<compile_context>
chip_gen: v7x
topology: tpu7x:2x2x1
jax: 0.10.0
libtpu: 0.0.40
codegen_flags: <defaults>
</compile_context>

<pallas_src>
import functools

import jax
import jax.numpy as jnp
from jax.experimental import pallas as pl
from jax.experimental.pallas import tpu as pltpu


# ----------------------------- Pallas kernel ------------------------------

def _fused_window_mha_kernel(x_ref, qkv_w_ref, qkv_b_ref, head_w_ref,
                             head_b_ref, bias_ref, o_ref, *,
                             windows, num_heads, qkv_dim, scale):
    """One block of `windows` windows per grid step.

    x_ref:      (G*N, C)         window-partitioned input rows
    qkv_w_ref:  (C, 3*inner)     qkv_proj weight (already transposed)
    qkv_b_ref:  (1, 3*inner)
    head_w_ref: (inner, C)       head_proj weight (already transposed)
    head_b_ref: (1, C)
    bias_ref:   (N, N)           additive score_mod table (-inf == masked)
    o_ref:      (G*N, C)
    """
    N = bias_ref.shape[0]
    inner = num_heads * qkv_dim

    x = x_ref[...].astype(jnp.float32)                         # (G*N, C)
    qkv = jnp.dot(x, qkv_w_ref[...],
                  preferred_element_type=jnp.float32) + qkv_b_ref[...]
    qkv = qkv.reshape(windows, N, 3 * inner)                   # (G, N, 3*inner)

    bias = bias_ref[...][None]                                 # (1, N, N)

    head_outs = []
    for h in range(num_heads):                                 # H is small/static
        q = qkv[:, :, h * qkv_dim:(h + 1) * qkv_dim] * scale   # (G, N, D)
        k = qkv[:, :, inner + h * qkv_dim:inner + (h + 1) * qkv_dim]
        v = qkv[:, :, 2 * inner + h * qkv_dim:2 * inner + (h + 1) * qkv_dim]

        s = jnp.einsum('gqd,gkd->gqk', q, k,
                       preferred_element_type=jnp.float32) + bias
        m = jnp.max(s, axis=-1, keepdims=True)   # dist=0 diagonal -> finite max
        p = jnp.exp(s - m)
        denom = jnp.sum(p, axis=-1, keepdims=True)
        o_h = jnp.einsum('gqk,gkd->gqd', p, v,
                         preferred_element_type=jnp.float32)
        head_outs.append(o_h * pl.reciprocal(denom, approx=True))

    o = jnp.concatenate(head_outs, axis=-1)                    # (G, N, inner)
    o = o.reshape(windows * N, inner)
    out = jnp.dot(o, head_w_ref[...],
                  preferred_element_type=jnp.float32) + head_b_ref[...]
    o_ref[...] = out.astype(o_ref.dtype)


def fused_window_mha(xn, qkv_w_t, qkv_b, head_w_t, head_b, bias, *,
                     num_heads, qkv_dim, block_windows=32):
    """xn: (Beff, N, C) window-partitioned tokens -> (Beff, N, C)."""
    Beff, N, C = xn.shape
    inner = num_heads * qkv_dim
    scale = 1.0 / (qkv_dim ** 0.5)

    # Block of G windows per grid step; keep >= 2 grid steps when possible so
    # v7x's two TensorCores both get work.  G=32 keeps the per-block VMEM
    # footprint a few MiB -> fits the 16 MiB v5e scoped default (and v7x's
    # smaller 64 MiB physical VMEM) without raising vmem_limit_bytes.
    G = max(1, min(block_windows, pl.cdiv(Beff, 2)))
    Beff_pad = pl.cdiv(Beff, G) * G
    if Beff_pad != Beff:
        xn = jnp.pad(xn, ((0, Beff_pad - Beff), (0, 0), (0, 0)))

    x_flat = xn.reshape(Beff_pad * N, C)
    kern = functools.partial(_fused_window_mha_kernel, windows=G,
                             num_heads=num_heads, qkv_dim=qkv_dim, scale=scale)

    out_flat = pl.pallas_call(
        kern,
        out_shape=jax.ShapeDtypeStruct((Beff_pad * N, C), xn.dtype),
        grid_spec=pltpu.PrefetchScalarGridSpec(
            num_scalar_prefetch=0,
            grid=(Beff_pad // G,),
            in_specs=[
                pl.BlockSpec((G * N, C), lambda i: (i, 0)),          # x block
                pl.BlockSpec((C, 3 * inner), lambda i: (0, 0)),      # resident
                pl.BlockSpec((1, 3 * inner), lambda i: (0, 0)),      # resident
                pl.BlockSpec((inner, C), lambda i: (0, 0)),          # resident
                pl.BlockSpec((1, C), lambda i: (0, 0)),              # resident
                pl.BlockSpec((N, N), lambda i: (0, 0)),              # resident
            ],
            out_specs=pl.BlockSpec((G * N, C), lambda i: (i, 0)),
        ),
        compiler_params=pltpu.CompilerParams(
            dimension_semantics=("parallel",)),
    )(x_flat, qkv_w_t, qkv_b.reshape(1, -1), head_w_t, head_b.reshape(1, -1),
      bias)

    out = out_flat.reshape(Beff_pad, N, C)
    return out[:Beff]


# ------------------------------- glue (JAX) -------------------------------

def bchw_to_bnc(x, window_size):
    B, C, H, W = x.shape
    wh, ww = window_size
    x = x.reshape(B, C, H // wh, wh, W // ww, ww)
    x = jnp.transpose(x, (0, 2, 4, 3, 5, 1))        # B, nH, nW, wh, ww, C
    return x.reshape(B * (H // wh) * (W // ww), wh * ww, C)


def bnc_to_bchw(x, out_shape, window_size):
    B, C, H, W = out_shape
    wh, ww = window_size
    x = x.reshape(B, H // wh, W // ww, wh, ww, C)
    x = jnp.transpose(x, (0, 5, 1, 3, 2, 4))        # B, C, nH, wh, nW, ww
    return x.reshape(B, C, H, W)


def make_score_bias(N, window_h, max_distance, relative_bias):
    """Additive (N, N) table equivalent to the PyTorch score_mod closures."""
    idx = jnp.arange(N, dtype=jnp.int32)
    pos_h = idx // window_h
    pos_w = idx % window_h
    dh = (pos_h[:, None] - pos_h[None, :]).astype(jnp.float32)
    dw = (pos_w[:, None] - pos_w[None, :]).astype(jnp.float32)
    dist = jnp.sqrt(dh * dh + dw * dw)
    bias = jnp.zeros((N, N), jnp.float32)
    if relative_bias:
        bias = bias - jnp.log(dist + 1.0)
    if max_distance is not None:
        bias = jnp.where(dist <= jnp.float32(max_distance), bias, -jnp.inf)
    return bias


def init_params(key, embed_dim, num_heads, qkv_dim):
    # Deterministic synthetic init (shapes follow nn.Linear: weight = (out, in)).
    inner = qkv_dim * num_heads
    k1, k2, k3, k4 = jax.random.split(key, 4)
    std = 0.05
    return {
        "qkv_w": jax.random.normal(k1, (inner * 3, embed_dim), jnp.float32) * std,
        "qkv_b": jax.random.normal(k2, (inner * 3,), jnp.float32) * std,
        "head_w": jax.random.normal(k3, (embed_dim, inner), jnp.float32) * std,
        "head_b": jax.random.normal(k4, (embed_dim,), jnp.float32) * std,
    }


def window_neighborhood_mha2d(x, params, *, num_heads, qkv_dim, window_size,
                              max_distance=None, relative_bias=False,
                              block_windows=32):
    assert max_distance is not None or relative_bias
    B, C, H, W = x.shape
    wh, ww = window_size

    xn = bchw_to_bnc(x, window_size)                 # (B_eff, N, C)
    _, N, _ = xn.shape
    bias = make_score_bias(N, wh, max_distance, relative_bias)

    out = fused_window_mha(
        xn, params["qkv_w"].T, params["qkv_b"],
        params["head_w"].T, params["head_b"], bias,
        num_heads=num_heads, qkv_dim=qkv_dim, block_windows=block_windows)

    return bnc_to_bchw(out, (B, C, H, W), window_size)


# --------------------------- pure-JAX reference ---------------------------

def reference_forward(x, params, *, num_heads, qkv_dim, window_size,
                      max_distance=None, relative_bias=False):
    B, C, H, W = x.shape
    inner = num_heads * qkv_dim
    xn = bchw_to_bnc(x, window_size)
    Beff, N, _ = xn.shape
    qkv = xn @ params["qkv_w"].T + params["qkv_b"]
    q, k, v = jnp.split(qkv, 3, axis=-1)

    def heads(t):
        return jnp.transpose(t.reshape(Beff, N, num_heads, qkv_dim), (0, 2, 1, 3))

    q, k, v = heads(q), heads(k), heads(v)
    scale = 1.0 / (qkv_dim ** 0.5)
    s = jnp.einsum('bhqd,bhkd->bhqk', q, k) * scale
    s = s + make_score_bias(N, window_size[0], max_distance, relative_bias)
    p = jax.nn.softmax(s, axis=-1)
    o = jnp.einsum('bhqk,bhkd->bhqd', p, v)
    o = jnp.transpose(o, (0, 2, 1, 3)).reshape(Beff, N, inner)
    out = o @ params["head_w"].T + params["head_b"]
    return bnc_to_bchw(out, (B, C, H, W), window_size)


# ---------------------------------- main ----------------------------------

if __name__ == "__main__":
    key = jax.random.PRNGKey(0)
    kx, kp = jax.random.split(key)

    B, C, H, W = 2, 32, 16, 16            # embed_dim = 32 (NCHW input)
    num_heads = 4
    qkv_dim = C // num_heads              # default qkv_dim in the module
    window_size = (8, 8)
    max_distance = 3.0
    relative_bias = True

    x = jax.random.normal(kx, (B, C, H, W), jnp.float32)
    params = init_params(kp, C, num_heads, qkv_dim)

    out = window_neighborhood_mha2d(
        x, params, num_heads=num_heads, qkv_dim=qkv_dim,
        window_size=window_size, max_distance=max_distance,
        relative_bias=relative_bias)
    out = jax.block_until_ready(out)

    ref = reference_forward(
        x, params, num_heads=num_heads, qkv_dim=qkv_dim,
        window_size=window_size, max_distance=max_distance,
        relative_bias=relative_bias)

    assert out.shape == x.shape, (out.shape, x.shape)
    max_err = float(jnp.max(jnp.abs(out - ref)))
    # approx reciprocal in the softmax denominator -> slightly looser tolerance
    assert jnp.allclose(out, ref, atol=2e-3, rtol=2e-3), f"max_err={max_err}"

    print("KERNEL_OK")
</pallas_src>

<mosaic_0001>
module attributes {stable_mosaic.version = 11 : i64} {
  func.func @_fused_window_mha_kernel(%arg0: i32, %arg1: memref<256x32xf32, #tpu.memory_space<vmem>>, %arg2: memref<32x96xf32, #tpu.memory_space<vmem>>, %arg3: memref<1x96xf32, #tpu.memory_space<vmem>>, %arg4: memref<32x32xf32, #tpu.memory_space<vmem>>, %arg5: memref<1x32xf32, #tpu.memory_space<vmem>>, %arg6: memref<64x64xf32, #tpu.memory_space<vmem>>, %arg7: memref<256x32xf32, #tpu.memory_space<vmem>>) attributes {dimension_semantics = [#tpu.dimension_semantics<parallel>], iteration_bounds = array<i64: 2>, scalar_prefetch = 0 : i64, scratch_operands = 0 : i64, tpu.core_type = #tpu.core_type<tc>, window_params = [{transform_indices = @transform_0, window_bounds = array<i64: 256, 32>}, {pipeline_mode = #tpu.pipeline_mode<synchronous>, transform_indices = @transform_1, window_bounds = array<i64: 32, 96>}, {pipeline_mode = #tpu.pipeline_mode<synchronous>, transform_indices = @transform_2, window_bounds = array<i64: 1, 96>}, {pipeline_mode = #tpu.pipeline_mode<synchronous>, transform_indices = @transform_3, window_bounds = array<i64: 32, 32>}, {pipeline_mode = #tpu.pipeline_mode<synchronous>, transform_indices = @transform_4, window_bounds = array<i64: 1, 32>}, {pipeline_mode = #tpu.pipeline_mode<synchronous>, transform_indices = @transform_5, window_bounds = array<i64: 64, 64>}, {transform_indices = @transform_6, window_bounds = array<i64: 256, 32>}]} {
    %c0 = arith.constant 0 : index
    %c0_0 = arith.constant 0 : index
    %0 = vector.load %arg1[%c0, %c0_0] : memref<256x32xf32, #tpu.memory_space<vmem>>, vector<256x32xf32>
    %c0_1 = arith.constant 0 : index
    %c0_2 = arith.constant 0 : index
    %1 = vector.load %arg2[%c0_1, %c0_2] : memref<32x96xf32, #tpu.memory_space<vmem>>, vector<32x96xf32>
    %cst = arith.constant dense<0.000000e+00> : vector<256x96xf32>
    %2 = tpu.matmul %0, %1, %cst {dimension_numbers = #tpu.dot_dimension_numbers<[1], [0], [0], [1], [0, 0, 1, 1], [], []>} : vector<256x32xf32>, vector<32x96xf32>, vector<256x96xf32> -> vector<256x96xf32>
    %c0_3 = arith.constant 0 : index
    %c0_4 = arith.constant 0 : index
    %3 = vector.load %arg3[%c0_3, %c0_4] : memref<1x96xf32, #tpu.memory_space<vmem>>, vector<1x96xf32>
    %4 = vector.broadcast %3 : vector<1x96xf32> to vector<256x96xf32>
    %5 = arith.addf %2, %4 : vector<256x96xf32>
    %6 = vector.shape_cast %5 : vector<256x96xf32> to vector<4x64x96xf32>
    %c0_5 = arith.constant 0 : index
    %c0_6 = arith.constant 0 : index
    %7 = vector.load %arg6[%c0_5, %c0_6] : memref<64x64xf32, #tpu.memory_space<vmem>>, vector<64x64xf32>
    %8 = vector.shape_cast %7 : vector<64x64xf32> to vector<1x64x64xf32>
    %9 = vector.extract_strided_slice %6 {offsets = [0, 0, 0], sizes = [4, 64, 8], strides = [1, 1, 1]} : vector<4x64x96xf32> to vector<4x64x8xf32>
    %cst_7 = arith.constant 0.353553385 : f32
    %10 = vector.broadcast %cst_7 : f32 to vector<4x64x8xf32>
    %11 = arith.mulf %9, %10 : vector<4x64x8xf32>
    %12 = vector.extract_strided_slice %6 {offsets = [0, 0, 32], sizes = [4, 64, 8], strides = [1, 1, 1]} : vector<4x64x96xf32> to vector<4x64x8xf32>
    %13 = vector.extract_strided_slice %6 {offsets = [0, 0, 64], sizes = [4, 64, 8], strides = [1, 1, 1]} : vector<4x64x96xf32> to vector<4x64x8xf32>
    "tpu.trace_start"() <{level = 10 : i32, message = "gqd,gkd->gqk"}> : () -> ()
    %cst_8 = arith.constant dense<0.000000e+00> : vector<4x64x64xf32>
    %14 = tpu.matmul %11, %12, %cst_8 {dimension_numbers = #tpu.dot_dimension_numbers<[2], [2], [1], [1], [0, 0, 0, 1, 1, 1], [0], [0]>} : vector<4x64x8xf32>, vector<4x64x8xf32>, vector<4x64x64xf32> -> vector<4x64x64xf32>
    "tpu.trace_stop"() : () -> ()
    %15 = vector.broadcast %8 : vector<1x64x64xf32> to vector<4x64x64xf32>
    %16 = arith.addf %14, %15 : vector<4x64x64xf32>
    %cst_9 = arith.constant dense<0xFF800000> : vector<4x64xf32>
    %17 = vector.multi_reduction <maximumf>, %16, %cst_9 [2] : vector<4x64x64xf32> to vector<4x64xf32>
    %18 = vector.shape_cast %17 : vector<4x64xf32> to vector<4x64x1xf32>
    %19 = vector.broadcast %18 : vector<4x64x1xf32> to vector<4x64x64xf32>
    %20 = arith.subf %16, %19 : vector<4x64x64xf32>
    %21 = math.exp %20 : vector<4x64x64xf32>
    %cst_10 = arith.constant dense<0.000000e+00> : vector<4x64xf32>
    %22 = vector.multi_reduction <add>, %21, %cst_10 [2] : vector<4x64x64xf32> to vector<4x64xf32>
    %23 = vector.shape_cast %22 : vector<4x64xf32> to vector<4x64x1xf32>
    "tpu.trace_start"() <{level = 10 : i32, message = "gqk,gkd->gqd"}> : () -> ()
    %cst_11 = arith.constant dense<0.000000e+00> : vector<4x64x8xf32>
    %24 = tpu.matmul %21, %13, %cst_11 {dimension_numbers = #tpu.dot_dimension_numbers<[2], [1], [1], [2], [0, 0, 0, 1, 1, 2], [0], [0]>} : vector<4x64x64xf32>, vector<4x64x8xf32>, vector<4x64x8xf32> -> vector<4x64x8xf32>
    "tpu.trace_stop"() : () -> ()
    %25 = tpu.reciprocal %23 {approx = true} : vector<4x64x1xf32> -> vector<4x64x1xf32>
    %26 = vector.broadcast %25 : vector<4x64x1xf32> to vector<4x64x8xf32>
    %27 = arith.mulf %24, %26 : vector<4x64x8xf32>
    %28 = vector.extract_strided_slice %6 {offsets = [0, 0, 8], sizes = [4, 64, 8], strides = [1, 1, 1]} : vector<4x64x96xf32> to vector<4x64x8xf32>
    %cst_12 = arith.constant 0.353553385 : f32
    %29 = vector.broadcast %cst_12 : f32 to vector<4x64x8xf32>
    %30 = arith.mulf %28, %29 : vector<4x64x8xf32>
    %31 = vector.extract_strided_slice %6 {offsets = [0, 0, 40], sizes = [4, 64, 8], strides = [1, 1, 1]} : vector<4x64x96xf32> to vector<4x64x8xf32>
    %32 = vector.extract_strided_slice %6 {offsets = [0, 0, 72], sizes = [4, 64, 8], strides = [1, 1, 1]} : vector<4x64x96xf32> to vector<4x64x8xf32>
    "tpu.trace_start"() <{level = 10 : i32, message = "gqd,gkd->gqk"}> : () -> ()
    %cst_13 = arith.constant dense<0.000000e+00> : vector<4x64x64xf32>
    %33 = tpu.matmul %30, %31, %cst_13 {dimension_numbers = #tpu.dot_dimension_numbers<[2], [2], [1], [1], [0, 0, 0, 1, 1, 1], [0], [0]>} : vector<4x64x8xf32>, vector<4x64x8xf32>, vector<4x64x64xf32> -> vector<4x64x64xf32>
    "tpu.trace_stop"() : () -> ()
    %34 = vector.broadcast %8 : vector<1x64x64xf32> to vector<4x64x64xf32>
    %35 = arith.addf %33, %34 : vector<4x64x64xf32>
    %cst_14 = arith.constant dense<0xFF800000> : vector<4x64xf32>
    %36 = vector.multi_reduction <maximumf>, %35, %cst_14 [2] : vector<4x64x64xf32> to vector<4x64xf32>
    %37 = vector.shape_cast %36 : vector<4x64xf32> to vector<4x64x1xf32>
    %38 = vector.broadcast %37 : vector<4x64x1xf32> to vector<4x64x64xf32>
    %39 = arith.subf %35, %38 : vector<4x64x64xf32>
    %40 = math.exp %39 : vector<4x64x64xf32>
    %cst_15 = arith.constant dense<0.000000e+00> : vector<4x64xf32>
    %41 = vector.multi_reduction <add>, %40, %cst_15 [2] : vector<4x64x64xf32> to vector<4x64xf32>
    %42 = vector.shape_cast %41 : vector<4x64xf32> to vector<4x64x1xf32>
    "tpu.trace_start"() <{level = 10 : i32, message = "gqk,gkd->gqd"}> : () -> ()
    %cst_16 = arith.constant dense<0.000000e+00> : vector<4x64x8xf32>
    %43 = tpu.matmul %40, %32, %cst_16 {dimension_numbers = #tpu.dot_dimension_numbers<[2], [1], [1], [2], [0, 0, 0, 1, 1, 2], [0], [0]>} : vector<4x64x64xf32>, vector<4x64x8xf32>, vector<4x64x8xf32> -> vector<4x64x8xf32>
    "tpu.trace_stop"() : () -> ()
    %44 = tpu.reciprocal %42 {approx = true} : vector<4x64x1xf32> -> vector<4x64x1xf32>
    %45 = vector.broadcast %44 : vector<4x64x1xf32> to vector<4x64x8xf32>
    %46 = arith.mulf %43, %45 : vector<4x64x8xf32>
    %47 = vector.extract_strided_slice %6 {offsets = [0, 0, 16], sizes = [4, 64, 8], strides = [1, 1, 1]} : vector<4x64x96xf32> to vector<4x64x8xf32>
    %cst_17 = arith.constant 0.353553385 : f32
    %48 = vector.broadcast %cst_17 : f32 to vector<4x64x8xf32>
    %49 = arith.mulf %47, %48 : vector<4x64x8xf32>
    %50 = vector.extract_strided_slice %6 {offsets = [0, 0, 48], sizes = [4, 64, 8], strides = [1, 1, 1]} : vector<4x64x96xf32> to vector<4x64x8xf32>
    %51 = vector.extract_strided_slice %6 {offsets = [0, 0, 80], sizes = [4, 64, 8], strides = [1, 1, 1]} : vector<4x64x96xf32> to vector<4x64x8xf32>
    "tpu.trace_start"() <{level = 10 : i32, message = "gqd,gkd->gqk"}> : () -> ()
    %cst_18 = arith.constant dense<0.000000e+00> : vector<4x64x64xf32>
    %52 = tpu.matmul %49, %50, %cst_18 {dimension_numbers = #tpu.dot_dimension_numbers<[2], [2], [1], [1], [0, 0, 0, 1, 1, 1], [0], [0]>} : vector<4x64x8xf32>, vector<4x64x8xf32>, vector<4x64x64xf32> -> vector<4x64x64xf32>
    "tpu.trace_stop"() : () -> ()
    %53 = vector.broadcast %8 : vector<1x64x64xf32> to vector<4x64x64xf32>
    %54 = arith.addf %52, %53 : vector<4x64x64xf32>
    %cst_19 = arith.constant dense<0xFF800000> : vector<4x64xf32>
    %55 = vector.multi_reduction <maximumf>, %54, %cst_19 [2] : vector<4x64x64xf32> to vector<4x64xf32>
    %56 = vector.shape_cast %55 : vector<4x64xf32> to vector<4x64x1xf32>
    %57 = vector.broadcast %56 : vector<4x64x1xf32> to vector<4x64x64xf32>
    %58 = arith.subf %54, %57 : vector<4x64x64xf32>
    %59 = math.exp %58 : vector<4x64x64xf32>
    %cst_20 = arith.constant dense<0.000000e+00> : vector<4x64xf32>
    %60 = vector.multi_reduction <add>, %59, %cst_20 [2] : vector<4x64x64xf32> to vector<4x64xf32>
    %61 = vector.shape_cast %60 : vector<4x64xf32> to vector<4x64x1xf32>
    "tpu.trace_start"() <{level = 10 : i32, message = "gqk,gkd->gqd"}> : () -> ()
    %cst_21 = arith.constant dense<0.000000e+00> : vector<4x64x8xf32>
    %62 = tpu.matmul %59, %51, %cst_21 {dimension_numbers = #tpu.dot_dimension_numbers<[2], [1], [1], [2], [0, 0, 0, 1, 1, 2], [0], [0]>} : vector<4x64x64xf32>, vector<4x64x8xf32>, vector<4x64x8xf32> -> vector<4x64x8xf32>
    "tpu.trace_stop"() : () -> ()
    %63 = tpu.reciprocal %61 {approx = true} : vector<4x64x1xf32> -> vector<4x64x1xf32>
    %64 = vector.broadcast %63 : vector<4x64x1xf32> to vector<4x64x8xf32>
    %65 = arith.mulf %62, %64 : vector<4x64x8xf32>
    %66 = vector.extract_strided_slice %6 {offsets = [0, 0, 24], sizes = [4, 64, 8], strides = [1, 1, 1]} : vector<4x64x96xf32> to vector<4x64x8xf32>
    %cst_22 = arith.constant 0.353553385 : f32
    %67 = vector.broadcast %cst_22 : f32 to vector<4x64x8xf32>
    %68 = arith.mulf %66, %67 : vector<4x64x8xf32>
    %69 = vector.extract_strided_slice %6 {offsets = [0, 0, 56], sizes = [4, 64, 8], strides = [1, 1, 1]} : vector<4x64x96xf32> to vector<4x64x8xf32>
    %70 = vector.extract_strided_slice %6 {offsets = [0, 0, 88], sizes = [4, 64, 8], strides = [1, 1, 1]} : vector<4x64x96xf32> to vector<4x64x8xf32>
    "tpu.trace_start"() <{level = 10 : i32, message = "gqd,gkd->gqk"}> : () -> ()
    %cst_23 = arith.constant dense<0.000000e+00> : vector<4x64x64xf32>
    %71 = tpu.matmul %68, %69, %cst_23 {dimension_numbers = #tpu.dot_dimension_numbers<[2], [2], [1], [1], [0, 0, 0, 1, 1, 1], [0], [0]>} : vector<4x64x8xf32>, vector<4x64x8xf32>, vector<4x64x64xf32> -> vector<4x64x64xf32>
    "tpu.trace_stop"() : () -> ()
    %72 = vector.broadcast %8 : vector<1x64x64xf32> to vector<4x64x64xf32>
    %73 = arith.addf %71, %72 : vector<4x64x64xf32>
    %cst_24 = arith.constant dense<0xFF800000> : vector<4x64xf32>
    %74 = vector.multi_reduction <maximumf>, %73, %cst_24 [2] : vector<4x64x64xf32> to vector<4x64xf32>
    %75 = vector.shape_cast %74 : vector<4x64xf32> to vector<4x64x1xf32>
    %76 = vector.broadcast %75 : vector<4x64x1xf32> to vector<4x64x64xf32>
    %77 = arith.subf %73, %76 : vector<4x64x64xf32>
    %78 = math.exp %77 : vector<4x64x64xf32>
    %cst_25 = arith.constant dense<0.000000e+00> : vector<4x64xf32>
    %79 = vector.multi_reduction <add>, %78, %cst_25 [2] : vector<4x64x64xf32> to vector<4x64xf32>
    %80 = vector.shape_cast %79 : vector<4x64xf32> to vector<4x64x1xf32>
    "tpu.trace_start"() <{level = 10 : i32, message = "gqk,gkd->gqd"}> : () -> ()
    %cst_26 = arith.constant dense<0.000000e+00> : vector<4x64x8xf32>
    %81 = tpu.matmul %78, %70, %cst_26 {dimension_numbers = #tpu.dot_dimension_numbers<[2], [1], [1], [2], [0, 0, 0, 1, 1, 2], [0], [0]>} : vector<4x64x64xf32>, vector<4x64x8xf32>, vector<4x64x8xf32> -> vector<4x64x8xf32>
    "tpu.trace_stop"() : () -> ()
    %82 = tpu.reciprocal %80 {approx = true} : vector<4x64x1xf32> -> vector<4x64x1xf32>
    %83 = vector.broadcast %82 : vector<4x64x1xf32> to vector<4x64x8xf32>
    %84 = arith.mulf %81, %83 : vector<4x64x8xf32>
    %85 = tpu.concatenate %27, %46, %65, %84 in 2 : vector<4x64x8xf32>, vector<4x64x8xf32>, vector<4x64x8xf32>, vector<4x64x8xf32> -> vector<4x64x32xf32>
    %86 = vector.shape_cast %85 : vector<4x64x32xf32> to vector<256x32xf32>
    %c0_27 = arith.constant 0 : index
    %c0_28 = arith.constant 0 : index
    %87 = vector.load %arg4[%c0_27, %c0_28] : memref<32x32xf32, #tpu.memory_space<vmem>>, vector<32x32xf32>
    %cst_29 = arith.constant dense<0.000000e+00> : vector<256x32xf32>
    %88 = tpu.matmul %86, %87, %cst_29 {dimension_numbers = #tpu.dot_dimension_numbers<[1], [0], [0], [1], [0, 0, 1, 1], [], []>} : vector<256x32xf32>, vector<32x32xf32>, vector<256x32xf32> -> vector<256x32xf32>
    %c0_30 = arith.constant 0 : index
    %c0_31 = arith.constant 0 : index
    %89 = vector.load %arg5[%c0_30, %c0_31] : memref<1x32xf32, #tpu.memory_space<vmem>>, vector<1x32xf32>
    %90 = vector.broadcast %89 : vector<1x32xf32> to vector<256x32xf32>
    %91 = arith.addf %88, %90 : vector<256x32xf32>
    %c0_32 = arith.constant 0 : index
    %c0_33 = arith.constant 0 : index
    %92 = vector.load %arg7[%c0_32, %c0_33] : memref<256x32xf32, #tpu.memory_space<vmem>>, vector<256x32xf32>
    tpu.vector_store %arg7[%c0_32, %c0_33], %91 {strides = array<i32>} : memref<256x32xf32, #tpu.memory_space<vmem>>, vector<256x32xf32>,
    return
  }
  func.func @transform_0(%arg0: i32) -> (i32, i32) {
    %c0_i32 = arith.constant 0 : i32
    %c0_i32_0 = arith.constant 0 : i32
    return %arg0, %c0_i32 : i32, i32
  }
  func.func @transform_1(%arg0: i32) -> (i32, i32) {
    %c0_i32 = arith.constant 0 : i32
    %c0_i32_0 = arith.constant 0 : i32
    %c0_i32_1 = arith.constant 0 : i32
    return %c0_i32, %c0_i32_0 : i32, i32
  }
  func.func @transform_2(%arg0: i32) -> (i32, i32) {
    %c0_i32 = arith.constant 0 : i32
    %c0_i32_0 = arith.constant 0 : i32
    %c0_i32_1 = arith.constant 0 : i32
    return %c0_i32, %c0_i32_0 : i32, i32
  }
  func.func @transform_3(%arg0: i32) -> (i32, i32) {
    %c0_i32 = arith.constant 0 : i32
    %c0_i32_0 = arith.constant 0 : i32
    %c0_i32_1 = arith.constant 0 : i32
    return %c0_i32, %c0_i32_0 : i32, i32
  }
  func.func @transform_4(%arg0: i32) -> (i32, i32) {
    %c0_i32 = arith.constant 0 : i32
    %c0_i32_0 = arith.constant 0 : i32
    %c0_i32_1 = arith.constant 0 : i32
    return %c0_i32, %c0_i32_0 : i32, i32
  }
  func.func @transform_5(%arg0: i32) -> (i32, i32) {
    %c0_i32 = arith.constant 0 : i32
    %c0_i32_0 = arith.constant 0 : i32
    %c0_i32_1 = arith.constant 0 : i32
    return %c0_i32, %c0_i32_0 : i32, i32
  }
  func.func @transform_6(%arg0: i32) -> (i32, i32) {
    %c0_i32 = arith.constant 0 : i32
    %c0_i32_0 = arith.constant 0 : i32
    return %arg0, %c0_i32 : i32, i32
  }
}

</mosaic_0001>

<llo_original>
// kernel: tpu_custom_call.1
$region0: #{tpu_custom_call.1}
  #allocation0 [shape = 'u32[]', space=smem, size = 0x4, offset = 0x4, fixed_abs, tag = 'smem constant byte address 0x4 - core index']
  #allocation1 [shape = 'u32[144,128]{1,0:T(1,128)}', space=vmem, size = 0x12000, scoped, tag = 'internal scratch']
  %s0 = inlined_call_operand.vmem [shape: f32[512,32], index: 0, kind: input, shape index: {}]
  %s1 = inlined_call_operand.vmem [shape: f32[32,96], index: 1, kind: input, shape index: {}]
  %s2 = inlined_call_operand.vmem [shape: f32[1,96], index: 2, kind: input, shape index: {}]
  %s3 = inlined_call_operand.vmem [shape: f32[32,32], index: 3, kind: input, shape index: {}]
  %s4 = inlined_call_operand.vmem [shape: f32[1,32], index: 4, kind: input, shape index: {}]
  %s5 = inlined_call_operand.vmem [shape: f32[64,64], index: 5, kind: input, shape index: {}]
  %s6 = inlined_call_operand.vmem [shape: f32[512,32], index: 6, kind: output, shape index: {}]
  %s7 = sld [smem:[#allocation0]]
  $region57: #{tpu_custom_call.1} parent=0
    _
  %s9 = ssub.s32 1, %s7
  %s10 = scalar_select 0, %s9, %s7
  loop: start=0, step=1, limit=4
  $region2: #{tpu_custom_call.1} parent=0 // loop_pre_header
    _
  $region3: #{tpu_custom_call.1} parent=0 // loop_header
    %s12 = sphi 0, %s16
    %p13 = scmp.ge.s32.totalorder %s12, 4
    %s22 = sphi 0, %s24
    %s25 = sphi 0, %s22
    %s26 = sphi 0, %s25
    %s42 = sphi 0, %s26
    %s46 = sphi 0, %s46
    %s48 = sphi 0, %s46
    %s49 = sphi 0, %s48
    %s63 = sphi 0, %s49
    %s67 = sphi 0, %s67
    %s69 = sphi 0, %s67
    %s70 = sphi 0, %s69
    %s84 = sphi 0, %s70
    %s88 = sphi 0, %s88
    %s90 = sphi 0, %s88
    %s91 = sphi 0, %s90
    %s105 = sphi 0, %s91
    %s109 = sphi 0, %s109
    %s111 = sphi 0, %s109
    %s112 = sphi 0, %s111
    %s126 = sphi 0, %s112
    %s130 = sphi 0, %s130
    %s132 = sphi 0, %s130
    %s133 = sphi 0, %s132
    %s147 = sphi 0, %s133
    %s153 = sphi 0, %s155
    %s156 = sphi 0, %s153
    %s157 = sphi 0, %s156
    %s173 = sphi 0, %s157
  $region4: #{tpu_custom_call.1} parent=0 // loop_header_branch
    %15 = sbr.rel (%p13) target = $region8
  $region5: #{tpu_custom_call.1} parent=0 // loop_body
    %s17 = ssub.s32 %s12, 1
    %s18 = ssub.s32 %s12, 2
    %s19 = sadd.s32 %s12, 1
    %s20 = ssub.s32 %s12, %s19
    %p21 = scmp.eq.s32.totalorder %s20, 0
    %s23 = sadd.s32 %s22, 1
    %s24 = scalar_select %p21, %s22, %s23
    %p27 = pneg %p21
    %p28 = scmp.eq.s32.totalorder %s12, 1
    %p29 = por %p27, %p28
    %p30 = scmp.ne.s32.totalorder %s22, %s25
    %p31 = scmp.eq.s32.totalorder %s12, 0
    %p32 = por %p30, %p31
    %p33 = scmp.ne.s32.totalorder %s22, %s25
    %p34 = scmp.eq.s32.totalorder %s17, 1
    %p35 = por %p33, %p34
    %p36 = scmp.ne.s32.totalorder %s25, %s26
    %p37 = scmp.eq.s32.totalorder %s17, 0
    %p38 = por %p36, %p37
    %p39 = scmp.ne.s32.totalorder %s25, %s26
    %p40 = scmp.eq.s32.totalorder %s18, 1
    %p41 = por %p39, %p40
    %p43 = scmp.ne.s32.totalorder %s26, %s42
    %p44 = scmp.eq.s32.totalorder %s18, 0
    %p45 = por %p43, %p44
    %s47 = sadd.s32 %s46, 1
    %p50 = scmp.eq.s32.totalorder %s12, 1
    %p51 = scmp.ne.s32.totalorder %s46, %s48
    %p52 = scmp.eq.s32.totalorder %s12, 0
    %p53 = por %p51, %p52
    %p54 = scmp.ne.s32.totalorder %s46, %s48
    %p55 = scmp.eq.s32.totalorder %s17, 1
    %p56 = por %p54, %p55
    %p57 = scmp.ne.s32.totalorder %s48, %s49
    %p58 = scmp.eq.s32.totalorder %s17, 0
    %p59 = por %p57, %p58
    %p60 = scmp.ne.s32.totalorder %s48, %s49
    %p61 = scmp.eq.s32.totalorder %s18, 1
    %p62 = por %p60, %p61
    %p64 = scmp.ne.s32.totalorder %s49, %s63
    %p65 = scmp.eq.s32.totalorder %s18, 0
    %p66 = por %p64, %p65
    %s68 = sadd.s32 %s67, 1
    %p71 = scmp.eq.s32.totalorder %s12, 1
    %p72 = scmp.ne.s32.totalorder %s67, %s69
    %p73 = scmp.eq.s32.totalorder %s12, 0
    %p74 = por %p72, %p73
    %p75 = scmp.ne.s32.totalorder %s67, %s69
    %p76 = scmp.eq.s32.totalorder %s17, 1
    %p77 = por %p75, %p76
    %p78 = scmp.ne.s32.totalorder %s69, %s70
    %p79 = scmp.eq.s32.totalorder %s17, 0
    %p80 = por %p78, %p79
    %p81 = scmp.ne.s32.totalorder %s69, %s70
    %p82 = scmp.eq.s32.totalorder %s18, 1
    %p83 = por %p81, %p82
    %p85 = scmp.ne.s32.totalorder %s70, %s84
    %p86 = scmp.eq.s32.totalorder %s18, 0
    %p87 = por %p85, %p86
    %s89 = sadd.s32 %s88, 1
    %p92 = scmp.eq.s32.totalorder %s12, 1
    %p93 = scmp.ne.s32.totalorder %s88, %s90
    %p94 = scmp.eq.s32.totalorder %s12, 0
    %p95 = por %p93, %p94
    %p96 = scmp.ne.s32.totalorder %s88, %s90
    %p97 = scmp.eq.s32.totalorder %s17, 1
    %p98 = por %p96, %p97
    %p99 = scmp.ne.s32.totalorder %s90, %s91
    %p100 = scmp.eq.s32.totalorder %s17, 0
    %p101 = por %p99, %p100
    %p102 = scmp.ne.s32.totalorder %s90, %s91
    %p103 = scmp.eq.s32.totalorder %s18, 1
    %p104 = por %p102, %p103
    %p106 = scmp.ne.s32.totalorder %s91, %s105
    %p107 = scmp.eq.s32.totalorder %s18, 0
    %p108 = por %p106, %p107
    %s110 = sadd.s32 %s109, 1
    %p113 = scmp.eq.s32.totalorder %s12, 1
    %p114 = scmp.ne.s32.totalorder %s109, %s111
    %p115 = scmp.eq.s32.totalorder %s12, 0
    %p116 = por %p114, %p115
    %p117 = scmp.ne.s32.totalorder %s109, %s111
    %p118 = scmp.eq.s32.totalorder %s17, 1
    %p119 = por %p117, %p118
    %p120 = scmp.ne.s32.totalorder %s111, %s112
    %p121 = scmp.eq.s32.totalorder %s17, 0
    %p122 = por %p120, %p121
    %p123 = scmp.ne.s32.totalorder %s111, %s112
    %p124 = scmp.eq.s32.totalorder %s18, 1
    %p125 = por %p123, %p124
    %p127 = scmp.ne.s32.totalorder %s112, %s126
    %p128 = scmp.eq.s32.totalorder %s18, 0
    %p129 = por %p127, %p128
    %s131 = sadd.s32 %s130, 1
    %p134 = scmp.eq.s32.totalorder %s12, 1
    %p135 = scmp.ne.s32.totalorder %s130, %s132
    %p136 = scmp.eq.s32.totalorder %s12, 0
    %p137 = por %p135, %p136
    %p138 = scmp.ne.s32.totalorder %s130, %s132
    %p139 = scmp.eq.s32.totalorder %s17, 1
    %p140 = por %p138, %p139
    %p141 = scmp.ne.s32.totalorder %s132, %s133
    %p142 = scmp.eq.s32.totalorder %s17, 0
    %p143 = por %p141, %p142
    %p144 = scmp.ne.s32.totalorder %s132, %s133
    %p145 = scmp.eq.s32.totalorder %s18, 1
    %p146 = por %p144, %p145
    %p148 = scmp.ne.s32.totalorder %s133, %s147
    %p149 = scmp.eq.s32.totalorder %s18, 0
    %p150 = por %p148, %p149
    %s151 = ssub.s32 %s12, %s19
    %p152 = scmp.eq.s32.totalorder %s151, 0
    %s154 = sadd.s32 %s153, 1
    %s155 = scalar_select %p152, %s153, %s154
    %p158 = pneg %p152
    %p159 = scmp.eq.s32.totalorder %s12, 1
    %p160 = por %p158, %p159
    %p161 = scmp.ne.s32.totalorder %s153, %s156
    %p162 = scmp.eq.s32.totalorder %s12, 0
    %p163 = por %p161, %p162
    %p164 = scmp.ne.s32.totalorder %s153, %s156
    %p165 = scmp.eq.s32.totalorder %s17, 1
    %p166 = por %p164, %p165
    %p167 = scmp.ne.s32.totalorder %s156, %s157
    %p168 = scmp.eq.s32.totalorder %s17, 0
    %p169 = por %p167, %p168
    %p170 = scmp.ne.s32.totalorder %s156, %s157
    %p171 = scmp.eq.s32.totalorder %s18, 1
    %p172 = por %p170, %p171
    %p174 = scmp.ne.s32.totalorder %s157, %s173
    %p175 = scmp.eq.s32.totalorder %s18, 0
    %p176 = por %p174, %p175
    %p177 = scmp.le.s32.totalorder 1, %s12
    %p178 = scmp.lt.s32.totalorder %s12, 3
    %p179 = pnand %p177, %p178
    %p180 = pneg %p179
    // Predicated region
    $region9: #{tpu_custom_call.1} parent=5 // pred_check
      _
    $region10: #{tpu_custom_call.1} parent=5 // pred_check_branch
      %182 = sbr.rel (%p179) target = $region12
    $region11: #{tpu_custom_call.1} parent=5 // pred_region
      %s183 = ssub.s32 %s12, 1
      // Predicated region
      $region13: #{tpu_custom_call.1} parent=11 // pred_check
        %p184 = pneg %p59
      $region14: #{tpu_custom_call.1} parent=11 // pred_check_branch
        %186 = sbr.rel (%p184) target = $region16
      $region15: #{tpu_custom_call.1} parent=11 // pred_region
        _
      $region16: #{tpu_custom_call.1} parent=11 // pred_fallthru
        _
      // Predicated region
      $region17: #{tpu_custom_call.1} parent=11 // pred_check
        %p187 = pneg %p80
      $region18: #{tpu_custom_call.1} parent=11 // pred_check_branch
        %189 = sbr.rel (%p187) target = $region20
      $region19: #{tpu_custom_call.1} parent=11 // pred_region
        _
      $region20: #{tpu_custom_call.1} parent=11 // pred_fallthru
        _
      // Predicated region
      $region21: #{tpu_custom_call.1} parent=11 // pred_check
        %p190 = pneg %p101
      $region22: #{tpu_custom_call.1} parent=11 // pred_check_branch
        %192 = sbr.rel (%p190) target = $region24
      $region23: #{tpu_custom_call.1} parent=11 // pred_region
        _
      $region24: #{tpu_custom_call.1} parent=11 // pred_fallthru
        _
      // Predicated region
      $region25: #{tpu_custom_call.1} parent=11 // pred_check
        %p193 = pneg %p122
      $region26: #{tpu_custom_call.1} parent=11 // pred_check_branch
        %195 = sbr.rel (%p193) target = $region28
      $region27: #{tpu_custom_call.1} parent=11 // pred_region
        _
      $region28: #{tpu_custom_call.1} parent=11 // pred_fallthru
        _
      // Predicated region
      $region29: #{tpu_custom_call.1} parent=11 // pred_check
        %p196 = pneg %p143
      $region30: #{tpu_custom_call.1} parent=11 // pred_check_branch
        %198 = sbr.rel (%p196) target = $region32
      $region31: #{tpu_custom_call.1} parent=11 // pred_region
        _
      $region32: #{tpu_custom_call.1} parent=11 // pred_fallthru
        _
    $region12: #{tpu_custom_call.1} parent=5 // pred_fallthru
      _
    %p199 = scmp.lt.s32.totalorder %s12, 2
    // Predicated region
    $region33: #{tpu_custom_call.1} parent=5 // pred_check
      %p200 = pneg %p199
    $region34: #{tpu_custom_call.1} parent=5 // pred_check_branch
      %202 = sbr.rel (%p200) target = $region36
    $region35: #{tpu_custom_call.1} parent=5 // pred_region
      // Predicated region
      $region37: #{tpu_custom_call.1} parent=35 // pred_check
        %p203 = pneg %p32
      $region38: #{tpu_custom_call.1} parent=35 // pred_check_branch
        %205 = sbr.rel (%p203) target = $region40
      $region39: #{tpu_custom_call.1} parent=35 // pred_region
        %s206 = smul.u32 32, %s12
        %p207 = scmp.lt.s32.totalorder %s206, 63
        %s208 = scalar_select %p207, %s206, 63
        %s209 = smul.addr %s208, 8
        %s210 = scalar_lea.vmem %s0, %s209
        %s211 = smul.u32 32, %s12
      $region40: #{tpu_custom_call.1} parent=35 // pred_fallthru
        _
    $region36: #{tpu_custom_call.1} parent=5 // pred_fallthru
      _
    %p212 = scmp.le.s32.totalorder 1, %s12
    %p213 = scmp.lt.s32.totalorder %s12, 3
    %p214 = pnand %p212, %p213
    %p215 = pneg %p214
    // Predicated region
    $region41: #{tpu_custom_call.1} parent=5 // pred_check
      _
    $region42: #{tpu_custom_call.1} parent=5 // pred_check_branch
      %217 = sbr.rel (%p214) target = $region44
    $region43: #{tpu_custom_call.1} parent=5 // pred_region
      %s218 = ssub.s32 %s12, 1
      %s219 = smul.u32 32, %s17
      %p220 = scmp.lt.s32.totalorder %s219, 63
      %s221 = scalar_select %p220, %s219, 63
      %s222 = smul.addr %s221, 8
      %s223 = scalar_lea.vmem %s0, %s222
      %p224 = pneg %p38
      %p225 = pneg %p35
      %p226 = pneg %p59
      %p227 = pneg %p56
      %p228 = pneg %p80
      %p229 = pneg %p77
      %p230 = pneg %p101
      %p231 = pneg %p98
      %p232 = pneg %p122
      %p233 = pneg %p119
      %p234 = pneg %p143
      %p235 = pneg %p140
      %p236 = pneg %p169
      %p237 = pneg %p166
      %s238 = smul.u32 32, %s17
      %p239 = scmp.lt.s32.totalorder %s238, 63
      %s240 = scalar_select %p239, %s238, 63
      %s241 = smul.addr %s240, 8
      %s242 = scalar_lea.vmem %s6, %s241
      %s243 = smul.u32 32, %s17
      %p244 = scmp.lt.s32.totalorder %s243, 63
      %s245 = scalar_select %p244, %s243, 63
      %s246 = smul.addr %s245, 8
      %s247 = scalar_lea.vmem %s0, %s246
      %s248 = smul.u32 32, %s17
      %s249 = smul.u32 32, %s17
      %p250 = scmp.lt.s32.totalorder %s249, 63
      %s251 = scalar_select %p250, %s249, 63
      %s252 = smul.addr %s251, 8
      %s253 = scalar_lea.vmem %s6, %s252
      %s254 = smul.u32 32, %s17
      %v255 = vld [vmem:[%s247] sm:$0xff]
      %v256 = vld [vmem:[%s247 + $0x8] sm:$0xff]
      %v257 = vld [vmem:[%s247 + $0x10] sm:$0xff]
      %v258 = vld [vmem:[%s247 + $0x18] sm:$0xff]
      %v259 = vld [vmem:[%s247 + $0x20] sm:$0xff]
      %v260 = vld [vmem:[%s247 + $0x28] sm:$0xff]
      %v261 = vld [vmem:[%s247 + $0x30] sm:$0xff]
      %v262 = vld [vmem:[%s247 + $0x38] sm:$0xff]
      %v263 = vld [vmem:[%s247 + $0x40] sm:$0xff]
      %v264 = vld [vmem:[%s247 + $0x48] sm:$0xff]
      %v265 = vld [vmem:[%s247 + $0x50] sm:$0xff]
      %v266 = vld [vmem:[%s247 + $0x58] sm:$0xff]
      %v267 = vld [vmem:[%s247 + $0x60] sm:$0xff]
      %v268 = vld [vmem:[%s247 + $0x68] sm:$0xff]
      %v269 = vld [vmem:[%s247 + $0x70] sm:$0xff]
      %v270 = vld [vmem:[%s247 + $0x78] sm:$0xff]
      %v271 = vld [vmem:[%s247 + $0x80] sm:$0xff]
      %v272 = vld [vmem:[%s247 + $0x88] sm:$0xff]
      %v273 = vld [vmem:[%s247 + $0x90] sm:$0xff]
      %v274 = vld [vmem:[%s247 + $0x98] sm:$0xff]
      %v275 = vld [vmem:[%s247 + $0xa0] sm:$0xff]
      %v276 = vld [vmem:[%s247 + $0xa8] sm:$0xff]
      %v277 = vld [vmem:[%s247 + $0xb0] sm:$0xff]
      %v278 = vld [vmem:[%s247 + $0xb8] sm:$0xff]
      %v279 = vld [vmem:[%s247 + $0xc0] sm:$0xff]
      %v280 = vld [vmem:[%s247 + $0xc8] sm:$0xff]
      %v281 = vld [vmem:[%s247 + $0xd0] sm:$0xff]
      %v282 = vld [vmem:[%s247 + $0xd8] sm:$0xff]
      %v283 = vld [vmem:[%s247 + $0xe0] sm:$0xff]
      %v284 = vld [vmem:[%s247 + $0xe8] sm:$0xff]
      %v285 = vld [vmem:[%s247 + $0xf0] sm:$0xff]
      %v286 = vld [vmem:[%s247 + $0xf8] sm:$0xff]
      %v287 = vld [vmem:[%s1] sm:$0xff]
      %v288 = vld [vmem:[%s1 + $0x8] sm:$0xff]
      %v289 = vld [vmem:[%s1 + $0x10] sm:$0xff]
      %v290 = vld [vmem:[%s1 + $0x18] sm:$0xff]
      %v291 = vld [vmem:[%s2] sm:$0x1]
      %v293 = vlaneseq
      %v294 = vshrl.u32 %v293, 7
      %v295 = vsub.s32 0, %v294
      %v296 = vrot.slane %v291, %v295
      %vm298 = vcmask 261120
      %v300 = vsel %vm298, %v255, 0
      %v303 = vsel %vm298, %v256, 0
      %v306 = vsel %vm298, %v257, 0
      %v309 = vsel %vm298, %v258, 0
      %v312 = vsel %vm298, %v259, 0
      %v315 = vsel %vm298, %v260, 0
      %v318 = vsel %vm298, %v261, 0
      %v321 = vsel %vm298, %v262, 0
      %v324 = vsel %vm298, %v263, 0
      %v327 = vsel %vm298, %v264, 0
      %v330 = vsel %vm298, %v265, 0
      %v333 = vsel %vm298, %v266, 0
      %v336 = vsel %vm298, %v267, 0
      %v339 = vsel %vm298, %v268, 0
      %v342 = vsel %vm298, %v269, 0
      %v345 = vsel %vm298, %v270, 0
      %v348 = vsel %vm298, %v271, 0
      %v351 = vsel %vm298, %v272, 0
      %v354 = vsel %vm298, %v273, 0
      %v357 = vsel %vm298, %v274, 0
      %v360 = vsel %vm298, %v275, 0
      %v363 = vsel %vm298, %v276, 0
      %v366 = vsel %vm298, %v277, 0
      %v369 = vsel %vm298, %v278, 0
      %v372 = vsel %vm298, %v279, 0
      %v375 = vsel %vm298, %v280, 0
      %v378 = vsel %vm298, %v281, 0
      %v381 = vsel %vm298, %v282, 0
      %v384 = vsel %vm298, %v283, 0
      %v387 = vsel %vm298, %v284, 0
      %v390 = vsel %vm298, %v285, 0
      %v393 = vsel %vm298, %v286, 0
      %395 = vmatprep.subr.mxu0 0.0
      %396 = vmatpush1.msra.mxu0 %v287
      %397 = vmatprep.subr.mxu0 0.0
      %398 = vmatpush1.msra.mxu0 %v288
      %399 = vmatprep.subr.mxu0 0.0
      %400 = vmatpush1.msra.mxu0 %v289
      %401 = vmatprep.subr.mxu0 0.0
      %402 = vmatpush1.msra.mxu0 %v290
      %403 = vmatprep.subr.mxu0 0.0
      %404 = vmatpush1.msra.mxu0 0.0
      %405 = vmatprep.subr.mxu0 0.0
      %406 = vmatpush1.msra.mxu0 0.0
      %407 = vmatprep.subr.mxu0 0.0
      %408 = vmatpush1.msra.mxu0 0.0
      %409 = vmatprep.subr.mxu0 0.0
      %410 = vmatpush1.msra.mxu0 0.0
      %411 = vmatprep.subr.mxu0 0.0
      %412 = vmatpush1.msra.mxu0 0.0
      %413 = vmatprep.subr.mxu0 0.0
      %414 = vmatpush1.msra.mxu0 0.0
      %415 = vmatprep.subr.mxu0 0.0
      %416 = vmatpush1.msra.mxu0 0.0
      %417 = vmatprep.subr.mxu0 0.0
      %418 = vmatpush1.msra.mxu0 0.0
      %419 = vmatprep.subr.mxu0 0.0
      %420 = vmatpush1.msra.mxu0 0.0
      %421 = vmatprep.subr.mxu0 0.0
      %422 = vmatpush1.msra.mxu0 0.0
      %423 = vmatprep.subr.mxu0 0.0
      %424 = vmatpush1.msra.mxu0 0.0
      %425 = vmatprep.subr.mxu0 0.0
      %426 = vmatpush1.msra.mxu0 0.0
      %427 = vmatprep.subr.mxu0 0.0
      %428 = vmatpush1.msra.mxu0 0.0
      %429 = vmatprep.subr.mxu0 0.0
      %430 = vmatpush1.msra.mxu0 0.0
      %431 = vmatprep.subr.mxu0 0.0
      %432 = vmatpush1.msra.mxu0 0.0
      %433 = vmatprep.subr.mxu0 0.0
      %434 = vmatpush1.msra.mxu0 0.0
      %435 = vmatprep.subr.mxu0 0.0
      %436 = vmatpush1.msra.mxu0 0.0
      %437 = vmatprep.subr.mxu0 0.0
      %438 = vmatpush1.msra.mxu0 0.0
      %439 = vmatprep.subr.mxu0 0.0
      %440 = vmatpush1.msra.mxu0 0.0
      %441 = vmatprep.subr.mxu0 0.0
      %442 = vmatpush1.msra.mxu0 0.0
      %443 = vmatprep.subr.mxu0 0.0
      %444 = vmatpush1.msra.mxu0 0.0
      %445 = vmatprep.subr.mxu0 0.0
      %446 = vmatpush1.msra.mxu0 0.0
      %447 = vmatprep.subr.mxu0 0.0
      %448 = vmatpush1.msra.mxu0 0.0
      %449 = vmatprep.subr.mxu0 0.0
      %450 = vmatpush1.msra.mxu0 0.0
      %451 = vmatprep.subr.mxu0 0.0
      %452 = vmatpush1.msra.mxu0 0.0
      %453 = vmatprep.subr.mxu0 0.0
      %454 = vmatpush1.msra.mxu0 0.0
      %455 = vmatprep.subr.mxu0 0.0
      %456 = vmatpush1.msra.mxu0 0.0
      %457 = vmatprep.subr.mxu0 0.0
      %458 = vmatpush1.msra.mxu0 0.0
      %459 = vmatprep.mubr.f32.mxu0 0.0
      %460 = vmatmul.mubr.f32.gmra.mrb[0].mxu0 %v300
      %v461 = vpop.f32.mrb[0].mxu0
      %v462 = vadd.f32 %v296, %v461
      %v463 = vpop.f32.mrb[0].mxu0
      %464 = vmatprep.mubr.f32.mxu0 0.0
      %465 = vmatmul.mubr.f32.gmra.mrb[0].mxu0 %v303
      %v466 = vpop.f32.mrb[0].mxu0
      %v467 = vadd.f32 %v296, %v466
      %v468 = vpop.f32.mrb[0].mxu0
      %469 = vmatprep.mubr.f32.mxu0 0.0
      %470 = vmatmul.mubr.f32.gmra.mrb[0].mxu0 %v306
      %v471 = vpop.f32.mrb[0].mxu0
      %v472 = vadd.f32 %v296, %v471
      %v473 = vpop.f32.mrb[0].mxu0
      %474 = vmatprep.mubr.f32.mxu0 0.0
      %475 = vmatmul.mubr.f32.gmra.mrb[0].mxu0 %v309
      %v476 = vpop.f32.mrb[0].mxu0
      %v477 = vadd.f32 %v296, %v476
      %v478 = vpop.f32.mrb[0].mxu0
      %479 = vmatprep.mubr.f32.mxu0 0.0
      %480 = vmatmul.mubr.f32.gmra.mrb[0].mxu0 %v312
      %v481 = vpop.f32.mrb[0].mxu0
      %v482 = vadd.f32 %v296, %v481
      %v483 = vpop.f32.mrb[0].mxu0
      %484 = vmatprep.mubr.f32.mxu0 0.0
      %485 = vmatmul.mubr.f32.gmra.mrb[0].mxu0 %v315
      %v486 = vpop.f32.mrb[0].mxu0
      %v487 = vadd.f32 %v296, %v486
      %v488 = vpop.f32.mrb[0].mxu0
      %489 = vmatprep.mubr.f32.mxu0 0.0
      %490 = vmatmul.mubr.f32.gmra.mrb[0].mxu0 %v318
      %v491 = vpop.f32.mrb[0].mxu0
      %v492 = vadd.f32 %v296, %v491
      %v493 = vpop.f32.mrb[0].mxu0
      %494 = vmatprep.mubr.f32.mxu0 0.0
      %495 = vmatmul.mubr.f32.gmra.mrb[0].mxu0 %v321
      %v496 = vpop.f32.mrb[0].mxu0
      %v497 = vadd.f32 %v296, %v496
      %v498 = vpop.f32.mrb[0].mxu0
      %499 = vmatprep.mubr.f32.mxu0 0.0
      %500 = vmatmul.mubr.f32.gmra.mrb[0].mxu0 %v324
      %v501 = vpop.f32.mrb[0].mxu0
      %v502 = vadd.f32 %v296, %v501
      %v503 = vpop.f32.mrb[0].mxu0
      %504 = vmatprep.mubr.f32.mxu0 0.0
      %505 = vmatmul.mubr.f32.gmra.mrb[0].mxu0 %v327
      %v506 = vpop.f32.mrb[0].mxu0
      %v507 = vadd.f32 %v296, %v506
      %v508 = vpop.f32.mrb[0].mxu0
      %509 = vmatprep.mubr.f32.mxu0 0.0
      %510 = vmatmul.mubr.f32.gmra.mrb[0].mxu0 %v330
      %v511 = vpop.f32.mrb[0].mxu0
      %v512 = vadd.f32 %v296, %v511
      %v513 = vpop.f32.mrb[0].mxu0
      %514 = vmatprep.mubr.f32.mxu0 0.0
      %515 = vmatmul.mubr.f32.gmra.mrb[0].mxu0 %v333
      %v516 = vpop.f32.mrb[0].mxu0
      %v517 = vadd.f32 %v296, %v516
      %v518 = vpop.f32.mrb[0].mxu0
      %519 = vmatprep.mubr.f32.mxu0 0.0
      %520 = vmatmul.mubr.f32.gmra.mrb[0].mxu0 %v336
      %v521 = vpop.f32.mrb[0].mxu0
      %v522 = vadd.f32 %v296, %v521
      %v523 = vpop.f32.mrb[0].mxu0
      %524 = vmatprep.mubr.f32.mxu0 0.0
      %525 = vmatmul.mubr.f32.gmra.mrb[0].mxu0 %v339
      %v526 = vpop.f32.mrb[0].mxu0
      %v527 = vadd.f32 %v296, %v526
      %v528 = vpop.f32.mrb[0].mxu0
      %529 = vmatprep.mubr.f32.mxu0 0.0
      %530 = vmatmul.mubr.f32.gmra.mrb[0].mxu0 %v342
      %v531 = vpop.f32.mrb[0].mxu0
      %v532 = vadd.f32 %v296, %v531
      %v533 = vpop.f32.mrb[0].mxu0
      %534 = vmatprep.mubr.f32.mxu0 0.0
      %535 = vmatmul.mubr.f32.gmra.mrb[0].mxu0 %v345
      %v536 = vpop.f32.mrb[0].mxu0
      %v537 = vadd.f32 %v296, %v536
      %v538 = vpop.f32.mrb[0].mxu0
      %539 = vmatprep.mubr.f32.mxu0 0.0
      %540 = vmatmul.mubr.f32.gmra.mrb[0].mxu0 %v348
      %v541 = vpop.f32.mrb[0].mxu0
      %v542 = vadd.f32 %v296, %v541
      %v543 = vpop.f32.mrb[0].mxu0
      %544 = vmatprep.mubr.f32.mxu0 0.0
      %545 = vmatmul.mubr.f32.gmra.mrb[0].mxu0 %v351
      %v546 = vpop.f32.mrb[0].mxu0
      %v547 = vadd.f32 %v296, %v546
      %v548 = vpop.f32.mrb[0].mxu0
      %549 = vmatprep.mubr.f32.mxu0 0.0
      %550 = vmatmul.mubr.f32.gmra.mrb[0].mxu0 %v354
      %v551 = vpop.f32.mrb[0].mxu0
      %v552 = vadd.f32 %v296, %v551
      %v553 = vpop.f32.mrb[0].mxu0
      %554 = vmatprep.mubr.f32.mxu0 0.0
      %555 = vmatmul.mubr.f32.gmra.mrb[0].mxu0 %v357
      %v556 = vpop.f32.mrb[0].mxu0
      %v557 = vadd.f32 %v296, %v556
      %v558 = vpop.f32.mrb[0].mxu0
      %559 = vmatprep.mubr.f32.mxu0 0.0
      %560 = vmatmul.mubr.f32.gmra.mrb[0].mxu0 %v360
      %v561 = vpop.f32.mrb[0].mxu0
      %v562 = vadd.f32 %v296, %v561
      %v563 = vpop.f32.mrb[0].mxu0
      %564 = vmatprep.mubr.f32.mxu0 0.0
      %565 = vmatmul.mubr.f32.gmra.mrb[0].mxu0 %v363
      %v566 = vpop.f32.mrb[0].mxu0
      %v567 = vadd.f32 %v296, %v566
      %v568 = vpop.f32.mrb[0].mxu0
      %569 = vmatprep.mubr.f32.mxu0 0.0
      %570 = vmatmul.mubr.f32.gmra.mrb[0].mxu0 %v366
      %v571 = vpop.f32.mrb[0].mxu0
      %v572 = vadd.f32 %v296, %v571
      %v573 = vpop.f32.mrb[0].mxu0
      %574 = vmatprep.mubr.f32.mxu0 0.0
      %575 = vmatmul.mubr.f32.gmra.mrb[0].mxu0 %v369
      %v576 = vpop.f32.mrb[0].mxu0
      %v577 = vadd.f32 %v296, %v576
      %v578 = vpop.f32.mrb[0].mxu0
      %579 = vmatprep.mubr.f32.mxu0 0.0
      %580 = vmatmul.mubr.f32.gmra.mrb[0].mxu0 %v372
      %v581 = vpop.f32.mrb[0].mxu0
      %v582 = vadd.f32 %v296, %v581
      %v583 = vpop.f32.mrb[0].mxu0
      %584 = vmatprep.mubr.f32.mxu0 0.0
      %585 = vmatmul.mubr.f32.gmra.mrb[0].mxu0 %v375
      %v586 = vpop.f32.mrb[0].mxu0
      %v587 = vadd.f32 %v296, %v586
      %v588 = vpop.f32.mrb[0].mxu0
      %589 = vmatprep.mubr.f32.mxu0 0.0
      %590 = vmatmul.mubr.f32.gmra.mrb[0].mxu0 %v378
      %v591 = vpop.f32.mrb[0].mxu0
      %v592 = vadd.f32 %v296, %v591
      %v593 = vpop.f32.mrb[0].mxu0
      %594 = vmatprep.mubr.f32.mxu0 0.0
      %595 = vmatmul.mubr.f32.gmra.mrb[0].mxu0 %v381
      %v596 = vpop.f32.mrb[0].mxu0
      %v597 = vadd.f32 %v296, %v596
      %v598 = vpop.f32.mrb[0].mxu0
      %599 = vmatprep.mubr.f32.mxu0 0.0
      %600 = vmatmul.mubr.f32.gmra.mrb[0].mxu0 %v384
      %v601 = vpop.f32.mrb[0].mxu0
      %v602 = vadd.f32 %v296, %v601
      %v603 = vpop.f32.mrb[0].mxu0
      %604 = vmatprep.mubr.f32.mxu0 0.0
      %605 = vmatmul.mubr.f32.gmra.mrb[0].mxu0 %v387
      %v606 = vpop.f32.mrb[0].mxu0
      %v607 = vadd.f32 %v296, %v606
      %v608 = vpop.f32.mrb[0].mxu0
      %609 = vmatprep.mubr.f32.mxu0 0.0
      %610 = vmatmul.mubr.f32.gmra.mrb[0].mxu0 %v390
      %v611 = vpop.f32.mrb[0].mxu0
      %v612 = vadd.f32 %v296, %v611
      %v613 = vpop.f32.mrb[0].mxu0
      %614 = vmatprep.mubr.f32.mxu0 0.0
      %615 = vmatmul.mubr.f32.gmra.mrb[0].mxu0 %v393
      %v616 = vpop.f32.mrb[0].mxu0
      %v617 = vadd.f32 %v296, %v616
      %v618 = vpop.f32.mrb[0].mxu0
      %619 = vdwg.mxu0
      %v620 = vld [vmem:[%s5] sm:$0xff]
      %v621 = vld [vmem:[%s5 + $0x8] sm:$0xff]
      %v622 = vld [vmem:[%s5 + $0x10] sm:$0xff]
      %v623 = vld [vmem:[%s5 + $0x18] sm:$0xff]
      %v624 = vld [vmem:[%s5 + $0x20] sm:$0xff]
      %v625 = vld [vmem:[%s5 + $0x28] sm:$0xff]
      %v626 = vld [vmem:[%s5 + $0x30] sm:$0xff]
      %v627 = vld [vmem:[%s5 + $0x38] sm:$0xff]
      %v628 = vmul.f32 %v462, 0.35355338
      %v629 = vmul.f32 %v467, 0.35355338
      %v630 = vmul.f32 %v472, 0.35355338
      %v631 = vmul.f32 %v477, 0.35355338
      %v632 = vmul.f32 %v482, 0.35355338
      %v633 = vmul.f32 %v487, 0.35355338
      %v634 = vmul.f32 %v492, 0.35355338
      %v635 = vmul.f32 %v497, 0.35355338
      %v636 = vmul.f32 %v502, 0.35355338
      %v637 = vmul.f32 %v507, 0.35355338
      %v638 = vmul.f32 %v512, 0.35355338
      %v639 = vmul.f32 %v517, 0.35355338
      %v640 = vmul.f32 %v522, 0.35355338
      %v641 = vmul.f32 %v527, 0.35355338
      %v642 = vmul.f32 %v532, 0.35355338
      %v643 = vmul.f32 %v537, 0.35355338
      %v644 = vmul.f32 %v542, 0.35355338
      %v645 = vmul.f32 %v547, 0.35355338
      %v646 = vmul.f32 %v552, 0.35355338
      %v647 = vmul.f32 %v557, 0.35355338
      %v648 = vmul.f32 %v562, 0.35355338
      %v649 = vmul.f32 %v567, 0.35355338
      %v650 = vmul.f32 %v572, 0.35355338
      %v651 = vmul.f32 %v577, 0.35355338
      %v652 = vmul.f32 %v582, 0.35355338
      %v653 = vmul.f32 %v587, 0.35355338
      %v654 = vmul.f32 %v592, 0.35355338
      %v655 = vmul.f32 %v597, 0.35355338
      %v656 = vmul.f32 %v602, 0.35355338
      %v657 = vmul.f32 %v607, 0.35355338
      %v658 = vmul.f32 %v612, 0.35355338
      %v659 = vmul.f32 %v617, 0.35355338
      %668 = vrot.lane.b32.xlu0 %v462, 96
      %v669 = vpop.permute.xlu0 %668
      %670 = vrot.lane.b32.xlu0 %v467, 96
      %v671 = vpop.permute.xlu0 %670
      %672 = vrot.lane.b32.xlu0 %v472, 96
      %v673 = vpop.permute.xlu0 %672
      %674 = vrot.lane.b32.xlu0 %v477, 96
      %v675 = vpop.permute.xlu0 %674
      %676 = vrot.lane.b32.xlu0 %v482, 96
      %v677 = vpop.permute.xlu0 %676
      %678 = vrot.lane.b32.xlu0 %v487, 96
      %v679 = vpop.permute.xlu0 %678
      %680 = vrot.lane.b32.xlu0 %v492, 96
      %v681 = vpop.permute.xlu0 %680
      %682 = vrot.lane.b32.xlu0 %v497, 96
      %v683 = vpop.permute.xlu0 %682
      %vm684 = vcmask 64512
      %v686 = vsel %vm684, %v628, 0
      %v689 = vsel %vm684, %v629, 0
      %v692 = vsel %vm684, %v630, 0
      %v695 = vsel %vm684, %v631, 0
      %v698 = vsel %vm684, %v632, 0
      %v701 = vsel %vm684, %v633, 0
      %v704 = vsel %vm684, %v634, 0
      %v707 = vsel %vm684, %v635, 0
      %v709 = vsel %vm684, %v669, 0
      %v711 = vsel %vm684, %v671, 0
      %v713 = vsel %vm684, %v673, 0
      %v715 = vsel %vm684, %v675, 0
      %v717 = vsel %vm684, %v677, 0
      %v719 = vsel %vm684, %v679, 0
      %v721 = vsel %vm684, %v681, 0
      %v723 = vsel %vm684, %v683, 0
      %725 = vmatprep.subr.mxu0 0.0
      %726 = vmatpush1.xpose.msra.mxu0 %v709
      %727 = vmatprep.subr.mxu0 0.0
      %728 = vmatpush1.xpose.msra.mxu0 %v711
      %729 = vmatprep.subr.mxu0 0.0
      %730 = vmatpush1.xpose.msra.mxu0 %v713
      %731 = vmatprep.subr.mxu0 0.0
      %732 = vmatpush1.xpose.msra.mxu0 %v715
      %733 = vmatprep.subr.mxu0 0.0
      %734 = vmatpush1.xpose.msra.mxu0 %v717
      %735 = vmatprep.subr.mxu0 0.0
      %736 = vmatpush1.xpose.msra.mxu0 %v719
      %737 = vmatprep.subr.mxu0 0.0
      %738 = vmatpush1.xpose.msra.mxu0 %v721
      %739 = vmatprep.subr.mxu0 0.0
      %740 = vmatpush1.xpose.msra.mxu0 %v723
      %741 = vmatprep.subr.mxu0 0.0
      %742 = vmatpush1.xpose.msra.mxu0 0.0
      %743 = vmatprep.subr.mxu0 0.0
      %744 = vmatpush1.xpose.msra.mxu0 0.0
      %745 = vmatprep.subr.mxu0 0.0
      %746 = vmatpush1.xpose.msra.mxu0 0.0
      %747 = vmatprep.subr.mxu0 0.0
      %748 = vmatpush1.xpose.msra.mxu0 0.0
      %749 = vmatprep.subr.mxu0 0.0
      %750 = vmatpush1.xpose.msra.mxu0 0.0
      %751 = vmatprep.subr.mxu0 0.0
      %752 = vmatpush1.xpose.msra.mxu0 0.0
      %753 = vmatprep.subr.mxu0 0.0
      %754 = vmatpush1.xpose.msra.mxu0 0.0
      %755 = vmatprep.subr.mxu0 0.0
      %756 = vmatpush1.xpose.msra.mxu0 0.0
      %757 = vmatprep.subr.mxu0 0.0
      %758 = vmatpush1.xpose.msra.mxu0 0.0
      %759 = vmatprep.subr.mxu0 0.0
      %760 = vmatpush1.xpose.msra.mxu0 0.0
      %761 = vmatprep.subr.mxu0 0.0
      %762 = vmatpush1.xpose.msra.mxu0 0.0
      %763 = vmatprep.subr.mxu0 0.0
      %764 = vmatpush1.xpose.msra.mxu0 0.0
      %765 = vmatprep.subr.mxu0 0.0
      %766 = vmatpush1.xpose.msra.mxu0 0.0
      %767 = vmatprep.subr.mxu0 0.0
      %768 = vmatpush1.xpose.msra.mxu0 0.0
      %769 = vmatprep.subr.mxu0 0.0
      %770 = vmatpush1.xpose.msra.mxu0 0.0
      %771 = vmatprep.subr.mxu0 0.0
      %772 = vmatpush1.xpose.msra.mxu0 0.0
      %773 = vmatprep.subr.mxu0 0.0
      %774 = vmatpush1.xpose.msra.mxu0 0.0
      %775 = vmatprep.subr.mxu0 0.0
      %776 = vmatpush1.xpose.msra.mxu0 0.0
      %777 = vmatprep.subr.mxu0 0.0
      %778 = vmatpush1.xpose.msra.mxu0 0.0
      %779 = vmatprep.subr.mxu0 0.0
      %780 = vmatpush1.xpose.msra.mxu0 0.0
      %781 = vmatprep.subr.mxu0 0.0
      %782 = vmatpush1.xpose.msra.mxu0 0.0
      %783 = vmatprep.subr.mxu0 0.0
      %784 = vmatpush1.xpose.msra.mxu0 0.0
      %785 = vmatprep.subr.mxu0 0.0
      %786 = vmatpush1.xpose.msra.mxu0 0.0
      %787 = vmatprep.subr.mxu0 0.0
      %788 = vmatpush1.xpose.msra.mxu0 0.0
      %789 = vmatprep.mubr.f32.mxu0 0.0
      %790 = vmatmul.mubr.f32.gmra.mrb[0].mxu0 %v686
      %v791 = vpop.f32.mrb[0].mxu0
      %v792 = vadd.f32 %v620, %v791
      %v793 = vpop.f32.mrb[0].mxu0
      %794 = vmatprep.mubr.f32.mxu0 0.0
      %795 = vmatmul.mubr.f32.gmra.mrb[0].mxu0 %v689
      %v796 = vpop.f32.mrb[0].mxu0
      %v797 = vadd.f32 %v621, %v796
      %v798 = vpop.f32.mrb[0].mxu0
      %799 = vmatprep.mubr.f32.mxu0 0.0
      %800 = vmatmul.mubr.f32.gmra.mrb[0].mxu0 %v692
      %v801 = vpop.f32.mrb[0].mxu0
      %v802 = vadd.f32 %v622, %v801
      %v803 = vpop.f32.mrb[0].mxu0
      %804 = vmatprep.mubr.f32.mxu0 0.0
      %805 = vmatmul.mubr.f32.gmra.mrb[0].mxu0 %v695
      %v806 = vpop.f32.mrb[0].mxu0
      %v807 = vadd.f32 %v623, %v806
      %v808 = vpop.f32.mrb[0].mxu0
      %809 = vmatprep.mubr.f32.mxu0 0.0
      %810 = vmatmul.mubr.f32.gmra.mrb[0].mxu0 %v698
      %v811 = vpop.f32.mrb[0].mxu0
      %v812 = vadd.f32 %v624, %v811
      %v813 = vpop.f32.mrb[0].mxu0
      %814 = vmatprep.mubr.f32.mxu0 0.0
      %815 = vmatmul.mubr.f32.gmra.mrb[0].mxu0 %v701
      %v816 = vpop.f32.mrb[0].mxu0
      %v817 = vadd.f32 %v625, %v816
      %v818 = vpop.f32.mrb[0].mxu0
      %819 = vmatprep.mubr.f32.mxu0 0.0
      %820 = vmatmul.mubr.f32.gmra.mrb[0].mxu0 %v704
      %v821 = vpop.f32.mrb[0].mxu0
      %v822 = vadd.f32 %v626, %v821
      %v823 = vpop.f32.mrb[0].mxu0
      %824 = vmatprep.mubr.f32.mxu0 0.0
      %825 = vmatmul.mubr.f32.gmra.mrb[0].mxu0 %v707
      %v826 = vpop.f32.mrb[0].mxu0
      %v827 = vadd.f32 %v627, %v826
      %v828 = vpop.f32.mrb[0].mxu0
      %829 = vdwg.mxu0
      %838 = vrot.lane.b32.xlu0 %v502, 96
      %v839 = vpop.permute.xlu0 %838
      %840 = vrot.lane.b32.xlu0 %v507, 96
      %v841 = vpop.permute.xlu0 %840
      %842 = vrot.lane.b32.xlu0 %v512, 96
      %v843 = vpop.permute.xlu0 %842
      %844 = vrot.lane.b32.xlu0 %v517, 96
      %v845 = vpop.permute.xlu0 %844
      %846 = vrot.lane.b32.xlu0 %v522, 96
      %v847 = vpop.permute.xlu0 %846
      %848 = vrot.lane.b32.xlu0 %v527, 96
      %v849 = vpop.permute.xlu0 %848
      %850 = vrot.lane.b32.xlu0 %v532, 96
      %v851 = vpop.permute.xlu0 %850
      %852 = vrot.lane.b32.xlu0 %v537, 96
      %v853 = vpop.permute.xlu0 %852
      %v855 = vsel %vm684, %v636, 0
      %v858 = vsel %vm684, %v637, 0
      %v861 = vsel %vm684, %v638, 0
      %v864 = vsel %vm684, %v639, 0
      %v867 = vsel %vm684, %v640, 0
      %v870 = vsel %vm684, %v641, 0
      %v873 = vsel %vm684, %v642, 0
      %v876 = vsel %vm684, %v643, 0
      %v878 = vsel %vm684, %v839, 0
      %v880 = vsel %vm684, %v841, 0
      %v882 = vsel %vm684, %v843, 0
      %v884 = vsel %vm684, %v845, 0
      %v886 = vsel %vm684, %v847, 0
      %v888 = vsel %vm684, %v849, 0
      %v890 = vsel %vm684, %v851, 0
      %v892 = vsel %vm684, %v853, 0
      %894 = vmatprep.subr.mxu0 0.0
      %895 = vmatpush1.xpose.msra.mxu0 %v878
      %896 = vmatprep.subr.mxu0 0.0
      %897 = vmatpush1.xpose.msra.mxu0 %v880
      %898 = vmatprep.subr.mxu0 0.0
      %899 = vmatpush1.xpose.msra.mxu0 %v882
      %900 = vmatprep.subr.mxu0 0.0
      %901 = vmatpush1.xpose.msra.mxu0 %v884
      %902 = vmatprep.subr.mxu0 0.0
      %903 = vmatpush1.xpose.msra.mxu0 %v886
      %904 = vmatprep.subr.mxu0 0.0
      %905 = vmatpush1.xpose.msra.mxu0 %v888
      %906 = vmatprep.subr.mxu0 0.0
      %907 = vmatpush1.xpose.msra.mxu0 %v890
      %908 = vmatprep.subr.mxu0 0.0
      %909 = vmatpush1.xpose.msra.mxu0 %v892
      %910 = vmatprep.subr.mxu0 0.0
      %911 = vmatpush1.xpose.msra.mxu0 0.0
      %912 = vmatprep.subr.mxu0 0.0
      %913 = vmatpush1.xpose.msra.mxu0 0.0
      %914 = vmatprep.subr.mxu0 0.0
      %915 = vmatpush1.xpose.msra.mxu0 0.0
      %916 = vmatprep.subr.mxu0 0.0
      %917 = vmatpush1.xpose.msra.mxu0 0.0
      %918 = vmatprep.subr.mxu0 0.0
      %919 = vmatpush1.xpose.msra.mxu0 0.0
      %920 = vmatprep.subr.mxu0 0.0
      %921 = vmatpush1.xpose.msra.mxu0 0.0
      %922 = vmatprep.subr.mxu0 0.0
      %923 = vmatpush1.xpose.msra.mxu0 0.0
      %924 = vmatprep.subr.mxu0 0.0
      %925 = vmatpush1.xpose.msra.mxu0 0.0
      %926 = vmatprep.subr.mxu0 0.0
      %927 = vmatpush1.xpose.msra.mxu0 0.0
      %928 = vmatprep.subr.mxu0 0.0
      %929 = vmatpush1.xpose.msra.mxu0 0.0
      %930 = vmatprep.subr.mxu0 0.0
      %931 = vmatpush1.xpose.msra.mxu0 0.0
      %932 = vmatprep.subr.mxu0 0.0
      %933 = vmatpush1.xpose.msra.mxu0 0.0
      %934 = vmatprep.subr.mxu0 0.0
      %935 = vmatpush1.xpose.msra.mxu0 0.0
      %936 = vmatprep.subr.mxu0 0.0
      %937 = vmatpush1.xpose.msra.mxu0 0.0
      %938 = vmatprep.subr.mxu0 0.0
      %939 = vmatpush1.xpose.msra.mxu0 0.0
      %940 = vmatprep.subr.mxu0 0.0
      %941 = vmatpush1.xpose.msra.mxu0 0.0
      %942 = vmatprep.subr.mxu0 0.0
      %943 = vmatpush1.xpose.msra.mxu0 0.0
      %944 = vmatprep.subr.mxu0 0.0
      %945 = vmatpush1.xpose.msra.mxu0 0.0
      %946 = vmatprep.subr.mxu0 0.0
      %947 = vmatpush1.xpose.msra.mxu0 0.0
      %948 = vmatprep.subr.mxu0 0.0
      %949 = vmatpush1.xpose.msra.mxu0 0.0
      %950 = vmatprep.subr.mxu0 0.0
      %951 = vmatpush1.xpose.msra.mxu0 0.0
      %952 = vmatprep.subr.mxu0 0.0
      %953 = vmatpush1.xpose.msra.mxu0 0.0
      %954 = vmatprep.subr.mxu0 0.0
      %955 = vmatpush1.xpose.msra.mxu0 0.0
      %956 = vmatprep.subr.mxu0 0.0
      %957 = vmatpush1.xpose.msra.mxu0 0.0
      %958 = vmatprep.mubr.f32.mxu0 0.0
      %959 = vmatmul.mubr.f32.gmra.mrb[0].mxu0 %v855
      %v960 = vpop.f32.mrb[0].mxu0
      %v961 = vadd.f32 %v620, %v960
      %v962 = vpop.f32.mrb[0].mxu0
      %963 = vmatprep.mubr.f32.mxu0 0.0
      %964 = vmatmul.mubr.f32.gmra.mrb[0].mxu0 %v858
      %v965 = vpop.f32.mrb[0].mxu0
      %v966 = vadd.f32 %v621, %v965
      %v967 = vpop.f32.mrb[0].mxu0
      %968 = vmatprep.mubr.f32.mxu0 0.0
      %969 = vmatmul.mubr.f32.gmra.mrb[0].mxu0 %v861
      %v970 = vpop.f32.mrb[0].mxu0
      %v971 = vadd.f32 %v622, %v970
      %v972 = vpop.f32.mrb[0].mxu0
      %973 = vmatprep.mubr.f32.mxu0 0.0
      %974 = vmatmul.mubr.f32.gmra.mrb[0].mxu0 %v864
      %v975 = vpop.f32.mrb[0].mxu0
      %v976 = vadd.f32 %v623, %v975
      %v977 = vpop.f32.mrb[0].mxu0
      %978 = vmatprep.mubr.f32.mxu0 0.0
      %979 = vmatmul.mubr.f32.gmra.mrb[0].mxu0 %v867
      %v980 = vpop.f32.mrb[0].mxu0
      %v981 = vadd.f32 %v624, %v980
      %v982 = vpop.f32.mrb[0].mxu0
      %983 = vmatprep.mubr.f32.mxu0 0.0
      %984 = vmatmul.mubr.f32.gmra.mrb[0].mxu0 %v870
      %v985 = vpop.f32.mrb[0].mxu0
      %v986 = vadd.f32 %v625, %v985
      %v987 = vpop.f32.mrb[0].mxu0
      %988 = vmatprep.mubr.f32.mxu0 0.0
      %989 = vmatmul.mubr.f32.gmra.mrb[0].mxu0 %v873
      %v990 = vpop.f32.mrb[0].mxu0
      %v991 = vadd.f32 %v626, %v990
      %v992 = vpop.f32.mrb[0].mxu0
      %993 = vmatprep.mubr.f32.mxu0 0.0
      %994 = vmatmul.mubr.f32.gmra.mrb[0].mxu0 %v876
      %v995 = vpop.f32.mrb[0].mxu0
      %v996 = vadd.f32 %v627, %v995
      %v997 = vpop.f32.mrb[0].mxu0
      %998 = vdwg.mxu0
      %1007 = vrot.lane.b32.xlu0 %v542, 96
      %v1008 = vpop.permute.xlu0 %1007
      %1009 = vrot.lane.b32.xlu0 %v547, 96
      %v1010 = vpop.permute.xlu0 %1009
      %1011 = vrot.lane.b32.xlu0 %v552, 96
      %v1012 = vpop.permute.xlu0 %1011
      %1013 = vrot.lane.b32.xlu0 %v557, 96
      %v1014 = vpop.permute.xlu0 %1013
      %1015 = vrot.lane.b32.xlu0 %v562, 96
      %v1016 = vpop.permute.xlu0 %1015
      %1017 = vrot.lane.b32.xlu0 %v567, 96
      %v1018 = vpop.permute.xlu0 %1017
      %1019 = vrot.lane.b32.xlu0 %v572, 96
      %v1020 = vpop.permute.xlu0 %1019
      %1021 = vrot.lane.b32.xlu0 %v577, 96
      %v1022 = vpop.permute.xlu0 %1021
      %v1024 = vsel %vm684, %v644, 0
      %v1027 = vsel %vm684, %v645, 0
      %v1030 = vsel %vm684, %v646, 0
      %v1033 = vsel %vm684, %v647, 0
      %v1036 = vsel %vm684, %v648, 0
      %v1039 = vsel %vm684, %v649, 0
      %v1042 = vsel %vm684, %v650, 0
      %v1045 = vsel %vm684, %v651, 0
      %v1047 = vsel %vm684, %v1008, 0
      %v1049 = vsel %vm684, %v1010, 0
      %v1051 = vsel %vm684, %v1012, 0
      %v1053 = vsel %vm684, %v1014, 0
      %v1055 = vsel %vm684, %v1016, 0
      %v1057 = vsel %vm684, %v1018, 0
      %v1059 = vsel %vm684, %v1020, 0
      %v1061 = vsel %vm684, %v1022, 0
      %1063 = vmatprep.subr.mxu0 0.0
      %1064 = vmatpush1.xpose.msra.mxu0 %v1047
      %1065 = vmatprep.subr.mxu0 0.0
      %1066 = vmatpush1.xpose.msra.mxu0 %v1049
      %1067 = vmatprep.subr.mxu0 0.0
      %1068 = vmatpush1.xpose.msra.mxu0 %v1051
      %1069 = vmatprep.subr.mxu0 0.0
      %1070 = vmatpush1.xpose.msra.mxu0 %v1053
      %1071 = vmatprep.subr.mxu0 0.0
      %1072 = vmatpush1.xpose.msra.mxu0 %v1055
      %1073 = vmatprep.subr.mxu0 0.0
      %1074 = vmatpush1.xpose.msra.mxu0 %v1057
      %1075 = vmatprep.subr.mxu0 0.0
      %1076 = vmatpush1.xpose.msra.mxu0 %v1059
      %1077 = vmatprep.subr.mxu0 0.0
      %1078 = vmatpush1.xpose.msra.mxu0 %v1061
      %1079 = vmatprep.subr.mxu0 0.0
      %1080 = vmatpush1.xpose.msra.mxu0 0.0
      %1081 = vmatprep.subr.mxu0 0.0
      %1082 = vmatpush1.xpose.msra.mxu0 0.0
      %1083 = vmatprep.subr.mxu0 0.0
      %1084 = vmatpush1.xpose.msra.mxu0 0.0
      %1085 = vmatprep.subr.mxu0 0.0
      %1086 = vmatpush1.xpose.msra.mxu0 0.0
      %1087 = vmatprep.subr.mxu0 0.0
      %1088 = vmatpush1.xpose.msra.mxu0 0.0
      %1089 = vmatprep.subr.mxu0 0.0
      %1090 = vmatpush1.xpose.msra.mxu0 0.0
      %1091 = vmatprep.subr.mxu0 0.0
      %1092 = vmatpush1.xpose.msra.mxu0 0.0
      %1093 = vmatprep.subr.mxu0 0.0
      %1094 = vmatpush1.xpose.msra.mxu0 0.0
      %1095 = vmatprep.subr.mxu0 0.0
      %1096 = vmatpush1.xpose.msra.mxu0 0.0
      %1097 = vmatprep.subr.mxu0 0.0
      %1098 = vmatpush1.xpose.msra.mxu0 0.0
      %1099 = vmatprep.subr.mxu0 0.0
      %1100 = vmatpush1.xpose.msra.mxu0 0.0
      %1101 = vmatprep.subr.mxu0 0.0
      %1102 = vmatpush1.xpose.msra.mxu0 0.0
      %1103 = vmatprep.subr.mxu0 0.0
      %1104 = vmatpush1.xpose.msra.mxu0 0.0
      %1105 = vmatprep.subr.mxu0 0.0
      %1106 = vmatpush1.xpose.msra.mxu0 0.0
      %1107 = vmatprep.subr.mxu0 0.0
      %1108 = vmatpush1.xpose.msra.mxu0 0.0
      %1109 = vmatprep.subr.mxu0 0.0
      %1110 = vmatpush1.xpose.msra.mxu0 0.0
      %1111 = vmatprep.subr.mxu0 0.0
      %1112 = vmatpush1.xpose.msra.mxu0 0.0
      %1113 = vmatprep.subr.mxu0 0.0
      %1114 = vmatpush1.xpose.msra.mxu0 0.0
      %1115 = vmatprep.subr.mxu0 0.0
      %1116 = vmatpush1.xpose.msra.mxu0 0.0
      %1117 = vmatprep.subr.mxu0 0.0
      %1118 = vmatpush1.xpose.msra.mxu0 0.0
      %1119 = vmatprep.subr.mxu0 0.0
      %1120 = vmatpush1.xpose.msra.mxu0 0.0
      %1121 = vmatprep.subr.mxu0 0.0
      %1122 = vmatpush1.xpose.msra.mxu0 0.0
      %1123 = vmatprep.subr.mxu0 0.0
      %1124 = vmatpush1.xpose.msra.mxu0 0.0
      %1125 = vmatprep.subr.mxu0 0.0
      %1126 = vmatpush1.xpose.msra.mxu0 0.0
      %1127 = vmatprep.mubr.f32.mxu0 0.0
      %1128 = vmatmul.mubr.f32.gmra.mrb[0].mxu0 %v1024
      %v1129 = vpop.f32.mrb[0].mxu0
      %v1130 = vadd.f32 %v620, %v1129
      %v1131 = vpop.f32.mrb[0].mxu0
      %1132 = vmatprep.mubr.f32.mxu0 0.0
      %1133 = vmatmul.mubr.f32.gmra.mrb[0].mxu0 %v1027
      %v1134 = vpop.f32.mrb[0].mxu0
      %v1135 = vadd.f32 %v621, %v1134
      %v1136 = vpop.f32.mrb[0].mxu0
      %1137 = vmatprep.mubr.f32.mxu0 0.0
      %1138 = vmatmul.mubr.f32.gmra.mrb[0].mxu0 %v1030
      %v1139 = vpop.f32.mrb[0].mxu0
      %v1140 = vadd.f32 %v622, %v1139
      %v1141 = vpop.f32.mrb[0].mxu0
      %1142 = vmatprep.mubr.f32.mxu0 0.0
      %1143 = vmatmul.mubr.f32.gmra.mrb[0].mxu0 %v1033
      %v1144 = vpop.f32.mrb[0].mxu0
      %v1145 = vadd.f32 %v623, %v1144
      %v1146 = vpop.f32.mrb[0].mxu0
      %1147 = vmatprep.mubr.f32.mxu0 0.0
      %1148 = vmatmul.mubr.f32.gmra.mrb[0].mxu0 %v1036
      %v1149 = vpop.f32.mrb[0].mxu0
      %v1150 = vadd.f32 %v624, %v1149
      %v1151 = vpop.f32.mrb[0].mxu0
      %1152 = vmatprep.mubr.f32.mxu0 0.0
      %1153 = vmatmul.mubr.f32.gmra.mrb[0].mxu0 %v1039
      %v1154 = vpop.f32.mrb[0].mxu0
      %v1155 = vadd.f32 %v625, %v1154
      %v1156 = vpop.f32.mrb[0].mxu0
      %1157 = vmatprep.mubr.f32.mxu0 0.0
      %1158 = vmatmul.mubr.f32.gmra.mrb[0].mxu0 %v1042
      %v1159 = vpop.f32.mrb[0].mxu0
      %v1160 = vadd.f32 %v626, %v1159
      %v1161 = vpop.f32.mrb[0].mxu0
      %1162 = vmatprep.mubr.f32.mxu0 0.0
      %1163 = vmatmul.mubr.f32.gmra.mrb[0].mxu0 %v1045
      %v1164 = vpop.f32.mrb[0].mxu0
      %v1165 = vadd.f32 %v627, %v1164
      %v1166 = vpop.f32.mrb[0].mxu0
      %1167 = vdwg.mxu0
      %1176 = vrot.lane.b32.xlu0 %v582, 96
      %v1177 = vpop.permute.xlu0 %1176
      %1178 = vrot.lane.b32.xlu0 %v587, 96
      %v1179 = vpop.permute.xlu0 %1178
      %1180 = vrot.lane.b32.xlu0 %v592, 96
      %v1181 = vpop.permute.xlu0 %1180
      %1182 = vrot.lane.b32.xlu0 %v597, 96
      %v1183 = vpop.permute.xlu0 %1182
      %1184 = vrot.lane.b32.xlu0 %v602, 96
      %v1185 = vpop.permute.xlu0 %1184
      %1186 = vrot.lane.b32.xlu0 %v607, 96
      %v1187 = vpop.permute.xlu0 %1186
      %1188 = vrot.lane.b32.xlu0 %v612, 96
      %v1189 = vpop.permute.xlu0 %1188
      %1190 = vrot.lane.b32.xlu0 %v617, 96
      %v1191 = vpop.permute.xlu0 %1190
      %v1193 = vsel %vm684, %v652, 0
      %v1196 = vsel %vm684, %v653, 0
      %v1199 = vsel %vm684, %v654, 0
      %v1202 = vsel %vm684, %v655, 0
      %v1205 = vsel %vm684, %v656, 0
      %v1208 = vsel %vm684, %v657, 0
      %v1211 = vsel %vm684, %v658, 0
      %v1214 = vsel %vm684, %v659, 0
      %v1216 = vsel %vm684, %v1177, 0
      %v1218 = vsel %vm684, %v1179, 0
      %v1220 = vsel %vm684, %v1181, 0
      %v1222 = vsel %vm684, %v1183, 0
      %v1224 = vsel %vm684, %v1185, 0
      %v1226 = vsel %vm684, %v1187, 0
      %v1228 = vsel %vm684, %v1189, 0
      %v1230 = vsel %vm684, %v1191, 0
      %1232 = vmatprep.subr.mxu0 0.0
      %1233 = vmatpush1.xpose.msra.mxu0 %v1216
      %1234 = vmatprep.subr.mxu0 0.0
      %1235 = vmatpush1.xpose.msra.mxu0 %v1218
      %1236 = vmatprep.subr.mxu0 0.0
      %1237 = vmatpush1.xpose.msra.mxu0 %v1220
      %1238 = vmatprep.subr.mxu0 0.0
      %1239 = vmatpush1.xpose.msra.mxu0 %v1222
      %1240 = vmatprep.subr.mxu0 0.0
      %1241 = vmatpush1.xpose.msra.mxu0 %v1224
      %1242 = vmatprep.subr.mxu0 0.0
      %1243 = vmatpush1.xpose.msra.mxu0 %v1226
      %1244 = vmatprep.subr.mxu0 0.0
      %1245 = vmatpush1.xpose.msra.mxu0 %v1228
      %1246 = vmatprep.subr.mxu0 0.0
      %1247 = vmatpush1.xpose.msra.mxu0 %v1230
      %1248 = vmatprep.subr.mxu0 0.0
      %1249 = vmatpush1.xpose.msra.mxu0 0.0
      %1250 = vmatprep.subr.mxu0 0.0
      %1251 = vmatpush1.xpose.msra.mxu0 0.0
      %1252 = vmatprep.subr.mxu0 0.0
      %1253 = vmatpush1.xpose.msra.mxu0 0.0
      %1254 = vmatprep.subr.mxu0 0.0
      %1255 = vmatpush1.xpose.msra.mxu0 0.0
      %1256 = vmatprep.subr.mxu0 0.0
      %1257 = vmatpush1.xpose.msra.mxu0 0.0
      %1258 = vmatprep.subr.mxu0 0.0
      %1259 = vmatpush1.xpose.msra.mxu0 0.0
      %1260 = vmatprep.subr.mxu0 0.0
      %1261 = vmatpush1.xpose.msra.mxu0 0.0
      %1262 = vmatprep.subr.mxu0 0.0
      %1263 = vmatpush1.xpose.msra.mxu0 0.0
      %1264 = vmatprep.subr.mxu0 0.0
      %1265 = vmatpush1.xpose.msra.mxu0 0.0
      %1266 = vmatprep.subr.mxu0 0.0
      %1267 = vmatpush1.xpose.msra.mxu0 0.0
      %1268 = vmatprep.subr.mxu0 0.0
      %1269 = vmatpush1.xpose.msra.mxu0 0.0
      %1270 = vmatprep.subr.mxu0 0.0
      %1271 = vmatpush1.xpose.msra.mxu0 0.0
      %1272 = vmatprep.subr.mxu0 0.0
      %1273 = vmatpush1.xpose.msra.mxu0 0.0
      %1274 = vmatprep.subr.mxu0 0.0
      %1275 = vmatpush1.xpose.msra.mxu0 0.0
      %1276 = vmatprep.subr.mxu0 0.0
      %1277 = vmatpush1.xpose.msra.mxu0 0.0
      %1278 = vmatprep.subr.mxu0 0.0
      %1279 = vmatpush1.xpose.msra.mxu0 0.0
      %1280 = vmatprep.subr.mxu0 0.0
      %1281 = vmatpush1.xpose.msra.mxu0 0.0
      %1282 = vmatprep.subr.mxu0 0.0
      %1283 = vmatpush1.xpose.msra.mxu0 0.0
      %1284 = vmatprep.subr.mxu0 0.0
      %1285 = vmatpush1.xpose.msra.mxu0 0.0
      %1286 = vmatprep.subr.mxu0 0.0
      %1287 = vmatpush1.xpose.msra.mxu0 0.0
      %1288 = vmatprep.subr.mxu0 0.0
      %1289 = vmatpush1.xpose.msra.mxu0 0.0
      %1290 = vmatprep.subr.mxu0 0.0
      %1291 = vmatpush1.xpose.msra.mxu0 0.0
      %1292 = vmatprep.subr.mxu0 0.0
      %1293 = vmatpush1.xpose.msra.mxu0 0.0
      %1294 = vmatprep.subr.mxu0 0.0
      %1295 = vmatpush1.xpose.msra.mxu0 0.0
      %1296 = vmatprep.mubr.f32.mxu0 0.0
      %1297 = vmatmul.mubr.f32.gmra.mrb[0].mxu0 %v1193
      %v1298 = vpop.f32.mrb[0].mxu0
      %v1299 = vadd.f32 %v620, %v1298
      %v1300 = vpop.f32.mrb[0].mxu0
      %1301 = vmatprep.mubr.f32.mxu0 0.0
      %1302 = vmatmul.mubr.f32.gmra.mrb[0].mxu0 %v1196
      %v1303 = vpop.f32.mrb[0].mxu0
      %v1304 = vadd.f32 %v621, %v1303
      %v1305 = vpop.f32.mrb[0].mxu0
      %1306 = vmatprep.mubr.f32.mxu0 0.0
      %1307 = vmatmul.mubr.f32.gmra.mrb[0].mxu0 %v1199
      %v1308 = vpop.f32.mrb[0].mxu0
      %v1309 = vadd.f32 %v622, %v1308
      %v1310 = vpop.f32.mrb[0].mxu0
      %1311 = vmatprep.mubr.f32.mxu0 0.0
      %1312 = vmatmul.mubr.f32.gmra.mrb[0].mxu0 %v1202
      %v1313 = vpop.f32.mrb[0].mxu0
      %v1314 = vadd.f32 %v623, %v1313
      %v1315 = vpop.f32.mrb[0].mxu0
      %1316 = vmatprep.mubr.f32.mxu0 0.0
      %1317 = vmatmul.mubr.f32.gmra.mrb[0].mxu0 %v1205
      %v1318 = vpop.f32.mrb[0].mxu0
      %v1319 = vadd.f32 %v624, %v1318
      %v1320 = vpop.f32.mrb[0].mxu0
      %1321 = vmatprep.mubr.f32.mxu0 0.0
      %1322 = vmatmul.mubr.f32.gmra.mrb[0].mxu0 %v1208
      %v1323 = vpop.f32.mrb[0].mxu0
      %v1324 = vadd.f32 %v625, %v1323
      %v1325 = vpop.f32.mrb[0].mxu0
      %1326 = vmatprep.mubr.f32.mxu0 0.0
      %1327 = vmatmul.mubr.f32.gmra.mrb[0].mxu0 %v1211
      %v1328 = vpop.f32.mrb[0].mxu0
      %v1329 = vadd.f32 %v626, %v1328
      %v1330 = vpop.f32.mrb[0].mxu0
      %1331 = vmatprep.mubr.f32.mxu0 0.0
      %1332 = vmatmul.mubr.f32.gmra.mrb[0].mxu0 %v1214
      %v1333 = vpop.f32.mrb[0].mxu0
      %v1334 = vadd.f32 %v627, %v1333
      %v1335 = vpop.f32.mrb[0].mxu0
      %1336 = vdwg.mxu0
      %vm1337 = vcmask 523264
      %v1338 = vsel %vm1337, %v792, -inf
      %1339 = vmax.xlane.f32.xlu0 %v1338
      %v1340 = vpop.xlane.xlu0 %1339
      %v1341 = vsel %vm1337, %v797, -inf
      %1342 = vmax.xlane.f32.xlu0 %v1341
      %v1343 = vpop.xlane.xlu0 %1342
      %v1344 = vsel %vm1337, %v802, -inf
      %1345 = vmax.xlane.f32.xlu0 %v1344
      %v1346 = vpop.xlane.xlu0 %1345
      %v1347 = vsel %vm1337, %v807, -inf
      %1348 = vmax.xlane.f32.xlu0 %v1347
      %v1349 = vpop.xlane.xlu0 %1348
      %v1350 = vsel %vm1337, %v812, -inf
      %1351 = vmax.xlane.f32.xlu0 %v1350
      %v1352 = vpop.xlane.xlu0 %1351
      %v1353 = vsel %vm1337, %v817, -inf
      %1354 = vmax.xlane.f32.xlu0 %v1353
      %v1355 = vpop.xlane.xlu0 %1354
      %v1356 = vsel %vm1337, %v822, -inf
      %1357 = vmax.xlane.f32.xlu0 %v1356
      %v1358 = vpop.xlane.xlu0 %1357
      %v1359 = vsel %vm1337, %v827, -inf
      %1360 = vmax.xlane.f32.xlu0 %v1359
      %v1361 = vpop.xlane.xlu0 %1360
      %v1362 = vsel %vm1337, %v961, -inf
      %1363 = vmax.xlane.f32.xlu0 %v1362
      %v1364 = vpop.xlane.xlu0 %1363
      %v1365 = vsel %vm1337, %v966, -inf
      %1366 = vmax.xlane.f32.xlu0 %v1365
      %v1367 = vpop.xlane.xlu0 %1366
      %v1368 = vsel %vm1337, %v971, -inf
      %1369 = vmax.xlane.f32.xlu0 %v1368
      %v1370 = vpop.xlane.xlu0 %1369
      %v1371 = vsel %vm1337, %v976, -inf
      %1372 = vmax.xlane.f32.xlu0 %v1371
      %v1373 = vpop.xlane.xlu0 %1372
      %v1374 = vsel %vm1337, %v981, -inf
      %1375 = vmax.xlane.f32.xlu0 %v1374
      %v1376 = vpop.xlane.xlu0 %1375
      %v1377 = vsel %vm1337, %v986, -inf
      %1378 = vmax.xlane.f32.xlu0 %v1377
      %v1379 = vpop.xlane.xlu0 %1378
      %v1380 = vsel %vm1337, %v991, -inf
      %1381 = vmax.xlane.f32.xlu0 %v1380
      %v1382 = vpop.xlane.xlu0 %1381
      %v1383 = vsel %vm1337, %v996, -inf
      %1384 = vmax.xlane.f32.xlu0 %v1383
      %v1385 = vpop.xlane.xlu0 %1384
      %v1386 = vsel %vm1337, %v1130, -inf
      %1387 = vmax.xlane.f32.xlu0 %v1386
      %v1388 = vpop.xlane.xlu0 %1387
      %v1389 = vsel %vm1337, %v1135, -inf
      %1390 = vmax.xlane.f32.xlu0 %v1389
      %v1391 = vpop.xlane.xlu0 %1390
      %v1392 = vsel %vm1337, %v1140, -inf
      %1393 = vmax.xlane.f32.xlu0 %v1392
      %v1394 = vpop.xlane.xlu0 %1393
      %v1395 = vsel %vm1337, %v1145, -inf
      %1396 = vmax.xlane.f32.xlu0 %v1395
      %v1397 = vpop.xlane.xlu0 %1396
      %v1398 = vsel %vm1337, %v1150, -inf
      %1399 = vmax.xlane.f32.xlu0 %v1398
      %v1400 = vpop.xlane.xlu0 %1399
      %v1401 = vsel %vm1337, %v1155, -inf
      %1402 = vmax.xlane.f32.xlu0 %v1401
      %v1403 = vpop.xlane.xlu0 %1402
      %v1404 = vsel %vm1337, %v1160, -inf
      %1405 = vmax.xlane.f32.xlu0 %v1404
      %v1406 = vpop.xlane.xlu0 %1405
      %v1407 = vsel %vm1337, %v1165, -inf
      %1408 = vmax.xlane.f32.xlu0 %v1407
      %v1409 = vpop.xlane.xlu0 %1408
      %v1410 = vsel %vm1337, %v1299, -inf
      %1411 = vmax.xlane.f32.xlu0 %v1410
      %v1412 = vpop.xlane.xlu0 %1411
      %v1413 = vsel %vm1337, %v1304, -inf
      %1414 = vmax.xlane.f32.xlu0 %v1413
      %v1415 = vpop.xlane.xlu0 %1414
      %v1416 = vsel %vm1337, %v1309, -inf
      %1417 = vmax.xlane.f32.xlu0 %v1416
      %v1418 = vpop.xlane.xlu0 %1417
      %v1419 = vsel %vm1337, %v1314, -inf
      %1420 = vmax.xlane.f32.xlu0 %v1419
      %v1421 = vpop.xlane.xlu0 %1420
      %v1422 = vsel %vm1337, %v1319, -inf
      %1423 = vmax.xlane.f32.xlu0 %v1422
      %v1424 = vpop.xlane.xlu0 %1423
      %v1425 = vsel %vm1337, %v1324, -inf
      %1426 = vmax.xlane.f32.xlu0 %v1425
      %v1427 = vpop.xlane.xlu0 %1426
      %v1428 = vsel %vm1337, %v1329, -inf
      %1429 = vmax.xlane.f32.xlu0 %v1428
      %v1430 = vpop.xlane.xlu0 %1429
      %v1431 = vsel %vm1337, %v1334, -inf
      %1432 = vmax.xlane.f32.xlu0 %v1431
      %v1433 = vpop.xlane.xlu0 %1432
      %v1434 = vsub.f32 %v792, %v1340
      %v1435 = vsub.f32 %v797, %v1343
      %v1436 = vsub.f32 %v802, %v1346
      %v1437 = vsub.f32 %v807, %v1349
      %v1438 = vsub.f32 %v812, %v1352
      %v1439 = vsub.f32 %v817, %v1355
      %v1440 = vsub.f32 %v822, %v1358
      %v1441 = vsub.f32 %v827, %v1361
      %v1442 = vsub.f32 %v961, %v1364
      %v1443 = vsub.f32 %v966, %v1367
      %v1444 = vsub.f32 %v971, %v1370
      %v1445 = vsub.f32 %v976, %v1373
      %v1446 = vsub.f32 %v981, %v1376
      %v1447 = vsub.f32 %v986, %v1379
      %v1448 = vsub.f32 %v991, %v1382
      %v1449 = vsub.f32 %v996, %v1385
      %v1450 = vsub.f32 %v1130, %v1388
      %v1451 = vsub.f32 %v1135, %v1391
      %v1452 = vsub.f32 %v1140, %v1394
      %v1453 = vsub.f32 %v1145, %v1397
      %v1454 = vsub.f32 %v1150, %v1400
      %v1455 = vsub.f32 %v1155, %v1403
      %v1456 = vsub.f32 %v1160, %v1406
      %v1457 = vsub.f32 %v1165, %v1409
      %v1458 = vsub.f32 %v1299, %v1412
      %v1459 = vsub.f32 %v1304, %v1415
      %v1460 = vsub.f32 %v1309, %v1418
      %v1461 = vsub.f32 %v1314, %v1421
      %v1462 = vsub.f32 %v1319, %v1424
      %v1463 = vsub.f32 %v1324, %v1427
      %v1464 = vsub.f32 %v1329, %v1430
      %v1465 = vsub.f32 %v1334, %v1433
      %v1466 = vmul.f32 %v1434, 1.442695
      %v1467 = vpow.pop %v1466
      %v1468 = vmul.f32 %v1435, 1.442695
      %v1469 = vpow.pop %v1468
      %v1470 = vmul.f32 %v1436, 1.442695
      %v1471 = vpow.pop %v1470
      %v1472 = vmul.f32 %v1437, 1.442695
      %v1473 = vpow.pop %v1472
      %v1474 = vmul.f32 %v1438, 1.442695
      %v1475 = vpow.pop %v1474
      %v1476 = vmul.f32 %v1439, 1.442695
      %v1477 = vpow.pop %v1476
      %v1478 = vmul.f32 %v1440, 1.442695
      %v1479 = vpow.pop %v1478
      %v1480 = vmul.f32 %v1441, 1.442695
      %v1481 = vpow.pop %v1480
      %v1482 = vmul.f32 %v1442, 1.442695
      %v1483 = vpow.pop %v1482
      %v1484 = vmul.f32 %v1443, 1.442695
      %v1485 = vpow.pop %v1484
      %v1486 = vmul.f32 %v1444, 1.442695
      %v1487 = vpow.pop %v1486
      %v1488 = vmul.f32 %v1445, 1.442695
      %v1489 = vpow.pop %v1488
      %v1490 = vmul.f32 %v1446, 1.442695
      %v1491 = vpow.pop %v1490
      %v1492 = vmul.f32 %v1447, 1.442695
      %v1493 = vpow.pop %v1492
      %v1494 = vmul.f32 %v1448, 1.442695
      %v1495 = vpow.pop %v1494
      %v1496 = vmul.f32 %v1449, 1.442695
      %v1497 = vpow.pop %v1496
      %v1498 = vmul.f32 %v1450, 1.442695
      %v1499 = vpow.pop %v1498
      %v1500 = vmul.f32 %v1451, 1.442695
      %v1501 = vpow.pop %v1500
      %v1502 = vmul.f32 %v1452, 1.442695
      %v1503 = vpow.pop %v1502
      %v1504 = vmul.f32 %v1453, 1.442695
      %v1505 = vpow.pop %v1504
      %v1506 = vmul.f32 %v1454, 1.442695
      %v1507 = vpow.pop %v1506
      %v1508 = vmul.f32 %v1455, 1.442695
      %v1509 = vpow.pop %v1508
      %v1510 = vmul.f32 %v1456, 1.442695
      %v1511 = vpow.pop %v1510
      %v1512 = vmul.f32 %v1457, 1.442695
      %v1513 = vpow.pop %v1512
      %v1514 = vmul.f32 %v1458, 1.442695
      %v1515 = vpow.pop %v1514
      %v1516 = vmul.f32 %v1459, 1.442695
      %v1517 = vpow.pop %v1516
      %v1518 = vmul.f32 %v1460, 1.442695
      %v1519 = vpow.pop %v1518
      %v1520 = vmul.f32 %v1461, 1.442695
      %v1521 = vpow.pop %v1520
      %v1522 = vmul.f32 %v1462, 1.442695
      %v1523 = vpow.pop %v1522
      %v1524 = vmul.f32 %v1463, 1.442695
      %v1525 = vpow.pop %v1524
      %v1526 = vmul.f32 %v1464, 1.442695
      %v1527 = vpow.pop %v1526
      %v1528 = vmul.f32 %v1465, 1.442695
      %v1529 = vpow.pop %v1528
      %v1530 = vsel %vm1337, %v1467, 0.0
      %1531 = vadd.xlane.f32.xlu0 %v1530
      %v1532 = vpop.xlane.xlu0 %1531
      %v1533 = vsel %vm1337, %v1469, 0.0
      %1534 = vadd.xlane.f32.xlu0 %v1533
      %v1535 = vpop.xlane.xlu0 %1534
      %v1536 = vsel %vm1337, %v1471, 0.0
      %1537 = vadd.xlane.f32.xlu0 %v1536
      %v1538 = vpop.xlane.xlu0 %1537
      %v1539 = vsel %vm1337, %v1473, 0.0
      %1540 = vadd.xlane.f32.xlu0 %v1539
      %v1541 = vpop.xlane.xlu0 %1540
      %v1542 = vsel %vm1337, %v1475, 0.0
      %1543 = vadd.xlane.f32.xlu0 %v1542
      %v1544 = vpop.xlane.xlu0 %1543
      %v1545 = vsel %vm1337, %v1477, 0.0
      %1546 = vadd.xlane.f32.xlu0 %v1545
      %v1547 = vpop.xlane.xlu0 %1546
      %v1548 = vsel %vm1337, %v1479, 0.0
      %1549 = vadd.xlane.f32.xlu0 %v1548
      %v1550 = vpop.xlane.xlu0 %1549
      %v1551 = vsel %vm1337, %v1481, 0.0
      %1552 = vadd.xlane.f32.xlu0 %v1551
      %v1553 = vpop.xlane.xlu0 %1552
      %v1554 = vsel %vm1337, %v1483, 0.0
      %1555 = vadd.xlane.f32.xlu0 %v1554
      %v1556 = vpop.xlane.xlu0 %1555
      %v1557 = vsel %vm1337, %v1485, 0.0
      %1558 = vadd.xlane.f32.xlu0 %v1557
      %v1559 = vpop.xlane.xlu0 %1558
      %v1560 = vsel %vm1337, %v1487, 0.0
      %1561 = vadd.xlane.f32.xlu0 %v1560
      %v1562 = vpop.xlane.xlu0 %1561
      %v1563 = vsel %vm1337, %v1489, 0.0
      %1564 = vadd.xlane.f32.xlu0 %v1563
      %v1565 = vpop.xlane.xlu0 %1564
      %v1566 = vsel %vm1337, %v1491, 0.0
      %1567 = vadd.xlane.f32.xlu0 %v1566
      %v1568 = vpop.xlane.xlu0 %1567
      %v1569 = vsel %vm1337, %v1493, 0.0
      %1570 = vadd.xlane.f32.xlu0 %v1569
      %v1571 = vpop.xlane.xlu0 %1570
      %v1572 = vsel %vm1337, %v1495, 0.0
      %1573 = vadd.xlane.f32.xlu0 %v1572
      %v1574 = vpop.xlane.xlu0 %1573
      %v1575 = vsel %vm1337, %v1497, 0.0
      %1576 = vadd.xlane.f32.xlu0 %v1575
      %v1577 = vpop.xlane.xlu0 %1576
      %v1578 = vsel %vm1337, %v1499, 0.0
      %1579 = vadd.xlane.f32.xlu0 %v1578
      %v1580 = vpop.xlane.xlu0 %1579
      %v1581 = vsel %vm1337, %v1501, 0.0
      %1582 = vadd.xlane.f32.xlu0 %v1581
      %v1583 = vpop.xlane.xlu0 %1582
      %v1584 = vsel %vm1337, %v1503, 0.0
      %1585 = vadd.xlane.f32.xlu0 %v1584
      %v1586 = vpop.xlane.xlu0 %1585
      %v1587 = vsel %vm1337, %v1505, 0.0
      %1588 = vadd.xlane.f32.xlu0 %v1587
      %v1589 = vpop.xlane.xlu0 %1588
      %v1590 = vsel %vm1337, %v1507, 0.0
      %1591 = vadd.xlane.f32.xlu0 %v1590
      %v1592 = vpop.xlane.xlu0 %1591
      %v1593 = vsel %vm1337, %v1509, 0.0
      %1594 = vadd.xlane.f32.xlu0 %v1593
      %v1595 = vpop.xlane.xlu0 %1594
      %v1596 = vsel %vm1337, %v1511, 0.0
      %1597 = vadd.xlane.f32.xlu0 %v1596
      %v1598 = vpop.xlane.xlu0 %1597
      %v1599 = vsel %vm1337, %v1513, 0.0
      %1600 = vadd.xlane.f32.xlu0 %v1599
      %v1601 = vpop.xlane.xlu0 %1600
      %v1602 = vsel %vm1337, %v1515, 0.0
      %1603 = vadd.xlane.f32.xlu0 %v1602
      %v1604 = vpop.xlane.xlu0 %1603
      %v1605 = vsel %vm1337, %v1517, 0.0
      %1606 = vadd.xlane.f32.xlu0 %v1605
      %v1607 = vpop.xlane.xlu0 %1606
      %v1608 = vsel %vm1337, %v1519, 0.0
      %1609 = vadd.xlane.f32.xlu0 %v1608
      %v1610 = vpop.xlane.xlu0 %1609
      %v1611 = vsel %vm1337, %v1521, 0.0
      %1612 = vadd.xlane.f32.xlu0 %v1611
      %v1613 = vpop.xlane.xlu0 %1612
      %v1614 = vsel %vm1337, %v1523, 0.0
      %1615 = vadd.xlane.f32.xlu0 %v1614
      %v1616 = vpop.xlane.xlu0 %1615
      %v1617 = vsel %vm1337, %v1525, 0.0
      %1618 = vadd.xlane.f32.xlu0 %v1617
      %v1619 = vpop.xlane.xlu0 %1618
      %v1620 = vsel %vm1337, %v1527, 0.0
      %1621 = vadd.xlane.f32.xlu0 %v1620
      %v1622 = vpop.xlane.xlu0 %1621
      %v1623 = vsel %vm1337, %v1529, 0.0
      %1624 = vadd.xlane.f32.xlu0 %v1623
      %v1625 = vpop.xlane.xlu0 %1624
      %1626 = vrot.lane.b32.xlu0 %v462, 64
      %v1627 = vpop.permute.xlu0 %1626
      %1628 = vrot.lane.b32.xlu0 %v467, 64
      %v1629 = vpop.permute.xlu0 %1628
      %1630 = vrot.lane.b32.xlu0 %v472, 64
      %v1631 = vpop.permute.xlu0 %1630
      %1632 = vrot.lane.b32.xlu0 %v477, 64
      %v1633 = vpop.permute.xlu0 %1632
      %1634 = vrot.lane.b32.xlu0 %v482, 64
      %v1635 = vpop.permute.xlu0 %1634
      %1636 = vrot.lane.b32.xlu0 %v487, 64
      %v1637 = vpop.permute.xlu0 %1636
      %1638 = vrot.lane.b32.xlu0 %v492, 64
      %v1639 = vpop.permute.xlu0 %1638
      %1640 = vrot.lane.b32.xlu0 %v497, 64
      %v1641 = vpop.permute.xlu0 %1640
      %v1651 = vsel %vm1337, %v1467, 0
      %v1654 = vsel %vm1337, %v1469, 0
      %v1657 = vsel %vm1337, %v1471, 0
      %v1660 = vsel %vm1337, %v1473, 0
      %v1663 = vsel %vm1337, %v1475, 0
      %v1666 = vsel %vm1337, %v1477, 0
      %v1669 = vsel %vm1337, %v1479, 0
      %v1672 = vsel %vm1337, %v1481, 0
      %1674 = vmatprep.subr.mxu0 0.0
      %1675 = vmatpush1.msra.mxu0 %v1627
      %1676 = vmatprep.subr.mxu0 0.0
      %1677 = vmatpush1.msra.mxu0 %v1629
      %1678 = vmatprep.subr.mxu0 0.0
      %1679 = vmatpush1.msra.mxu0 %v1631
      %1680 = vmatprep.subr.mxu0 0.0
      %1681 = vmatpush1.msra.mxu0 %v1633
      %1682 = vmatprep.subr.mxu0 0.0
      %1683 = vmatpush1.msra.mxu0 %v1635
      %1684 = vmatprep.subr.mxu0 0.0
      %1685 = vmatpush1.msra.mxu0 %v1637
      %1686 = vmatprep.subr.mxu0 0.0
      %1687 = vmatpush1.msra.mxu0 %v1639
      %1688 = vmatprep.subr.mxu0 0.0
      %1689 = vmatpush1.msra.mxu0 %v1641
      %1690 = vmatprep.subr.mxu0 0.0
      %1691 = vmatpush1.msra.mxu0 0.0
      %1692 = vmatprep.subr.mxu0 0.0
      %1693 = vmatpush1.msra.mxu0 0.0
      %1694 = vmatprep.subr.mxu0 0.0
      %1695 = vmatpush1.msra.mxu0 0.0
      %1696 = vmatprep.subr.mxu0 0.0
      %1697 = vmatpush1.msra.mxu0 0.0
      %1698 = vmatprep.subr.mxu0 0.0
      %1699 = vmatpush1.msra.mxu0 0.0
      %1700 = vmatprep.subr.mxu0 0.0
      %1701 = vmatpush1.msra.mxu0 0.0
      %1702 = vmatprep.subr.mxu0 0.0
      %1703 = vmatpush1.msra.mxu0 0.0
      %1704 = vmatprep.subr.mxu0 0.0
      %1705 = vmatpush1.msra.mxu0 0.0
      %1706 = vmatprep.subr.mxu0 0.0
      %1707 = vmatpush1.msra.mxu0 0.0
      %1708 = vmatprep.subr.mxu0 0.0
      %1709 = vmatpush1.msra.mxu0 0.0
      %1710 = vmatprep.subr.mxu0 0.0
      %1711 = vmatpush1.msra.mxu0 0.0
      %1712 = vmatprep.subr.mxu0 0.0
      %1713 = vmatpush1.msra.mxu0 0.0
      %1714 = vmatprep.subr.mxu0 0.0
      %1715 = vmatpush1.msra.mxu0 0.0
      %1716 = vmatprep.subr.mxu0 0.0
      %1717 = vmatpush1.msra.mxu0 0.0
      %1718 = vmatprep.subr.mxu0 0.0
      %1719 = vmatpush1.msra.mxu0 0.0
      %1720 = vmatprep.subr.mxu0 0.0
      %1721 = vmatpush1.msra.mxu0 0.0
      %1722 = vmatprep.subr.mxu0 0.0
      %1723 = vmatpush1.msra.mxu0 0.0
      %1724 = vmatprep.subr.mxu0 0.0
      %1725 = vmatpush1.msra.mxu0 0.0
      %1726 = vmatprep.subr.mxu0 0.0
      %1727 = vmatpush1.msra.mxu0 0.0
      %1728 = vmatprep.subr.mxu0 0.0
      %1729 = vmatpush1.msra.mxu0 0.0
      %1730 = vmatprep.subr.mxu0 0.0
      %1731 = vmatpush1.msra.mxu0 0.0
      %1732 = vmatprep.subr.mxu0 0.0
      %1733 = vmatpush1.msra.mxu0 0.0
      %1734 = vmatprep.subr.mxu0 0.0
      %1735 = vmatpush1.msra.mxu0 0.0
      %1736 = vmatprep.subr.mxu0 0.0
      %1737 = vmatpush1.msra.mxu0 0.0
      %1738 = vmatprep.mubr.f32.mxu0 0.0
      %1739 = vmatmul.mubr.f32.gmra.mrb[0].mxu0 %v1651
      %v1740 = vpop.f32.mrb[0].mxu0
      %v1741 = vadd.f32 0.0, %v1740
      %v1742 = vpop.f32.mrb[0].mxu0
      %1743 = vmatprep.mubr.f32.mxu0 0.0
      %1744 = vmatmul.mubr.f32.gmra.mrb[0].mxu0 %v1654
      %v1745 = vpop.f32.mrb[0].mxu0
      %v1746 = vadd.f32 0.0, %v1745
      %v1747 = vpop.f32.mrb[0].mxu0
      %1748 = vmatprep.mubr.f32.mxu0 0.0
      %1749 = vmatmul.mubr.f32.gmra.mrb[0].mxu0 %v1657
      %v1750 = vpop.f32.mrb[0].mxu0
      %v1751 = vadd.f32 0.0, %v1750
      %v1752 = vpop.f32.mrb[0].mxu0
      %1753 = vmatprep.mubr.f32.mxu0 0.0
      %1754 = vmatmul.mubr.f32.gmra.mrb[0].mxu0 %v1660
      %v1755 = vpop.f32.mrb[0].mxu0
      %v1756 = vadd.f32 0.0, %v1755
      %v1757 = vpop.f32.mrb[0].mxu0
      %1758 = vmatprep.mubr.f32.mxu0 0.0
      %1759 = vmatmul.mubr.f32.gmra.mrb[0].mxu0 %v1663
      %v1760 = vpop.f32.mrb[0].mxu0
      %v1761 = vadd.f32 0.0, %v1760
      %v1762 = vpop.f32.mrb[0].mxu0
      %1763 = vmatprep.mubr.f32.mxu0 0.0
      %1764 = vmatmul.mubr.f32.gmra.mrb[0].mxu0 %v1666
      %v1765 = vpop.f32.mrb[0].mxu0
      %v1766 = vadd.f32 0.0, %v1765
      %v1767 = vpop.f32.mrb[0].mxu0
      %1768 = vmatprep.mubr.f32.mxu0 0.0
      %1769 = vmatmul.mubr.f32.gmra.mrb[0].mxu0 %v1669
      %v1770 = vpop.f32.mrb[0].mxu0
      %v1771 = vadd.f32 0.0, %v1770
      %v1772 = vpop.f32.mrb[0].mxu0
      %1773 = vmatprep.mubr.f32.mxu0 0.0
      %1774 = vmatmul.mubr.f32.gmra.mrb[0].mxu0 %v1672
      %v1775 = vpop.f32.mrb[0].mxu0
      %v1776 = vadd.f32 0.0, %v1775
      %v1777 = vpop.f32.mrb[0].mxu0
      %1778 = vdwg.mxu0
      %1779 = vrot.lane.b32.xlu0 %v502, 64
      %v1780 = vpop.permute.xlu0 %1779
      %1781 = vrot.lane.b32.xlu0 %v507, 64
      %v1782 = vpop.permute.xlu0 %1781
      %1783 = vrot.lane.b32.xlu0 %v512, 64
      %v1784 = vpop.permute.xlu0 %1783
      %1785 = vrot.lane.b32.xlu0 %v517, 64
      %v1786 = vpop.permute.xlu0 %1785
      %1787 = vrot.lane.b32.xlu0 %v522, 64
      %v1788 = vpop.permute.xlu0 %1787
      %1789 = vrot.lane.b32.xlu0 %v527, 64
      %v1790 = vpop.permute.xlu0 %1789
      %1791 = vrot.lane.b32.xlu0 %v532, 64
      %v1792 = vpop.permute.xlu0 %1791
      %1793 = vrot.lane.b32.xlu0 %v537, 64
      %v1794 = vpop.permute.xlu0 %1793
      %v1804 = vsel %vm1337, %v1483, 0
      %v1807 = vsel %vm1337, %v1485, 0
      %v1810 = vsel %vm1337, %v1487, 0
      %v1813 = vsel %vm1337, %v1489, 0
      %v1816 = vsel %vm1337, %v1491, 0
      %v1819 = vsel %vm1337, %v1493, 0
      %v1822 = vsel %vm1337, %v1495, 0
      %v1825 = vsel %vm1337, %v1497, 0
      %1827 = vmatprep.subr.mxu0 0.0
      %1828 = vmatpush1.msra.mxu0 %v1780
      %1829 = vmatprep.subr.mxu0 0.0
      %1830 = vmatpush1.msra.mxu0 %v1782
      %1831 = vmatprep.subr.mxu0 0.0
      %1832 = vmatpush1.msra.mxu0 %v1784
      %1833 = vmatprep.subr.mxu0 0.0
      %1834 = vmatpush1.msra.mxu0 %v1786
      %1835 = vmatprep.subr.mxu0 0.0
      %1836 = vmatpush1.msra.mxu0 %v1788
      %1837 = vmatprep.subr.mxu0 0.0
      %1838 = vmatpush1.msra.mxu0 %v1790
      %1839 = vmatprep.subr.mxu0 0.0
      %1840 = vmatpush1.msra.mxu0 %v1792
      %1841 = vmatprep.subr.mxu0 0.0
      %1842 = vmatpush1.msra.mxu0 %v1794
      %1843 = vmatprep.subr.mxu0 0.0
      %1844 = vmatpush1.msra.mxu0 0.0
      %1845 = vmatprep.subr.mxu0 0.0
      %1846 = vmatpush1.msra.mxu0 0.0
      %1847 = vmatprep.subr.mxu0 0.0
      %1848 = vmatpush1.msra.mxu0 0.0
      %1849 = vmatprep.subr.mxu0 0.0
      %1850 = vmatpush1.msra.mxu0 0.0
      %1851 = vmatprep.subr.mxu0 0.0
      %1852 = vmatpush1.msra.mxu0 0.0
      %1853 = vmatprep.subr.mxu0 0.0
      %1854 = vmatpush1.msra.mxu0 0.0
      %1855 = vmatprep.subr.mxu0 0.0
      %1856 = vmatpush1.msra.mxu0 0.0
      %1857 = vmatprep.subr.mxu0 0.0
      %1858 = vmatpush1.msra.mxu0 0.0
      %1859 = vmatprep.subr.mxu0 0.0
      %1860 = vmatpush1.msra.mxu0 0.0
      %1861 = vmatprep.subr.mxu0 0.0
      %1862 = vmatpush1.msra.mxu0 0.0
      %1863 = vmatprep.subr.mxu0 0.0
      %1864 = vmatpush1.msra.mxu0 0.0
      %1865 = vmatprep.subr.mxu0 0.0
      %1866 = vmatpush1.msra.mxu0 0.0
      %1867 = vmatprep.subr.mxu0 0.0
      %1868 = vmatpush1.msra.mxu0 0.0
      %1869 = vmatprep.subr.mxu0 0.0
      %1870 = vmatpush1.msra.mxu0 0.0
      %1871 = vmatprep.subr.mxu0 0.0
      %1872 = vmatpush1.msra.mxu0 0.0
      %1873 = vmatprep.subr.mxu0 0.0
      %1874 = vmatpush1.msra.mxu0 0.0
      %1875 = vmatprep.subr.mxu0 0.0
      %1876 = vmatpush1.msra.mxu0 0.0
      %1877 = vmatprep.subr.mxu0 0.0
      %1878 = vmatpush1.msra.mxu0 0.0
      %1879 = vmatprep.subr.mxu0 0.0
      %1880 = vmatpush1.msra.mxu0 0.0
      %1881 = vmatprep.subr.mxu0 0.0
      %1882 = vmatpush1.msra.mxu0 0.0
      %1883 = vmatprep.subr.mxu0 0.0
      %1884 = vmatpush1.msra.mxu0 0.0
      %1885 = vmatprep.subr.mxu0 0.0
      %1886 = vmatpush1.msra.mxu0 0.0
      %1887 = vmatprep.subr.mxu0 0.0
      %1888 = vmatpush1.msra.mxu0 0.0
      %1889 = vmatprep.subr.mxu0 0.0
      %1890 = vmatpush1.msra.mxu0 0.0
      %1891 = vmatprep.mubr.f32.mxu0 0.0
      %1892 = vmatmul.mubr.f32.gmra.mrb[0].mxu0 %v1804
      %v1893 = vpop.f32.mrb[0].mxu0
      %v1894 = vadd.f32 0.0, %v1893
      %v1895 = vpop.f32.mrb[0].mxu0
      %1896 = vmatprep.mubr.f32.mxu0 0.0
      %1897 = vmatmul.mubr.f32.gmra.mrb[0].mxu0 %v1807
      %v1898 = vpop.f32.mrb[0].mxu0
      %v1899 = vadd.f32 0.0, %v1898
      %v1900 = vpop.f32.mrb[0].mxu0
      %1901 = vmatprep.mubr.f32.mxu0 0.0
      %1902 = vmatmul.mubr.f32.gmra.mrb[0].mxu0 %v1810
      %v1903 = vpop.f32.mrb[0].mxu0
      %v1904 = vadd.f32 0.0, %v1903
      %v1905 = vpop.f32.mrb[0].mxu0
      %1906 = vmatprep.mubr.f32.mxu0 0.0
      %1907 = vmatmul.mubr.f32.gmra.mrb[0].mxu0 %v1813
      %v1908 = vpop.f32.mrb[0].mxu0
      %v1909 = vadd.f32 0.0, %v1908
      %v1910 = vpop.f32.mrb[0].mxu0
      %1911 = vmatprep.mubr.f32.mxu0 0.0
      %1912 = vmatmul.mubr.f32.gmra.mrb[0].mxu0 %v1816
      %v1913 = vpop.f32.mrb[0].mxu0
      %v1914 = vadd.f32 0.0, %v1913
      %v1915 = vpop.f32.mrb[0].mxu0
      %1916 = vmatprep.mubr.f32.mxu0 0.0
      %1917 = vmatmul.mubr.f32.gmra.mrb[0].mxu0 %v1819
      %v1918 = vpop.f32.mrb[0].mxu0
      %v1919 = vadd.f32 0.0, %v1918
      %v1920 = vpop.f32.mrb[0].mxu0
      %1921 = vmatprep.mubr.f32.mxu0 0.0
      %1922 = vmatmul.mubr.f32.gmra.mrb[0].mxu0 %v1822
      %v1923 = vpop.f32.mrb[0].mxu0
      %v1924 = vadd.f32 0.0, %v1923
      %v1925 = vpop.f32.mrb[0].mxu0
      %1926 = vmatprep.mubr.f32.mxu0 0.0
      %1927 = vmatmul.mubr.f32.gmra.mrb[0].mxu0 %v1825
      %v1928 = vpop.f32.mrb[0].mxu0
      %v1929 = vadd.f32 0.0, %v1928
      %v1930 = vpop.f32.mrb[0].mxu0
      %1931 = vdwg.mxu0
      %1932 = vrot.lane.b32.xlu0 %v542, 64
      %v1933 = vpop.permute.xlu0 %1932
      %1934 = vrot.lane.b32.xlu0 %v547, 64
      %v1935 = vpop.permute.xlu0 %1934
      %1936 = vrot.lane.b32.xlu0 %v552, 64
      %v1937 = vpop.permute.xlu0 %1936
      %1938 = vrot.lane.b32.xlu0 %v557, 64
      %v1939 = vpop.permute.xlu0 %1938
      %1940 = vrot.lane.b32.xlu0 %v562, 64
      %v1941 = vpop.permute.xlu0 %1940
      %1942 = vrot.lane.b32.xlu0 %v567, 64
      %v1943 = vpop.permute.xlu0 %1942
      %1944 = vrot.lane.b32.xlu0 %v572, 64
      %v1945 = vpop.permute.xlu0 %1944
      %1946 = vrot.lane.b32.xlu0 %v577, 64
      %v1947 = vpop.permute.xlu0 %1946
      %v1957 = vsel %vm1337, %v1499, 0
      %v1960 = vsel %vm1337, %v1501, 0
      %v1963 = vsel %vm1337, %v1503, 0
      %v1966 = vsel %vm1337, %v1505, 0
      %v1969 = vsel %vm1337, %v1507, 0
      %v1972 = vsel %vm1337, %v1509, 0
      %v1975 = vsel %vm1337, %v1511, 0
      %v1978 = vsel %vm1337, %v1513, 0
      %1980 = vmatprep.subr.mxu0 0.0
      %1981 = vmatpush1.msra.mxu0 %v1933
      %1982 = vmatprep.subr.mxu0 0.0
      %1983 = vmatpush1.msra.mxu0 %v1935
      %1984 = vmatprep.subr.mxu0 0.0
      %1985 = vmatpush1.msra.mxu0 %v1937
      %1986 = vmatprep.subr.mxu0 0.0
      %1987 = vmatpush1.msra.mxu0 %v1939
      %1988 = vmatprep.subr.mxu0 0.0
      %1989 = vmatpush1.msra.mxu0 %v1941
      %1990 = vmatprep.subr.mxu0 0.0
      %1991 = vmatpush1.msra.mxu0 %v1943
      %1992 = vmatprep.subr.mxu0 0.0
      %1993 = vmatpush1.msra.mxu0 %v1945
      %1994 = vmatprep.subr.mxu0 0.0
      %1995 = vmatpush1.msra.mxu0 %v1947
      %1996 = vmatprep.subr.mxu0 0.0
      %1997 = vmatpush1.msra.mxu0 0.0
      %1998 = vmatprep.subr.mxu0 0.0
      %1999 = vmatpush1.msra.mxu0 0.0
      %2000 = vmatprep.subr.mxu0 0.0
      %2001 = vmatpush1.msra.mxu0 0.0
      %2002 = vmatprep.subr.mxu0 0.0
      %2003 = vmatpush1.msra.mxu0 0.0
      %2004 = vmatprep.subr.mxu0 0.0
      %2005 = vmatpush1.msra.mxu0 0.0
      %2006 = vmatprep.subr.mxu0 0.0
      %2007 = vmatpush1.msra.mxu0 0.0
      %2008 = vmatprep.subr.mxu0 0.0
      %2009 = vmatpush1.msra.mxu0 0.0
      %2010 = vmatprep.subr.mxu0 0.0
      %2011 = vmatpush1.msra.mxu0 0.0
      %2012 = vmatprep.subr.mxu0 0.0
      %2013 = vmatpush1.msra.mxu0 0.0
      %2014 = vmatprep.subr.mxu0 0.0
      %2015 = vmatpush1.msra.mxu0 0.0
      %2016 = vmatprep.subr.mxu0 0.0
      %2017 = vmatpush1.msra.mxu0 0.0
      %2018 = vmatprep.subr.mxu0 0.0
      %2019 = vmatpush1.msra.mxu0 0.0
      %2020 = vmatprep.subr.mxu0 0.0
      %2021 = vmatpush1.msra.mxu0 0.0
      %2022 = vmatprep.subr.mxu0 0.0
      %2023 = vmatpush1.msra.mxu0 0.0
      %2024 = vmatprep.subr.mxu0 0.0
      %2025 = vmatpush1.msra.mxu0 0.0
      %2026 = vmatprep.subr.mxu0 0.0
      %2027 = vmatpush1.msra.mxu0 0.0
      %2028 = vmatprep.subr.mxu0 0.0
      %2029 = vmatpush1.msra.mxu0 0.0
      %2030 = vmatprep.subr.mxu0 0.0
      %2031 = vmatpush1.msra.mxu0 0.0
      %2032 = vmatprep.subr.mxu0 0.0
      %2033 = vmatpush1.msra.mxu0 0.0
      %2034 = vmatprep.subr.mxu0 0.0
      %2035 = vmatpush1.msra.mxu0 0.0
      %2036 = vmatprep.subr.mxu0 0.0
      %2037 = vmatpush1.msra.mxu0 0.0
      %2038 = vmatprep.subr.mxu0 0.0
      %2039 = vmatpush1.msra.mxu0 0.0
      %2040 = vmatprep.subr.mxu0 0.0
      %2041 = vmatpush1.msra.mxu0 0.0
      %2042 = vmatprep.subr.mxu0 0.0
      %2043 = vmatpush1.msra.mxu0 0.0
      %2044 = vmatprep.mubr.f32.mxu0 0.0
      %2045 = vmatmul.mubr.f32.gmra.mrb[0].mxu0 %v1957
      %v2046 = vpop.f32.mrb[0].mxu0
      %v2047 = vadd.f32 0.0, %v2046
      %v2048 = vpop.f32.mrb[0].mxu0
      %2049 = vmatprep.mubr.f32.mxu0 0.0
      %2050 = vmatmul.mubr.f32.gmra.mrb[0].mxu0 %v1960
      %v2051 = vpop.f32.mrb[0].mxu0
      %v2052 = vadd.f32 0.0, %v2051
      %v2053 = vpop.f32.mrb[0].mxu0
      %2054 = vmatprep.mubr.f32.mxu0 0.0
      %2055 = vmatmul.mubr.f32.gmra.mrb[0].mxu0 %v1963
      %v2056 = vpop.f32.mrb[0].mxu0
      %v2057 = vadd.f32 0.0, %v2056
      %v2058 = vpop.f32.mrb[0].mxu0
      %2059 = vmatprep.mubr.f32.mxu0 0.0
      %2060 = vmatmul.mubr.f32.gmra.mrb[0].mxu0 %v1966
      %v2061 = vpop.f32.mrb[0].mxu0
      %v2062 = vadd.f32 0.0, %v2061
      %v2063 = vpop.f32.mrb[0].mxu0
      %2064 = vmatprep.mubr.f32.mxu0 0.0
      %2065 = vmatmul.mubr.f32.gmra.mrb[0].mxu0 %v1969
      %v2066 = vpop.f32.mrb[0].mxu0
      %v2067 = vadd.f32 0.0, %v2066
      %v2068 = vpop.f32.mrb[0].mxu0
      %2069 = vmatprep.mubr.f32.mxu0 0.0
      %2070 = vmatmul.mubr.f32.gmra.mrb[0].mxu0 %v1972
      %v2071 = vpop.f32.mrb[0].mxu0
      %v2072 = vadd.f32 0.0, %v2071
      %v2073 = vpop.f32.mrb[0].mxu0
      %2074 = vmatprep.mubr.f32.mxu0 0.0
      %2075 = vmatmul.mubr.f32.gmra.mrb[0].mxu0 %v1975
      %v2076 = vpop.f32.mrb[0].mxu0
      %v2077 = vadd.f32 0.0, %v2076
      %v2078 = vpop.f32.mrb[0].mxu0
      %2079 = vmatprep.mubr.f32.mxu0 0.0
      %2080 = vmatmul.mubr.f32.gmra.mrb[0].mxu0 %v1978
      %v2081 = vpop.f32.mrb[0].mxu0
      %v2082 = vadd.f32 0.0, %v2081
      %v2083 = vpop.f32.mrb[0].mxu0
      %2084 = vdwg.mxu0
      %2085 = vrot.lane.b32.xlu0 %v582, 64
      %v2086 = vpop.permute.xlu0 %2085
      %2087 = vrot.lane.b32.xlu0 %v587, 64
      %v2088 = vpop.permute.xlu0 %2087
      %2089 = vrot.lane.b32.xlu0 %v592, 64
      %v2090 = vpop.permute.xlu0 %2089
      %2091 = vrot.lane.b32.xlu0 %v597, 64
      %v2092 = vpop.permute.xlu0 %2091
      %2093 = vrot.lane.b32.xlu0 %v602, 64
      %v2094 = vpop.permute.xlu0 %2093
      %2095 = vrot.lane.b32.xlu0 %v607, 64
      %v2096 = vpop.permute.xlu0 %2095
      %2097 = vrot.lane.b32.xlu0 %v612, 64
      %v2098 = vpop.permute.xlu0 %2097
      %2099 = vrot.lane.b32.xlu0 %v617, 64
      %v2100 = vpop.permute.xlu0 %2099
      %v2110 = vsel %vm1337, %v1515, 0
      %v2113 = vsel %vm1337, %v1517, 0
      %v2116 = vsel %vm1337, %v1519, 0
      %v2119 = vsel %vm1337, %v1521, 0
      %v2122 = vsel %vm1337, %v1523, 0
      %v2125 = vsel %vm1337, %v1525, 0
      %v2128 = vsel %vm1337, %v1527, 0
      %v2131 = vsel %vm1337, %v1529, 0
      %2133 = vmatprep.subr.mxu0 0.0
      %2134 = vmatpush1.msra.mxu0 %v2086
      %2135 = vmatprep.subr.mxu0 0.0
      %2136 = vmatpush1.msra.mxu0 %v2088
      %2137 = vmatprep.subr.mxu0 0.0
      %2138 = vmatpush1.msra.mxu0 %v2090
      %2139 = vmatprep.subr.mxu0 0.0
      %2140 = vmatpush1.msra.mxu0 %v2092
      %2141 = vmatprep.subr.mxu0 0.0
      %2142 = vmatpush1.msra.mxu0 %v2094
      %2143 = vmatprep.subr.mxu0 0.0
      %2144 = vmatpush1.msra.mxu0 %v2096
      %2145 = vmatprep.subr.mxu0 0.0
      %2146 = vmatpush1.msra.mxu0 %v2098
      %2147 = vmatprep.subr.mxu0 0.0
      %2148 = vmatpush1.msra.mxu0 %v2100
      %2149 = vmatprep.subr.mxu0 0.0
      %2150 = vmatpush1.msra.mxu0 0.0
      %2151 = vmatprep.subr.mxu0 0.0
      %2152 = vmatpush1.msra.mxu0 0.0
      %2153 = vmatprep.subr.mxu0 0.0
      %2154 = vmatpush1.msra.mxu0 0.0
      %2155 = vmatprep.subr.mxu0 0.0
      %2156 = vmatpush1.msra.mxu0 0.0
      %2157 = vmatprep.subr.mxu0 0.0
      %2158 = vmatpush1.msra.mxu0 0.0
      %2159 = vmatprep.subr.mxu0 0.0
      %2160 = vmatpush1.msra.mxu0 0.0
      %2161 = vmatprep.subr.mxu0 0.0
      %2162 = vmatpush1.msra.mxu0 0.0
      %2163 = vmatprep.subr.mxu0 0.0
      %2164 = vmatpush1.msra.mxu0 0.0
      %2165 = vmatprep.subr.mxu0 0.0
      %2166 = vmatpush1.msra.mxu0 0.0
      %2167 = vmatprep.subr.mxu0 0.0
      %2168 = vmatpush1.msra.mxu0 0.0
      %2169 = vmatprep.subr.mxu0 0.0
      %2170 = vmatpush1.msra.mxu0 0.0
      %2171 = vmatprep.subr.mxu0 0.0
      %2172 = vmatpush1.msra.mxu0 0.0
      %2173 = vmatprep.subr.mxu0 0.0
      %2174 = vmatpush1.msra.mxu0 0.0
      %2175 = vmatprep.subr.mxu0 0.0
      %2176 = vmatpush1.msra.mxu0 0.0
      %2177 = vmatprep.subr.mxu0 0.0
      %2178 = vmatpush1.msra.mxu0 0.0
      %2179 = vmatprep.subr.mxu0 0.0
      %2180 = vmatpush1.msra.mxu0 0.0
      %2181 = vmatprep.subr.mxu0 0.0
      %2182 = vmatpush1.msra.mxu0 0.0
      %2183 = vmatprep.subr.mxu0 0.0
      %2184 = vmatpush1.msra.mxu0 0.0
      %2185 = vmatprep.subr.mxu0 0.0
      %2186 = vmatpush1.msra.mxu0 0.0
      %2187 = vmatprep.subr.mxu0 0.0
      %2188 = vmatpush1.msra.mxu0 0.0
      %2189 = vmatprep.subr.mxu0 0.0
      %2190 = vmatpush1.msra.mxu0 0.0
      %2191 = vmatprep.subr.mxu0 0.0
      %2192 = vmatpush1.msra.mxu0 0.0
      %2193 = vmatprep.subr.mxu0 0.0
      %2194 = vmatpush1.msra.mxu0 0.0
      %2195 = vmatprep.subr.mxu0 0.0
      %2196 = vmatpush1.msra.mxu0 0.0
      %2197 = vmatprep.mubr.f32.mxu0 0.0
      %2198 = vmatmul.mubr.f32.gmra.mrb[0].mxu0 %v2110
      %v2199 = vpop.f32.mrb[0].mxu0
      %v2200 = vadd.f32 0.0, %v2199
      %v2201 = vpop.f32.mrb[0].mxu0
      %2202 = vmatprep.mubr.f32.mxu0 0.0
      %2203 = vmatmul.mubr.f32.gmra.mrb[0].mxu0 %v2113
      %v2204 = vpop.f32.mrb[0].mxu0
      %v2205 = vadd.f32 0.0, %v2204
      %v2206 = vpop.f32.mrb[0].mxu0
      %2207 = vmatprep.mubr.f32.mxu0 0.0
      %2208 = vmatmul.mubr.f32.gmra.mrb[0].mxu0 %v2116
      %v2209 = vpop.f32.mrb[0].mxu0
      %v2210 = vadd.f32 0.0, %v2209
      %v2211 = vpop.f32.mrb[0].mxu0
      %2212 = vmatprep.mubr.f32.mxu0 0.0
      %2213 = vmatmul.mubr.f32.gmra.mrb[0].mxu0 %v2119
      %v2214 = vpop.f32.mrb[0].mxu0
      %v2215 = vadd.f32 0.0, %v2214
      %v2216 = vpop.f32.mrb[0].mxu0
      %2217 = vmatprep.mubr.f32.mxu0 0.0
      %2218 = vmatmul.mubr.f32.gmra.mrb[0].mxu0 %v2122
      %v2219 = vpop.f32.mrb[0].mxu0
      %v2220 = vadd.f32 0.0, %v2219
      %v2221 = vpop.f32.mrb[0].mxu0
      %2222 = vmatprep.mubr.f32.mxu0 0.0
      %2223 = vmatmul.mubr.f32.gmra.mrb[0].mxu0 %v2125
      %v2224 = vpop.f32.mrb[0].mxu0
      %v2225 = vadd.f32 0.0, %v2224
      %v2226 = vpop.f32.mrb[0].mxu0
      %2227 = vmatprep.mubr.f32.mxu0 0.0
      %2228 = vmatmul.mubr.f32.gmra.mrb[0].mxu0 %v2128
      %v2229 = vpop.f32.mrb[0].mxu0
      %v2230 = vadd.f32 0.0, %v2229
      %v2231 = vpop.f32.mrb[0].mxu0
      %2232 = vmatprep.mubr.f32.mxu0 0.0
      %2233 = vmatmul.mubr.f32.gmra.mrb[0].mxu0 %v2131
      %v2234 = vpop.f32.mrb[0].mxu0
      %v2235 = vadd.f32 0.0, %v2234
      %v2236 = vpop.f32.mrb[0].mxu0
      %2237 = vdwg.mxu0
      %v2238 = vrcp.pop %v1532
      %v2239 = vrcp.pop %v1535
      %v2240 = vrcp.pop %v1538
      %v2241 = vrcp.pop %v1541
      %v2242 = vrcp.pop %v1544
      %v2243 = vrcp.pop %v1547
      %v2244 = vrcp.pop %v1550
      %v2245 = vrcp.pop %v1553
      %v2246 = vrcp.pop %v1556
      %v2247 = vrcp.pop %v1559
      %v2248 = vrcp.pop %v1562
      %v2249 = vrcp.pop %v1565
      %v2250 = vrcp.pop %v1568
      %v2251 = vrcp.pop %v1571
      %v2252 = vrcp.pop %v1574
      %v2253 = vrcp.pop %v1577
      %v2254 = vrcp.pop %v1580
      %v2255 = vrcp.pop %v1583
      %v2256 = vrcp.pop %v1586
      %v2257 = vrcp.pop %v1589
      %v2258 = vrcp.pop %v1592
      %v2259 = vrcp.pop %v1595
      %v2260 = vrcp.pop %v1598
      %v2261 = vrcp.pop %v1601
      %v2262 = vrcp.pop %v1604
      %v2263 = vrcp.pop %v1607
      %v2264 = vrcp.pop %v1610
      %v2265 = vrcp.pop %v1613
      %v2266 = vrcp.pop %v1616
      %v2267 = vrcp.pop %v1619
      %v2268 = vrcp.pop %v1622
      %v2269 = vrcp.pop %v1625
      %v2270 = vmul.f32 %v1741, %v2238
      %v2271 = vmul.f32 %v1746, %v2239
      %v2272 = vmul.f32 %v1751, %v2240
      %v2273 = vmul.f32 %v1756, %v2241
      %v2274 = vmul.f32 %v1761, %v2242
      %v2275 = vmul.f32 %v1766, %v2243
      %v2276 = vmul.f32 %v1771, %v2244
      %v2277 = vmul.f32 %v1776, %v2245
      %v2278 = vmul.f32 %v1894, %v2246
      %v2279 = vmul.f32 %v1899, %v2247
      %v2280 = vmul.f32 %v1904, %v2248
      %v2281 = vmul.f32 %v1909, %v2249
      %v2282 = vmul.f32 %v1914, %v2250
      %v2283 = vmul.f32 %v1919, %v2251
      %v2284 = vmul.f32 %v1924, %v2252
      %v2285 = vmul.f32 %v1929, %v2253
      %v2286 = vmul.f32 %v2047, %v2254
      %v2287 = vmul.f32 %v2052, %v2255
      %v2288 = vmul.f32 %v2057, %v2256
      %v2289 = vmul.f32 %v2062, %v2257
      %v2290 = vmul.f32 %v2067, %v2258
      %v2291 = vmul.f32 %v2072, %v2259
      %v2292 = vmul.f32 %v2077, %v2260
      %v2293 = vmul.f32 %v2082, %v2261
      %v2294 = vmul.f32 %v2200, %v2262
      %v2295 = vmul.f32 %v2205, %v2263
      %v2296 = vmul.f32 %v2210, %v2264
      %v2297 = vmul.f32 %v2215, %v2265
      %v2298 = vmul.f32 %v2220, %v2266
      %v2299 = vmul.f32 %v2225, %v2267
      %v2300 = vmul.f32 %v2230, %v2268
      %v2301 = vmul.f32 %v2235, %v2269
      %2302 = vrot.lane.b32.xlu0 %v628, 120
      %v2303 = vpop.permute.xlu0 %2302
      %2304 = vrot.lane.b32.xlu0 %v629, 120
      %v2305 = vpop.permute.xlu0 %2304
      %2306 = vrot.lane.b32.xlu0 %v630, 120
      %v2307 = vpop.permute.xlu0 %2306
      %2308 = vrot.lane.b32.xlu0 %v631, 120
      %v2309 = vpop.permute.xlu0 %2308
      %2310 = vrot.lane.b32.xlu0 %v632, 120
      %v2311 = vpop.permute.xlu0 %2310
      %2312 = vrot.lane.b32.xlu0 %v633, 120
      %v2313 = vpop.permute.xlu0 %2312
      %2314 = vrot.lane.b32.xlu0 %v634, 120
      %v2315 = vpop.permute.xlu0 %2314
      %2316 = vrot.lane.b32.xlu0 %v635, 120
      %v2317 = vpop.permute.xlu0 %2316
      %2318 = vrot.lane.b32.xlu0 %v462, 88
      %v2319 = vpop.permute.xlu0 %2318
      %2320 = vrot.lane.b32.xlu0 %v467, 88
      %v2321 = vpop.permute.xlu0 %2320
      %2322 = vrot.lane.b32.xlu0 %v472, 88
      %v2323 = vpop.permute.xlu0 %2322
      %2324 = vrot.lane.b32.xlu0 %v477, 88
      %v2325 = vpop.permute.xlu0 %2324
      %2326 = vrot.lane.b32.xlu0 %v482, 88
      %v2327 = vpop.permute.xlu0 %2326
      %2328 = vrot.lane.b32.xlu0 %v487, 88
      %v2329 = vpop.permute.xlu0 %2328
      %2330 = vrot.lane.b32.xlu0 %v492, 88
      %v2331 = vpop.permute.xlu0 %2330
      %2332 = vrot.lane.b32.xlu0 %v497, 88
      %v2333 = vpop.permute.xlu0 %2332
      %v2334 = vsel %vm684, %v2303, 0
      %v2336 = vsel %vm684, %v2305, 0
      %v2338 = vsel %vm684, %v2307, 0
      %v2340 = vsel %vm684, %v2309, 0
      %v2342 = vsel %vm684, %v2311, 0
      %v2344 = vsel %vm684, %v2313, 0
      %v2346 = vsel %vm684, %v2315, 0
      %v2348 = vsel %vm684, %v2317, 0
      %v2350 = vsel %vm684, %v2319, 0
      %v2352 = vsel %vm684, %v2321, 0
      %v2354 = vsel %vm684, %v2323, 0
      %v2356 = vsel %vm684, %v2325, 0
      %v2358 = vsel %vm684, %v2327, 0
      %v2360 = vsel %vm684, %v2329, 0
      %v2362 = vsel %vm684, %v2331, 0
      %v2364 = vsel %vm684, %v2333, 0
      %2366 = vmatprep.subr.mxu0 0.0
      %2367 = vmatpush1.xpose.msra.mxu0 %v2350
      %2368 = vmatprep.subr.mxu0 0.0
      %2369 = vmatpush1.xpose.msra.mxu0 %v2352
      %2370 = vmatprep.subr.mxu0 0.0
      %2371 = vmatpush1.xpose.msra.mxu0 %v2354
      %2372 = vmatprep.subr.mxu0 0.0
      %2373 = vmatpush1.xpose.msra.mxu0 %v2356
      %2374 = vmatprep.subr.mxu0 0.0
      %2375 = vmatpush1.xpose.msra.mxu0 %v2358
      %2376 = vmatprep.subr.mxu0 0.0
      %2377 = vmatpush1.xpose.msra.mxu0 %v2360
      %2378 = vmatprep.subr.mxu0 0.0
      %2379 = vmatpush1.xpose.msra.mxu0 %v2362
      %2380 = vmatprep.subr.mxu0 0.0
      %2381 = vmatpush1.xpose.msra.mxu0 %v2364
      %2382 = vmatprep.subr.mxu0 0.0
      %2383 = vmatpush1.xpose.msra.mxu0 0.0
      %2384 = vmatprep.subr.mxu0 0.0
      %2385 = vmatpush1.xpose.msra.mxu0 0.0
      %2386 = vmatprep.subr.mxu0 0.0
      %2387 = vmatpush1.xpose.msra.mxu0 0.0
      %2388 = vmatprep.subr.mxu0 0.0
      %2389 = vmatpush1.xpose.msra.mxu0 0.0
      %2390 = vmatprep.subr.mxu0 0.0
      %2391 = vmatpush1.xpose.msra.mxu0 0.0
      %2392 = vmatprep.subr.mxu0 0.0
      %2393 = vmatpush1.xpose.msra.mxu0 0.0
      %2394 = vmatprep.subr.mxu0 0.0
      %2395 = vmatpush1.xpose.msra.mxu0 0.0
      %2396 = vmatprep.subr.mxu0 0.0
      %2397 = vmatpush1.xpose.msra.mxu0 0.0
      %2398 = vmatprep.subr.mxu0 0.0
      %2399 = vmatpush1.xpose.msra.mxu0 0.0
      %2400 = vmatprep.subr.mxu0 0.0
      %2401 = vmatpush1.xpose.msra.mxu0 0.0
      %2402 = vmatprep.subr.mxu0 0.0
      %2403 = vmatpush1.xpose.msra.mxu0 0.0
      %2404 = vmatprep.subr.mxu0 0.0
      %2405 = vmatpush1.xpose.msra.mxu0 0.0
      %2406 = vmatprep.subr.mxu0 0.0
      %2407 = vmatpush1.xpose.msra.mxu0 0.0
      %2408 = vmatprep.subr.mxu0 0.0
      %2409 = vmatpush1.xpose.msra.mxu0 0.0
      %2410 = vmatprep.subr.mxu0 0.0
      %2411 = vmatpush1.xpose.msra.mxu0 0.0
      %2412 = vmatprep.subr.mxu0 0.0
      %2413 = vmatpush1.xpose.msra.mxu0 0.0
      %2414 = vmatprep.subr.mxu0 0.0
      %2415 = vmatpush1.xpose.msra.mxu0 0.0
      %2416 = vmatprep.subr.mxu0 0.0
      %2417 = vmatpush1.xpose.msra.mxu0 0.0
      %2418 = vmatprep.subr.mxu0 0.0
      %2419 = vmatpush1.xpose.msra.mxu0 0.0
      %2420 = vmatprep.subr.mxu0 0.0
      %2421 = vmatpush1.xpose.msra.mxu0 0.0
      %2422 = vmatprep.subr.mxu0 0.0
      %2423 = vmatpush1.xpose.msra.mxu0 0.0
      %2424 = vmatprep.subr.mxu0 0.0
      %2425 = vmatpush1.xpose.msra.mxu0 0.0
      %2426 = vmatprep.subr.mxu0 0.0
      %2427 = vmatpush1.xpose.msra.mxu0 0.0
      %2428 = vmatprep.subr.mxu0 0.0
      %2429 = vmatpush1.xpose.msra.mxu0 0.0
      %2430 = vmatprep.mubr.f32.mxu0 0.0
      %2431 = vmatmul.mubr.f32.gmra.mrb[0].mxu0 %v2334
      %v2432 = vpop.f32.mrb[0].mxu0
      %v2433 = vadd.f32 %v620, %v2432
      %v2434 = vpop.f32.mrb[0].mxu0
      %2435 = vmatprep.mubr.f32.mxu0 0.0
      %2436 = vmatmul.mubr.f32.gmra.mrb[0].mxu0 %v2336
      %v2437 = vpop.f32.mrb[0].mxu0
      %v2438 = vadd.f32 %v621, %v2437
      %v2439 = vpop.f32.mrb[0].mxu0
      %2440 = vmatprep.mubr.f32.mxu0 0.0
      %2441 = vmatmul.mubr.f32.gmra.mrb[0].mxu0 %v2338
      %v2442 = vpop.f32.mrb[0].mxu0
      %v2443 = vadd.f32 %v622, %v2442
      %v2444 = vpop.f32.mrb[0].mxu0
      %2445 = vmatprep.mubr.f32.mxu0 0.0
      %2446 = vmatmul.mubr.f32.gmra.mrb[0].mxu0 %v2340
      %v2447 = vpop.f32.mrb[0].mxu0
      %v2448 = vadd.f32 %v623, %v2447
      %v2449 = vpop.f32.mrb[0].mxu0
      %2450 = vmatprep.mubr.f32.mxu0 0.0
      %2451 = vmatmul.mubr.f32.gmra.mrb[0].mxu0 %v2342
      %v2452 = vpop.f32.mrb[0].mxu0
      %v2453 = vadd.f32 %v624, %v2452
      %v2454 = vpop.f32.mrb[0].mxu0
      %2455 = vmatprep.mubr.f32.mxu0 0.0
      %2456 = vmatmul.mubr.f32.gmra.mrb[0].mxu0 %v2344
      %v2457 = vpop.f32.mrb[0].mxu0
      %v2458 = vadd.f32 %v625, %v2457
      %v2459 = vpop.f32.mrb[0].mxu0
      %2460 = vmatprep.mubr.f32.mxu0 0.0
      %2461 = vmatmul.mubr.f32.gmra.mrb[0].mxu0 %v2346
      %v2462 = vpop.f32.mrb[0].mxu0
      %v2463 = vadd.f32 %v626, %v2462
      %v2464 = vpop.f32.mrb[0].mxu0
      %2465 = vmatprep.mubr.f32.mxu0 0.0
      %2466 = vmatmul.mubr.f32.gmra.mrb[0].mxu0 %v2348
      %v2467 = vpop.f32.mrb[0].mxu0
      %v2468 = vadd.f32 %v627, %v2467
      %v2469 = vpop.f32.mrb[0].mxu0
      %2470 = vdwg.mxu0
      %2471 = vrot.lane.b32.xlu0 %v636, 120
      %v2472 = vpop.permute.xlu0 %2471
      %2473 = vrot.lane.b32.xlu0 %v637, 120
      %v2474 = vpop.permute.xlu0 %2473
      %2475 = vrot.lane.b32.xlu0 %v638, 120
      %v2476 = vpop.permute.xlu0 %2475
      %2477 = vrot.lane.b32.xlu0 %v639, 120
      %v2478 = vpop.permute.xlu0 %2477
      %2479 = vrot.lane.b32.xlu0 %v640, 120
      %v2480 = vpop.permute.xlu0 %2479
      %2481 = vrot.lane.b32.xlu0 %v641, 120
      %v2482 = vpop.permute.xlu0 %2481
      %2483 = vrot.lane.b32.xlu0 %v642, 120
      %v2484 = vpop.permute.xlu0 %2483
      %2485 = vrot.lane.b32.xlu0 %v643, 120
      %v2486 = vpop.permute.xlu0 %2485
      %2487 = vrot.lane.b32.xlu0 %v502, 88
      %v2488 = vpop.permute.xlu0 %2487
      %2489 = vrot.lane.b32.xlu0 %v507, 88
      %v2490 = vpop.permute.xlu0 %2489
      %2491 = vrot.lane.b32.xlu0 %v512, 88
      %v2492 = vpop.permute.xlu0 %2491
      %2493 = vrot.lane.b32.xlu0 %v517, 88
      %v2494 = vpop.permute.xlu0 %2493
      %2495 = vrot.lane.b32.xlu0 %v522, 88
      %v2496 = vpop.permute.xlu0 %2495
      %2497 = vrot.lane.b32.xlu0 %v527, 88
      %v2498 = vpop.permute.xlu0 %2497
      %2499 = vrot.lane.b32.xlu0 %v532, 88
      %v2500 = vpop.permute.xlu0 %2499
      %2501 = vrot.lane.b32.xlu0 %v537, 88
      %v2502 = vpop.permute.xlu0 %2501
      %v2503 = vsel %vm684, %v2472, 0
      %v2505 = vsel %vm684, %v2474, 0
      %v2507 = vsel %vm684, %v2476, 0
      %v2509 = vsel %vm684, %v2478, 0
      %v2511 = vsel %vm684, %v2480, 0
      %v2513 = vsel %vm684, %v2482, 0
      %v2515 = vsel %vm684, %v2484, 0
      %v2517 = vsel %vm684, %v2486, 0
      %v2519 = vsel %vm684, %v2488, 0
      %v2521 = vsel %vm684, %v2490, 0
      %v2523 = vsel %vm684, %v2492, 0
      %v2525 = vsel %vm684, %v2494, 0
      %v2527 = vsel %vm684, %v2496, 0
      %v2529 = vsel %vm684, %v2498, 0
      %v2531 = vsel %vm684, %v2500, 0
      %v2533 = vsel %vm684, %v2502, 0
      %2535 = vmatprep.subr.mxu0 0.0
      %2536 = vmatpush1.xpose.msra.mxu0 %v2519
      %2537 = vmatprep.subr.mxu0 0.0
      %2538 = vmatpush1.xpose.msra.mxu0 %v2521
      %2539 = vmatprep.subr.mxu0 0.0
      %2540 = vmatpush1.xpose.msra.mxu0 %v2523
      %2541 = vmatprep.subr.mxu0 0.0
      %2542 = vmatpush1.xpose.msra.mxu0 %v2525
      %2543 = vmatprep.subr.mxu0 0.0
      %2544 = vmatpush1.xpose.msra.mxu0 %v2527
      %2545 = vmatprep.subr.mxu0 0.0
      %2546 = vmatpush1.xpose.msra.mxu0 %v2529
      %2547 = vmatprep.subr.mxu0 0.0
      %2548 = vmatpush1.xpose.msra.mxu0 %v2531
      %2549 = vmatprep.subr.mxu0 0.0
      %2550 = vmatpush1.xpose.msra.mxu0 %v2533
      %2551 = vmatprep.subr.mxu0 0.0
      %2552 = vmatpush1.xpose.msra.mxu0 0.0
      %2553 = vmatprep.subr.mxu0 0.0
      %2554 = vmatpush1.xpose.msra.mxu0 0.0
      %2555 = vmatprep.subr.mxu0 0.0
      %2556 = vmatpush1.xpose.msra.mxu0 0.0
      %2557 = vmatprep.subr.mxu0 0.0
      %2558 = vmatpush1.xpose.msra.mxu0 0.0
      %2559 = vmatprep.subr.mxu0 0.0
      %2560 = vmatpush1.xpose.msra.mxu0 0.0
      %2561 = vmatprep.subr.mxu0 0.0
      %2562 = vmatpush1.xpose.msra.mxu0 0.0
      %2563 = vmatprep.subr.mxu0 0.0
      %2564 = vmatpush1.xpose.msra.mxu0 0.0
      %2565 = vmatprep.subr.mxu0 0.0
      %2566 = vmatpush1.xpose.msra.mxu0 0.0
      %2567 = vmatprep.subr.mxu0 0.0
      %2568 = vmatpush1.xpose.msra.mxu0 0.0
      %2569 = vmatprep.subr.mxu0 0.0
      %2570 = vmatpush1.xpose.msra.mxu0 0.0
      %2571 = vmatprep.subr.mxu0 0.0
      %2572 = vmatpush1.xpose.msra.mxu0 0.0
      %2573 = vmatprep.subr.mxu0 0.0
      %2574 = vmatpush1.xpose.msra.mxu0 0.0
      %2575 = vmatprep.subr.mxu0 0.0
      %2576 = vmatpush1.xpose.msra.mxu0 0.0
      %2577 = vmatprep.subr.mxu0 0.0
      %2578 = vmatpush1.xpose.msra.mxu0 0.0
      %2579 = vmatprep.subr.mxu0 0.0
      %2580 = vmatpush1.xpose.msra.mxu0 0.0
      %2581 = vmatprep.subr.mxu0 0.0
      %2582 = vmatpush1.xpose.msra.mxu0 0.0
      %2583 = vmatprep.subr.mxu0 0.0
      %2584 = vmatpush1.xpose.msra.mxu0 0.0
      %2585 = vmatprep.subr.mxu0 0.0
      %2586 = vmatpush1.xpose.msra.mxu0 0.0
      %2587 = vmatprep.subr.mxu0 0.0
      %2588 = vmatpush1.xpose.msra.mxu0 0.0
      %2589 = vmatprep.subr.mxu0 0.0
      %2590 = vmatpush1.xpose.msra.mxu0 0.0
      %2591 = vmatprep.subr.mxu0 0.0
      %2592 = vmatpush1.xpose.msra.mxu0 0.0
      %2593 = vmatprep.subr.mxu0 0.0
      %2594 = vmatpush1.xpose.msra.mxu0 0.0
      %2595 = vmatprep.subr.mxu0 0.0
      %2596 = vmatpush1.xpose.msra.mxu0 0.0
      %2597 = vmatprep.subr.mxu0 0.0
      %2598 = vmatpush1.xpose.msra.mxu0 0.0
      %2599 = vmatprep.mubr.f32.mxu0 0.0
      %2600 = vmatmul.mubr.f32.gmra.mrb[0].mxu0 %v2503
      %v2601 = vpop.f32.mrb[0].mxu0
      %v2602 = vadd.f32 %v620, %v2601
      %v2603 = vpop.f32.mrb[0].mxu0
      %2604 = vmatprep.mubr.f32.mxu0 0.0
      %2605 = vmatmul.mubr.f32.gmra.mrb[0].mxu0 %v2505
      %v2606 = vpop.f32.mrb[0].mxu0
      %v2607 = vadd.f32 %v621, %v2606
      %v2608 = vpop.f32.mrb[0].mxu0
      %2609 = vmatprep.mubr.f32.mxu0 0.0
      %2610 = vmatmul.mubr.f32.gmra.mrb[0].mxu0 %v2507
      %v2611 = vpop.f32.mrb[0].mxu0
      %v2612 = vadd.f32 %v622, %v2611
      %v2613 = vpop.f32.mrb[0].mxu0
      %2614 = vmatprep.mubr.f32.mxu0 0.0
      %2615 = vmatmul.mubr.f32.gmra.mrb[0].mxu0 %v2509
      %v2616 = vpop.f32.mrb[0].mxu0
      %v2617 = vadd.f32 %v623, %v2616
      %v2618 = vpop.f32.mrb[0].mxu0
      %2619 = vmatprep.mubr.f32.mxu0 0.0
      %2620 = vmatmul.mubr.f32.gmra.mrb[0].mxu0 %v2511
      %v2621 = vpop.f32.mrb[0].mxu0
      %v2622 = vadd.f32 %v624, %v2621
      %v2623 = vpop.f32.mrb[0].mxu0
      %2624 = vmatprep.mubr.f32.mxu0 0.0
      %2625 = vmatmul.mubr.f32.gmra.mrb[0].mxu0 %v2513
      %v2626 = vpop.f32.mrb[0].mxu0
      %v2627 = vadd.f32 %v625, %v2626
      %v2628 = vpop.f32.mrb[0].mxu0
      %2629 = vmatprep.mubr.f32.mxu0 0.0
      %2630 = vmatmul.mubr.f32.gmra.mrb[0].mxu0 %v2515
      %v2631 = vpop.f32.mrb[0].mxu0
      %v2632 = vadd.f32 %v626, %v2631
      %v2633 = vpop.f32.mrb[0].mxu0
      %2634 = vmatprep.mubr.f32.mxu0 0.0
      %2635 = vmatmul.mubr.f32.gmra.mrb[0].mxu0 %v2517
      %v2636 = vpop.f32.mrb[0].mxu0
      %v2637 = vadd.f32 %v627, %v2636
      %v2638 = vpop.f32.mrb[0].mxu0
      %2639 = vdwg.mxu0
      %2640 = vrot.lane.b32.xlu0 %v644, 120
      %v2641 = vpop.permute.xlu0 %2640
      %2642 = vrot.lane.b32.xlu0 %v645, 120
      %v2643 = vpop.permute.xlu0 %2642
      %2644 = vrot.lane.b32.xlu0 %v646, 120
      %v2645 = vpop.permute.xlu0 %2644
      %2646 = vrot.lane.b32.xlu0 %v647, 120
      %v2647 = vpop.permute.xlu0 %2646
      %2648 = vrot.lane.b32.xlu0 %v648, 120
      %v2649 = vpop.permute.xlu0 %2648
      %2650 = vrot.lane.b32.xlu0 %v649, 120
      %v2651 = vpop.permute.xlu0 %2650
      %2652 = vrot.lane.b32.xlu0 %v650, 120
      %v2653 = vpop.permute.xlu0 %2652
      %2654 = vrot.lane.b32.xlu0 %v651, 120
      %v2655 = vpop.permute.xlu0 %2654
      %2656 = vrot.lane.b32.xlu0 %v542, 88
      %v2657 = vpop.permute.xlu0 %2656
      %2658 = vrot.lane.b32.xlu0 %v547, 88
      %v2659 = vpop.permute.xlu0 %2658
      %2660 = vrot.lane.b32.xlu0 %v552, 88
      %v2661 = vpop.permute.xlu0 %2660
      %2662 = vrot.lane.b32.xlu0 %v557, 88
      %v2663 = vpop.permute.xlu0 %2662
      %2664 = vrot.lane.b32.xlu0 %v562, 88
      %v2665 = vpop.permute.xlu0 %2664
      %2666 = vrot.lane.b32.xlu0 %v567, 88
      %v2667 = vpop.permute.xlu0 %2666
      %2668 = vrot.lane.b32.xlu0 %v572, 88
      %v2669 = vpop.permute.xlu0 %2668
      %2670 = vrot.lane.b32.xlu0 %v577, 88
      %v2671 = vpop.permute.xlu0 %2670
      %v2672 = vsel %vm684, %v2641, 0
      %v2674 = vsel %vm684, %v2643, 0
      %v2676 = vsel %vm684, %v2645, 0
      %v2678 = vsel %vm684, %v2647, 0
      %v2680 = vsel %vm684, %v2649, 0
      %v2682 = vsel %vm684, %v2651, 0
      %v2684 = vsel %vm684, %v2653, 0
      %v2686 = vsel %vm684, %v2655, 0
      %v2688 = vsel %vm684, %v2657, 0
      %v2690 = vsel %vm684, %v2659, 0
      %v2692 = vsel %vm684, %v2661, 0
      %v2694 = vsel %vm684, %v2663, 0
      %v2696 = vsel %vm684, %v2665, 0
      %v2698 = vsel %vm684, %v2667, 0
      %v2700 = vsel %vm684, %v2669, 0
      %v2702 = vsel %vm684, %v2671, 0
      %2704 = vmatprep.subr.mxu0 0.0
      %2705 = vmatpush1.xpose.msra.mxu0 %v2688
      %2706 = vmatprep.subr.mxu0 0.0
      %2707 = vmatpush1.xpose.msra.mxu0 %v2690
      %2708 = vmatprep.subr.mxu0 0.0
      %2709 = vmatpush1.xpose.msra.mxu0 %v2692
      %2710 = vmatprep.subr.mxu0 0.0
      %2711 = vmatpush1.xpose.msra.mxu0 %v2694
      %2712 = vmatprep.subr.mxu0 0.0
      %2713 = vmatpush1.xpose.msra.mxu0 %v2696
      %2714 = vmatprep.subr.mxu0 0.0
      %2715 = vmatpush1.xpose.msra.mxu0 %v2698
      %2716 = vmatprep.subr.mxu0 0.0
      %2717 = vmatpush1.xpose.msra.mxu0 %v2700
      %2718 = vmatprep.subr.mxu0 0.0
      %2719 = vmatpush1.xpose.msra.mxu0 %v2702
      %2720 = vmatprep.subr.mxu0 0.0
      %2721 = vmatpush1.xpose.msra.mxu0 0.0
      %2722 = vmatprep.subr.mxu0 0.0
      %2723 = vmatpush1.xpose.msra.mxu0 0.0
      %2724 = vmatprep.subr.mxu0 0.0
      %2725 = vmatpush1.xpose.msra.mxu0 0.0
      %2726 = vmatprep.subr.mxu0 0.0
      %2727 = vmatpush1.xpose.msra.mxu0 0.0
      %2728 = vmatprep.subr.mxu0 0.0
      %2729 = vmatpush1.xpose.msra.mxu0 0.0
      %2730 = vmatprep.subr.mxu0 0.0
      %2731 = vmatpush1.xpose.msra.mxu0 0.0
      %2732 = vmatprep.subr.mxu0 0.0
      %2733 = vmatpush1.xpose.msra.mxu0 0.0
      %2734 = vmatprep.subr.mxu0 0.0
      %2735 = vmatpush1.xpose.msra.mxu0 0.0
      %2736 = vmatprep.subr.mxu0 0.0
      %2737 = vmatpush1.xpose.msra.mxu0 0.0
      %2738 = vmatprep.subr.mxu0 0.0
      %2739 = vmatpush1.xpose.msra.mxu0 0.0
      %2740 = vmatprep.subr.mxu0 0.0
      %2741 = vmatpush1.xpose.msra.mxu0 0.0
      %2742 = vmatprep.subr.mxu0 0.0
      %2743 = vmatpush1.xpose.msra.mxu0 0.0
      %2744 = vmatprep.subr.mxu0 0.0
      %2745 = vmatpush1.xpose.msra.mxu0 0.0
      %2746 = vmatprep.subr.mxu0 0.0
      %2747 = vmatpush1.xpose.msra.mxu0 0.0
      %2748 = vmatprep.subr.mxu0 0.0
      %2749 = vmatpush1.xpose.msra.mxu0 0.0
      %2750 = vmatprep.subr.mxu0 0.0
      %2751 = vmatpush1.xpose.msra.mxu0 0.0
      %2752 = vmatprep.subr.mxu0 0.0
      %2753 = vmatpush1.xpose.msra.mxu0 0.0
      %2754 = vmatprep.subr.mxu0 0.0
      %2755 = vmatpush1.xpose.msra.mxu0 0.0
      %2756 = vmatprep.subr.mxu0 0.0
      %2757 = vmatpush1.xpose.msra.mxu0 0.0
      %2758 = vmatprep.subr.mxu0 0.0
      %2759 = vmatpush1.xpose.msra.mxu0 0.0
      %2760 = vmatprep.subr.mxu0 0.0
      %2761 = vmatpush1.xpose.msra.mxu0 0.0
      %2762 = vmatprep.subr.mxu0 0.0
      %2763 = vmatpush1.xpose.msra.mxu0 0.0
      %2764 = vmatprep.subr.mxu0 0.0
      %2765 = vmatpush1.xpose.msra.mxu0 0.0
      %2766 = vmatprep.subr.mxu0 0.0
      %2767 = vmatpush1.xpose.msra.mxu0 0.0
      %2768 = vmatprep.mubr.f32.mxu0 0.0
      %2769 = vmatmul.mubr.f32.gmra.mrb[0].mxu0 %v2672
      %v2770 = vpop.f32.mrb[0].mxu0
      %v2771 = vadd.f32 %v620, %v2770
      %v2772 = vpop.f32.mrb[0].mxu0
      %2773 = vmatprep.mubr.f32.mxu0 0.0
      %2774 = vmatmul.mubr.f32.gmra.mrb[0].mxu0 %v2674
      %v2775 = vpop.f32.mrb[0].mxu0
      %v2776 = vadd.f32 %v621, %v2775
      %v2777 = vpop.f32.mrb[0].mxu0
      %2778 = vmatprep.mubr.f32.mxu0 0.0
      %2779 = vmatmul.mubr.f32.gmra.mrb[0].mxu0 %v2676
      %v2780 = vpop.f32.mrb[0].mxu0
      %v2781 = vadd.f32 %v622, %v2780
      %v2782 = vpop.f32.mrb[0].mxu0
      %2783 = vmatprep.mubr.f32.mxu0 0.0
      %2784 = vmatmul.mubr.f32.gmra.mrb[0].mxu0 %v2678
      %v2785 = vpop.f32.mrb[0].mxu0
      %v2786 = vadd.f32 %v623, %v2785
      %v2787 = vpop.f32.mrb[0].mxu0
      %2788 = vmatprep.mubr.f32.mxu0 0.0
      %2789 = vmatmul.mubr.f32.gmra.mrb[0].mxu0 %v2680
      %v2790 = vpop.f32.mrb[0].mxu0
      %v2791 = vadd.f32 %v624, %v2790
      %v2792 = vpop.f32.mrb[0].mxu0
      %2793 = vmatprep.mubr.f32.mxu0 0.0
      %2794 = vmatmul.mubr.f32.gmra.mrb[0].mxu0 %v2682
      %v2795 = vpop.f32.mrb[0].mxu0
      %v2796 = vadd.f32 %v625, %v2795
      %v2797 = vpop.f32.mrb[0].mxu0
      %2798 = vmatprep.mubr.f32.mxu0 0.0
      %2799 = vmatmul.mubr.f32.gmra.mrb[0].mxu0 %v2684
      %v2800 = vpop.f32.mrb[0].mxu0
      %v2801 = vadd.f32 %v626, %v2800
      %v2802 = vpop.f32.mrb[0].mxu0
      %2803 = vmatprep.mubr.f32.mxu0 0.0
      %2804 = vmatmul.mubr.f32.gmra.mrb[0].mxu0 %v2686
      %v2805 = vpop.f32.mrb[0].mxu0
      %v2806 = vadd.f32 %v627, %v2805
      %v2807 = vpop.f32.mrb[0].mxu0
      %2808 = vdwg.mxu0
      %2809 = vrot.lane.b32.xlu0 %v652, 120
      %v2810 = vpop.permute.xlu0 %2809
      %2811 = vrot.lane.b32.xlu0 %v653, 120
      %v2812 = vpop.permute.xlu0 %2811
      %2813 = vrot.lane.b32.xlu0 %v654, 120
      %v2814 = vpop.permute.xlu0 %2813
      %2815 = vrot.lane.b32.xlu0 %v655, 120
      %v2816 = vpop.permute.xlu0 %2815
      %2817 = vrot.lane.b32.xlu0 %v656, 120
      %v2818 = vpop.permute.xlu0 %2817
      %2819 = vrot.lane.b32.xlu0 %v657, 120
      %v2820 = vpop.permute.xlu0 %2819
      %2821 = vrot.lane.b32.xlu0 %v658, 120
      %v2822 = vpop.permute.xlu0 %2821
      %2823 = vrot.lane.b32.xlu0 %v659, 120
      %v2824 = vpop.permute.xlu0 %2823
      %2825 = vrot.lane.b32.xlu0 %v582, 88
      %v2826 = vpop.permute.xlu0 %2825
      %2827 = vrot.lane.b32.xlu0 %v587, 88
      %v2828 = vpop.permute.xlu0 %2827
      %2829 = vrot.lane.b32.xlu0 %v592, 88
      %v2830 = vpop.permute.xlu0 %2829
      %2831 = vrot.lane.b32.xlu0 %v597, 88
      %v2832 = vpop.permute.xlu0 %2831
      %2833 = vrot.lane.b32.xlu0 %v602, 88
      %v2834 = vpop.permute.xlu0 %2833
      %2835 = vrot.lane.b32.xlu0 %v607, 88
      %v2836 = vpop.permute.xlu0 %2835
      %2837 = vrot.lane.b32.xlu0 %v612, 88
      %v2838 = vpop.permute.xlu0 %2837
      %2839 = vrot.lane.b32.xlu0 %v617, 88
      %v2840 = vpop.permute.xlu0 %2839
      %v2841 = vsel %vm684, %v2810, 0
      %v2843 = vsel %vm684, %v2812, 0
      %v2845 = vsel %vm684, %v2814, 0
      %v2847 = vsel %vm684, %v2816, 0
      %v2849 = vsel %vm684, %v2818, 0
      %v2851 = vsel %vm684, %v2820, 0
      %v2853 = vsel %vm684, %v2822, 0
      %v2855 = vsel %vm684, %v2824, 0
      %v2857 = vsel %vm684, %v2826, 0
      %v2859 = vsel %vm684, %v2828, 0
      %v2861 = vsel %vm684, %v2830, 0
      %v2863 = vsel %vm684, %v2832, 0
      %v2865 = vsel %vm684, %v2834, 0
      %v2867 = vsel %vm684, %v2836, 0
      %v2869 = vsel %vm684, %v2838, 0
      %v2871 = vsel %vm684, %v2840, 0
      %2873 = vmatprep.subr.mxu0 0.0
      %2874 = vmatpush1.xpose.msra.mxu0 %v2857
      %2875 = vmatprep.subr.mxu0 0.0
      %2876 = vmatpush1.xpose.msra.mxu0 %v2859
      %2877 = vmatprep.subr.mxu0 0.0
      %2878 = vmatpush1.xpose.msra.mxu0 %v2861
      %2879 = vmatprep.subr.mxu0 0.0
      %2880 = vmatpush1.xpose.msra.mxu0 %v2863
      %2881 = vmatprep.subr.mxu0 0.0
      %2882 = vmatpush1.xpose.msra.mxu0 %v2865
      %2883 = vmatprep.subr.mxu0 0.0
      %2884 = vmatpush1.xpose.msra.mxu0 %v2867
      %2885 = vmatprep.subr.mxu0 0.0
      %2886 = vmatpush1.xpose.msra.mxu0 %v2869
      %2887 = vmatprep.subr.mxu0 0.0
      %2888 = vmatpush1.xpose.msra.mxu0 %v2871
      %2889 = vmatprep.subr.mxu0 0.0
      %2890 = vmatpush1.xpose.msra.mxu0 0.0
      %2891 = vmatprep.subr.mxu0 0.0
      %2892 = vmatpush1.xpose.msra.mxu0 0.0
      %2893 = vmatprep.subr.mxu0 0.0
      %2894 = vmatpush1.xpose.msra.mxu0 0.0
      %2895 = vmatprep.subr.mxu0 0.0
      %2896 = vmatpush1.xpose.msra.mxu0 0.0
      %2897 = vmatprep.subr.mxu0 0.0
      %2898 = vmatpush1.xpose.msra.mxu0 0.0
      %2899 = vmatprep.subr.mxu0 0.0
      %2900 = vmatpush1.xpose.msra.mxu0 0.0
      %2901 = vmatprep.subr.mxu0 0.0
      %2902 = vmatpush1.xpose.msra.mxu0 0.0
      %2903 = vmatprep.subr.mxu0 0.0
      %2904 = vmatpush1.xpose.msra.mxu0 0.0
      %2905 = vmatprep.subr.mxu0 0.0
      %2906 = vmatpush1.xpose.msra.mxu0 0.0
      %2907 = vmatprep.subr.mxu0 0.0
      %2908 = vmatpush1.xpose.msra.mxu0 0.0
      %2909 = vmatprep.subr.mxu0 0.0
      %2910 = vmatpush1.xpose.msra.mxu0 0.0
      %2911 = vmatprep.subr.mxu0 0.0
      %2912 = vmatpush1.xpose.msra.mxu0 0.0
      %2913 = vmatprep.subr.mxu0 0.0
      %2914 = vmatpush1.xpose.msra.mxu0 0.0
      %2915 = vmatprep.subr.mxu0 0.0
      %2916 = vmatpush1.xpose.msra.mxu0 0.0
      %2917 = vmatprep.subr.mxu0 0.0
      %2918 = vmatpush1.xpose.msra.mxu0 0.0
      %2919 = vmatprep.subr.mxu0 0.0
      %2920 = vmatpush1.xpose.msra.mxu0 0.0
      %2921 = vmatprep.subr.mxu0 0.0
      %2922 = vmatpush1.xpose.msra.mxu0 0.0
      %2923 = vmatprep.subr.mxu0 0.0
      %2924 = vmatpush1.xpose.msra.mxu0 0.0
      %2925 = vmatprep.subr.mxu0 0.0
      %2926 = vmatpush1.xpose.msra.mxu0 0.0
      %2927 = vmatprep.subr.mxu0 0.0
      %2928 = vmatpush1.xpose.msra.mxu0 0.0
      %2929 = vmatprep.subr.mxu0 0.0
      %2930 = vmatpush1.xpose.msra.mxu0 0.0
      %2931 = vmatprep.subr.mxu0 0.0
      %2932 = vmatpush1.xpose.msra.mxu0 0.0
      %2933 = vmatprep.subr.mxu0 0.0
      %2934 = vmatpush1.xpose.msra.mxu0 0.0
      %2935 = vmatprep.subr.mxu0 0.0
      %2936 = vmatpush1.xpose.msra.mxu0 0.0
      %2937 = vmatprep.mubr.f32.mxu0 0.0
      %2938 = vmatmul.mubr.f32.gmra.mrb[0].mxu0 %v2841
      %v2939 = vpop.f32.mrb[0].mxu0
      %v2940 = vadd.f32 %v620, %v2939
      %v2941 = vpop.f32.mrb[0].mxu0
      %2942 = vmatprep.mubr.f32.mxu0 0.0
      %2943 = vmatmul.mubr.f32.gmra.mrb[0].mxu0 %v2843
      %v2944 = vpop.f32.mrb[0].mxu0
      %v2945 = vadd.f32 %v621, %v2944
      %v2946 = vpop.f32.mrb[0].mxu0
      %2947 = vmatprep.mubr.f32.mxu0 0.0
      %2948 = vmatmul.mubr.f32.gmra.mrb[0].mxu0 %v2845
      %v2949 = vpop.f32.mrb[0].mxu0
      %v2950 = vadd.f32 %v622, %v2949
      %v2951 = vpop.f32.mrb[0].mxu0
      %2952 = vmatprep.mubr.f32.mxu0 0.0
      %2953 = vmatmul.mubr.f32.gmra.mrb[0].mxu0 %v2847
      %v2954 = vpop.f32.mrb[0].mxu0
      %v2955 = vadd.f32 %v623, %v2954
      %v2956 = vpop.f32.mrb[0].mxu0
      %2957 = vmatprep.mubr.f32.mxu0 0.0
      %2958 = vmatmul.mubr.f32.gmra.mrb[0].mxu0 %v2849
      %v2959 = vpop.f32.mrb[0].mxu0
      %v2960 = vadd.f32 %v624, %v2959
      %v2961 = vpop.f32.mrb[0].mxu0
      %2962 = vmatprep.mubr.f32.mxu0 0.0
      %2963 = vmatmul.mubr.f32.gmra.mrb[0].mxu0 %v2851
      %v2964 = vpop.f32.mrb[0].mxu0
      %v2965 = vadd.f32 %v625, %v2964
      %v2966 = vpop.f32.mrb[0].mxu0
      %2967 = vmatprep.mubr.f32.mxu0 0.0
      %2968 = vmatmul.mubr.f32.gmra.mrb[0].mxu0 %v2853
      %v2969 = vpop.f32.mrb[0].mxu0
      %v2970 = vadd.f32 %v626, %v2969
      %v2971 = vpop.f32.mrb[0].mxu0
      %2972 = vmatprep.mubr.f32.mxu0 0.0
      %2973 = vmatmul.mubr.f32.gmra.mrb[0].mxu0 %v2855
      %v2974 = vpop.f32.mrb[0].mxu0
      %v2975 = vadd.f32 %v627, %v2974
      %v2976 = vpop.f32.mrb[0].mxu0
      %2977 = vdwg.mxu0
      %v2978 = vsel %vm1337, %v2433, -inf
      %2979 = vmax.xlane.f32.xlu0 %v2978
      %v2980 = vpop.xlane.xlu0 %2979
      %v2981 = vsel %vm1337, %v2438, -inf
      %2982 = vmax.xlane.f32.xlu0 %v2981
      %v2983 = vpop.xlane.xlu0 %2982
      %v2984 = vsel %vm1337, %v2443, -inf
      %2985 = vmax.xlane.f32.xlu0 %v2984
      %v2986 = vpop.xlane.xlu0 %2985
      %v2987 = vsel %vm1337, %v2448, -inf
      %2988 = vmax.xlane.f32.xlu0 %v2987
      %v2989 = vpop.xlane.xlu0 %2988
      %v2990 = vsel %vm1337, %v2453, -inf
      %2991 = vmax.xlane.f32.xlu0 %v2990
      %v2992 = vpop.xlane.xlu0 %2991
      %v2993 = vsel %vm1337, %v2458, -inf
      %2994 = vmax.xlane.f32.xlu0 %v2993
      %v2995 = vpop.xlane.xlu0 %2994
      %v2996 = vsel %vm1337, %v2463, -inf
      %2997 = vmax.xlane.f32.xlu0 %v2996
      %v2998 = vpop.xlane.xlu0 %2997
      %v2999 = vsel %vm1337, %v2468, -inf
      %3000 = vmax.xlane.f32.xlu0 %v2999
      %v3001 = vpop.xlane.xlu0 %3000
      %v3002 = vsel %vm1337, %v2602, -inf
      %3003 = vmax.xlane.f32.xlu0 %v3002
      %v3004 = vpop.xlane.xlu0 %3003
      %v3005 = vsel %vm1337, %v2607, -inf
      %3006 = vmax.xlane.f32.xlu0 %v3005
      %v3007 = vpop.xlane.xlu0 %3006
      %v3008 = vsel %vm1337, %v2612, -inf
      %3009 = vmax.xlane.f32.xlu0 %v3008
      %v3010 = vpop.xlane.xlu0 %3009
      %v3011 = vsel %vm1337, %v2617, -inf
      %3012 = vmax.xlane.f32.xlu0 %v3011
      %v3013 = vpop.xlane.xlu0 %3012
      %v3014 = vsel %vm1337, %v2622, -inf
      %3015 = vmax.xlane.f32.xlu0 %v3014
      %v3016 = vpop.xlane.xlu0 %3015
      %v3017 = vsel %vm1337, %v2627, -inf
      %3018 = vmax.xlane.f32.xlu0 %v3017
      %v3019 = vpop.xlane.xlu0 %3018
      %v3020 = vsel %vm1337, %v2632, -inf
      %3021 = vmax.xlane.f32.xlu0 %v3020
      %v3022 = vpop.xlane.xlu0 %3021
      %v3023 = vsel %vm1337, %v2637, -inf
      %3024 = vmax.xlane.f32.xlu0 %v3023
      %v3025 = vpop.xlane.xlu0 %3024
      %v3026 = vsel %vm1337, %v2771, -inf
      %3027 = vmax.xlane.f32.xlu0 %v3026
      %v3028 = vpop.xlane.xlu0 %3027
      %v3029 = vsel %vm1337, %v2776, -inf
      %3030 = vmax.xlane.f32.xlu0 %v3029
      %v3031 = vpop.xlane.xlu0 %3030
      %v3032 = vsel %vm1337, %v2781, -inf
      %3033 = vmax.xlane.f32.xlu0 %v3032
      %v3034 = vpop.xlane.xlu0 %3033
      %v3035 = vsel %vm1337, %v2786, -inf
      %3036 = vmax.xlane.f32.xlu0 %v3035
      %v3037 = vpop.xlane.xlu0 %3036
      %v3038 = vsel %vm1337, %v2791, -inf
      %3039 = vmax.xlane.f32.xlu0 %v3038
      %v3040 = vpop.xlane.xlu0 %3039
      %v3041 = vsel %vm1337, %v2796, -inf
      %3042 = vmax.xlane.f32.xlu0 %v3041
      %v3043 = vpop.xlane.xlu0 %3042
      %v3044 = vsel %vm1337, %v2801, -inf
      %3045 = vmax.xlane.f32.xlu0 %v3044
      %v3046 = vpop.xlane.xlu0 %3045
      %v3047 = vsel %vm1337, %v2806, -inf
      %3048 = vmax.xlane.f32.xlu0 %v3047
      %v3049 = vpop.xlane.xlu0 %3048
      %v3050 = vsel %vm1337, %v2940, -inf
      %3051 = vmax.xlane.f32.xlu0 %v3050
      %v3052 = vpop.xlane.xlu0 %3051
      %v3053 = vsel %vm1337, %v2945, -inf
      %3054 = vmax.xlane.f32.xlu0 %v3053
      %v3055 = vpop.xlane.xlu0 %3054
      %v3056 = vsel %vm1337, %v2950, -inf
      %3057 = vmax.xlane.f32.xlu0 %v3056
      %v3058 = vpop.xlane.xlu0 %3057
      %v3059 = vsel %vm1337, %v2955, -inf
      %3060 = vmax.xlane.f32.xlu0 %v3059
      %v3061 = vpop.xlane.xlu0 %3060
      %v3062 = vsel %vm1337, %v2960, -inf
      %3063 = vmax.xlane.f32.xlu0 %v3062
      %v3064 = vpop.xlane.xlu0 %3063
      %v3065 = vsel %vm1337, %v2965, -inf
      %3066 = vmax.xlane.f32.xlu0 %v3065
      %v3067 = vpop.xlane.xlu0 %3066
      %v3068 = vsel %vm1337, %v2970, -inf
      %3069 = vmax.xlane.f32.xlu0 %v3068
      %v3070 = vpop.xlane.xlu0 %3069
      %v3071 = vsel %vm1337, %v2975, -inf
      %3072 = vmax.xlane.f32.xlu0 %v3071
      %v3073 = vpop.xlane.xlu0 %3072
      %v3074 = vsub.f32 %v2433, %v2980
      %v3075 = vsub.f32 %v2438, %v2983
      %v3076 = vsub.f32 %v2443, %v2986
      %v3077 = vsub.f32 %v2448, %v2989
      %v3078 = vsub.f32 %v2453, %v2992
      %v3079 = vsub.f32 %v2458, %v2995
      %v3080 = vsub.f32 %v2463, %v2998
      %v3081 = vsub.f32 %v2468, %v3001
      %v3082 = vsub.f32 %v2602, %v3004
      %v3083 = vsub.f32 %v2607, %v3007
      %v3084 = vsub.f32 %v2612, %v3010
      %v3085 = vsub.f32 %v2617, %v3013
      %v3086 = vsub.f32 %v2622, %v3016
      %v3087 = vsub.f32 %v2627, %v3019
      %v3088 = vsub.f32 %v2632, %v3022
      %v3089 = vsub.f32 %v2637, %v3025
      %v3090 = vsub.f32 %v2771, %v3028
      %v3091 = vsub.f32 %v2776, %v3031
      %v3092 = vsub.f32 %v2781, %v3034
      %v3093 = vsub.f32 %v2786, %v3037
      %v3094 = vsub.f32 %v2791, %v3040
      %v3095 = vsub.f32 %v2796, %v3043
      %v3096 = vsub.f32 %v2801, %v3046
      %v3097 = vsub.f32 %v2806, %v3049
      %v3098 = vsub.f32 %v2940, %v3052
      %v3099 = vsub.f32 %v2945, %v3055
      %v3100 = vsub.f32 %v2950, %v3058
      %v3101 = vsub.f32 %v2955, %v3061
      %v3102 = vsub.f32 %v2960, %v3064
      %v3103 = vsub.f32 %v2965, %v3067
      %v3104 = vsub.f32 %v2970, %v3070
      %v3105 = vsub.f32 %v2975, %v3073
      %v3106 = vmul.f32 %v3074, 1.442695
      %v3107 = vpow.pop %v3106
      %v3108 = vmul.f32 %v3075, 1.442695
      %v3109 = vpow.pop %v3108
      %v3110 = vmul.f32 %v3076, 1.442695
      %v3111 = vpow.pop %v3110
      %v3112 = vmul.f32 %v3077, 1.442695
      %v3113 = vpow.pop %v3112
      %v3114 = vmul.f32 %v3078, 1.442695
      %v3115 = vpow.pop %v3114
      %v3116 = vmul.f32 %v3079, 1.442695
      %v3117 = vpow.pop %v3116
      %v3118 = vmul.f32 %v3080, 1.442695
      %v3119 = vpow.pop %v3118
      %v3120 = vmul.f32 %v3081, 1.442695
      %v3121 = vpow.pop %v3120
      %v3122 = vmul.f32 %v3082, 1.442695
      %v3123 = vpow.pop %v3122
      %v3124 = vmul.f32 %v3083, 1.442695
      %v3125 = vpow.pop %v3124
      %v3126 = vmul.f32 %v3084, 1.442695
      %v3127 = vpow.pop %v3126
      %v3128 = vmul.f32 %v3085, 1.442695
      %v3129 = vpow.pop %v3128
      %v3130 = vmul.f32 %v3086, 1.442695
      %v3131 = vpow.pop %v3130
      %v3132 = vmul.f32 %v3087, 1.442695
      %v3133 = vpow.pop %v3132
      %v3134 = vmul.f32 %v3088, 1.442695
      %v3135 = vpow.pop %v3134
      %v3136 = vmul.f32 %v3089, 1.442695
      %v3137 = vpow.pop %v3136
      %v3138 = vmul.f32 %v3090, 1.442695
      %v3139 = vpow.pop %v3138
      %v3140 = vmul.f32 %v3091, 1.442695
      %v3141 = vpow.pop %v3140
      %v3142 = vmul.f32 %v3092, 1.442695
      %v3143 = vpow.pop %v3142
      %v3144 = vmul.f32 %v3093, 1.442695
      %v3145 = vpow.pop %v3144
      %v3146 = vmul.f32 %v3094, 1.442695
      %v3147 = vpow.pop %v3146
      %v3148 = vmul.f32 %v3095, 1.442695
      %v3149 = vpow.pop %v3148
      %v3150 = vmul.f32 %v3096, 1.442695
      %v3151 = vpow.pop %v3150
      %v3152 = vmul.f32 %v3097, 1.442695
      %v3153 = vpow.pop %v3152
      %v3154 = vmul.f32 %v3098, 1.442695
      %v3155 = vpow.pop %v3154
      %v3156 = vmul.f32 %v3099, 1.442695
      %v3157 = vpow.pop %v3156
      %v3158 = vmul.f32 %v3100, 1.442695
      %v3159 = vpow.pop %v3158
      %v3160 = vmul.f32 %v3101, 1.442695
      %v3161 = vpow.pop %v3160
      %v3162 = vmul.f32 %v3102, 1.442695
      %v3163 = vpow.pop %v3162
      %v3164 = vmul.f32 %v3103, 1.442695
      %v3165 = vpow.pop %v3164
      %v3166 = vmul.f32 %v3104, 1.442695
      %v3167 = vpow.pop %v3166
      %v3168 = vmul.f32 %v3105, 1.442695
      %v3169 = vpow.pop %v3168
      %v3170 = vsel %vm1337, %v3107, 0.0
      %3171 = vadd.xlane.f32.xlu0 %v3170
      %v3172 = vpop.xlane.xlu0 %3171
      %v3173 = vsel %vm1337, %v3109, 0.0
      %3174 = vadd.xlane.f32.xlu0 %v3173
      %v3175 = vpop.xlane.xlu0 %3174
      %v3176 = vsel %vm1337, %v3111, 0.0
      %3177 = vadd.xlane.f32.xlu0 %v3176
      %v3178 = vpop.xlane.xlu0 %3177
      %v3179 = vsel %vm1337, %v3113, 0.0
      %3180 = vadd.xlane.f32.xlu0 %v3179
      %v3181 = vpop.xlane.xlu0 %3180
      %v3182 = vsel %vm1337, %v3115, 0.0
      %3183 = vadd.xlane.f32.xlu0 %v3182
      %v3184 = vpop.xlane.xlu0 %3183
      %v3185 = vsel %vm1337, %v3117, 0.0
      %3186 = vadd.xlane.f32.xlu0 %v3185
      %v3187 = vpop.xlane.xlu0 %3186
      %v3188 = vsel %vm1337, %v3119, 0.0
      %3189 = vadd.xlane.f32.xlu0 %v3188
      %v3190 = vpop.xlane.xlu0 %3189
      %v3191 = vsel %vm1337, %v3121, 0.0
      %3192 = vadd.xlane.f32.xlu0 %v3191
      %v3193 = vpop.xlane.xlu0 %3192
      %v3194 = vsel %vm1337, %v3123, 0.0
      %3195 = vadd.xlane.f32.xlu0 %v3194
      %v3196 = vpop.xlane.xlu0 %3195
      %v3197 = vsel %vm1337, %v3125, 0.0
      %3198 = vadd.xlane.f32.xlu0 %v3197
      %v3199 = vpop.xlane.xlu0 %3198
      %v3200 = vsel %vm1337, %v3127, 0.0
      %3201 = vadd.xlane.f32.xlu0 %v3200
      %v3202 = vpop.xlane.xlu0 %3201
      %v3203 = vsel %vm1337, %v3129, 0.0
      %3204 = vadd.xlane.f32.xlu0 %v3203
      %v3205 = vpop.xlane.xlu0 %3204
      %v3206 = vsel %vm1337, %v3131, 0.0
      %3207 = vadd.xlane.f32.xlu0 %v3206
      %v3208 = vpop.xlane.xlu0 %3207
      %v3209 = vsel %vm1337, %v3133, 0.0
      %3210 = vadd.xlane.f32.xlu0 %v3209
      %v3211 = vpop.xlane.xlu0 %3210
      %v3212 = vsel %vm1337, %v3135, 0.0
      %3213 = vadd.xlane.f32.xlu0 %v3212
      %v3214 = vpop.xlane.xlu0 %3213
      %v3215 = vsel %vm1337, %v3137, 0.0
      %3216 = vadd.xlane.f32.xlu0 %v3215
      %v3217 = vpop.xlane.xlu0 %3216
      %v3218 = vsel %vm1337, %v3139, 0.0
      %3219 = vadd.xlane.f32.xlu0 %v3218
      %v3220 = vpop.xlane.xlu0 %3219
      %v3221 = vsel %vm1337, %v3141, 0.0
      %3222 = vadd.xlane.f32.xlu0 %v3221
      %v3223 = vpop.xlane.xlu0 %3222
      %v3224 = vsel %vm1337, %v3143, 0.0
      %3225 = vadd.xlane.f32.xlu0 %v3224
      %v3226 = vpop.xlane.xlu0 %3225
      %v3227 = vsel %vm1337, %v3145, 0.0
      %3228 = vadd.xlane.f32.xlu0 %v3227
      %v3229 = vpop.xlane.xlu0 %3228
      %v3230 = vsel %vm1337, %v3147, 0.0
      %3231 = vadd.xlane.f32.xlu0 %v3230
      %v3232 = vpop.xlane.xlu0 %3231
      %v3233 = vsel %vm1337, %v3149, 0.0
      %3234 = vadd.xlane.f32.xlu0 %v3233
      %v3235 = vpop.xlane.xlu0 %3234
      %v3236 = vsel %vm1337, %v3151, 0.0
      %3237 = vadd.xlane.f32.xlu0 %v3236
      %v3238 = vpop.xlane.xlu0 %3237
      %v3239 = vsel %vm1337, %v3153, 0.0
      %3240 = vadd.xlane.f32.xlu0 %v3239
      %v3241 = vpop.xlane.xlu0 %3240
      %v3242 = vsel %vm1337, %v3155, 0.0
      %3243 = vadd.xlane.f32.xlu0 %v3242
      %v3244 = vpop.xlane.xlu0 %3243
      %v3245 = vsel %vm1337, %v3157, 0.0
      %3246 = vadd.xlane.f32.xlu0 %v3245
      %v3247 = vpop.xlane.xlu0 %3246
      %v3248 = vsel %vm1337, %v3159, 0.0
      %3249 = vadd.xlane.f32.xlu0 %v3248
      %v3250 = vpop.xlane.xlu0 %3249
      %v3251 = vsel %vm1337, %v3161, 0.0
      %3252 = vadd.xlane.f32.xlu0 %v3251
      %v3253 = vpop.xlane.xlu0 %3252
      %v3254 = vsel %vm1337, %v3163, 0.0
      %3255 = vadd.xlane.f32.xlu0 %v3254
      %v3256 = vpop.xlane.xlu0 %3255
      %v3257 = vsel %vm1337, %v3165, 0.0
      %3258 = vadd.xlane.f32.xlu0 %v3257
      %v3259 = vpop.xlane.xlu0 %3258
      %v3260 = vsel %vm1337, %v3167, 0.0
      %3261 = vadd.xlane.f32.xlu0 %v3260
      %v3262 = vpop.xlane.xlu0 %3261
      %v3263 = vsel %vm1337, %v3169, 0.0
      %3264 = vadd.xlane.f32.xlu0 %v3263
      %v3265 = vpop.xlane.xlu0 %3264
      %3266 = vrot.lane.b32.xlu0 %v462, 56
      %v3267 = vpop.permute.xlu0 %3266
      %3268 = vrot.lane.b32.xlu0 %v467, 56
      %v3269 = vpop.permute.xlu0 %3268
      %3270 = vrot.lane.b32.xlu0 %v472, 56
      %v3271 = vpop.permute.xlu0 %3270
      %3272 = vrot.lane.b32.xlu0 %v477, 56
      %v3273 = vpop.permute.xlu0 %3272
      %3274 = vrot.lane.b32.xlu0 %v482, 56
      %v3275 = vpop.permute.xlu0 %3274
      %3276 = vrot.lane.b32.xlu0 %v487, 56
      %v3277 = vpop.permute.xlu0 %3276
      %3278 = vrot.lane.b32.xlu0 %v492, 56
      %v3279 = vpop.permute.xlu0 %3278
      %3280 = vrot.lane.b32.xlu0 %v497, 56
      %v3281 = vpop.permute.xlu0 %3280
      %v3291 = vsel %vm1337, %v3107, 0
      %v3294 = vsel %vm1337, %v3109, 0
      %v3297 = vsel %vm1337, %v3111, 0
      %v3300 = vsel %vm1337, %v3113, 0
      %v3303 = vsel %vm1337, %v3115, 0
      %v3306 = vsel %vm1337, %v3117, 0
      %v3309 = vsel %vm1337, %v3119, 0
      %v3312 = vsel %vm1337, %v3121, 0
      %3314 = vmatprep.subr.mxu0 0.0
      %3315 = vmatpush1.msra.mxu0 %v3267
      %3316 = vmatprep.subr.mxu0 0.0
      %3317 = vmatpush1.msra.mxu0 %v3269
      %3318 = vmatprep.subr.mxu0 0.0
      %3319 = vmatpush1.msra.mxu0 %v3271
      %3320 = vmatprep.subr.mxu0 0.0
      %3321 = vmatpush1.msra.mxu0 %v3273
      %3322 = vmatprep.subr.mxu0 0.0
      %3323 = vmatpush1.msra.mxu0 %v3275
      %3324 = vmatprep.subr.mxu0 0.0
      %3325 = vmatpush1.msra.mxu0 %v3277
      %3326 = vmatprep.subr.mxu0 0.0
      %3327 = vmatpush1.msra.mxu0 %v3279
      %3328 = vmatprep.subr.mxu0 0.0
      %3329 = vmatpush1.msra.mxu0 %v3281
      %3330 = vmatprep.subr.mxu0 0.0
      %3331 = vmatpush1.msra.mxu0 0.0
      %3332 = vmatprep.subr.mxu0 0.0
      %3333 = vmatpush1.msra.mxu0 0.0
      %3334 = vmatprep.subr.mxu0 0.0
      %3335 = vmatpush1.msra.mxu0 0.0
      %3336 = vmatprep.subr.mxu0 0.0
      %3337 = vmatpush1.msra.mxu0 0.0
      %3338 = vmatprep.subr.mxu0 0.0
      %3339 = vmatpush1.msra.mxu0 0.0
      %3340 = vmatprep.subr.mxu0 0.0
      %3341 = vmatpush1.msra.mxu0 0.0
      %3342 = vmatprep.subr.mxu0 0.0
      %3343 = vmatpush1.msra.mxu0 0.0
      %3344 = vmatprep.subr.mxu0 0.0
      %3345 = vmatpush1.msra.mxu0 0.0
      %3346 = vmatprep.subr.mxu0 0.0
      %3347 = vmatpush1.msra.mxu0 0.0
      %3348 = vmatprep.subr.mxu0 0.0
      %3349 = vmatpush1.msra.mxu0 0.0
      %3350 = vmatprep.subr.mxu0 0.0
      %3351 = vmatpush1.msra.mxu0 0.0
      %3352 = vmatprep.subr.mxu0 0.0
      %3353 = vmatpush1.msra.mxu0 0.0
      %3354 = vmatprep.subr.mxu0 0.0
      %3355 = vmatpush1.msra.mxu0 0.0
      %3356 = vmatprep.subr.mxu0 0.0
      %3357 = vmatpush1.msra.mxu0 0.0
      %3358 = vmatprep.subr.mxu0 0.0
      %3359 = vmatpush1.msra.mxu0 0.0
      %3360 = vmatprep.subr.mxu0 0.0
      %3361 = vmatpush1.msra.mxu0 0.0
      %3362 = vmatprep.subr.mxu0 0.0
      %3363 = vmatpush1.msra.mxu0 0.0
      %3364 = vmatprep.subr.mxu0 0.0
      %3365 = vmatpush1.msra.mxu0 0.0
      %3366 = vmatprep.subr.mxu0 0.0
      %3367 = vmatpush1.msra.mxu0 0.0
      %3368 = vmatprep.subr.mxu0 0.0
      %3369 = vmatpush1.msra.mxu0 0.0
      %3370 = vmatprep.subr.mxu0 0.0
      %3371 = vmatpush1.msra.mxu0 0.0
      %3372 = vmatprep.subr.mxu0 0.0
      %3373 = vmatpush1.msra.mxu0 0.0
      %3374 = vmatprep.subr.mxu0 0.0
      %3375 = vmatpush1.msra.mxu0 0.0
      %3376 = vmatprep.subr.mxu0 0.0
      %3377 = vmatpush1.msra.mxu0 0.0
      %3378 = vmatprep.mubr.f32.mxu0 0.0
      %3379 = vmatmul.mubr.f32.gmra.mrb[0].mxu0 %v3291
      %v3380 = vpop.f32.mrb[0].mxu0
      %v3381 = vadd.f32 0.0, %v3380
      %v3382 = vpop.f32.mrb[0].mxu0
      %3383 = vmatprep.mubr.f32.mxu0 0.0
      %3384 = vmatmul.mubr.f32.gmra.mrb[0].mxu0 %v3294
      %v3385 = vpop.f32.mrb[0].mxu0
      %v3386 = vadd.f32 0.0, %v3385
      %v3387 = vpop.f32.mrb[0].mxu0
      %3388 = vmatprep.mubr.f32.mxu0 0.0
      %3389 = vmatmul.mubr.f32.gmra.mrb[0].mxu0 %v3297
      %v3390 = vpop.f32.mrb[0].mxu0
      %v3391 = vadd.f32 0.0, %v3390
      %v3392 = vpop.f32.mrb[0].mxu0
      %3393 = vmatprep.mubr.f32.mxu0 0.0
      %3394 = vmatmul.mubr.f32.gmra.mrb[0].mxu0 %v3300
      %v3395 = vpop.f32.mrb[0].mxu0
      %v3396 = vadd.f32 0.0, %v3395
      %v3397 = vpop.f32.mrb[0].mxu0
      %3398 = vmatprep.mubr.f32.mxu0 0.0
      %3399 = vmatmul.mubr.f32.gmra.mrb[0].mxu0 %v3303
      %v3400 = vpop.f32.mrb[0].mxu0
      %v3401 = vadd.f32 0.0, %v3400
      %v3402 = vpop.f32.mrb[0].mxu0
      %3403 = vmatprep.mubr.f32.mxu0 0.0
      %3404 = vmatmul.mubr.f32.gmra.mrb[0].mxu0 %v3306
      %v3405 = vpop.f32.mrb[0].mxu0
      %v3406 = vadd.f32 0.0, %v3405
      %v3407 = vpop.f32.mrb[0].mxu0
      %3408 = vmatprep.mubr.f32.mxu0 0.0
      %3409 = vmatmul.mubr.f32.gmra.mrb[0].mxu0 %v3309
      %v3410 = vpop.f32.mrb[0].mxu0
      %v3411 = vadd.f32 0.0, %v3410
      %v3412 = vpop.f32.mrb[0].mxu0
      %3413 = vmatprep.mubr.f32.mxu0 0.0
      %3414 = vmatmul.mubr.f32.gmra.mrb[0].mxu0 %v3312
      %v3415 = vpop.f32.mrb[0].mxu0
      %v3416 = vadd.f32 0.0, %v3415
      %v3417 = vpop.f32.mrb[0].mxu0
      %3418 = vdwg.mxu0
      %3419 = vrot.lane.b32.xlu0 %v502, 56
      %v3420 = vpop.permute.xlu0 %3419
      %3421 = vrot.lane.b32.xlu0 %v507, 56
      %v3422 = vpop.permute.xlu0 %3421
      %3423 = vrot.lane.b32.xlu0 %v512, 56
      %v3424 = vpop.permute.xlu0 %3423
      %3425 = vrot.lane.b32.xlu0 %v517, 56
      %v3426 = vpop.permute.xlu0 %3425
      %3427 = vrot.lane.b32.xlu0 %v522, 56
      %v3428 = vpop.permute.xlu0 %3427
      %3429 = vrot.lane.b32.xlu0 %v527, 56
      %v3430 = vpop.permute.xlu0 %3429
      %3431 = vrot.lane.b32.xlu0 %v532, 56
      %v3432 = vpop.permute.xlu0 %3431
      %3433 = vrot.lane.b32.xlu0 %v537, 56
      %v3434 = vpop.permute.xlu0 %3433
      %v3444 = vsel %vm1337, %v3123, 0
      %v3447 = vsel %vm1337, %v3125, 0
      %v3450 = vsel %vm1337, %v3127, 0
      %v3453 = vsel %vm1337, %v3129, 0
      %v3456 = vsel %vm1337, %v3131, 0
      %v3459 = vsel %vm1337, %v3133, 0
      %v3462 = vsel %vm1337, %v3135, 0
      %v3465 = vsel %vm1337, %v3137, 0
      %3467 = vmatprep.subr.mxu0 0.0
      %3468 = vmatpush1.msra.mxu0 %v3420
      %3469 = vmatprep.subr.mxu0 0.0
      %3470 = vmatpush1.msra.mxu0 %v3422
      %3471 = vmatprep.subr.mxu0 0.0
      %3472 = vmatpush1.msra.mxu0 %v3424
      %3473 = vmatprep.subr.mxu0 0.0
      %3474 = vmatpush1.msra.mxu0 %v3426
      %3475 = vmatprep.subr.mxu0 0.0
      %3476 = vmatpush1.msra.mxu0 %v3428
      %3477 = vmatprep.subr.mxu0 0.0
      %3478 = vmatpush1.msra.mxu0 %v3430
      %3479 = vmatprep.subr.mxu0 0.0
      %3480 = vmatpush1.msra.mxu0 %v3432
      %3481 = vmatprep.subr.mxu0 0.0
      %3482 = vmatpush1.msra.mxu0 %v3434
      %3483 = vmatprep.subr.mxu0 0.0
      %3484 = vmatpush1.msra.mxu0 0.0
      %3485 = vmatprep.subr.mxu0 0.0
      %3486 = vmatpush1.msra.mxu0 0.0
      %3487 = vmatprep.subr.mxu0 0.0
      %3488 = vmatpush1.msra.mxu0 0.0
      %3489 = vmatprep.subr.mxu0 0.0
      %3490 = vmatpush1.msra.mxu0 0.0
      %3491 = vmatprep.subr.mxu0 0.0
      %3492 = vmatpush1.msra.mxu0 0.0
      %3493 = vmatprep.subr.mxu0 0.0
      %3494 = vmatpush1.msra.mxu0 0.0
      %3495 = vmatprep.subr.mxu0 0.0
      %3496 = vmatpush1.msra.mxu0 0.0
      %3497 = vmatprep.subr.mxu0 0.0
      %3498 = vmatpush1.msra.mxu0 0.0
      %3499 = vmatprep.subr.mxu0 0.0
      %3500 = vmatpush1.msra.mxu0 0.0
      %3501 = vmatprep.subr.mxu0 0.0
      %3502 = vmatpush1.msra.mxu0 0.0
      %3503 = vmatprep.subr.mxu0 0.0
      %3504 = vmatpush1.msra.mxu0 0.0
      %3505 = vmatprep.subr.mxu0 0.0
      %3506 = vmatpush1.msra.mxu0 0.0
      %3507 = vmatprep.subr.mxu0 0.0
      %3508 = vmatpush1.msra.mxu0 0.0
      %3509 = vmatprep.subr.mxu0 0.0
      %3510 = vmatpush1.msra.mxu0 0.0
      %3511 = vmatprep.subr.mxu0 0.0
      %3512 = vmatpush1.msra.mxu0 0.0
      %3513 = vmatprep.subr.mxu0 0.0
      %3514 = vmatpush1.msra.mxu0 0.0
      %3515 = vmatprep.subr.mxu0 0.0
      %3516 = vmatpush1.msra.mxu0 0.0
      %3517 = vmatprep.subr.mxu0 0.0
      %3518 = vmatpush1.msra.mxu0 0.0
      %3519 = vmatprep.subr.mxu0 0.0
      %3520 = vmatpush1.msra.mxu0 0.0
      %3521 = vmatprep.subr.mxu0 0.0
      %3522 = vmatpush1.msra.mxu0 0.0
      %3523 = vmatprep.subr.mxu0 0.0
      %3524 = vmatpush1.msra.mxu0 0.0
      %3525 = vmatprep.subr.mxu0 0.0
      %3526 = vmatpush1.msra.mxu0 0.0
      %3527 = vmatprep.subr.mxu0 0.0
      %3528 = vmatpush1.msra.mxu0 0.0
      %3529 = vmatprep.subr.mxu0 0.0
      %3530 = vmatpush1.msra.mxu0 0.0
      %3531 = vmatprep.mubr.f32.mxu0 0.0
      %3532 = vmatmul.mubr.f32.gmra.mrb[0].mxu0 %v3444
      %v3533 = vpop.f32.mrb[0].mxu0
      %v3534 = vadd.f32 0.0, %v3533
      %v3535 = vpop.f32.mrb[0].mxu0
      %3536 = vmatprep.mubr.f32.mxu0 0.0
      %3537 = vmatmul.mubr.f32.gmra.mrb[0].mxu0 %v3447
      %v3538 = vpop.f32.mrb[0].mxu0
      %v3539 = vadd.f32 0.0, %v3538
      %v3540 = vpop.f32.mrb[0].mxu0
      %3541 = vmatprep.mubr.f32.mxu0 0.0
      %3542 = vmatmul.mubr.f32.gmra.mrb[0].mxu0 %v3450
      %v3543 = vpop.f32.mrb[0].mxu0
      %v3544 = vadd.f32 0.0, %v3543
      %v3545 = vpop.f32.mrb[0].mxu0
      %3546 = vmatprep.mubr.f32.mxu0 0.0
      %3547 = vmatmul.mubr.f32.gmra.mrb[0].mxu0 %v3453
      %v3548 = vpop.f32.mrb[0].mxu0
      %v3549 = vadd.f32 0.0, %v3548
      %v3550 = vpop.f32.mrb[0].mxu0
      %3551 = vmatprep.mubr.f32.mxu0 0.0
      %3552 = vmatmul.mubr.f32.gmra.mrb[0].mxu0 %v3456
      %v3553 = vpop.f32.mrb[0].mxu0
      %v3554 = vadd.f32 0.0, %v3553
      %v3555 = vpop.f32.mrb[0].mxu0
      %3556 = vmatprep.mubr.f32.mxu0 0.0
      %3557 = vmatmul.mubr.f32.gmra.mrb[0].mxu0 %v3459
      %v3558 = vpop.f32.mrb[0].mxu0
      %v3559 = vadd.f32 0.0, %v3558
      %v3560 = vpop.f32.mrb[0].mxu0
      %3561 = vmatprep.mubr.f32.mxu0 0.0
      %3562 = vmatmul.mubr.f32.gmra.mrb[0].mxu0 %v3462
      %v3563 = vpop.f32.mrb[0].mxu0
      %v3564 = vadd.f32 0.0, %v3563
      %v3565 = vpop.f32.mrb[0].mxu0
      %3566 = vmatprep.mubr.f32.mxu0 0.0
      %3567 = vmatmul.mubr.f32.gmra.mrb[0].mxu0 %v3465
      %v3568 = vpop.f32.mrb[0].mxu0
      %v3569 = vadd.f32 0.0, %v3568
      %v3570 = vpop.f32.mrb[0].mxu0
      %3571 = vdwg.mxu0
      %3572 = vrot.lane.b32.xlu0 %v542, 56
      %v3573 = vpop.permute.xlu0 %3572
      %3574 = vrot.lane.b32.xlu0 %v547, 56
      %v3575 = vpop.permute.xlu0 %3574
      %3576 = vrot.lane.b32.xlu0 %v552, 56
      %v3577 = vpop.permute.xlu0 %3576
      %3578 = vrot.lane.b32.xlu0 %v557, 56
      %v3579 = vpop.permute.xlu0 %3578
      %3580 = vrot.lane.b32.xlu0 %v562, 56
      %v3581 = vpop.permute.xlu0 %3580
      %3582 = vrot.lane.b32.xlu0 %v567, 56
      %v3583 = vpop.permute.xlu0 %3582
      %3584 = vrot.lane.b32.xlu0 %v572, 56
      %v3585 = vpop.permute.xlu0 %3584
      %3586 = vrot.lane.b32.xlu0 %v577, 56
      %v3587 = vpop.permute.xlu0 %3586
      %v3597 = vsel %vm1337, %v3139, 0
      %v3600 = vsel %vm1337, %v3141, 0
      %v3603 = vsel %vm1337, %v3143, 0
      %v3606 = vsel %vm1337, %v3145, 0
      %v3609 = vsel %vm1337, %v3147, 0
      %v3612 = vsel %vm1337, %v3149, 0
      %v3615 = vsel %vm1337, %v3151, 0
      %v3618 = vsel %vm1337, %v3153, 0
      %3620 = vmatprep.subr.mxu0 0.0
      %3621 = vmatpush1.msra.mxu0 %v3573
      %3622 = vmatprep.subr.mxu0 0.0
      %3623 = vmatpush1.msra.mxu0 %v3575
      %3624 = vmatprep.subr.mxu0 0.0
      %3625 = vmatpush1.msra.mxu0 %v3577
      %3626 = vmatprep.subr.mxu0 0.0
      %3627 = vmatpush1.msra.mxu0 %v3579
      %3628 = vmatprep.subr.mxu0 0.0
      %3629 = vmatpush1.msra.mxu0 %v3581
      %3630 = vmatprep.subr.mxu0 0.0
      %3631 = vmatpush1.msra.mxu0 %v3583
      %3632 = vmatprep.subr.mxu0 0.0
      %3633 = vmatpush1.msra.mxu0 %v3585
      %3634 = vmatprep.subr.mxu0 0.0
      %3635 = vmatpush1.msra.mxu0 %v3587
      %3636 = vmatprep.subr.mxu0 0.0
      %3637 = vmatpush1.msra.mxu0 0.0
      %3638 = vmatprep.subr.mxu0 0.0
      %3639 = vmatpush1.msra.mxu0 0.0
      %3640 = vmatprep.subr.mxu0 0.0
      %3641 = vmatpush1.msra.mxu0 0.0
      %3642 = vmatprep.subr.mxu0 0.0
      %3643 = vmatpush1.msra.mxu0 0.0
      %3644 = vmatprep.subr.mxu0 0.0
      %3645 = vmatpush1.msra.mxu0 0.0
      %3646 = vmatprep.subr.mxu0 0.0
      %3647 = vmatpush1.msra.mxu0 0.0
      %3648 = vmatprep.subr.mxu0 0.0
      %3649 = vmatpush1.msra.mxu0 0.0
      %3650 = vmatprep.subr.mxu0 0.0
      %3651 = vmatpush1.msra.mxu0 0.0
      %3652 = vmatprep.subr.mxu0 0.0
      %3653 = vmatpush1.msra.mxu0 0.0
      %3654 = vmatprep.subr.mxu0 0.0
      %3655 = vmatpush1.msra.mxu0 0.0
      %3656 = vmatprep.subr.mxu0 0.0
      %3657 = vmatpush1.msra.mxu0 0.0
      %3658 = vmatprep.subr.mxu0 0.0
      %3659 = vmatpush1.msra.mxu0 0.0
      %3660 = vmatprep.subr.mxu0 0.0
      %3661 = vmatpush1.msra.mxu0 0.0
      %3662 = vmatprep.subr.mxu0 0.0
      %3663 = vmatpush1.msra.mxu0 0.0
      %3664 = vmatprep.subr.mxu0 0.0
      %3665 = vmatpush1.msra.mxu0 0.0
      %3666 = vmatprep.subr.mxu0 0.0
      %3667 = vmatpush1.msra.mxu0 0.0
      %3668 = vmatprep.subr.mxu0 0.0
      %3669 = vmatpush1.msra.mxu0 0.0
      %3670 = vmatprep.subr.mxu0 0.0
      %3671 = vmatpush1.msra.mxu0 0.0
      %3672 = vmatprep.subr.mxu0 0.0
      %3673 = vmatpush1.msra.mxu0 0.0
      %3674 = vmatprep.subr.mxu0 0.0
      %3675 = vmatpush1.msra.mxu0 0.0
      %3676 = vmatprep.subr.mxu0 0.0
      %3677 = vmatpush1.msra.mxu0 0.0
      %3678 = vmatprep.subr.mxu0 0.0
      %3679 = vmatpush1.msra.mxu0 0.0
      %3680 = vmatprep.subr.mxu0 0.0
      %3681 = vmatpush1.msra.mxu0 0.0
      %3682 = vmatprep.subr.mxu0 0.0
      %3683 = vmatpush1.msra.mxu0 0.0
      %3684 = vmatprep.mubr.f32.mxu0 0.0
      %3685 = vmatmul.mubr.f32.gmra.mrb[0].mxu0 %v3597
      %v3686 = vpop.f32.mrb[0].mxu0
      %v3687 = vadd.f32 0.0, %v3686
      %v3688 = vpop.f32.mrb[0].mxu0
      %3689 = vmatprep.mubr.f32.mxu0 0.0
      %3690 = vmatmul.mubr.f32.gmra.mrb[0].mxu0 %v3600
      %v3691 = vpop.f32.mrb[0].mxu0
      %v3692 = vadd.f32 0.0, %v3691
      %v3693 = vpop.f32.mrb[0].mxu0
      %3694 = vmatprep.mubr.f32.mxu0 0.0
      %3695 = vmatmul.mubr.f32.gmra.mrb[0].mxu0 %v3603
      %v3696 = vpop.f32.mrb[0].mxu0
      %v3697 = vadd.f32 0.0, %v3696
      %v3698 = vpop.f32.mrb[0].mxu0
      %3699 = vmatprep.mubr.f32.mxu0 0.0
      %3700 = vmatmul.mubr.f32.gmra.mrb[0].mxu0 %v3606
      %v3701 = vpop.f32.mrb[0].mxu0
      %v3702 = vadd.f32 0.0, %v3701
      %v3703 = vpop.f32.mrb[0].mxu0
      %3704 = vmatprep.mubr.f32.mxu0 0.0
      %3705 = vmatmul.mubr.f32.gmra.mrb[0].mxu0 %v3609
      %v3706 = vpop.f32.mrb[0].mxu0
      %v3707 = vadd.f32 0.0, %v3706
      %v3708 = vpop.f32.mrb[0].mxu0
      %3709 = vmatprep.mubr.f32.mxu0 0.0
      %3710 = vmatmul.mubr.f32.gmra.mrb[0].mxu0 %v3612
      %v3711 = vpop.f32.mrb[0].mxu0
      %v3712 = vadd.f32 0.0, %v3711
      %v3713 = vpop.f32.mrb[0].mxu0
      %3714 = vmatprep.mubr.f32.mxu0 0.0
      %3715 = vmatmul.mubr.f32.gmra.mrb[0].mxu0 %v3615
      %v3716 = vpop.f32.mrb[0].mxu0
      %v3717 = vadd.f32 0.0, %v3716
      %v3718 = vpop.f32.mrb[0].mxu0
      %3719 = vmatprep.mubr.f32.mxu0 0.0
      %3720 = vmatmul.mubr.f32.gmra.mrb[0].mxu0 %v3618
      %v3721 = vpop.f32.mrb[0].mxu0
      %v3722 = vadd.f32 0.0, %v3721
      %v3723 = vpop.f32.mrb[0].mxu0
      %3724 = vdwg.mxu0
      %3725 = vrot.lane.b32.xlu0 %v582, 56
      %v3726 = vpop.permute.xlu0 %3725
      %3727 = vrot.lane.b32.xlu0 %v587, 56
      %v3728 = vpop.permute.xlu0 %3727
      %3729 = vrot.lane.b32.xlu0 %v592, 56
      %v3730 = vpop.permute.xlu0 %3729
      %3731 = vrot.lane.b32.xlu0 %v597, 56
      %v3732 = vpop.permute.xlu0 %3731
      %3733 = vrot.lane.b32.xlu0 %v602, 56
      %v3734 = vpop.permute.xlu0 %3733
      %3735 = vrot.lane.b32.xlu0 %v607, 56
      %v3736 = vpop.permute.xlu0 %3735
      %3737 = vrot.lane.b32.xlu0 %v612, 56
      %v3738 = vpop.permute.xlu0 %3737
      %3739 = vrot.lane.b32.xlu0 %v617, 56
      %v3740 = vpop.permute.xlu0 %3739
      %v3750 = vsel %vm1337, %v3155, 0
      %v3753 = vsel %vm1337, %v3157, 0
      %v3756 = vsel %vm1337, %v3159, 0
      %v3759 = vsel %vm1337, %v3161, 0
      %v3762 = vsel %vm1337, %v3163, 0
      %v3765 = vsel %vm1337, %v3165, 0
      %v3768 = vsel %vm1337, %v3167, 0
      %v3771 = vsel %vm1337, %v3169, 0
      %3773 = vmatprep.subr.mxu0 0.0
      %3774 = vmatpush1.msra.mxu0 %v3726
      %3775 = vmatprep.subr.mxu0 0.0
      %3776 = vmatpush1.msra.mxu0 %v3728
      %3777 = vmatprep.subr.mxu0 0.0
      %3778 = vmatpush1.msra.mxu0 %v3730
      %3779 = vmatprep.subr.mxu0 0.0
      %3780 = vmatpush1.msra.mxu0 %v3732
      %3781 = vmatprep.subr.mxu0 0.0
      %3782 = vmatpush1.msra.mxu0 %v3734
      %3783 = vmatprep.subr.mxu0 0.0
      %3784 = vmatpush1.msra.mxu0 %v3736
      %3785 = vmatprep.subr.mxu0 0.0
      %3786 = vmatpush1.msra.mxu0 %v3738
      %3787 = vmatprep.subr.mxu0 0.0
      %3788 = vmatpush1.msra.mxu0 %v3740
      %3789 = vmatprep.subr.mxu0 0.0
      %3790 = vmatpush1.msra.mxu0 0.0
      %3791 = vmatprep.subr.mxu0 0.0
      %3792 = vmatpush1.msra.mxu0 0.0
      %3793 = vmatprep.subr.mxu0 0.0
      %3794 = vmatpush1.msra.mxu0 0.0
      %3795 = vmatprep.subr.mxu0 0.0
      %3796 = vmatpush1.msra.mxu0 0.0
      %3797 = vmatprep.subr.mxu0 0.0
      %3798 = vmatpush1.msra.mxu0 0.0
      %3799 = vmatprep.subr.mxu0 0.0
      %3800 = vmatpush1.msra.mxu0 0.0
      %3801 = vmatprep.subr.mxu0 0.0
      %3802 = vmatpush1.msra.mxu0 0.0
      %3803 = vmatprep.subr.mxu0 0.0
      %3804 = vmatpush1.msra.mxu0 0.0
      %3805 = vmatprep.subr.mxu0 0.0
      %3806 = vmatpush1.msra.mxu0 0.0
      %3807 = vmatprep.subr.mxu0 0.0
      %3808 = vmatpush1.msra.mxu0 0.0
      %3809 = vmatprep.subr.mxu0 0.0
      %3810 = vmatpush1.msra.mxu0 0.0
      %3811 = vmatprep.subr.mxu0 0.0
      %3812 = vmatpush1.msra.mxu0 0.0
      %3813 = vmatprep.subr.mxu0 0.0
      %3814 = vmatpush1.msra.mxu0 0.0
      %3815 = vmatprep.subr.mxu0 0.0
      %3816 = vmatpush1.msra.mxu0 0.0
      %3817 = vmatprep.subr.mxu0 0.0
      %3818 = vmatpush1.msra.mxu0 0.0
      %3819 = vmatprep.subr.mxu0 0.0
      %3820 = vmatpush1.msra.mxu0 0.0
      %3821 = vmatprep.subr.mxu0 0.0
      %3822 = vmatpush1.msra.mxu0 0.0
      %3823 = vmatprep.subr.mxu0 0.0
      %3824 = vmatpush1.msra.mxu0 0.0
      %3825 = vmatprep.subr.mxu0 0.0
      %3826 = vmatpush1.msra.mxu0 0.0
      %3827 = vmatprep.subr.mxu0 0.0
      %3828 = vmatpush1.msra.mxu0 0.0
      %3829 = vmatprep.subr.mxu0 0.0
      %3830 = vmatpush1.msra.mxu0 0.0
      %3831 = vmatprep.subr.mxu0 0.0
      %3832 = vmatpush1.msra.mxu0 0.0
      %3833 = vmatprep.subr.mxu0 0.0
      %3834 = vmatpush1.msra.mxu0 0.0
      %3835 = vmatprep.subr.mxu0 0.0
      %3836 = vmatpush1.msra.mxu0 0.0
      %3837 = vmatprep.mubr.f32.mxu0 0.0
      %3838 = vmatmul.mubr.f32.gmra.mrb[0].mxu0 %v3750
      %v3839 = vpop.f32.mrb[0].mxu0
      %v3840 = vadd.f32 0.0, %v3839
      %v3841 = vpop.f32.mrb[0].mxu0
      %3842 = vmatprep.mubr.f32.mxu0 0.0
      %3843 = vmatmul.mubr.f32.gmra.mrb[0].mxu0 %v3753
      %v3844 = vpop.f32.mrb[0].mxu0
      %v3845 = vadd.f32 0.0, %v3844
      %v3846 = vpop.f32.mrb[0].mxu0
      %3847 = vmatprep.mubr.f32.mxu0 0.0
      %3848 = vmatmul.mubr.f32.gmra.mrb[0].mxu0 %v3756
      %v3849 = vpop.f32.mrb[0].mxu0
      %v3850 = vadd.f32 0.0, %v3849
      %v3851 = vpop.f32.mrb[0].mxu0
      %3852 = vmatprep.mubr.f32.mxu0 0.0
      %3853 = vmatmul.mubr.f32.gmra.mrb[0].mxu0 %v3759
      %v3854 = vpop.f32.mrb[0].mxu0
      %v3855 = vadd.f32 0.0, %v3854
      %v3856 = vpop.f32.mrb[0].mxu0
      %3857 = vmatprep.mubr.f32.mxu0 0.0
      %3858 = vmatmul.mubr.f32.gmra.mrb[0].mxu0 %v3762
      %v3859 = vpop.f32.mrb[0].mxu0
      %v3860 = vadd.f32 0.0, %v3859
      %v3861 = vpop.f32.mrb[0].mxu0
      %3862 = vmatprep.mubr.f32.mxu0 0.0
      %3863 = vmatmul.mubr.f32.gmra.mrb[0].mxu0 %v3765
      %v3864 = vpop.f32.mrb[0].mxu0
      %v3865 = vadd.f32 0.0, %v3864
      %v3866 = vpop.f32.mrb[0].mxu0
      %3867 = vmatprep.mubr.f32.mxu0 0.0
      %3868 = vmatmul.mubr.f32.gmra.mrb[0].mxu0 %v3768
      %v3869 = vpop.f32.mrb[0].mxu0
      %v3870 = vadd.f32 0.0, %v3869
      %v3871 = vpop.f32.mrb[0].mxu0
      %3872 = vmatprep.mubr.f32.mxu0 0.0
      %3873 = vmatmul.mubr.f32.gmra.mrb[0].mxu0 %v3771
      %v3874 = vpop.f32.mrb[0].mxu0
      %v3875 = vadd.f32 0.0, %v3874
      %v3876 = vpop.f32.mrb[0].mxu0
      %3877 = vdwg.mxu0
      %v3878 = vrcp.pop %v3172
      %v3879 = vrcp.pop %v3175
      %v3880 = vrcp.pop %v3178
      %v3881 = vrcp.pop %v3181
      %v3882 = vrcp.pop %v3184
      %v3883 = vrcp.pop %v3187
      %v3884 = vrcp.pop %v3190
      %v3885 = vrcp.pop %v3193
      %v3886 = vrcp.pop %v3196
      %v3887 = vrcp.pop %v3199
      %v3888 = vrcp.pop %v3202
      %v3889 = vrcp.pop %v3205
      %v3890 = vrcp.pop %v3208
      %v3891 = vrcp.pop %v3211
      %v3892 = vrcp.pop %v3214
      %v3893 = vrcp.pop %v3217
      %v3894 = vrcp.pop %v3220
      %v3895 = vrcp.pop %v3223
      %v3896 = vrcp.pop %v3226
      %v3897 = vrcp.pop %v3229
      %v3898 = vrcp.pop %v3232
      %v3899 = vrcp.pop %v3235
      %v3900 = vrcp.pop %v3238
      %v3901 = vrcp.pop %v3241
      %v3902 = vrcp.pop %v3244
      %v3903 = vrcp.pop %v3247
      %v3904 = vrcp.pop %v3250
      %v3905 = vrcp.pop %v3253
      %v3906 = vrcp.pop %v3256
      %v3907 = vrcp.pop %v3259
      %v3908 = vrcp.pop %v3262
      %v3909 = vrcp.pop %v3265
      %v3910 = vmul.f32 %v3381, %v3878
      %v3911 = vmul.f32 %v3386, %v3879
      %v3912 = vmul.f32 %v3391, %v3880
      %v3913 = vmul.f32 %v3396, %v3881
      %v3914 = vmul.f32 %v3401, %v3882
      %v3915 = vmul.f32 %v3406, %v3883
      %v3916 = vmul.f32 %v3411, %v3884
      %v3917 = vmul.f32 %v3416, %v3885
      %v3918 = vmul.f32 %v3534, %v3886
      %v3919 = vmul.f32 %v3539, %v3887
      %v3920 = vmul.f32 %v3544, %v3888
      %v3921 = vmul.f32 %v3549, %v3889
      %v3922 = vmul.f32 %v3554, %v3890
      %v3923 = vmul.f32 %v3559, %v3891
      %v3924 = vmul.f32 %v3564, %v3892
      %v3925 = vmul.f32 %v3569, %v3893
      %v3926 = vmul.f32 %v3687, %v3894
      %v3927 = vmul.f32 %v3692, %v3895
      %v3928 = vmul.f32 %v3697, %v3896
      %v3929 = vmul.f32 %v3702, %v3897
      %v3930 = vmul.f32 %v3707, %v3898
      %v3931 = vmul.f32 %v3712, %v3899
      %v3932 = vmul.f32 %v3717, %v3900
      %v3933 = vmul.f32 %v3722, %v3901
      %v3934 = vmul.f32 %v3840, %v3902
      %v3935 = vmul.f32 %v3845, %v3903
      %v3936 = vmul.f32 %v3850, %v3904
      %v3937 = vmul.f32 %v3855, %v3905
      %v3938 = vmul.f32 %v3860, %v3906
      %v3939 = vmul.f32 %v3865, %v3907
      %v3940 = vmul.f32 %v3870, %v3908
      %v3941 = vmul.f32 %v3875, %v3909
      %3942 = vrot.lane.b32.xlu0 %v628, 112
      %v3943 = vpop.permute.xlu0 %3942
      %3944 = vrot.lane.b32.xlu0 %v629, 112
      %v3945 = vpop.permute.xlu0 %3944
      %3946 = vrot.lane.b32.xlu0 %v630, 112
      %v3947 = vpop.permute.xlu0 %3946
      %3948 = vrot.lane.b32.xlu0 %v631, 112
      %v3949 = vpop.permute.xlu0 %3948
      %3950 = vrot.lane.b32.xlu0 %v632, 112
      %v3951 = vpop.permute.xlu0 %3950
      %3952 = vrot.lane.b32.xlu0 %v633, 112
      %v3953 = vpop.permute.xlu0 %3952
      %3954 = vrot.lane.b32.xlu0 %v634, 112
      %v3955 = vpop.permute.xlu0 %3954
      %3956 = vrot.lane.b32.xlu0 %v635, 112
      %v3957 = vpop.permute.xlu0 %3956
      %3958 = vrot.lane.b32.xlu0 %v462, 80
      %v3959 = vpop.permute.xlu0 %3958
      %3960 = vrot.lane.b32.xlu0 %v467, 80
      %v3961 = vpop.permute.xlu0 %3960
      %3962 = vrot.lane.b32.xlu0 %v472, 80
      %v3963 = vpop.permute.xlu0 %3962
      %3964 = vrot.lane.b32.xlu0 %v477, 80
      %v3965 = vpop.permute.xlu0 %3964
      %3966 = vrot.lane.b32.xlu0 %v482, 80
      %v3967 = vpop.permute.xlu0 %3966
      %3968 = vrot.lane.b32.xlu0 %v487, 80
      %v3969 = vpop.permute.xlu0 %3968
      %3970 = vrot.lane.b32.xlu0 %v492, 80
      %v3971 = vpop.permute.xlu0 %3970
      %3972 = vrot.lane.b32.xlu0 %v497, 80
      %v3973 = vpop.permute.xlu0 %3972
      %v3974 = vsel %vm684, %v3943, 0
      %v3976 = vsel %vm684, %v3945, 0
      %v3978 = vsel %vm684, %v3947, 0
      %v3980 = vsel %vm684, %v3949, 0
      %v3982 = vsel %vm684, %v3951, 0
      %v3984 = vsel %vm684, %v3953, 0
      %v3986 = vsel %vm684, %v3955, 0
      %v3988 = vsel %vm684, %v3957, 0
      %v3990 = vsel %vm684, %v3959, 0
      %v3992 = vsel %vm684, %v3961, 0
      %v3994 = vsel %vm684, %v3963, 0
      %v3996 = vsel %vm684, %v3965, 0
      %v3998 = vsel %vm684, %v3967, 0
      %v4000 = vsel %vm684, %v3969, 0
      %v4002 = vsel %vm684, %v3971, 0
      %v4004 = vsel %vm684, %v3973, 0
      %4006 = vmatprep.subr.mxu0 0.0
      %4007 = vmatpush1.xpose.msra.mxu0 %v3990
      %4008 = vmatprep.subr.mxu0 0.0
      %4009 = vmatpush1.xpose.msra.mxu0 %v3992
      %4010 = vmatprep.subr.mxu0 0.0
      %4011 = vmatpush1.xpose.msra.mxu0 %v3994
      %4012 = vmatprep.subr.mxu0 0.0
      %4013 = vmatpush1.xpose.msra.mxu0 %v3996
      %4014 = vmatprep.subr.mxu0 0.0
      %4015 = vmatpush1.xpose.msra.mxu0 %v3998
      %4016 = vmatprep.subr.mxu0 0.0
      %4017 = vmatpush1.xpose.msra.mxu0 %v4000
      %4018 = vmatprep.subr.mxu0 0.0
      %4019 = vmatpush1.xpose.msra.mxu0 %v4002
      %4020 = vmatprep.subr.mxu0 0.0
      %4021 = vmatpush1.xpose.msra.mxu0 %v4004
      %4022 = vmatprep.subr.mxu0 0.0
      %4023 = vmatpush1.xpose.msra.mxu0 0.0
      %4024 = vmatprep.subr.mxu0 0.0
      %4025 = vmatpush1.xpose.msra.mxu0 0.0
      %4026 = vmatprep.subr.mxu0 0.0
      %4027 = vmatpush1.xpose.msra.mxu0 0.0
      %4028 = vmatprep.subr.mxu0 0.0
      %4029 = vmatpush1.xpose.msra.mxu0 0.0
      %4030 = vmatprep.subr.mxu0 0.0
      %4031 = vmatpush1.xpose.msra.mxu0 0.0
      %4032 = vmatprep.subr.mxu0 0.0
      %4033 = vmatpush1.xpose.msra.mxu0 0.0
      %4034 = vmatprep.subr.mxu0 0.0
      %4035 = vmatpush1.xpose.msra.mxu0 0.0
      %4036 = vmatprep.subr.mxu0 0.0
      %4037 = vmatpush1.xpose.msra.mxu0 0.0
      %4038 = vmatprep.subr.mxu0 0.0
      %4039 = vmatpush1.xpose.msra.mxu0 0.0
      %4040 = vmatprep.subr.mxu0 0.0
      %4041 = vmatpush1.xpose.msra.mxu0 0.0
      %4042 = vmatprep.subr.mxu0 0.0
      %4043 = vmatpush1.xpose.msra.mxu0 0.0
      %4044 = vmatprep.subr.mxu0 0.0
      %4045 = vmatpush1.xpose.msra.mxu0 0.0
      %4046 = vmatprep.subr.mxu0 0.0
      %4047 = vmatpush1.xpose.msra.mxu0 0.0
      %4048 = vmatprep.subr.mxu0 0.0
      %4049 = vmatpush1.xpose.msra.mxu0 0.0
      %4050 = vmatprep.subr.mxu0 0.0
      %4051 = vmatpush1.xpose.msra.mxu0 0.0
      %4052 = vmatprep.subr.mxu0 0.0
      %4053 = vmatpush1.xpose.msra.mxu0 0.0
      %4054 = vmatprep.subr.mxu0 0.0
      %4055 = vmatpush1.xpose.msra.mxu0 0.0
      %4056 = vmatprep.subr.mxu0 0.0
      %4057 = vmatpush1.xpose.msra.mxu0 0.0
      %4058 = vmatprep.subr.mxu0 0.0
      %4059 = vmatpush1.xpose.msra.mxu0 0.0
      %4060 = vmatprep.subr.mxu0 0.0
      %4061 = vmatpush1.xpose.msra.mxu0 0.0
      %4062 = vmatprep.subr.mxu0 0.0
      %4063 = vmatpush1.xpose.msra.mxu0 0.0
      %4064 = vmatprep.subr.mxu0 0.0
      %4065 = vmatpush1.xpose.msra.mxu0 0.0
      %4066 = vmatprep.subr.mxu0 0.0
      %4067 = vmatpush1.xpose.msra.mxu0 0.0
      %4068 = vmatprep.subr.mxu0 0.0
      %4069 = vmatpush1.xpose.msra.mxu0 0.0
      %4070 = vmatprep.mubr.f32.mxu0 0.0
      %4071 = vmatmul.mubr.f32.gmra.mrb[0].mxu0 %v3974
      %v4072 = vpop.f32.mrb[0].mxu0
      %v4073 = vadd.f32 %v620, %v4072
      %v4074 = vpop.f32.mrb[0].mxu0
      %4075 = vmatprep.mubr.f32.mxu0 0.0
      %4076 = vmatmul.mubr.f32.gmra.mrb[0].mxu0 %v3976
      %v4077 = vpop.f32.mrb[0].mxu0
      %v4078 = vadd.f32 %v621, %v4077
      %v4079 = vpop.f32.mrb[0].mxu0
      %4080 = vmatprep.mubr.f32.mxu0 0.0
      %4081 = vmatmul.mubr.f32.gmra.mrb[0].mxu0 %v3978
      %v4082 = vpop.f32.mrb[0].mxu0
      %v4083 = vadd.f32 %v622, %v4082
      %v4084 = vpop.f32.mrb[0].mxu0
      %4085 = vmatprep.mubr.f32.mxu0 0.0
      %4086 = vmatmul.mubr.f32.gmra.mrb[0].mxu0 %v3980
      %v4087 = vpop.f32.mrb[0].mxu0
      %v4088 = vadd.f32 %v623, %v4087
      %v4089 = vpop.f32.mrb[0].mxu0
      %4090 = vmatprep.mubr.f32.mxu0 0.0
      %4091 = vmatmul.mubr.f32.gmra.mrb[0].mxu0 %v3982
      %v4092 = vpop.f32.mrb[0].mxu0
      %v4093 = vadd.f32 %v624, %v4092
      %v4094 = vpop.f32.mrb[0].mxu0
      %4095 = vmatprep.mubr.f32.mxu0 0.0
      %4096 = vmatmul.mubr.f32.gmra.mrb[0].mxu0 %v3984
      %v4097 = vpop.f32.mrb[0].mxu0
      %v4098 = vadd.f32 %v625, %v4097
      %v4099 = vpop.f32.mrb[0].mxu0
      %4100 = vmatprep.mubr.f32.mxu0 0.0
      %4101 = vmatmul.mubr.f32.gmra.mrb[0].mxu0 %v3986
      %v4102 = vpop.f32.mrb[0].mxu0
      %v4103 = vadd.f32 %v626, %v4102
      %v4104 = vpop.f32.mrb[0].mxu0
      %4105 = vmatprep.mubr.f32.mxu0 0.0
      %4106 = vmatmul.mubr.f32.gmra.mrb[0].mxu0 %v3988
      %v4107 = vpop.f32.mrb[0].mxu0
      %v4108 = vadd.f32 %v627, %v4107
      %v4109 = vpop.f32.mrb[0].mxu0
      %4110 = vdwg.mxu0
      %4111 = vrot.lane.b32.xlu0 %v636, 112
      %v4112 = vpop.permute.xlu0 %4111
      %4113 = vrot.lane.b32.xlu0 %v637, 112
      %v4114 = vpop.permute.xlu0 %4113
      %4115 = vrot.lane.b32.xlu0 %v638, 112
      %v4116 = vpop.permute.xlu0 %4115
      %4117 = vrot.lane.b32.xlu0 %v639, 112
      %v4118 = vpop.permute.xlu0 %4117
      %4119 = vrot.lane.b32.xlu0 %v640, 112
      %v4120 = vpop.permute.xlu0 %4119
      %4121 = vrot.lane.b32.xlu0 %v641, 112
      %v4122 = vpop.permute.xlu0 %4121
      %4123 = vrot.lane.b32.xlu0 %v642, 112
      %v4124 = vpop.permute.xlu0 %4123
      %4125 = vrot.lane.b32.xlu0 %v643, 112
      %v4126 = vpop.permute.xlu0 %4125
      %4127 = vrot.lane.b32.xlu0 %v502, 80
      %v4128 = vpop.permute.xlu0 %4127
      %4129 = vrot.lane.b32.xlu0 %v507, 80
      %v4130 = vpop.permute.xlu0 %4129
      %4131 = vrot.lane.b32.xlu0 %v512, 80
      %v4132 = vpop.permute.xlu0 %4131
      %4133 = vrot.lane.b32.xlu0 %v517, 80
      %v4134 = vpop.permute.xlu0 %4133
      %4135 = vrot.lane.b32.xlu0 %v522, 80
      %v4136 = vpop.permute.xlu0 %4135
      %4137 = vrot.lane.b32.xlu0 %v527, 80
      %v4138 = vpop.permute.xlu0 %4137
      %4139 = vrot.lane.b32.xlu0 %v532, 80
      %v4140 = vpop.permute.xlu0 %4139
      %4141 = vrot.lane.b32.xlu0 %v537, 80
      %v4142 = vpop.permute.xlu0 %4141
      %v4143 = vsel %vm684, %v4112, 0
      %v4145 = vsel %vm684, %v4114, 0
      %v4147 = vsel %vm684, %v4116, 0
      %v4149 = vsel %vm684, %v4118, 0
      %v4151 = vsel %vm684, %v4120, 0
      %v4153 = vsel %vm684, %v4122, 0
      %v4155 = vsel %vm684, %v4124, 0
      %v4157 = vsel %vm684, %v4126, 0
      %v4159 = vsel %vm684, %v4128, 0
      %v4161 = vsel %vm684, %v4130, 0
      %v4163 = vsel %vm684, %v4132, 0
      %v4165 = vsel %vm684, %v4134, 0
      %v4167 = vsel %vm684, %v4136, 0
      %v4169 = vsel %vm684, %v4138, 0
      %v4171 = vsel %vm684, %v4140, 0
      %v4173 = vsel %vm684, %v4142, 0
      %4175 = vmatprep.subr.mxu0 0.0
      %4176 = vmatpush1.xpose.msra.mxu0 %v4159
      %4177 = vmatprep.subr.mxu0 0.0
      %4178 = vmatpush1.xpose.msra.mxu0 %v4161
      %4179 = vmatprep.subr.mxu0 0.0
      %4180 = vmatpush1.xpose.msra.mxu0 %v4163
      %4181 = vmatprep.subr.mxu0 0.0
      %4182 = vmatpush1.xpose.msra.mxu0 %v4165
      %4183 = vmatprep.subr.mxu0 0.0
      %4184 = vmatpush1.xpose.msra.mxu0 %v4167
      %4185 = vmatprep.subr.mxu0 0.0
      %4186 = vmatpush1.xpose.msra.mxu0 %v4169
      %4187 = vmatprep.subr.mxu0 0.0
      %4188 = vmatpush1.xpose.msra.mxu0 %v4171
      %4189 = vmatprep.subr.mxu0 0.0
      %4190 = vmatpush1.xpose.msra.mxu0 %v4173
      %4191 = vmatprep.subr.mxu0 0.0
      %4192 = vmatpush1.xpose.msra.mxu0 0.0
      %4193 = vmatprep.subr.mxu0 0.0
      %4194 = vmatpush1.xpose.msra.mxu0 0.0
      %4195 = vmatprep.subr.mxu0 0.0
      %4196 = vmatpush1.xpose.msra.mxu0 0.0
      %4197 = vmatprep.subr.mxu0 0.0
      %4198 = vmatpush1.xpose.msra.mxu0 0.0
      %4199 = vmatprep.subr.mxu0 0.0
      %4200 = vmatpush1.xpose.msra.mxu0 0.0
      %4201 = vmatprep.subr.mxu0 0.0
      %4202 = vmatpush1.xpose.msra.mxu0 0.0
      %4203 = vmatprep.subr.mxu0 0.0
      %4204 = vmatpush1.xpose.msra.mxu0 0.0
      %4205 = vmatprep.subr.mxu0 0.0
      %4206 = vmatpush1.xpose.msra.mxu0 0.0
      %4207 = vmatprep.subr.mxu0 0.0
      %4208 = vmatpush1.xpose.msra.mxu0 0.0
      %4209 = vmatprep.subr.mxu0 0.0
      %4210 = vmatpush1.xpose.msra.mxu0 0.0
      %4211 = vmatprep.subr.mxu0 0.0
      %4212 = vmatpush1.xpose.msra.mxu0 0.0
      %4213 = vmatprep.subr.mxu0 0.0
      %4214 = vmatpush1.xpose.msra.mxu0 0.0
      %4215 = vmatprep.subr.mxu0 0.0
      %4216 = vmatpush1.xpose.msra.mxu0 0.0
      %4217 = vmatprep.subr.mxu0 0.0
      %4218 = vmatpush1.xpose.msra.mxu0 0.0
      %4219 = vmatprep.subr.mxu0 0.0
      %4220 = vmatpush1.xpose.msra.mxu0 0.0
      %4221 = vmatprep.subr.mxu0 0.0
      %4222 = vmatpush1.xpose.msra.mxu0 0.0
      %4223 = vmatprep.subr.mxu0 0.0
      %4224 = vmatpush1.xpose.msra.mxu0 0.0
      %4225 = vmatprep.subr.mxu0 0.0
      %4226 = vmatpush1.xpose.msra.mxu0 0.0
      %4227 = vmatprep.subr.mxu0 0.0
      %4228 = vmatpush1.xpose.msra.mxu0 0.0
      %4229 = vmatprep.subr.mxu0 0.0
      %4230 = vmatpush1.xpose.msra.mxu0 0.0
      %4231 = vmatprep.subr.mxu0 0.0
      %4232 = vmatpush1.xpose.msra.mxu0 0.0
      %4233 = vmatprep.subr.mxu0 0.0
      %4234 = vmatpush1.xpose.msra.mxu0 0.0
      %4235 = vmatprep.subr.mxu0 0.0
      %4236 = vmatpush1.xpose.msra.mxu0 0.0
      %4237 = vmatprep.subr.mxu0 0.0
      %4238 = vmatpush1.xpose.msra.mxu0 0.0
      %4239 = vmatprep.mubr.f32.mxu0 0.0
      %4240 = vmatmul.mubr.f32.gmra.mrb[0].mxu0 %v4143
      %v4241 = vpop.f32.mrb[0].mxu0
      %v4242 = vadd.f32 %v620, %v4241
      %v4243 = vpop.f32.mrb[0].mxu0
      %4244 = vmatprep.mubr.f32.mxu0 0.0
      %4245 = vmatmul.mubr.f32.gmra.mrb[0].mxu0 %v4145
      %v4246 = vpop.f32.mrb[0].mxu0
      %v4247 = vadd.f32 %v621, %v4246
      %v4248 = vpop.f32.mrb[0].mxu0
      %4249 = vmatprep.mubr.f32.mxu0 0.0
      %4250 = vmatmul.mubr.f32.gmra.mrb[0].mxu0 %v4147
      %v4251 = vpop.f32.mrb[0].mxu0
      %v4252 = vadd.f32 %v622, %v4251
      %v4253 = vpop.f32.mrb[0].mxu0
      %4254 = vmatprep.mubr.f32.mxu0 0.0
      %4255 = vmatmul.mubr.f32.gmra.mrb[0].mxu0 %v4149
      %v4256 = vpop.f32.mrb[0].mxu0
      %v4257 = vadd.f32 %v623, %v4256
      %v4258 = vpop.f32.mrb[0].mxu0
      %4259 = vmatprep.mubr.f32.mxu0 0.0
      %4260 = vmatmul.mubr.f32.gmra.mrb[0].mxu0 %v4151
      %v4261 = vpop.f32.mrb[0].mxu0
      %v4262 = vadd.f32 %v624, %v4261
      %v4263 = vpop.f32.mrb[0].mxu0
      %4264 = vmatprep.mubr.f32.mxu0 0.0
      %4265 = vmatmul.mubr.f32.gmra.mrb[0].mxu0 %v4153
      %v4266 = vpop.f32.mrb[0].mxu0
      %v4267 = vadd.f32 %v625, %v4266
      %v4268 = vpop.f32.mrb[0].mxu0
      %4269 = vmatprep.mubr.f32.mxu0 0.0
      %4270 = vmatmul.mubr.f32.gmra.mrb[0].mxu0 %v4155
      %v4271 = vpop.f32.mrb[0].mxu0
      %v4272 = vadd.f32 %v626, %v4271
      %v4273 = vpop.f32.mrb[0].mxu0
      %4274 = vmatprep.mubr.f32.mxu0 0.0
      %4275 = vmatmul.mubr.f32.gmra.mrb[0].mxu0 %v4157
      %v4276 = vpop.f32.mrb[0].mxu0
      %v4277 = vadd.f32 %v627, %v4276
      %v4278 = vpop.f32.mrb[0].mxu0
      %4279 = vdwg.mxu0
      %4280 = vrot.lane.b32.xlu0 %v644, 112
      %v4281 = vpop.permute.xlu0 %4280
      %4282 = vrot.lane.b32.xlu0 %v645, 112
      %v4283 = vpop.permute.xlu0 %4282
      %4284 = vrot.lane.b32.xlu0 %v646, 112
      %v4285 = vpop.permute.xlu0 %4284
      %4286 = vrot.lane.b32.xlu0 %v647, 112
      %v4287 = vpop.permute.xlu0 %4286
      %4288 = vrot.lane.b32.xlu0 %v648, 112
      %v4289 = vpop.permute.xlu0 %4288
      %4290 = vrot.lane.b32.xlu0 %v649, 112
      %v4291 = vpop.permute.xlu0 %4290
      %4292 = vrot.lane.b32.xlu0 %v650, 112
      %v4293 = vpop.permute.xlu0 %4292
      %4294 = vrot.lane.b32.xlu0 %v651, 112
      %v4295 = vpop.permute.xlu0 %4294
      %4296 = vrot.lane.b32.xlu0 %v542, 80
      %v4297 = vpop.permute.xlu0 %4296
      %4298 = vrot.lane.b32.xlu0 %v547, 80
      %v4299 = vpop.permute.xlu0 %4298
      %4300 = vrot.lane.b32.xlu0 %v552, 80
      %v4301 = vpop.permute.xlu0 %4300
      %4302 = vrot.lane.b32.xlu0 %v557, 80
      %v4303 = vpop.permute.xlu0 %4302
      %4304 = vrot.lane.b32.xlu0 %v562, 80
      %v4305 = vpop.permute.xlu0 %4304
      %4306 = vrot.lane.b32.xlu0 %v567, 80
      %v4307 = vpop.permute.xlu0 %4306
      %4308 = vrot.lane.b32.xlu0 %v572, 80
      %v4309 = vpop.permute.xlu0 %4308
      %4310 = vrot.lane.b32.xlu0 %v577, 80
      %v4311 = vpop.permute.xlu0 %4310
      %v4312 = vsel %vm684, %v4281, 0
      %v4314 = vsel %vm684, %v4283, 0
      %v4316 = vsel %vm684, %v4285, 0
      %v4318 = vsel %vm684, %v4287, 0
      %v4320 = vsel %vm684, %v4289, 0
      %v4322 = vsel %vm684, %v4291, 0
      %v4324 = vsel %vm684, %v4293, 0
      %v4326 = vsel %vm684, %v4295, 0
      %v4328 = vsel %vm684, %v4297, 0
      %v4330 = vsel %vm684, %v4299, 0
      %v4332 = vsel %vm684, %v4301, 0
      %v4334 = vsel %vm684, %v4303, 0
      %v4336 = vsel %vm684, %v4305, 0
      %v4338 = vsel %vm684, %v4307, 0
      %v4340 = vsel %vm684, %v4309, 0
      %v4342 = vsel %vm684, %v4311, 0
      %4344 = vmatprep.subr.mxu0 0.0
      %4345 = vmatpush1.xpose.msra.mxu0 %v4328
      %4346 = vmatprep.subr.mxu0 0.0
      %4347 = vmatpush1.xpose.msra.mxu0 %v4330
      %4348 = vmatprep.subr.mxu0 0.0
      %4349 = vmatpush1.xpose.msra.mxu0 %v4332
      %4350 = vmatprep.subr.mxu0 0.0
      %4351 = vmatpush1.xpose.msra.mxu0 %v4334
      %4352 = vmatprep.subr.mxu0 0.0
      %4353 = vmatpush1.xpose.msra.mxu0 %v4336
      %4354 = vmatprep.subr.mxu0 0.0
      %4355 = vmatpush1.xpose.msra.mxu0 %v4338
      %4356 = vmatprep.subr.mxu0 0.0
      %4357 = vmatpush1.xpose.msra.mxu0 %v4340
      %4358 = vmatprep.subr.mxu0 0.0
      %4359 = vmatpush1.xpose.msra.mxu0 %v4342
      %4360 = vmatprep.subr.mxu0 0.0
      %4361 = vmatpush1.xpose.msra.mxu0 0.0
      %4362 = vmatprep.subr.mxu0 0.0
      %4363 = vmatpush1.xpose.msra.mxu0 0.0
      %4364 = vmatprep.subr.mxu0 0.0
      %4365 = vmatpush1.xpose.msra.mxu0 0.0
      %4366 = vmatprep.subr.mxu0 0.0
      %4367 = vmatpush1.xpose.msra.mxu0 0.0
      %4368 = vmatprep.subr.mxu0 0.0
      %4369 = vmatpush1.xpose.msra.mxu0 0.0
      %4370 = vmatprep.subr.mxu0 0.0
      %4371 = vmatpush1.xpose.msra.mxu0 0.0
      %4372 = vmatprep.subr.mxu0 0.0
      %4373 = vmatpush1.xpose.msra.mxu0 0.0
      %4374 = vmatprep.subr.mxu0 0.0
      %4375 = vmatpush1.xpose.msra.mxu0 0.0
      %4376 = vmatprep.subr.mxu0 0.0
      %4377 = vmatpush1.xpose.msra.mxu0 0.0
      %4378 = vmatprep.subr.mxu0 0.0
      %4379 = vmatpush1.xpose.msra.mxu0 0.0
      %4380 = vmatprep.subr.mxu0 0.0
      %4381 = vmatpush1.xpose.msra.mxu0 0.0
      %4382 = vmatprep.subr.mxu0 0.0
      %4383 = vmatpush1.xpose.msra.mxu0 0.0
      %4384 = vmatprep.subr.mxu0 0.0
      %4385 = vmatpush1.xpose.msra.mxu0 0.0
      %4386 = vmatprep.subr.mxu0 0.0
      %4387 = vmatpush1.xpose.msra.mxu0 0.0
      %4388 = vmatprep.subr.mxu0 0.0
      %4389 = vmatpush1.xpose.msra.mxu0 0.0
      %4390 = vmatprep.subr.mxu0 0.0
      %4391 = vmatpush1.xpose.msra.mxu0 0.0
      %4392 = vmatprep.subr.mxu0 0.0
      %4393 = vmatpush1.xpose.msra.mxu0 0.0
      %4394 = vmatprep.subr.mxu0 0.0
      %4395 = vmatpush1.xpose.msra.mxu0 0.0
      %4396 = vmatprep.subr.mxu0 0.0
      %4397 = vmatpush1.xpose.msra.mxu0 0.0
      %4398 = vmatprep.subr.mxu0 0.0
      %4399 = vmatpush1.xpose.msra.mxu0 0.0
      %4400 = vmatprep.subr.mxu0 0.0
      %4401 = vmatpush1.xpose.msra.mxu0 0.0
      %4402 = vmatprep.subr.mxu0 0.0
      %4403 = vmatpush1.xpose.msra.mxu0 0.0
      %4404 = vmatprep.subr.mxu0 0.0
      %4405 = vmatpush1.xpose.msra.mxu0 0.0
      %4406 = vmatprep.subr.mxu0 0.0
      %4407 = vmatpush1.xpose.msra.mxu0 0.0
      %4408 = vmatprep.mubr.f32.mxu0 0.0
      %4409 = vmatmul.mubr.f32.gmra.mrb[0].mxu0 %v4312
      %v4410 = vpop.f32.mrb[0].mxu0
      %v4411 = vadd.f32 %v620, %v4410
      %v4412 = vpop.f32.mrb[0].mxu0
      %4413 = vmatprep.mubr.f32.mxu0 0.0
      %4414 = vmatmul.mubr.f32.gmra.mrb[0].mxu0 %v4314
      %v4415 = vpop.f32.mrb[0].mxu0
      %v4416 = vadd.f32 %v621, %v4415
      %v4417 = vpop.f32.mrb[0].mxu0
      %4418 = vmatprep.mubr.f32.mxu0 0.0
      %4419 = vmatmul.mubr.f32.gmra.mrb[0].mxu0 %v4316
      %v4420 = vpop.f32.mrb[0].mxu0
      %v4421 = vadd.f32 %v622, %v4420
      %v4422 = vpop.f32.mrb[0].mxu0
      %4423 = vmatprep.mubr.f32.mxu0 0.0
      %4424 = vmatmul.mubr.f32.gmra.mrb[0].mxu0 %v4318
      %v4425 = vpop.f32.mrb[0].mxu0
      %v4426 = vadd.f32 %v623, %v4425
      %v4427 = vpop.f32.mrb[0].mxu0
      %4428 = vmatprep.mubr.f32.mxu0 0.0
      %4429 = vmatmul.mubr.f32.gmra.mrb[0].mxu0 %v4320
      %v4430 = vpop.f32.mrb[0].mxu0
      %v4431 = vadd.f32 %v624, %v4430
      %v4432 = vpop.f32.mrb[0].mxu0
      %4433 = vmatprep.mubr.f32.mxu0 0.0
      %4434 = vmatmul.mubr.f32.gmra.mrb[0].mxu0 %v4322
      %v4435 = vpop.f32.mrb[0].mxu0
      %v4436 = vadd.f32 %v625, %v4435
      %v4437 = vpop.f32.mrb[0].mxu0
      %4438 = vmatprep.mubr.f32.mxu0 0.0
      %4439 = vmatmul.mubr.f32.gmra.mrb[0].mxu0 %v4324
      %v4440 = vpop.f32.mrb[0].mxu0
      %v4441 = vadd.f32 %v626, %v4440
      %v4442 = vpop.f32.mrb[0].mxu0
      %4443 = vmatprep.mubr.f32.mxu0 0.0
      %4444 = vmatmul.mubr.f32.gmra.mrb[0].mxu0 %v4326
      %v4445 = vpop.f32.mrb[0].mxu0
      %v4446 = vadd.f32 %v627, %v4445
      %v4447 = vpop.f32.mrb[0].mxu0
      %4448 = vdwg.mxu0
      %4449 = vrot.lane.b32.xlu0 %v652, 112
      %v4450 = vpop.permute.xlu0 %4449
      %4451 = vrot.lane.b32.xlu0 %v653, 112
      %v4452 = vpop.permute.xlu0 %4451
      %4453 = vrot.lane.b32.xlu0 %v654, 112
      %v4454 = vpop.permute.xlu0 %4453
      %4455 = vrot.lane.b32.xlu0 %v655, 112
      %v4456 = vpop.permute.xlu0 %4455
      %4457 = vrot.lane.b32.xlu0 %v656, 112
      %v4458 = vpop.permute.xlu0 %4457
      %4459 = vrot.lane.b32.xlu0 %v657, 112
      %v4460 = vpop.permute.xlu0 %4459
      %4461 = vrot.lane.b32.xlu0 %v658, 112
      %v4462 = vpop.permute.xlu0 %4461
      %4463 = vrot.lane.b32.xlu0 %v659, 112
      %v4464 = vpop.permute.xlu0 %4463
      %4465 = vrot.lane.b32.xlu0 %v582, 80
      %v4466 = vpop.permute.xlu0 %4465
      %4467 = vrot.lane.b32.xlu0 %v587, 80
      %v4468 = vpop.permute.xlu0 %4467
      %4469 = vrot.lane.b32.xlu0 %v592, 80
      %v4470 = vpop.permute.xlu0 %4469
      %4471 = vrot.lane.b32.xlu0 %v597, 80
      %v4472 = vpop.permute.xlu0 %4471
      %4473 = vrot.lane.b32.xlu0 %v602, 80
      %v4474 = vpop.permute.xlu0 %4473
      %4475 = vrot.lane.b32.xlu0 %v607, 80
      %v4476 = vpop.permute.xlu0 %4475
      %4477 = vrot.lane.b32.xlu0 %v612, 80
      %v4478 = vpop.permute.xlu0 %4477
      %4479 = vrot.lane.b32.xlu0 %v617, 80
      %v4480 = vpop.permute.xlu0 %4479
      %v4481 = vsel %vm684, %v4450, 0
      %v4483 = vsel %vm684, %v4452, 0
      %v4485 = vsel %vm684, %v4454, 0
      %v4487 = vsel %vm684, %v4456, 0
      %v4489 = vsel %vm684, %v4458, 0
      %v4491 = vsel %vm684, %v4460, 0
      %v4493 = vsel %vm684, %v4462, 0
      %v4495 = vsel %vm684, %v4464, 0
      %v4497 = vsel %vm684, %v4466, 0
      %v4499 = vsel %vm684, %v4468, 0
      %v4501 = vsel %vm684, %v4470, 0
      %v4503 = vsel %vm684, %v4472, 0
      %v4505 = vsel %vm684, %v4474, 0
      %v4507 = vsel %vm684, %v4476, 0
      %v4509 = vsel %vm684, %v4478, 0
      %v4511 = vsel %vm684, %v4480, 0
      %4513 = vmatprep.subr.mxu0 0.0
      %4514 = vmatpush1.xpose.msra.mxu0 %v4497
      %4515 = vmatprep.subr.mxu0 0.0
      %4516 = vmatpush1.xpose.msra.mxu0 %v4499
      %4517 = vmatprep.subr.mxu0 0.0
      %4518 = vmatpush1.xpose.msra.mxu0 %v4501
      %4519 = vmatprep.subr.mxu0 0.0
      %4520 = vmatpush1.xpose.msra.mxu0 %v4503
      %4521 = vmatprep.subr.mxu0 0.0
      %4522 = vmatpush1.xpose.msra.mxu0 %v4505
      %4523 = vmatprep.subr.mxu0 0.0
      %4524 = vmatpush1.xpose.msra.mxu0 %v4507
      %4525 = vmatprep.subr.mxu0 0.0
      %4526 = vmatpush1.xpose.msra.mxu0 %v4509
      %4527 = vmatprep.subr.mxu0 0.0
      %4528 = vmatpush1.xpose.msra.mxu0 %v4511
      %4529 = vmatprep.subr.mxu0 0.0
      %4530 = vmatpush1.xpose.msra.mxu0 0.0
      %4531 = vmatprep.subr.mxu0 0.0
      %4532 = vmatpush1.xpose.msra.mxu0 0.0
      %4533 = vmatprep.subr.mxu0 0.0
      %4534 = vmatpush1.xpose.msra.mxu0 0.0
      %4535 = vmatprep.subr.mxu0 0.0
      %4536 = vmatpush1.xpose.msra.mxu0 0.0
      %4537 = vmatprep.subr.mxu0 0.0
      %4538 = vmatpush1.xpose.msra.mxu0 0.0
      %4539 = vmatprep.subr.mxu0 0.0
      %4540 = vmatpush1.xpose.msra.mxu0 0.0
      %4541 = vmatprep.subr.mxu0 0.0
      %4542 = vmatpush1.xpose.msra.mxu0 0.0
      %4543 = vmatprep.subr.mxu0 0.0
      %4544 = vmatpush1.xpose.msra.mxu0 0.0
      %4545 = vmatprep.subr.mxu0 0.0
      %4546 = vmatpush1.xpose.msra.mxu0 0.0
      %4547 = vmatprep.subr.mxu0 0.0
      %4548 = vmatpush1.xpose.msra.mxu0 0.0
      %4549 = vmatprep.subr.mxu0 0.0
      %4550 = vmatpush1.xpose.msra.mxu0 0.0
      %4551 = vmatprep.subr.mxu0 0.0
      %4552 = vmatpush1.xpose.msra.mxu0 0.0
      %4553 = vmatprep.subr.mxu0 0.0
      %4554 = vmatpush1.xpose.msra.mxu0 0.0
      %4555 = vmatprep.subr.mxu0 0.0
      %4556 = vmatpush1.xpose.msra.mxu0 0.0
      %4557 = vmatprep.subr.mxu0 0.0
      %4558 = vmatpush1.xpose.msra.mxu0 0.0
      %4559 = vmatprep.subr.mxu0 0.0
      %4560 = vmatpush1.xpose.msra.mxu0 0.0
      %4561 = vmatprep.subr.mxu0 0.0
      %4562 = vmatpush1.xpose.msra.mxu0 0.0
      %4563 = vmatprep.subr.mxu0 0.0
      %4564 = vmatpush1.xpose.msra.mxu0 0.0
      %4565 = vmatprep.subr.mxu0 0.0
      %4566 = vmatpush1.xpose.msra.mxu0 0.0
      %4567 = vmatprep.subr.mxu0 0.0
      %4568 = vmatpush1.xpose.msra.mxu0 0.0
      %4569 = vmatprep.subr.mxu0 0.0
      %4570 = vmatpush1.xpose.msra.mxu0 0.0
      %4571 = vmatprep.subr.mxu0 0.0
      %4572 = vmatpush1.xpose.msra.mxu0 0.0
      %4573 = vmatprep.subr.mxu0 0.0
      %4574 = vmatpush1.xpose.msra.mxu0 0.0
      %4575 = vmatprep.subr.mxu0 0.0
      %4576 = vmatpush1.xpose.msra.mxu0 0.0
      %4577 = vmatprep.mubr.f32.mxu0 0.0
      %4578 = vmatmul.mubr.f32.gmra.mrb[0].mxu0 %v4481
      %v4579 = vpop.f32.mrb[0].mxu0
      %v4580 = vadd.f32 %v620, %v4579
      %v4581 = vpop.f32.mrb[0].mxu0
      %4582 = vmatprep.mubr.f32.mxu0 0.0
      %4583 = vmatmul.mubr.f32.gmra.mrb[0].mxu0 %v4483
      %v4584 = vpop.f32.mrb[0].mxu0
      %v4585 = vadd.f32 %v621, %v4584
      %v4586 = vpop.f32.mrb[0].mxu0
      %4587 = vmatprep.mubr.f32.mxu0 0.0
      %4588 = vmatmul.mubr.f32.gmra.mrb[0].mxu0 %v4485
      %v4589 = vpop.f32.mrb[0].mxu0
      %v4590 = vadd.f32 %v622, %v4589
      %v4591 = vpop.f32.mrb[0].mxu0
      %4592 = vmatprep.mubr.f32.mxu0 0.0
      %4593 = vmatmul.mubr.f32.gmra.mrb[0].mxu0 %v4487
      %v4594 = vpop.f32.mrb[0].mxu0
      %v4595 = vadd.f32 %v623, %v4594
      %v4596 = vpop.f32.mrb[0].mxu0
      %4597 = vmatprep.mubr.f32.mxu0 0.0
      %4598 = vmatmul.mubr.f32.gmra.mrb[0].mxu0 %v4489
      %v4599 = vpop.f32.mrb[0].mxu0
      %v4600 = vadd.f32 %v624, %v4599
      %v4601 = vpop.f32.mrb[0].mxu0
      %4602 = vmatprep.mubr.f32.mxu0 0.0
      %4603 = vmatmul.mubr.f32.gmra.mrb[0].mxu0 %v4491
      %v4604 = vpop.f32.mrb[0].mxu0
      %v4605 = vadd.f32 %v625, %v4604
      %v4606 = vpop.f32.mrb[0].mxu0
      %4607 = vmatprep.mubr.f32.mxu0 0.0
      %4608 = vmatmul.mubr.f32.gmra.mrb[0].mxu0 %v4493
      %v4609 = vpop.f32.mrb[0].mxu0
      %v4610 = vadd.f32 %v626, %v4609
      %v4611 = vpop.f32.mrb[0].mxu0
      %4612 = vmatprep.mubr.f32.mxu0 0.0
      %4613 = vmatmul.mubr.f32.gmra.mrb[0].mxu0 %v4495
      %v4614 = vpop.f32.mrb[0].mxu0
      %v4615 = vadd.f32 %v627, %v4614
      %v4616 = vpop.f32.mrb[0].mxu0
      %4617 = vdwg.mxu0
      %v4618 = vsel %vm1337, %v4073, -inf
      %4619 = vmax.xlane.f32.xlu0 %v4618
      %v4620 = vpop.xlane.xlu0 %4619
      %v4621 = vsel %vm1337, %v4078, -inf
      %4622 = vmax.xlane.f32.xlu0 %v4621
      %v4623 = vpop.xlane.xlu0 %4622
      %v4624 = vsel %vm1337, %v4083, -inf
      %4625 = vmax.xlane.f32.xlu0 %v4624
      %v4626 = vpop.xlane.xlu0 %4625
      %v4627 = vsel %vm1337, %v4088, -inf
      %4628 = vmax.xlane.f32.xlu0 %v4627
      %v4629 = vpop.xlane.xlu0 %4628
      %v4630 = vsel %vm1337, %v4093, -inf
      %4631 = vmax.xlane.f32.xlu0 %v4630
      %v4632 = vpop.xlane.xlu0 %4631
      %v4633 = vsel %vm1337, %v4098, -inf
      %4634 = vmax.xlane.f32.xlu0 %v4633
      %v4635 = vpop.xlane.xlu0 %4634
      %v4636 = vsel %vm1337, %v4103, -inf
      %4637 = vmax.xlane.f32.xlu0 %v4636
      %v4638 = vpop.xlane.xlu0 %4637
      %v4639 = vsel %vm1337, %v4108, -inf
      %4640 = vmax.xlane.f32.xlu0 %v4639
      %v4641 = vpop.xlane.xlu0 %4640
      %v4642 = vsel %vm1337, %v4242, -inf
      %4643 = vmax.xlane.f32.xlu0 %v4642
      %v4644 = vpop.xlane.xlu0 %4643
      %v4645 = vsel %vm1337, %v4247, -inf
      %4646 = vmax.xlane.f32.xlu0 %v4645
      %v4647 = vpop.xlane.xlu0 %4646
      %v4648 = vsel %vm1337, %v4252, -inf
      %4649 = vmax.xlane.f32.xlu0 %v4648
      %v4650 = vpop.xlane.xlu0 %4649
      %v4651 = vsel %vm1337, %v4257, -inf
      %4652 = vmax.xlane.f32.xlu0 %v4651
      %v4653 = vpop.xlane.xlu0 %4652
      %v4654 = vsel %vm1337, %v4262, -inf
      %4655 = vmax.xlane.f32.xlu0 %v4654
      %v4656 = vpop.xlane.xlu0 %4655
      %v4657 = vsel %vm1337, %v4267, -inf
      %4658 = vmax.xlane.f32.xlu0 %v4657
      %v4659 = vpop.xlane.xlu0 %4658
      %v4660 = vsel %vm1337, %v4272, -inf
      %4661 = vmax.xlane.f32.xlu0 %v4660
      %v4662 = vpop.xlane.xlu0 %4661
      %v4663 = vsel %vm1337, %v4277, -inf
      %4664 = vmax.xlane.f32.xlu0 %v4663
      %v4665 = vpop.xlane.xlu0 %4664
      %v4666 = vsel %vm1337, %v4411, -inf
      %4667 = vmax.xlane.f32.xlu0 %v4666
      %v4668 = vpop.xlane.xlu0 %4667
      %v4669 = vsel %vm1337, %v4416, -inf
      %4670 = vmax.xlane.f32.xlu0 %v4669
      %v4671 = vpop.xlane.xlu0 %4670
      %v4672 = vsel %vm1337, %v4421, -inf
      %4673 = vmax.xlane.f32.xlu0 %v4672
      %v4674 = vpop.xlane.xlu0 %4673
      %v4675 = vsel %vm1337, %v4426, -inf
      %4676 = vmax.xlane.f32.xlu0 %v4675
      %v4677 = vpop.xlane.xlu0 %4676
      %v4678 = vsel %vm1337, %v4431, -inf
      %4679 = vmax.xlane.f32.xlu0 %v4678
      %v4680 = vpop.xlane.xlu0 %4679
      %v4681 = vsel %vm1337, %v4436, -inf
      %4682 = vmax.xlane.f32.xlu0 %v4681
      %v4683 = vpop.xlane.xlu0 %4682
      %v4684 = vsel %vm1337, %v4441, -inf
      %4685 = vmax.xlane.f32.xlu0 %v4684
      %v4686 = vpop.xlane.xlu0 %4685
      %v4687 = vsel %vm1337, %v4446, -inf
      %4688 = vmax.xlane.f32.xlu0 %v4687
      %v4689 = vpop.xlane.xlu0 %4688
      %v4690 = vsel %vm1337, %v4580, -inf
      %4691 = vmax.xlane.f32.xlu0 %v4690
      %v4692 = vpop.xlane.xlu0 %4691
      %v4693 = vsel %vm1337, %v4585, -inf
      %4694 = vmax.xlane.f32.xlu0 %v4693
      %v4695 = vpop.xlane.xlu0 %4694
      %v4696 = vsel %vm1337, %v4590, -inf
      %4697 = vmax.xlane.f32.xlu0 %v4696
      %v4698 = vpop.xlane.xlu0 %4697
      %v4699 = vsel %vm1337, %v4595, -inf
      %4700 = vmax.xlane.f32.xlu0 %v4699
      %v4701 = vpop.xlane.xlu0 %4700
      %v4702 = vsel %vm1337, %v4600, -inf
      %4703 = vmax.xlane.f32.xlu0 %v4702
      %v4704 = vpop.xlane.xlu0 %4703
      %v4705 = vsel %vm1337, %v4605, -inf
      %4706 = vmax.xlane.f32.xlu0 %v4705
      %v4707 = vpop.xlane.xlu0 %4706
      %v4708 = vsel %vm1337, %v4610, -inf
      %4709 = vmax.xlane.f32.xlu0 %v4708
      %v4710 = vpop.xlane.xlu0 %4709
      %v4711 = vsel %vm1337, %v4615, -inf
      %4712 = vmax.xlane.f32.xlu0 %v4711
      %v4713 = vpop.xlane.xlu0 %4712
      %v4714 = vsub.f32 %v4073, %v4620
      %v4715 = vsub.f32 %v4078, %v4623
      %v4716 = vsub.f32 %v4083, %v4626
      %v4717 = vsub.f32 %v4088, %v4629
      %v4718 = vsub.f32 %v4093, %v4632
      %v4719 = vsub.f32 %v4098, %v4635
      %v4720 = vsub.f32 %v4103, %v4638
      %v4721 = vsub.f32 %v4108, %v4641
      %v4722 = vsub.f32 %v4242, %v4644
      %v4723 = vsub.f32 %v4247, %v4647
      %v4724 = vsub.f32 %v4252, %v4650
      %v4725 = vsub.f32 %v4257, %v4653
      %v4726 = vsub.f32 %v4262, %v4656
      %v4727 = vsub.f32 %v4267, %v4659
      %v4728 = vsub.f32 %v4272, %v4662
      %v4729 = vsub.f32 %v4277, %v4665
      %v4730 = vsub.f32 %v4411, %v4668
      %v4731 = vsub.f32 %v4416, %v4671
      %v4732 = vsub.f32 %v4421, %v4674
      %v4733 = vsub.f32 %v4426, %v4677
      %v4734 = vsub.f32 %v4431, %v4680
      %v4735 = vsub.f32 %v4436, %v4683
      %v4736 = vsub.f32 %v4441, %v4686
      %v4737 = vsub.f32 %v4446, %v4689
      %v4738 = vsub.f32 %v4580, %v4692
      %v4739 = vsub.f32 %v4585, %v4695
      %v4740 = vsub.f32 %v4590, %v4698
      %v4741 = vsub.f32 %v4595, %v4701
      %v4742 = vsub.f32 %v4600, %v4704
      %v4743 = vsub.f32 %v4605, %v4707
      %v4744 = vsub.f32 %v4610, %v4710
      %v4745 = vsub.f32 %v4615, %v4713
      %v4746 = vmul.f32 %v4714, 1.442695
      %v4747 = vpow.pop %v4746
      %v4748 = vmul.f32 %v4715, 1.442695
      %v4749 = vpow.pop %v4748
      %v4750 = vmul.f32 %v4716, 1.442695
      %v4751 = vpow.pop %v4750
      %v4752 = vmul.f32 %v4717, 1.442695
      %v4753 = vpow.pop %v4752
      %v4754 = vmul.f32 %v4718, 1.442695
      %v4755 = vpow.pop %v4754
      %v4756 = vmul.f32 %v4719, 1.442695
      %v4757 = vpow.pop %v4756
      %v4758 = vmul.f32 %v4720, 1.442695
      %v4759 = vpow.pop %v4758
      %v4760 = vmul.f32 %v4721, 1.442695
      %v4761 = vpow.pop %v4760
      %v4762 = vmul.f32 %v4722, 1.442695
      %v4763 = vpow.pop %v4762
      %v4764 = vmul.f32 %v4723, 1.442695
      %v4765 = vpow.pop %v4764
      %v4766 = vmul.f32 %v4724, 1.442695
      %v4767 = vpow.pop %v4766
      %v4768 = vmul.f32 %v4725, 1.442695
      %v4769 = vpow.pop %v4768
      %v4770 = vmul.f32 %v4726, 1.442695
      %v4771 = vpow.pop %v4770
      %v4772 = vmul.f32 %v4727, 1.442695
      %v4773 = vpow.pop %v4772
      %v4774 = vmul.f32 %v4728, 1.442695
      %v4775 = vpow.pop %v4774
      %v4776 = vmul.f32 %v4729, 1.442695
      %v4777 = vpow.pop %v4776
      %v4778 = vmul.f32 %v4730, 1.442695
      %v4779 = vpow.pop %v4778
      %v4780 = vmul.f32 %v4731, 1.442695
      %v4781 = vpow.pop %v4780
      %v4782 = vmul.f32 %v4732, 1.442695
      %v4783 = vpow.pop %v4782
      %v4784 = vmul.f32 %v4733, 1.442695
      %v4785 = vpow.pop %v4784
      %v4786 = vmul.f32 %v4734, 1.442695
      %v4787 = vpow.pop %v4786
      %v4788 = vmul.f32 %v4735, 1.442695
      %v4789 = vpow.pop %v4788
      %v4790 = vmul.f32 %v4736, 1.442695
      %v4791 = vpow.pop %v4790
      %v4792 = vmul.f32 %v4737, 1.442695
      %v4793 = vpow.pop %v4792
      %v4794 = vmul.f32 %v4738, 1.442695
      %v4795 = vpow.pop %v4794
      %v4796 = vmul.f32 %v4739, 1.442695
      %v4797 = vpow.pop %v4796
      %v4798 = vmul.f32 %v4740, 1.442695
      %v4799 = vpow.pop %v4798
      %v4800 = vmul.f32 %v4741, 1.442695
      %v4801 = vpow.pop %v4800
      %v4802 = vmul.f32 %v4742, 1.442695
      %v4803 = vpow.pop %v4802
      %v4804 = vmul.f32 %v4743, 1.442695
      %v4805 = vpow.pop %v4804
      %v4806 = vmul.f32 %v4744, 1.442695
      %v4807 = vpow.pop %v4806
      %v4808 = vmul.f32 %v4745, 1.442695
      %v4809 = vpow.pop %v4808
      %v4810 = vsel %vm1337, %v4747, 0.0
      %4811 = vadd.xlane.f32.xlu0 %v4810
      %v4812 = vpop.xlane.xlu0 %4811
      %v4813 = vsel %vm1337, %v4749, 0.0
      %4814 = vadd.xlane.f32.xlu0 %v4813
      %v4815 = vpop.xlane.xlu0 %4814
      %v4816 = vsel %vm1337, %v4751, 0.0
      %4817 = vadd.xlane.f32.xlu0 %v4816
      %v4818 = vpop.xlane.xlu0 %4817
      %v4819 = vsel %vm1337, %v4753, 0.0
      %4820 = vadd.xlane.f32.xlu0 %v4819
      %v4821 = vpop.xlane.xlu0 %4820
      %v4822 = vsel %vm1337, %v4755, 0.0
      %4823 = vadd.xlane.f32.xlu0 %v4822
      %v4824 = vpop.xlane.xlu0 %4823
      %v4825 = vsel %vm1337, %v4757, 0.0
      %4826 = vadd.xlane.f32.xlu0 %v4825
      %v4827 = vpop.xlane.xlu0 %4826
      %v4828 = vsel %vm1337, %v4759, 0.0
      %4829 = vadd.xlane.f32.xlu0 %v4828
      %v4830 = vpop.xlane.xlu0 %4829
      %v4831 = vsel %vm1337, %v4761, 0.0
      %4832 = vadd.xlane.f32.xlu0 %v4831
      %v4833 = vpop.xlane.xlu0 %4832
      %v4834 = vsel %vm1337, %v4763, 0.0
      %4835 = vadd.xlane.f32.xlu0 %v4834
      %v4836 = vpop.xlane.xlu0 %4835
      %v4837 = vsel %vm1337, %v4765, 0.0
      %4838 = vadd.xlane.f32.xlu0 %v4837
      %v4839 = vpop.xlane.xlu0 %4838
      %v4840 = vsel %vm1337, %v4767, 0.0
      %4841 = vadd.xlane.f32.xlu0 %v4840
      %v4842 = vpop.xlane.xlu0 %4841
      %v4843 = vsel %vm1337, %v4769, 0.0
      %4844 = vadd.xlane.f32.xlu0 %v4843
      %v4845 = vpop.xlane.xlu0 %4844
      %v4846 = vsel %vm1337, %v4771, 0.0
      %4847 = vadd.xlane.f32.xlu0 %v4846
      %v4848 = vpop.xlane.xlu0 %4847
      %v4849 = vsel %vm1337, %v4773, 0.0
      %4850 = vadd.xlane.f32.xlu0 %v4849
      %v4851 = vpop.xlane.xlu0 %4850
      %v4852 = vsel %vm1337, %v4775, 0.0
      %4853 = vadd.xlane.f32.xlu0 %v4852
      %v4854 = vpop.xlane.xlu0 %4853
      %v4855 = vsel %vm1337, %v4777, 0.0
      %4856 = vadd.xlane.f32.xlu0 %v4855
      %v4857 = vpop.xlane.xlu0 %4856
      %v4858 = vsel %vm1337, %v4779, 0.0
      %4859 = vadd.xlane.f32.xlu0 %v4858
      %v4860 = vpop.xlane.xlu0 %4859
      %v4861 = vsel %vm1337, %v4781, 0.0
      %4862 = vadd.xlane.f32.xlu0 %v4861
      %v4863 = vpop.xlane.xlu0 %4862
      %v4864 = vsel %vm1337, %v4783, 0.0
      %4865 = vadd.xlane.f32.xlu0 %v4864
      %v4866 = vpop.xlane.xlu0 %4865
      %v4867 = vsel %vm1337, %v4785, 0.0
      %4868 = vadd.xlane.f32.xlu0 %v4867
      %v4869 = vpop.xlane.xlu0 %4868
      %v4870 = vsel %vm1337, %v4787, 0.0
      %4871 = vadd.xlane.f32.xlu0 %v4870
      %v4872 = vpop.xlane.xlu0 %4871
      %v4873 = vsel %vm1337, %v4789, 0.0
      %4874 = vadd.xlane.f32.xlu0 %v4873
      %v4875 = vpop.xlane.xlu0 %4874
      %v4876 = vsel %vm1337, %v4791, 0.0
      %4877 = vadd.xlane.f32.xlu0 %v4876
      %v4878 = vpop.xlane.xlu0 %4877
      %v4879 = vsel %vm1337, %v4793, 0.0
      %4880 = vadd.xlane.f32.xlu0 %v4879
      %v4881 = vpop.xlane.xlu0 %4880
      %v4882 = vsel %vm1337, %v4795, 0.0
      %4883 = vadd.xlane.f32.xlu0 %v4882
      %v4884 = vpop.xlane.xlu0 %4883
      %v4885 = vsel %vm1337, %v4797, 0.0
      %4886 = vadd.xlane.f32.xlu0 %v4885
      %v4887 = vpop.xlane.xlu0 %4886
      %v4888 = vsel %vm1337, %v4799, 0.0
      %4889 = vadd.xlane.f32.xlu0 %v4888
      %v4890 = vpop.xlane.xlu0 %4889
      %v4891 = vsel %vm1337, %v4801, 0.0
      %4892 = vadd.xlane.f32.xlu0 %v4891
      %v4893 = vpop.xlane.xlu0 %4892
      %v4894 = vsel %vm1337, %v4803, 0.0
      %4895 = vadd.xlane.f32.xlu0 %v4894
      %v4896 = vpop.xlane.xlu0 %4895
      %v4897 = vsel %vm1337, %v4805, 0.0
      %4898 = vadd.xlane.f32.xlu0 %v4897
      %v4899 = vpop.xlane.xlu0 %4898
      %v4900 = vsel %vm1337, %v4807, 0.0
      %4901 = vadd.xlane.f32.xlu0 %v4900
      %v4902 = vpop.xlane.xlu0 %4901
      %v4903 = vsel %vm1337, %v4809, 0.0
      %4904 = vadd.xlane.f32.xlu0 %v4903
      %v4905 = vpop.xlane.xlu0 %4904
      %4906 = vrot.lane.b32.xlu0 %v462, 48
      %v4907 = vpop.permute.xlu0 %4906
      %4908 = vrot.lane.b32.xlu0 %v467, 48
      %v4909 = vpop.permute.xlu0 %4908
      %4910 = vrot.lane.b32.xlu0 %v472, 48
      %v4911 = vpop.permute.xlu0 %4910
      %4912 = vrot.lane.b32.xlu0 %v477, 48
      %v4913 = vpop.permute.xlu0 %4912
      %4914 = vrot.lane.b32.xlu0 %v482, 48
      %v4915 = vpop.permute.xlu0 %4914
      %4916 = vrot.lane.b32.xlu0 %v487, 48
      %v4917 = vpop.permute.xlu0 %4916
      %4918 = vrot.lane.b32.xlu0 %v492, 48
      %v4919 = vpop.permute.xlu0 %4918
      %4920 = vrot.lane.b32.xlu0 %v497, 48
      %v4921 = vpop.permute.xlu0 %4920
      %v4931 = vsel %vm1337, %v4747, 0
      %v4934 = vsel %vm1337, %v4749, 0
      %v4937 = vsel %vm1337, %v4751, 0
      %v4940 = vsel %vm1337, %v4753, 0
      %v4943 = vsel %vm1337, %v4755, 0
      %v4946 = vsel %vm1337, %v4757, 0
      %v4949 = vsel %vm1337, %v4759, 0
      %v4952 = vsel %vm1337, %v4761, 0
      %4954 = vmatprep.subr.mxu0 0.0
      %4955 = vmatpush1.msra.mxu0 %v4907
      %4956 = vmatprep.subr.mxu0 0.0
      %4957 = vmatpush1.msra.mxu0 %v4909
      %4958 = vmatprep.subr.mxu0 0.0
      %4959 = vmatpush1.msra.mxu0 %v4911
      %4960 = vmatprep.subr.mxu0 0.0
      %4961 = vmatpush1.msra.mxu0 %v4913
      %4962 = vmatprep.subr.mxu0 0.0
      %4963 = vmatpush1.msra.mxu0 %v4915
      %4964 = vmatprep.subr.mxu0 0.0
      %4965 = vmatpush1.msra.mxu0 %v4917
      %4966 = vmatprep.subr.mxu0 0.0
      %4967 = vmatpush1.msra.mxu0 %v4919
      %4968 = vmatprep.subr.mxu0 0.0
      %4969 = vmatpush1.msra.mxu0 %v4921
      %4970 = vmatprep.subr.mxu0 0.0
      %4971 = vmatpush1.msra.mxu0 0.0
      %4972 = vmatprep.subr.mxu0 0.0
      %4973 = vmatpush1.msra.mxu0 0.0
      %4974 = vmatprep.subr.mxu0 0.0
      %4975 = vmatpush1.msra.mxu0 0.0
      %4976 = vmatprep.subr.mxu0 0.0
      %4977 = vmatpush1.msra.mxu0 0.0
      %4978 = vmatprep.subr.mxu0 0.0
      %4979 = vmatpush1.msra.mxu0 0.0
      %4980 = vmatprep.subr.mxu0 0.0
      %4981 = vmatpush1.msra.mxu0 0.0
      %4982 = vmatprep.subr.mxu0 0.0
      %4983 = vmatpush1.msra.mxu0 0.0
      %4984 = vmatprep.subr.mxu0 0.0
      %4985 = vmatpush1.msra.mxu0 0.0
      %4986 = vmatprep.subr.mxu0 0.0
      %4987 = vmatpush1.msra.mxu0 0.0
      %4988 = vmatprep.subr.mxu0 0.0
      %4989 = vmatpush1.msra.mxu0 0.0
      %4990 = vmatprep.subr.mxu0 0.0
      %4991 = vmatpush1.msra.mxu0 0.0
      %4992 = vmatprep.subr.mxu0 0.0
      %4993 = vmatpush1.msra.mxu0 0.0
      %4994 = vmatprep.subr.mxu0 0.0
      %4995 = vmatpush1.msra.mxu0 0.0
      %4996 = vmatprep.subr.mxu0 0.0
      %4997 = vmatpush1.msra.mxu0 0.0
      %4998 = vmatprep.subr.mxu0 0.0
      %4999 = vmatpush1.msra.mxu0 0.0
      %5000 = vmatprep.subr.mxu0 0.0
      %5001 = vmatpush1.msra.mxu0 0.0
      %5002 = vmatprep.subr.mxu0 0.0
      %5003 = vmatpush1.msra.mxu0 0.0
      %5004 = vmatprep.subr.mxu0 0.0
      %5005 = vmatpush1.msra.mxu0 0.0
      %5006 = vmatprep.subr.mxu0 0.0
      %5007 = vmatpush1.msra.mxu0 0.0
      %5008 = vmatprep.subr.mxu0 0.0
      %5009 = vmatpush1.msra.mxu0 0.0
      %5010 = vmatprep.subr.mxu0 0.0
      %5011 = vmatpush1.msra.mxu0 0.0
      %5012 = vmatprep.subr.mxu0 0.0
      %5013 = vmatpush1.msra.mxu0 0.0
      %5014 = vmatprep.subr.mxu0 0.0
      %5015 = vmatpush1.msra.mxu0 0.0
      %5016 = vmatprep.subr.mxu0 0.0
      %5017 = vmatpush1.msra.mxu0 0.0
      %5018 = vmatprep.mubr.f32.mxu0 0.0
      %5019 = vmatmul.mubr.f32.gmra.mrb[0].mxu0 %v4931
      %v5020 = vpop.f32.mrb[0].mxu0
      %v5021 = vadd.f32 0.0, %v5020
      %v5022 = vpop.f32.mrb[0].mxu0
      %5023 = vmatprep.mubr.f32.mxu0 0.0
      %5024 = vmatmul.mubr.f32.gmra.mrb[0].mxu0 %v4934
      %v5025 = vpop.f32.mrb[0].mxu0
      %v5026 = vadd.f32 0.0, %v5025
      %v5027 = vpop.f32.mrb[0].mxu0
      %5028 = vmatprep.mubr.f32.mxu0 0.0
      %5029 = vmatmul.mubr.f32.gmra.mrb[0].mxu0 %v4937
      %v5030 = vpop.f32.mrb[0].mxu0
      %v5031 = vadd.f32 0.0, %v5030
      %v5032 = vpop.f32.mrb[0].mxu0
      %5033 = vmatprep.mubr.f32.mxu0 0.0
      %5034 = vmatmul.mubr.f32.gmra.mrb[0].mxu0 %v4940
      %v5035 = vpop.f32.mrb[0].mxu0
      %v5036 = vadd.f32 0.0, %v5035
      %v5037 = vpop.f32.mrb[0].mxu0
      %5038 = vmatprep.mubr.f32.mxu0 0.0
      %5039 = vmatmul.mubr.f32.gmra.mrb[0].mxu0 %v4943
      %v5040 = vpop.f32.mrb[0].mxu0
      %v5041 = vadd.f32 0.0, %v5040
      %v5042 = vpop.f32.mrb[0].mxu0
      %5043 = vmatprep.mubr.f32.mxu0 0.0
      %5044 = vmatmul.mubr.f32.gmra.mrb[0].mxu0 %v4946
      %v5045 = vpop.f32.mrb[0].mxu0
      %v5046 = vadd.f32 0.0, %v5045
      %v5047 = vpop.f32.mrb[0].mxu0
      %5048 = vmatprep.mubr.f32.mxu0 0.0
      %5049 = vmatmul.mubr.f32.gmra.mrb[0].mxu0 %v4949
      %v5050 = vpop.f32.mrb[0].mxu0
      %v5051 = vadd.f32 0.0, %v5050
      %v5052 = vpop.f32.mrb[0].mxu0
      %5053 = vmatprep.mubr.f32.mxu0 0.0
      %5054 = vmatmul.mubr.f32.gmra.mrb[0].mxu0 %v4952
      %v5055 = vpop.f32.mrb[0].mxu0
      %v5056 = vadd.f32 0.0, %v5055
      %v5057 = vpop.f32.mrb[0].mxu0
      %5058 = vdwg.mxu0
      %5059 = vrot.lane.b32.xlu0 %v502, 48
      %v5060 = vpop.permute.xlu0 %5059
      %5061 = vrot.lane.b32.xlu0 %v507, 48
      %v5062 = vpop.permute.xlu0 %5061
      %5063 = vrot.lane.b32.xlu0 %v512, 48
      %v5064 = vpop.permute.xlu0 %5063
      %5065 = vrot.lane.b32.xlu0 %v517, 48
      %v5066 = vpop.permute.xlu0 %5065
      %5067 = vrot.lane.b32.xlu0 %v522, 48
      %v5068 = vpop.permute.xlu0 %5067
      %5069 = vrot.lane.b32.xlu0 %v527, 48
      %v5070 = vpop.permute.xlu0 %5069
      %5071 = vrot.lane.b32.xlu0 %v532, 48
      %v5072 = vpop.permute.xlu0 %5071
      %5073 = vrot.lane.b32.xlu0 %v537, 48
      %v5074 = vpop.permute.xlu0 %5073
      %v5084 = vsel %vm1337, %v4763, 0
      %v5087 = vsel %vm1337, %v4765, 0
      %v5090 = vsel %vm1337, %v4767, 0
      %v5093 = vsel %vm1337, %v4769, 0
      %v5096 = vsel %vm1337, %v4771, 0
      %v5099 = vsel %vm1337, %v4773, 0
      %v5102 = vsel %vm1337, %v4775, 0
      %v5105 = vsel %vm1337, %v4777, 0
      %5107 = vmatprep.subr.mxu0 0.0
      %5108 = vmatpush1.msra.mxu0 %v5060
      %5109 = vmatprep.subr.mxu0 0.0
      %5110 = vmatpush1.msra.mxu0 %v5062
      %5111 = vmatprep.subr.mxu0 0.0
      %5112 = vmatpush1.msra.mxu0 %v5064
      %5113 = vmatprep.subr.mxu0 0.0
      %5114 = vmatpush1.msra.mxu0 %v5066
      %5115 = vmatprep.subr.mxu0 0.0
      %5116 = vmatpush1.msra.mxu0 %v5068
      %5117 = vmatprep.subr.mxu0 0.0
      %5118 = vmatpush1.msra.mxu0 %v5070
      %5119 = vmatprep.subr.mxu0 0.0
      %5120 = vmatpush1.msra.mxu0 %v5072
      %5121 = vmatprep.subr.mxu0 0.0
      %5122 = vmatpush1.msra.mxu0 %v5074
      %5123 = vmatprep.subr.mxu0 0.0
      %5124 = vmatpush1.msra.mxu0 0.0
      %5125 = vmatprep.subr.mxu0 0.0
      %5126 = vmatpush1.msra.mxu0 0.0
      %5127 = vmatprep.subr.mxu0 0.0
      %5128 = vmatpush1.msra.mxu0 0.0
      %5129 = vmatprep.subr.mxu0 0.0
      %5130 = vmatpush1.msra.mxu0 0.0
      %5131 = vmatprep.subr.mxu0 0.0
      %5132 = vmatpush1.msra.mxu0 0.0
      %5133 = vmatprep.subr.mxu0 0.0
      %5134 = vmatpush1.msra.mxu0 0.0
      %5135 = vmatprep.subr.mxu0 0.0
      %5136 = vmatpush1.msra.mxu0 0.0
      %5137 = vmatprep.subr.mxu0 0.0
      %5138 = vmatpush1.msra.mxu0 0.0
      %5139 = vmatprep.subr.mxu0 0.0
      %5140 = vmatpush1.msra.mxu0 0.0
      %5141 = vmatprep.subr.mxu0 0.0
      %5142 = vmatpush1.msra.mxu0 0.0
      %5143 = vmatprep.subr.mxu0 0.0
      %5144 = vmatpush1.msra.mxu0 0.0
      %5145 = vmatprep.subr.mxu0 0.0
      %5146 = vmatpush1.msra.mxu0 0.0
      %5147 = vmatprep.subr.mxu0 0.0
      %5148 = vmatpush1.msra.mxu0 0.0
      %5149 = vmatprep.subr.mxu0 0.0
      %5150 = vmatpush1.msra.mxu0 0.0
      %5151 = vmatprep.subr.mxu0 0.0
      %5152 = vmatpush1.msra.mxu0 0.0
      %5153 = vmatprep.subr.mxu0 0.0
      %5154 = vmatpush1.msra.mxu0 0.0
      %5155 = vmatprep.subr.mxu0 0.0
      %5156 = vmatpush1.msra.mxu0 0.0
      %5157 = vmatprep.subr.mxu0 0.0
      %5158 = vmatpush1.msra.mxu0 0.0
      %5159 = vmatprep.subr.mxu0 0.0
      %5160 = vmatpush1.msra.mxu0 0.0
      %5161 = vmatprep.subr.mxu0 0.0
      %5162 = vmatpush1.msra.mxu0 0.0
      %5163 = vmatprep.subr.mxu0 0.0
      %5164 = vmatpush1.msra.mxu0 0.0
      %5165 = vmatprep.subr.mxu0 0.0
      %5166 = vmatpush1.msra.mxu0 0.0
      %5167 = vmatprep.subr.mxu0 0.0
      %5168 = vmatpush1.msra.mxu0 0.0
      %5169 = vmatprep.subr.mxu0 0.0
      %5170 = vmatpush1.msra.mxu0 0.0
      %5171 = vmatprep.mubr.f32.mxu0 0.0
      %5172 = vmatmul.mubr.f32.gmra.mrb[0].mxu0 %v5084
      %v5173 = vpop.f32.mrb[0].mxu0
      %v5174 = vadd.f32 0.0, %v5173
      %v5175 = vpop.f32.mrb[0].mxu0
      %5176 = vmatprep.mubr.f32.mxu0 0.0
      %5177 = vmatmul.mubr.f32.gmra.mrb[0].mxu0 %v5087
      %v5178 = vpop.f32.mrb[0].mxu0
      %v5179 = vadd.f32 0.0, %v5178
      %v5180 = vpop.f32.mrb[0].mxu0
      %5181 = vmatprep.mubr.f32.mxu0 0.0
      %5182 = vmatmul.mubr.f32.gmra.mrb[0].mxu0 %v5090
      %v5183 = vpop.f32.mrb[0].mxu0
      %v5184 = vadd.f32 0.0, %v5183
      %v5185 = vpop.f32.mrb[0].mxu0
      %5186 = vmatprep.mubr.f32.mxu0 0.0
      %5187 = vmatmul.mubr.f32.gmra.mrb[0].mxu0 %v5093
      %v5188 = vpop.f32.mrb[0].mxu0
      %v5189 = vadd.f32 0.0, %v5188
      %v5190 = vpop.f32.mrb[0].mxu0
      %5191 = vmatprep.mubr.f32.mxu0 0.0
      %5192 = vmatmul.mubr.f32.gmra.mrb[0].mxu0 %v5096
      %v5193 = vpop.f32.mrb[0].mxu0
      %v5194 = vadd.f32 0.0, %v5193
      %v5195 = vpop.f32.mrb[0].mxu0
      %5196 = vmatprep.mubr.f32.mxu0 0.0
      %5197 = vmatmul.mubr.f32.gmra.mrb[0].mxu0 %v5099
      %v5198 = vpop.f32.mrb[0].mxu0
      %v5199 = vadd.f32 0.0, %v5198
      %v5200 = vpop.f32.mrb[0].mxu0
      %5201 = vmatprep.mubr.f32.mxu0 0.0
      %5202 = vmatmul.mubr.f32.gmra.mrb[0].mxu0 %v5102
      %v5203 = vpop.f32.mrb[0].mxu0
      %v5204 = vadd.f32 0.0, %v5203
      %v5205 = vpop.f32.mrb[0].mxu0
      %5206 = vmatprep.mubr.f32.mxu0 0.0
      %5207 = vmatmul.mubr.f32.gmra.mrb[0].mxu0 %v5105
      %v5208 = vpop.f32.mrb[0].mxu0
      %v5209 = vadd.f32 0.0, %v5208
      %v5210 = vpop.f32.mrb[0].mxu0
      %5211 = vdwg.mxu0
      %5212 = vrot.lane.b32.xlu0 %v542, 48
      %v5213 = vpop.permute.xlu0 %5212
      %5214 = vrot.lane.b32.xlu0 %v547, 48
      %v5215 = vpop.permute.xlu0 %5214
      %5216 = vrot.lane.b32.xlu0 %v552, 48
      %v5217 = vpop.permute.xlu0 %5216
      %5218 = vrot.lane.b32.xlu0 %v557, 48
      %v5219 = vpop.permute.xlu0 %5218
      %5220 = vrot.lane.b32.xlu0 %v562, 48
      %v5221 = vpop.permute.xlu0 %5220
      %5222 = vrot.lane.b32.xlu0 %v567, 48
      %v5223 = vpop.permute.xlu0 %5222
      %5224 = vrot.lane.b32.xlu0 %v572, 48
      %v5225 = vpop.permute.xlu0 %5224
      %5226 = vrot.lane.b32.xlu0 %v577, 48
      %v5227 = vpop.permute.xlu0 %5226
      %v5237 = vsel %vm1337, %v4779, 0
      %v5240 = vsel %vm1337, %v4781, 0
      %v5243 = vsel %vm1337, %v4783, 0
      %v5246 = vsel %vm1337, %v4785, 0
      %v5249 = vsel %vm1337, %v4787, 0
      %v5252 = vsel %vm1337, %v4789, 0
      %v5255 = vsel %vm1337, %v4791, 0
      %v5258 = vsel %vm1337, %v4793, 0
      %5260 = vmatprep.subr.mxu0 0.0
      %5261 = vmatpush1.msra.mxu0 %v5213
      %5262 = vmatprep.subr.mxu0 0.0
      %5263 = vmatpush1.msra.mxu0 %v5215
      %5264 = vmatprep.subr.mxu0 0.0
      %5265 = vmatpush1.msra.mxu0 %v5217
      %5266 = vmatprep.subr.mxu0 0.0
      %5267 = vmatpush1.msra.mxu0 %v5219
      %5268 = vmatprep.subr.mxu0 0.0
      %5269 = vmatpush1.msra.mxu0 %v5221
      %5270 = vmatprep.subr.mxu0 0.0
      %5271 = vmatpush1.msra.mxu0 %v5223
      %5272 = vmatprep.subr.mxu0 0.0
      %5273 = vmatpush1.msra.mxu0 %v5225
      %5274 = vmatprep.subr.mxu0 0.0
      %5275 = vmatpush1.msra.mxu0 %v5227
      %5276 = vmatprep.subr.mxu0 0.0
      %5277 = vmatpush1.msra.mxu0 0.0
      %5278 = vmatprep.subr.mxu0 0.0
      %5279 = vmatpush1.msra.mxu0 0.0
      %5280 = vmatprep.subr.mxu0 0.0
      %5281 = vmatpush1.msra.mxu0 0.0
      %5282 = vmatprep.subr.mxu0 0.0
      %5283 = vmatpush1.msra.mxu0 0.0
      %5284 = vmatprep.subr.mxu0 0.0
      %5285 = vmatpush1.msra.mxu0 0.0
      %5286 = vmatprep.subr.mxu0 0.0
      %5287 = vmatpush1.msra.mxu0 0.0
      %5288 = vmatprep.subr.mxu0 0.0
      %5289 = vmatpush1.msra.mxu0 0.0
      %5290 = vmatprep.subr.mxu0 0.0
      %5291 = vmatpush1.msra.mxu0 0.0
      %5292 = vmatprep.subr.mxu0 0.0
      %5293 = vmatpush1.msra.mxu0 0.0
      %5294 = vmatprep.subr.mxu0 0.0
      %5295 = vmatpush1.msra.mxu0 0.0
      %5296 = vmatprep.subr.mxu0 0.0
      %5297 = vmatpush1.msra.mxu0 0.0
      %5298 = vmatprep.subr.mxu0 0.0
      %5299 = vmatpush1.msra.mxu0 0.0
      %5300 = vmatprep.subr.mxu0 0.0
      %5301 = vmatpush1.msra.mxu0 0.0
      %5302 = vmatprep.subr.mxu0 0.0
      %5303 = vmatpush1.msra.mxu0 0.0
      %5304 = vmatprep.subr.mxu0 0.0
      %5305 = vmatpush1.msra.mxu0 0.0
      %5306 = vmatprep.subr.mxu0 0.0
      %5307 = vmatpush1.msra.mxu0 0.0
      %5308 = vmatprep.subr.mxu0 0.0
      %5309 = vmatpush1.msra.mxu0 0.0
      %5310 = vmatprep.subr.mxu0 0.0
      %5311 = vmatpush1.msra.mxu0 0.0
      %5312 = vmatprep.subr.mxu0 0.0
      %5313 = vmatpush1.msra.mxu0 0.0
      %5314 = vmatprep.subr.mxu0 0.0
      %5315 = vmatpush1.msra.mxu0 0.0
      %5316 = vmatprep.subr.mxu0 0.0
      %5317 = vmatpush1.msra.mxu0 0.0
      %5318 = vmatprep.subr.mxu0 0.0
      %5319 = vmatpush1.msra.mxu0 0.0
      %5320 = vmatprep.subr.mxu0 0.0
      %5321 = vmatpush1.msra.mxu0 0.0
      %5322 = vmatprep.subr.mxu0 0.0
      %5323 = vmatpush1.msra.mxu0 0.0
      %5324 = vmatprep.mubr.f32.mxu0 0.0
      %5325 = vmatmul.mubr.f32.gmra.mrb[0].mxu0 %v5237
      %v5326 = vpop.f32.mrb[0].mxu0
      %v5327 = vadd.f32 0.0, %v5326
      %v5328 = vpop.f32.mrb[0].mxu0
      %5329 = vmatprep.mubr.f32.mxu0 0.0
      %5330 = vmatmul.mubr.f32.gmra.mrb[0].mxu0 %v5240
      %v5331 = vpop.f32.mrb[0].mxu0
      %v5332 = vadd.f32 0.0, %v5331
      %v5333 = vpop.f32.mrb[0].mxu0
      %5334 = vmatprep.mubr.f32.mxu0 0.0
      %5335 = vmatmul.mubr.f32.gmra.mrb[0].mxu0 %v5243
      %v5336 = vpop.f32.mrb[0].mxu0
      %v5337 = vadd.f32 0.0, %v5336
      %v5338 = vpop.f32.mrb[0].mxu0
      %5339 = vmatprep.mubr.f32.mxu0 0.0
      %5340 = vmatmul.mubr.f32.gmra.mrb[0].mxu0 %v5246
      %v5341 = vpop.f32.mrb[0].mxu0
      %v5342 = vadd.f32 0.0, %v5341
      %v5343 = vpop.f32.mrb[0].mxu0
      %5344 = vmatprep.mubr.f32.mxu0 0.0
      %5345 = vmatmul.mubr.f32.gmra.mrb[0].mxu0 %v5249
      %v5346 = vpop.f32.mrb[0].mxu0
      %v5347 = vadd.f32 0.0, %v5346
      %v5348 = vpop.f32.mrb[0].mxu0
      %5349 = vmatprep.mubr.f32.mxu0 0.0
      %5350 = vmatmul.mubr.f32.gmra.mrb[0].mxu0 %v5252
      %v5351 = vpop.f32.mrb[0].mxu0
      %v5352 = vadd.f32 0.0, %v5351
      %v5353 = vpop.f32.mrb[0].mxu0
      %5354 = vmatprep.mubr.f32.mxu0 0.0
      %5355 = vmatmul.mubr.f32.gmra.mrb[0].mxu0 %v5255
      %v5356 = vpop.f32.mrb[0].mxu0
      %v5357 = vadd.f32 0.0, %v5356
      %v5358 = vpop.f32.mrb[0].mxu0
      %5359 = vmatprep.mubr.f32.mxu0 0.0
      %5360 = vmatmul.mubr.f32.gmra.mrb[0].mxu0 %v5258
      %v5361 = vpop.f32.mrb[0].mxu0
      %v5362 = vadd.f32 0.0, %v5361
      %v5363 = vpop.f32.mrb[0].mxu0
      %5364 = vdwg.mxu0
      %5365 = vrot.lane.b32.xlu0 %v582, 48
      %v5366 = vpop.permute.xlu0 %5365
      %5367 = vrot.lane.b32.xlu0 %v587, 48
      %v5368 = vpop.permute.xlu0 %5367
      %5369 = vrot.lane.b32.xlu0 %v592, 48
      %v5370 = vpop.permute.xlu0 %5369
      %5371 = vrot.lane.b32.xlu0 %v597, 48
      %v5372 = vpop.permute.xlu0 %5371
      %5373 = vrot.lane.b32.xlu0 %v602, 48
      %v5374 = vpop.permute.xlu0 %5373
      %5375 = vrot.lane.b32.xlu0 %v607, 48
      %v5376 = vpop.permute.xlu0 %5375
      %5377 = vrot.lane.b32.xlu0 %v612, 48
      %v5378 = vpop.permute.xlu0 %5377
      %5379 = vrot.lane.b32.xlu0 %v617, 48
      %v5380 = vpop.permute.xlu0 %5379
      %v5390 = vsel %vm1337, %v4795, 0
      %v5393 = vsel %vm1337, %v4797, 0
      %v5396 = vsel %vm1337, %v4799, 0
      %v5399 = vsel %vm1337, %v4801, 0
      %v5402 = vsel %vm1337, %v4803, 0
      %v5405 = vsel %vm1337, %v4805, 0
      %v5408 = vsel %vm1337, %v4807, 0
      %v5411 = vsel %vm1337, %v4809, 0
      %5413 = vmatprep.subr.mxu0 0.0
      %5414 = vmatpush1.msra.mxu0 %v5366
      %5415 = vmatprep.subr.mxu0 0.0
      %5416 = vmatpush1.msra.mxu0 %v5368
      %5417 = vmatprep.subr.mxu0 0.0
      %5418 = vmatpush1.msra.mxu0 %v5370
      %5419 = vmatprep.subr.mxu0 0.0
      %5420 = vmatpush1.msra.mxu0 %v5372
      %5421 = vmatprep.subr.mxu0 0.0
      %5422 = vmatpush1.msra.mxu0 %v5374
      %5423 = vmatprep.subr.mxu0 0.0
      %5424 = vmatpush1.msra.mxu0 %v5376
      %5425 = vmatprep.subr.mxu0 0.0
      %5426 = vmatpush1.msra.mxu0 %v5378
      %5427 = vmatprep.subr.mxu0 0.0
      %5428 = vmatpush1.msra.mxu0 %v5380
      %5429 = vmatprep.subr.mxu0 0.0
      %5430 = vmatpush1.msra.mxu0 0.0
      %5431 = vmatprep.subr.mxu0 0.0
      %5432 = vmatpush1.msra.mxu0 0.0
      %5433 = vmatprep.subr.mxu0 0.0
      %5434 = vmatpush1.msra.mxu0 0.0
      %5435 = vmatprep.subr.mxu0 0.0
      %5436 = vmatpush1.msra.mxu0 0.0
      %5437 = vmatprep.subr.mxu0 0.0
      %5438 = vmatpush1.msra.mxu0 0.0
      %5439 = vmatprep.subr.mxu0 0.0
      %5440 = vmatpush1.msra.mxu0 0.0
      %5441 = vmatprep.subr.mxu0 0.0
      %5442 = vmatpush1.msra.mxu0 0.0
      %5443 = vmatprep.subr.mxu0 0.0
      %5444 = vmatpush1.msra.mxu0 0.0
      %5445 = vmatprep.subr.mxu0 0.0
      %5446 = vmatpush1.msra.mxu0 0.0
      %5447 = vmatprep.subr.mxu0 0.0
      %5448 = vmatpush1.msra.mxu0 0.0
      %5449 = vmatprep.subr.mxu0 0.0
      %5450 = vmatpush1.msra.mxu0 0.0
      %5451 = vmatprep.subr.mxu0 0.0
      %5452 = vmatpush1.msra.mxu0 0.0
      %5453 = vmatprep.subr.mxu0 0.0
      %5454 = vmatpush1.msra.mxu0 0.0
      %5455 = vmatprep.subr.mxu0 0.0
      %5456 = vmatpush1.msra.mxu0 0.0
      %5457 = vmatprep.subr.mxu0 0.0
      %5458 = vmatpush1.msra.mxu0 0.0
      %5459 = vmatprep.subr.mxu0 0.0
      %5460 = vmatpush1.msra.mxu0 0.0
      %5461 = vmatprep.subr.mxu0 0.0
      %5462 = vmatpush1.msra.mxu0 0.0
      %5463 = vmatprep.subr.mxu0 0.0
      %5464 = vmatpush1.msra.mxu0 0.0
      %5465 = vmatprep.subr.mxu0 0.0
      %5466 = vmatpush1.msra.mxu0 0.0
      %5467 = vmatprep.subr.mxu0 0.0
      %5468 = vmatpush1.msra.mxu0 0.0
      %5469 = vmatprep.subr.mxu0 0.0
      %5470 = vmatpush1.msra.mxu0 0.0
      %5471 = vmatprep.subr.mxu0 0.0
      %5472 = vmatpush1.msra.mxu0 0.0
      %5473 = vmatprep.subr.mxu0 0.0
      %5474 = vmatpush1.msra.mxu0 0.0
      %5475 = vmatprep.subr.mxu0 0.0
      %5476 = vmatpush1.msra.mxu0 0.0
      %5477 = vmatprep.mubr.f32.mxu0 0.0
      %5478 = vmatmul.mubr.f32.gmra.mrb[0].mxu0 %v5390
      %v5479 = vpop.f32.mrb[0].mxu0
      %v5480 = vadd.f32 0.0, %v5479
      %v5481 = vpop.f32.mrb[0].mxu0
      %5482 = vmatprep.mubr.f32.mxu0 0.0
      %5483 = vmatmul.mubr.f32.gmra.mrb[0].mxu0 %v5393
      %v5484 = vpop.f32.mrb[0].mxu0
      %v5485 = vadd.f32 0.0, %v5484
      %v5486 = vpop.f32.mrb[0].mxu0
      %5487 = vmatprep.mubr.f32.mxu0 0.0
      %5488 = vmatmul.mubr.f32.gmra.mrb[0].mxu0 %v5396
      %v5489 = vpop.f32.mrb[0].mxu0
      %v5490 = vadd.f32 0.0, %v5489
      %v5491 = vpop.f32.mrb[0].mxu0
      %5492 = vmatprep.mubr.f32.mxu0 0.0
      %5493 = vmatmul.mubr.f32.gmra.mrb[0].mxu0 %v5399
      %v5494 = vpop.f32.mrb[0].mxu0
      %v5495 = vadd.f32 0.0, %v5494
      %v5496 = vpop.f32.mrb[0].mxu0
      %5497 = vmatprep.mubr.f32.mxu0 0.0
      %5498 = vmatmul.mubr.f32.gmra.mrb[0].mxu0 %v5402
      %v5499 = vpop.f32.mrb[0].mxu0
      %v5500 = vadd.f32 0.0, %v5499
      %v5501 = vpop.f32.mrb[0].mxu0
      %5502 = vmatprep.mubr.f32.mxu0 0.0
      %5503 = vmatmul.mubr.f32.gmra.mrb[0].mxu0 %v5405
      %v5504 = vpop.f32.mrb[0].mxu0
      %v5505 = vadd.f32 0.0, %v5504
      %v5506 = vpop.f32.mrb[0].mxu0
      %5507 = vmatprep.mubr.f32.mxu0 0.0
      %5508 = vmatmul.mubr.f32.gmra.mrb[0].mxu0 %v5408
      %v5509 = vpop.f32.mrb[0].mxu0
      %v5510 = vadd.f32 0.0, %v5509
      %v5511 = vpop.f32.mrb[0].mxu0
      %5512 = vmatprep.mubr.f32.mxu0 0.0
      %5513 = vmatmul.mubr.f32.gmra.mrb[0].mxu0 %v5411
      %v5514 = vpop.f32.mrb[0].mxu0
      %v5515 = vadd.f32 0.0, %v5514
      %v5516 = vpop.f32.mrb[0].mxu0
      %5517 = vdwg.mxu0
      %v5518 = vrcp.pop %v4812
      %v5519 = vrcp.pop %v4815
      %v5520 = vrcp.pop %v4818
      %v5521 = vrcp.pop %v4821
      %v5522 = vrcp.pop %v4824
      %v5523 = vrcp.pop %v4827
      %v5524 = vrcp.pop %v4830
      %v5525 = vrcp.pop %v4833
      %v5526 = vrcp.pop %v4836
      %v5527 = vrcp.pop %v4839
      %v5528 = vrcp.pop %v4842
      %v5529 = vrcp.pop %v4845
      %v5530 = vrcp.pop %v4848
      %v5531 = vrcp.pop %v4851
      %v5532 = vrcp.pop %v4854
      %v5533 = vrcp.pop %v4857
      %v5534 = vrcp.pop %v4860
      %v5535 = vrcp.pop %v4863
      %v5536 = vrcp.pop %v4866
      %v5537 = vrcp.pop %v4869
      %v5538 = vrcp.pop %v4872
      %v5539 = vrcp.pop %v4875
      %v5540 = vrcp.pop %v4878
      %v5541 = vrcp.pop %v4881
      %v5542 = vrcp.pop %v4884
      %v5543 = vrcp.pop %v4887
      %v5544 = vrcp.pop %v4890
      %v5545 = vrcp.pop %v4893
      %v5546 = vrcp.pop %v4896
      %v5547 = vrcp.pop %v4899
      %v5548 = vrcp.pop %v4902
      %v5549 = vrcp.pop %v4905
      %v5550 = vmul.f32 %v5021, %v5518
      %v5551 = vmul.f32 %v5026, %v5519
      %v5552 = vmul.f32 %v5031, %v5520
      %v5553 = vmul.f32 %v5036, %v5521
      %v5554 = vmul.f32 %v5041, %v5522
      %v5555 = vmul.f32 %v5046, %v5523
      %v5556 = vmul.f32 %v5051, %v5524
      %v5557 = vmul.f32 %v5056, %v5525
      %v5558 = vmul.f32 %v5174, %v5526
      %v5559 = vmul.f32 %v5179, %v5527
      %v5560 = vmul.f32 %v5184, %v5528
      %v5561 = vmul.f32 %v5189, %v5529
      %v5562 = vmul.f32 %v5194, %v5530
      %v5563 = vmul.f32 %v5199, %v5531
      %v5564 = vmul.f32 %v5204, %v5532
      %v5565 = vmul.f32 %v5209, %v5533
      %v5566 = vmul.f32 %v5327, %v5534
      %v5567 = vmul.f32 %v5332, %v5535
      %v5568 = vmul.f32 %v5337, %v5536
      %v5569 = vmul.f32 %v5342, %v5537
      %v5570 = vmul.f32 %v5347, %v5538
      %v5571 = vmul.f32 %v5352, %v5539
      %v5572 = vmul.f32 %v5357, %v5540
      %v5573 = vmul.f32 %v5362, %v5541
      %v5574 = vmul.f32 %v5480, %v5542
      %v5575 = vmul.f32 %v5485, %v5543
      %v5576 = vmul.f32 %v5490, %v5544
      %v5577 = vmul.f32 %v5495, %v5545
      %v5578 = vmul.f32 %v5500, %v5546
      %v5579 = vmul.f32 %v5505, %v5547
      %v5580 = vmul.f32 %v5510, %v5548
      %v5581 = vmul.f32 %v5515, %v5549
      %5582 = vrot.lane.b32.xlu0 %v628, 104
      %v5583 = vpop.permute.xlu0 %5582
      %5584 = vrot.lane.b32.xlu0 %v629, 104
      %v5585 = vpop.permute.xlu0 %5584
      %5586 = vrot.lane.b32.xlu0 %v630, 104
      %v5587 = vpop.permute.xlu0 %5586
      %5588 = vrot.lane.b32.xlu0 %v631, 104
      %v5589 = vpop.permute.xlu0 %5588
      %5590 = vrot.lane.b32.xlu0 %v632, 104
      %v5591 = vpop.permute.xlu0 %5590
      %5592 = vrot.lane.b32.xlu0 %v633, 104
      %v5593 = vpop.permute.xlu0 %5592
      %5594 = vrot.lane.b32.xlu0 %v634, 104
      %v5595 = vpop.permute.xlu0 %5594
      %5596 = vrot.lane.b32.xlu0 %v635, 104
      %v5597 = vpop.permute.xlu0 %5596
      %5598 = vrot.lane.b32.xlu0 %v462, 72
      %v5599 = vpop.permute.xlu0 %5598
      %5600 = vrot.lane.b32.xlu0 %v467, 72
      %v5601 = vpop.permute.xlu0 %5600
      %5602 = vrot.lane.b32.xlu0 %v472, 72
      %v5603 = vpop.permute.xlu0 %5602
      %5604 = vrot.lane.b32.xlu0 %v477, 72
      %v5605 = vpop.permute.xlu0 %5604
      %5606 = vrot.lane.b32.xlu0 %v482, 72
      %v5607 = vpop.permute.xlu0 %5606
      %5608 = vrot.lane.b32.xlu0 %v487, 72
      %v5609 = vpop.permute.xlu0 %5608
      %5610 = vrot.lane.b32.xlu0 %v492, 72
      %v5611 = vpop.permute.xlu0 %5610
      %5612 = vrot.lane.b32.xlu0 %v497, 72
      %v5613 = vpop.permute.xlu0 %5612
      %v5614 = vsel %vm684, %v5583, 0
      %v5616 = vsel %vm684, %v5585, 0
      %v5618 = vsel %vm684, %v5587, 0
      %v5620 = vsel %vm684, %v5589, 0
      %v5622 = vsel %vm684, %v5591, 0
      %v5624 = vsel %vm684, %v5593, 0
      %v5626 = vsel %vm684, %v5595, 0
      %v5628 = vsel %vm684, %v5597, 0
      %v5630 = vsel %vm684, %v5599, 0
      %v5632 = vsel %vm684, %v5601, 0
      %v5634 = vsel %vm684, %v5603, 0
      %v5636 = vsel %vm684, %v5605, 0
      %v5638 = vsel %vm684, %v5607, 0
      %v5640 = vsel %vm684, %v5609, 0
      %v5642 = vsel %vm684, %v5611, 0
      %v5644 = vsel %vm684, %v5613, 0
      %5646 = vmatprep.subr.mxu0 0.0
      %5647 = vmatpush1.xpose.msra.mxu0 %v5630
      %5648 = vmatprep.subr.mxu0 0.0
      %5649 = vmatpush1.xpose.msra.mxu0 %v5632
      %5650 = vmatprep.subr.mxu0 0.0
      %5651 = vmatpush1.xpose.msra.mxu0 %v5634
      %5652 = vmatprep.subr.mxu0 0.0
      %5653 = vmatpush1.xpose.msra.mxu0 %v5636
      %5654 = vmatprep.subr.mxu0 0.0
      %5655 = vmatpush1.xpose.msra.mxu0 %v5638
      %5656 = vmatprep.subr.mxu0 0.0
      %5657 = vmatpush1.xpose.msra.mxu0 %v5640
      %5658 = vmatprep.subr.mxu0 0.0
      %5659 = vmatpush1.xpose.msra.mxu0 %v5642
      %5660 = vmatprep.subr.mxu0 0.0
      %5661 = vmatpush1.xpose.msra.mxu0 %v5644
      %5662 = vmatprep.subr.mxu0 0.0
      %5663 = vmatpush1.xpose.msra.mxu0 0.0
      %5664 = vmatprep.subr.mxu0 0.0
      %5665 = vmatpush1.xpose.msra.mxu0 0.0
      %5666 = vmatprep.subr.mxu0 0.0
      %5667 = vmatpush1.xpose.msra.mxu0 0.0
      %5668 = vmatprep.subr.mxu0 0.0
      %5669 = vmatpush1.xpose.msra.mxu0 0.0
      %5670 = vmatprep.subr.mxu0 0.0
      %5671 = vmatpush1.xpose.msra.mxu0 0.0
      %5672 = vmatprep.subr.mxu0 0.0
      %5673 = vmatpush1.xpose.msra.mxu0 0.0
      %5674 = vmatprep.subr.mxu0 0.0
      %5675 = vmatpush1.xpose.msra.mxu0 0.0
      %5676 = vmatprep.subr.mxu0 0.0
      %5677 = vmatpush1.xpose.msra.mxu0 0.0
      %5678 = vmatprep.subr.mxu0 0.0
      %5679 = vmatpush1.xpose.msra.mxu0 0.0
      %5680 = vmatprep.subr.mxu0 0.0
      %5681 = vmatpush1.xpose.msra.mxu0 0.0
      %5682 = vmatprep.subr.mxu0 0.0
      %5683 = vmatpush1.xpose.msra.mxu0 0.0
      %5684 = vmatprep.subr.mxu0 0.0
      %5685 = vmatpush1.xpose.msra.mxu0 0.0
      %5686 = vmatprep.subr.mxu0 0.0
      %5687 = vmatpush1.xpose.msra.mxu0 0.0
      %5688 = vmatprep.subr.mxu0 0.0
      %5689 = vmatpush1.xpose.msra.mxu0 0.0
      %5690 = vmatprep.subr.mxu0 0.0
      %5691 = vmatpush1.xpose.msra.mxu0 0.0
      %5692 = vmatprep.subr.mxu0 0.0
      %5693 = vmatpush1.xpose.msra.mxu0 0.0
      %5694 = vmatprep.subr.mxu0 0.0
      %5695 = vmatpush1.xpose.msra.mxu0 0.0
      %5696 = vmatprep.subr.mxu0 0.0
      %5697 = vmatpush1.xpose.msra.mxu0 0.0
      %5698 = vmatprep.subr.mxu0 0.0
      %5699 = vmatpush1.xpose.msra.mxu0 0.0
      %5700 = vmatprep.subr.mxu0 0.0
      %5701 = vmatpush1.xpose.msra.mxu0 0.0
      %5702 = vmatprep.subr.mxu0 0.0
      %5703 = vmatpush1.xpose.msra.mxu0 0.0
      %5704 = vmatprep.subr.mxu0 0.0
      %5705 = vmatpush1.xpose.msra.mxu0 0.0
      %5706 = vmatprep.subr.mxu0 0.0
      %5707 = vmatpush1.xpose.msra.mxu0 0.0
      %5708 = vmatprep.subr.mxu0 0.0
      %5709 = vmatpush1.xpose.msra.mxu0 0.0
      %5710 = vmatprep.mubr.f32.mxu0 0.0
      %5711 = vmatmul.mubr.f32.gmra.mrb[0].mxu0 %v5614
      %v5712 = vpop.f32.mrb[0].mxu0
      %v5713 = vadd.f32 %v620, %v5712
      %v5714 = vpop.f32.mrb[0].mxu0
      %5715 = vmatprep.mubr.f32.mxu0 0.0
      %5716 = vmatmul.mubr.f32.gmra.mrb[0].mxu0 %v5616
      %v5717 = vpop.f32.mrb[0].mxu0
      %v5718 = vadd.f32 %v621, %v5717
      %v5719 = vpop.f32.mrb[0].mxu0
      %5720 = vmatprep.mubr.f32.mxu0 0.0
      %5721 = vmatmul.mubr.f32.gmra.mrb[0].mxu0 %v5618
      %v5722 = vpop.f32.mrb[0].mxu0
      %v5723 = vadd.f32 %v622, %v5722
      %v5724 = vpop.f32.mrb[0].mxu0
      %5725 = vmatprep.mubr.f32.mxu0 0.0
      %5726 = vmatmul.mubr.f32.gmra.mrb[0].mxu0 %v5620
      %v5727 = vpop.f32.mrb[0].mxu0
      %v5728 = vadd.f32 %v623, %v5727
      %v5729 = vpop.f32.mrb[0].mxu0
      %5730 = vmatprep.mubr.f32.mxu0 0.0
      %5731 = vmatmul.mubr.f32.gmra.mrb[0].mxu0 %v5622
      %v5732 = vpop.f32.mrb[0].mxu0
      %v5733 = vadd.f32 %v624, %v5732
      %v5734 = vpop.f32.mrb[0].mxu0
      %5735 = vmatprep.mubr.f32.mxu0 0.0
      %5736 = vmatmul.mubr.f32.gmra.mrb[0].mxu0 %v5624
      %v5737 = vpop.f32.mrb[0].mxu0
      %v5738 = vadd.f32 %v625, %v5737
      %v5739 = vpop.f32.mrb[0].mxu0
      %5740 = vmatprep.mubr.f32.mxu0 0.0
      %5741 = vmatmul.mubr.f32.gmra.mrb[0].mxu0 %v5626
      %v5742 = vpop.f32.mrb[0].mxu0
      %v5743 = vadd.f32 %v626, %v5742
      %v5744 = vpop.f32.mrb[0].mxu0
      %5745 = vmatprep.mubr.f32.mxu0 0.0
      %5746 = vmatmul.mubr.f32.gmra.mrb[0].mxu0 %v5628
      %v5747 = vpop.f32.mrb[0].mxu0
      %v5748 = vadd.f32 %v627, %v5747
      %v5749 = vpop.f32.mrb[0].mxu0
      %5750 = vdwg.mxu0
      %5751 = vrot.lane.b32.xlu0 %v636, 104
      %v5752 = vpop.permute.xlu0 %5751
      %5753 = vrot.lane.b32.xlu0 %v637, 104
      %v5754 = vpop.permute.xlu0 %5753
      %5755 = vrot.lane.b32.xlu0 %v638, 104
      %v5756 = vpop.permute.xlu0 %5755
      %5757 = vrot.lane.b32.xlu0 %v639, 104
      %v5758 = vpop.permute.xlu0 %5757
      %5759 = vrot.lane.b32.xlu0 %v640, 104
      %v5760 = vpop.permute.xlu0 %5759
      %5761 = vrot.lane.b32.xlu0 %v641, 104
      %v5762 = vpop.permute.xlu0 %5761
      %5763 = vrot.lane.b32.xlu0 %v642, 104
      %v5764 = vpop.permute.xlu0 %5763
      %5765 = vrot.lane.b32.xlu0 %v643, 104
      %v5766 = vpop.permute.xlu0 %5765
      %5767 = vrot.lane.b32.xlu0 %v502, 72
      %v5768 = vpop.permute.xlu0 %5767
      %5769 = vrot.lane.b32.xlu0 %v507, 72
      %v5770 = vpop.permute.xlu0 %5769
      %5771 = vrot.lane.b32.xlu0 %v512, 72
      %v5772 = vpop.permute.xlu0 %5771
      %5773 = vrot.lane.b32.xlu0 %v517, 72
      %v5774 = vpop.permute.xlu0 %5773
      %5775 = vrot.lane.b32.xlu0 %v522, 72
      %v5776 = vpop.permute.xlu0 %5775
      %5777 = vrot.lane.b32.xlu0 %v527, 72
      %v5778 = vpop.permute.xlu0 %5777
      %5779 = vrot.lane.b32.xlu0 %v532, 72
      %v5780 = vpop.permute.xlu0 %5779
      %5781 = vrot.lane.b32.xlu0 %v537, 72
      %v5782 = vpop.permute.xlu0 %5781
      %v5783 = vsel %vm684, %v5752, 0
      %v5785 = vsel %vm684, %v5754, 0
      %v5787 = vsel %vm684, %v5756, 0
      %v5789 = vsel %vm684, %v5758, 0
      %v5791 = vsel %vm684, %v5760, 0
      %v5793 = vsel %vm684, %v5762, 0
      %v5795 = vsel %vm684, %v5764, 0
      %v5797 = vsel %vm684, %v5766, 0
      %v5799 = vsel %vm684, %v5768, 0
      %v5801 = vsel %vm684, %v5770, 0
      %v5803 = vsel %vm684, %v5772, 0
      %v5805 = vsel %vm684, %v5774, 0
      %v5807 = vsel %vm684, %v5776, 0
      %v5809 = vsel %vm684, %v5778, 0
      %v5811 = vsel %vm684, %v5780, 0
      %v5813 = vsel %vm684, %v5782, 0
      %5815 = vmatprep.subr.mxu0 0.0
      %5816 = vmatpush1.xpose.msra.mxu0 %v5799
      %5817 = vmatprep.subr.mxu0 0.0
      %5818 = vmatpush1.xpose.msra.mxu0 %v5801
      %5819 = vmatprep.subr.mxu0 0.0
      %5820 = vmatpush1.xpose.msra.mxu0 %v5803
      %5821 = vmatprep.subr.mxu0 0.0
      %5822 = vmatpush1.xpose.msra.mxu0 %v5805
      %5823 = vmatprep.subr.mxu0 0.0
      %5824 = vmatpush1.xpose.msra.mxu0 %v5807
      %5825 = vmatprep.subr.mxu0 0.0
      %5826 = vmatpush1.xpose.msra.mxu0 %v5809
      %5827 = vmatprep.subr.mxu0 0.0
      %5828 = vmatpush1.xpose.msra.mxu0 %v5811
      %5829 = vmatprep.subr.mxu0 0.0
      %5830 = vmatpush1.xpose.msra.mxu0 %v5813
      %5831 = vmatprep.subr.mxu0 0.0
      %5832 = vmatpush1.xpose.msra.mxu0 0.0
      %5833 = vmatprep.subr.mxu0 0.0
      %5834 = vmatpush1.xpose.msra.mxu0 0.0
      %5835 = vmatprep.subr.mxu0 0.0
      %5836 = vmatpush1.xpose.msra.mxu0 0.0
      %5837 = vmatprep.subr.mxu0 0.0
      %5838 = vmatpush1.xpose.msra.mxu0 0.0
      %5839 = vmatprep.subr.mxu0 0.0
      %5840 = vmatpush1.xpose.msra.mxu0 0.0
      %5841 = vmatprep.subr.mxu0 0.0
      %5842 = vmatpush1.xpose.msra.mxu0 0.0
      %5843 = vmatprep.subr.mxu0 0.0
      %5844 = vmatpush1.xpose.msra.mxu0 0.0
      %5845 = vmatprep.subr.mxu0 0.0
      %5846 = vmatpush1.xpose.msra.mxu0 0.0
      %5847 = vmatprep.subr.mxu0 0.0
      %5848 = vmatpush1.xpose.msra.mxu0 0.0
      %5849 = vmatprep.subr.mxu0 0.0
      %5850 = vmatpush1.xpose.msra.mxu0 0.0
      %5851 = vmatprep.subr.mxu0 0.0
      %5852 = vmatpush1.xpose.msra.mxu0 0.0
      %5853 = vmatprep.subr.mxu0 0.0
      %5854 = vmatpush1.xpose.msra.mxu0 0.0
      %5855 = vmatprep.subr.mxu0 0.0
      %5856 = vmatpush1.xpose.msra.mxu0 0.0
      %5857 = vmatprep.subr.mxu0 0.0
      %5858 = vmatpush1.xpose.msra.mxu0 0.0
      %5859 = vmatprep.subr.mxu0 0.0
      %5860 = vmatpush1.xpose.msra.mxu0 0.0
      %5861 = vmatprep.subr.mxu0 0.0
      %5862 = vmatpush1.xpose.msra.mxu0 0.0
      %5863 = vmatprep.subr.mxu0 0.0
      %5864 = vmatpush1.xpose.msra.mxu0 0.0
      %5865 = vmatprep.subr.mxu0 0.0
      %5866 = vmatpush1.xpose.msra.mxu0 0.0
      %5867 = vmatprep.subr.mxu0 0.0
      %5868 = vmatpush1.xpose.msra.mxu0 0.0
      %5869 = vmatprep.subr.mxu0 0.0
      %5870 = vmatpush1.xpose.msra.mxu0 0.0
      %5871 = vmatprep.subr.mxu0 0.0
      %5872 = vmatpush1.xpose.msra.mxu0 0.0
      %5873 = vmatprep.subr.mxu0 0.0
      %5874 = vmatpush1.xpose.msra.mxu0 0.0
      %5875 = vmatprep.subr.mxu0 0.0
      %5876 = vmatpush1.xpose.msra.mxu0 0.0
      %5877 = vmatprep.subr.mxu0 0.0
      %5878 = vmatpush1.xpose.msra.mxu0 0.0
      %5879 = vmatprep.mubr.f32.mxu0 0.0
      %5880 = vmatmul.mubr.f32.gmra.mrb[0].mxu0 %v5783
      %v5881 = vpop.f32.mrb[0].mxu0
      %v5882 = vadd.f32 %v620, %v5881
      %v5883 = vpop.f32.mrb[0].mxu0
      %5884 = vmatprep.mubr.f32.mxu0 0.0
      %5885 = vmatmul.mubr.f32.gmra.mrb[0].mxu0 %v5785
      %v5886 = vpop.f32.mrb[0].mxu0
      %v5887 = vadd.f32 %v621, %v5886
      %v5888 = vpop.f32.mrb[0].mxu0
      %5889 = vmatprep.mubr.f32.mxu0 0.0
      %5890 = vmatmul.mubr.f32.gmra.mrb[0].mxu0 %v5787
      %v5891 = vpop.f32.mrb[0].mxu0
      %v5892 = vadd.f32 %v622, %v5891
      %v5893 = vpop.f32.mrb[0].mxu0
      %5894 = vmatprep.mubr.f32.mxu0 0.0
      %5895 = vmatmul.mubr.f32.gmra.mrb[0].mxu0 %v5789
      %v5896 = vpop.f32.mrb[0].mxu0
      %v5897 = vadd.f32 %v623, %v5896
      %v5898 = vpop.f32.mrb[0].mxu0
      %5899 = vmatprep.mubr.f32.mxu0 0.0
      %5900 = vmatmul.mubr.f32.gmra.mrb[0].mxu0 %v5791
      %v5901 = vpop.f32.mrb[0].mxu0
      %v5902 = vadd.f32 %v624, %v5901
      %v5903 = vpop.f32.mrb[0].mxu0
      %5904 = vmatprep.mubr.f32.mxu0 0.0
      %5905 = vmatmul.mubr.f32.gmra.mrb[0].mxu0 %v5793
      %v5906 = vpop.f32.mrb[0].mxu0
      %v5907 = vadd.f32 %v625, %v5906
      %v5908 = vpop.f32.mrb[0].mxu0
      %5909 = vmatprep.mubr.f32.mxu0 0.0
      %5910 = vmatmul.mubr.f32.gmra.mrb[0].mxu0 %v5795
      %v5911 = vpop.f32.mrb[0].mxu0
      %v5912 = vadd.f32 %v626, %v5911
      %v5913 = vpop.f32.mrb[0].mxu0
      %5914 = vmatprep.mubr.f32.mxu0 0.0
      %5915 = vmatmul.mubr.f32.gmra.mrb[0].mxu0 %v5797
      %v5916 = vpop.f32.mrb[0].mxu0
      %v5917 = vadd.f32 %v627, %v5916
      %v5918 = vpop.f32.mrb[0].mxu0
      %5919 = vdwg.mxu0
      %5920 = vrot.lane.b32.xlu0 %v644, 104
      %v5921 = vpop.permute.xlu0 %5920
      %5922 = vrot.lane.b32.xlu0 %v645, 104
      %v5923 = vpop.permute.xlu0 %5922
      %5924 = vrot.lane.b32.xlu0 %v646, 104
      %v5925 = vpop.permute.xlu0 %5924
      %5926 = vrot.lane.b32.xlu0 %v647, 104
      %v5927 = vpop.permute.xlu0 %5926
      %5928 = vrot.lane.b32.xlu0 %v648, 104
      %v5929 = vpop.permute.xlu0 %5928
      %5930 = vrot.lane.b32.xlu0 %v649, 104
      %v5931 = vpop.permute.xlu0 %5930
      %5932 = vrot.lane.b32.xlu0 %v650, 104
      %v5933 = vpop.permute.xlu0 %5932
      %5934 = vrot.lane.b32.xlu0 %v651, 104
      %v5935 = vpop.permute.xlu0 %5934
      %5936 = vrot.lane.b32.xlu0 %v542, 72
      %v5937 = vpop.permute.xlu0 %5936
      %5938 = vrot.lane.b32.xlu0 %v547, 72
      %v5939 = vpop.permute.xlu0 %5938
      %5940 = vrot.lane.b32.xlu0 %v552, 72
      %v5941 = vpop.permute.xlu0 %5940
      %5942 = vrot.lane.b32.xlu0 %v557, 72
      %v5943 = vpop.permute.xlu0 %5942
      %5944 = vrot.lane.b32.xlu0 %v562, 72
      %v5945 = vpop.permute.xlu0 %5944
      %5946 = vrot.lane.b32.xlu0 %v567, 72
      %v5947 = vpop.permute.xlu0 %5946
      %5948 = vrot.lane.b32.xlu0 %v572, 72
      %v5949 = vpop.permute.xlu0 %5948
      %5950 = vrot.lane.b32.xlu0 %v577, 72
      %v5951 = vpop.permute.xlu0 %5950
      %v5952 = vsel %vm684, %v5921, 0
      %v5954 = vsel %vm684, %v5923, 0
      %v5956 = vsel %vm684, %v5925, 0
      %v5958 = vsel %vm684, %v5927, 0
      %v5960 = vsel %vm684, %v5929, 0
      %v5962 = vsel %vm684, %v5931, 0
      %v5964 = vsel %vm684, %v5933, 0
      %v5966 = vsel %vm684, %v5935, 0
      %v5968 = vsel %vm684, %v5937, 0
      %v5970 = vsel %vm684, %v5939, 0
      %v5972 = vsel %vm684, %v5941, 0
      %v5974 = vsel %vm684, %v5943, 0
      %v5976 = vsel %vm684, %v5945, 0
      %v5978 = vsel %vm684, %v5947, 0
      %v5980 = vsel %vm684, %v5949, 0
      %v5982 = vsel %vm684, %v5951, 0
      %5984 = vmatprep.subr.mxu0 0.0
      %5985 = vmatpush1.xpose.msra.mxu0 %v5968
      %5986 = vmatprep.subr.mxu0 0.0
      %5987 = vmatpush1.xpose.msra.mxu0 %v5970
      %5988 = vmatprep.subr.mxu0 0.0
      %5989 = vmatpush1.xpose.msra.mxu0 %v5972
      %5990 = vmatprep.subr.mxu0 0.0
      %5991 = vmatpush1.xpose.msra.mxu0 %v5974
      %5992 = vmatprep.subr.mxu0 0.0
      %5993 = vmatpush1.xpose.msra.mxu0 %v5976
      %5994 = vmatprep.subr.mxu0 0.0
      %5995 = vmatpush1.xpose.msra.mxu0 %v5978
      %5996 = vmatprep.subr.mxu0 0.0
      %5997 = vmatpush1.xpose.msra.mxu0 %v5980
      %5998 = vmatprep.subr.mxu0 0.0
      %5999 = vmatpush1.xpose.msra.mxu0 %v5982
      %6000 = vmatprep.subr.mxu0 0.0
      %6001 = vmatpush1.xpose.msra.mxu0 0.0
      %6002 = vmatprep.subr.mxu0 0.0
      %6003 = vmatpush1.xpose.msra.mxu0 0.0
      %6004 = vmatprep.subr.mxu0 0.0
      %6005 = vmatpush1.xpose.msra.mxu0 0.0
      %6006 = vmatprep.subr.mxu0 0.0
      %6007 = vmatpush1.xpose.msra.mxu0 0.0
      %6008 = vmatprep.subr.mxu0 0.0
      %6009 = vmatpush1.xpose.msra.mxu0 0.0
      %6010 = vmatprep.subr.mxu0 0.0
      %6011 = vmatpush1.xpose.msra.mxu0 0.0
      %6012 = vmatprep.subr.mxu0 0.0
      %6013 = vmatpush1.xpose.msra.mxu0 0.0
      %6014 = vmatprep.subr.mxu0 0.0
      %6015 = vmatpush1.xpose.msra.mxu0 0.0
      %6016 = vmatprep.subr.mxu0 0.0
      %6017 = vmatpush1.xpose.msra.mxu0 0.0
      %6018 = vmatprep.subr.mxu0 0.0
      %6019 = vmatpush1.xpose.msra.mxu0 0.0
      %6020 = vmatprep.subr.mxu0 0.0
      %6021 = vmatpush1.xpose.msra.mxu0 0.0
      %6022 = vmatprep.subr.mxu0 0.0
      %6023 = vmatpush1.xpose.msra.mxu0 0.0
      %6024 = vmatprep.subr.mxu0 0.0
      %6025 = vmatpush1.xpose.msra.mxu0 0.0
      %6026 = vmatprep.subr.mxu0 0.0
      %6027 = vmatpush1.xpose.msra.mxu0 0.0
      %6028 = vmatprep.subr.mxu0 0.0
      %6029 = vmatpush1.xpose.msra.mxu0 0.0
      %6030 = vmatprep.subr.mxu0 0.0
      %6031 = vmatpush1.xpose.msra.mxu0 0.0
      %6032 = vmatprep.subr.mxu0 0.0
      %6033 = vmatpush1.xpose.msra.mxu0 0.0
      %6034 = vmatprep.subr.mxu0 0.0
      %6035 = vmatpush1.xpose.msra.mxu0 0.0
      %6036 = vmatprep.subr.mxu0 0.0
      %6037 = vmatpush1.xpose.msra.mxu0 0.0
      %6038 = vmatprep.subr.mxu0 0.0
      %6039 = vmatpush1.xpose.msra.mxu0 0.0
      %6040 = vmatprep.subr.mxu0 0.0
      %6041 = vmatpush1.xpose.msra.mxu0 0.0
      %6042 = vmatprep.subr.mxu0 0.0
      %6043 = vmatpush1.xpose.msra.mxu0 0.0
      %6044 = vmatprep.subr.mxu0 0.0
      %6045 = vmatpush1.xpose.msra.mxu0 0.0
      %6046 = vmatprep.subr.mxu0 0.0
      %6047 = vmatpush1.xpose.msra.mxu0 0.0
      %6048 = vmatprep.mubr.f32.mxu0 0.0
      %6049 = vmatmul.mubr.f32.gmra.mrb[0].mxu0 %v5952
      %v6050 = vpop.f32.mrb[0].mxu0
      %v6051 = vadd.f32 %v620, %v6050
      %v6052 = vpop.f32.mrb[0].mxu0
      %6053 = vmatprep.mubr.f32.mxu0 0.0
      %6054 = vmatmul.mubr.f32.gmra.mrb[0].mxu0 %v5954
      %v6055 = vpop.f32.mrb[0].mxu0
      %v6056 = vadd.f32 %v621, %v6055
      %v6057 = vpop.f32.mrb[0].mxu0
      %6058 = vmatprep.mubr.f32.mxu0 0.0
      %6059 = vmatmul.mubr.f32.gmra.mrb[0].mxu0 %v5956
      %v6060 = vpop.f32.mrb[0].mxu0
      %v6061 = vadd.f32 %v622, %v6060
      %v6062 = vpop.f32.mrb[0].mxu0
      %6063 = vmatprep.mubr.f32.mxu0 0.0
      %6064 = vmatmul.mubr.f32.gmra.mrb[0].mxu0 %v5958
      %v6065 = vpop.f32.mrb[0].mxu0
      %v6066 = vadd.f32 %v623, %v6065
      %v6067 = vpop.f32.mrb[0].mxu0
      %6068 = vmatprep.mubr.f32.mxu0 0.0
      %6069 = vmatmul.mubr.f32.gmra.mrb[0].mxu0 %v5960
      %v6070 = vpop.f32.mrb[0].mxu0
      %v6071 = vadd.f32 %v624, %v6070
      %v6072 = vpop.f32.mrb[0].mxu0
      %6073 = vmatprep.mubr.f32.mxu0 0.0
      %6074 = vmatmul.mubr.f32.gmra.mrb[0].mxu0 %v5962
      %v6075 = vpop.f32.mrb[0].mxu0
      %v6076 = vadd.f32 %v625, %v6075
      %v6077 = vpop.f32.mrb[0].mxu0
      %6078 = vmatprep.mubr.f32.mxu0 0.0
      %6079 = vmatmul.mubr.f32.gmra.mrb[0].mxu0 %v5964
      %v6080 = vpop.f32.mrb[0].mxu0
      %v6081 = vadd.f32 %v626, %v6080
      %v6082 = vpop.f32.mrb[0].mxu0
      %6083 = vmatprep.mubr.f32.mxu0 0.0
      %6084 = vmatmul.mubr.f32.gmra.mrb[0].mxu0 %v5966
      %v6085 = vpop.f32.mrb[0].mxu0
      %v6086 = vadd.f32 %v627, %v6085
      %v6087 = vpop.f32.mrb[0].mxu0
      %6088 = vdwg.mxu0
      %6089 = vrot.lane.b32.xlu0 %v652, 104
      %v6090 = vpop.permute.xlu0 %6089
      %6091 = vrot.lane.b32.xlu0 %v653, 104
      %v6092 = vpop.permute.xlu0 %6091
      %6093 = vrot.lane.b32.xlu0 %v654, 104
      %v6094 = vpop.permute.xlu0 %6093
      %6095 = vrot.lane.b32.xlu0 %v655, 104
      %v6096 = vpop.permute.xlu0 %6095
      %6097 = vrot.lane.b32.xlu0 %v656, 104
      %v6098 = vpop.permute.xlu0 %6097
      %6099 = vrot.lane.b32.xlu0 %v657, 104
      %v6100 = vpop.permute.xlu0 %6099
      %6101 = vrot.lane.b32.xlu0 %v658, 104
      %v6102 = vpop.permute.xlu0 %6101
      %6103 = vrot.lane.b32.xlu0 %v659, 104
      %v6104 = vpop.permute.xlu0 %6103
      %6105 = vrot.lane.b32.xlu0 %v582, 72
      %v6106 = vpop.permute.xlu0 %6105
      %6107 = vrot.lane.b32.xlu0 %v587, 72
      %v6108 = vpop.permute.xlu0 %6107
      %6109 = vrot.lane.b32.xlu0 %v592, 72
      %v6110 = vpop.permute.xlu0 %6109
      %6111 = vrot.lane.b32.xlu0 %v597, 72
      %v6112 = vpop.permute.xlu0 %6111
      %6113 = vrot.lane.b32.xlu0 %v602, 72
      %v6114 = vpop.permute.xlu0 %6113
      %6115 = vrot.lane.b32.xlu0 %v607, 72
      %v6116 = vpop.permute.xlu0 %6115
      %6117 = vrot.lane.b32.xlu0 %v612, 72
      %v6118 = vpop.permute.xlu0 %6117
      %6119 = vrot.lane.b32.xlu0 %v617, 72
      %v6120 = vpop.permute.xlu0 %6119
      %v6121 = vsel %vm684, %v6090, 0
      %v6123 = vsel %vm684, %v6092, 0
      %v6125 = vsel %vm684, %v6094, 0
      %v6127 = vsel %vm684, %v6096, 0
      %v6129 = vsel %vm684, %v6098, 0
      %v6131 = vsel %vm684, %v6100, 0
      %v6133 = vsel %vm684, %v6102, 0
      %v6135 = vsel %vm684, %v6104, 0
      %v6137 = vsel %vm684, %v6106, 0
      %v6139 = vsel %vm684, %v6108, 0
      %v6141 = vsel %vm684, %v6110, 0
      %v6143 = vsel %vm684, %v6112, 0
      %v6145 = vsel %vm684, %v6114, 0
      %v6147 = vsel %vm684, %v6116, 0
      %v6149 = vsel %vm684, %v6118, 0
      %v6151 = vsel %vm684, %v6120, 0
      %6153 = vmatprep.subr.mxu0 0.0
      %6154 = vmatpush1.xpose.msra.mxu0 %v6137
      %6155 = vmatprep.subr.mxu0 0.0
      %6156 = vmatpush1.xpose.msra.mxu0 %v6139
      %6157 = vmatprep.subr.mxu0 0.0
      %6158 = vmatpush1.xpose.msra.mxu0 %v6141
      %6159 = vmatprep.subr.mxu0 0.0
      %6160 = vmatpush1.xpose.msra.mxu0 %v6143
      %6161 = vmatprep.subr.mxu0 0.0
      %6162 = vmatpush1.xpose.msra.mxu0 %v6145
      %6163 = vmatprep.subr.mxu0 0.0
      %6164 = vmatpush1.xpose.msra.mxu0 %v6147
      %6165 = vmatprep.subr.mxu0 0.0
      %6166 = vmatpush1.xpose.msra.mxu0 %v6149
      %6167 = vmatprep.subr.mxu0 0.0
      %6168 = vmatpush1.xpose.msra.mxu0 %v6151
      %6169 = vmatprep.subr.mxu0 0.0
      %6170 = vmatpush1.xpose.msra.mxu0 0.0
      %6171 = vmatprep.subr.mxu0 0.0
      %6172 = vmatpush1.xpose.msra.mxu0 0.0
      %6173 = vmatprep.subr.mxu0 0.0
      %6174 = vmatpush1.xpose.msra.mxu0 0.0
      %6175 = vmatprep.subr.mxu0 0.0
      %6176 = vmatpush1.xpose.msra.mxu0 0.0
      %6177 = vmatprep.subr.mxu0 0.0
      %6178 = vmatpush1.xpose.msra.mxu0 0.0
      %6179 = vmatprep.subr.mxu0 0.0
      %6180 = vmatpush1.xpose.msra.mxu0 0.0
      %6181 = vmatprep.subr.mxu0 0.0
      %6182 = vmatpush1.xpose.msra.mxu0 0.0
      %6183 = vmatprep.subr.mxu0 0.0
      %6184 = vmatpush1.xpose.msra.mxu0 0.0
      %6185 = vmatprep.subr.mxu0 0.0
      %6186 = vmatpush1.xpose.msra.mxu0 0.0
      %6187 = vmatprep.subr.mxu0 0.0
      %6188 = vmatpush1.xpose.msra.mxu0 0.0
      %6189 = vmatprep.subr.mxu0 0.0
      %6190 = vmatpush1.xpose.msra.mxu0 0.0
      %6191 = vmatprep.subr.mxu0 0.0
      %6192 = vmatpush1.xpose.msra.mxu0 0.0
      %6193 = vmatprep.subr.mxu0 0.0
      %6194 = vmatpush1.xpose.msra.mxu0 0.0
      %6195 = vmatprep.subr.mxu0 0.0
      %6196 = vmatpush1.xpose.msra.mxu0 0.0
      %6197 = vmatprep.subr.mxu0 0.0
      %6198 = vmatpush1.xpose.msra.mxu0 0.0
      %6199 = vmatprep.subr.mxu0 0.0
      %6200 = vmatpush1.xpose.msra.mxu0 0.0
      %6201 = vmatprep.subr.mxu0 0.0
      %6202 = vmatpush1.xpose.msra.mxu0 0.0
      %6203 = vmatprep.subr.mxu0 0.0
      %6204 = vmatpush1.xpose.msra.mxu0 0.0
      %6205 = vmatprep.subr.mxu0 0.0
      %6206 = vmatpush1.xpose.msra.mxu0 0.0
      %6207 = vmatprep.subr.mxu0 0.0
      %6208 = vmatpush1.xpose.msra.mxu0 0.0
      %6209 = vmatprep.subr.mxu0 0.0
      %6210 = vmatpush1.xpose.msra.mxu0 0.0
      %6211 = vmatprep.subr.mxu0 0.0
      %6212 = vmatpush1.xpose.msra.mxu0 0.0
      %6213 = vmatprep.subr.mxu0 0.0
      %6214 = vmatpush1.xpose.msra.mxu0 0.0
      %6215 = vmatprep.subr.mxu0 0.0
      %6216 = vmatpush1.xpose.msra.mxu0 0.0
      %6217 = vmatprep.mubr.f32.mxu0 0.0
      %6218 = vmatmul.mubr.f32.gmra.mrb[0].mxu0 %v6121
      %v6219 = vpop.f32.mrb[0].mxu0
      %v6220 = vadd.f32 %v620, %v6219
      %v6221 = vpop.f32.mrb[0].mxu0
      %6222 = vmatprep.mubr.f32.mxu0 0.0
      %6223 = vmatmul.mubr.f32.gmra.mrb[0].mxu0 %v6123
      %v6224 = vpop.f32.mrb[0].mxu0
      %v6225 = vadd.f32 %v621, %v6224
      %v6226 = vpop.f32.mrb[0].mxu0
      %6227 = vmatprep.mubr.f32.mxu0 0.0
      %6228 = vmatmul.mubr.f32.gmra.mrb[0].mxu0 %v6125
      %v6229 = vpop.f32.mrb[0].mxu0
      %v6230 = vadd.f32 %v622, %v6229
      %v6231 = vpop.f32.mrb[0].mxu0
      %6232 = vmatprep.mubr.f32.mxu0 0.0
      %6233 = vmatmul.mubr.f32.gmra.mrb[0].mxu0 %v6127
      %v6234 = vpop.f32.mrb[0].mxu0
      %v6235 = vadd.f32 %v623, %v6234
      %v6236 = vpop.f32.mrb[0].mxu0
      %6237 = vmatprep.mubr.f32.mxu0 0.0
      %6238 = vmatmul.mubr.f32.gmra.mrb[0].mxu0 %v6129
      %v6239 = vpop.f32.mrb[0].mxu0
      %v6240 = vadd.f32 %v624, %v6239
      %v6241 = vpop.f32.mrb[0].mxu0
      %6242 = vmatprep.mubr.f32.mxu0 0.0
      %6243 = vmatmul.mubr.f32.gmra.mrb[0].mxu0 %v6131
      %v6244 = vpop.f32.mrb[0].mxu0
      %v6245 = vadd.f32 %v625, %v6244
      %v6246 = vpop.f32.mrb[0].mxu0
      %6247 = vmatprep.mubr.f32.mxu0 0.0
      %6248 = vmatmul.mubr.f32.gmra.mrb[0].mxu0 %v6133
      %v6249 = vpop.f32.mrb[0].mxu0
      %v6250 = vadd.f32 %v626, %v6249
      %v6251 = vpop.f32.mrb[0].mxu0
      %6252 = vmatprep.mubr.f32.mxu0 0.0
      %6253 = vmatmul.mubr.f32.gmra.mrb[0].mxu0 %v6135
      %v6254 = vpop.f32.mrb[0].mxu0
      %v6255 = vadd.f32 %v627, %v6254
      %v6256 = vpop.f32.mrb[0].mxu0
      %6257 = vdwg.mxu0
      %v6258 = vsel %vm1337, %v5713, -inf
      %6259 = vmax.xlane.f32.xlu0 %v6258
      %v6260 = vpop.xlane.xlu0 %6259
      %v6261 = vsel %vm1337, %v5718, -inf
      %6262 = vmax.xlane.f32.xlu0 %v6261
      %v6263 = vpop.xlane.xlu0 %6262
      %v6264 = vsel %vm1337, %v5723, -inf
      %6265 = vmax.xlane.f32.xlu0 %v6264
      %v6266 = vpop.xlane.xlu0 %6265
      %v6267 = vsel %vm1337, %v5728, -inf
      %6268 = vmax.xlane.f32.xlu0 %v6267
      %v6269 = vpop.xlane.xlu0 %6268
      %v6270 = vsel %vm1337, %v5733, -inf
      %6271 = vmax.xlane.f32.xlu0 %v6270
      %v6272 = vpop.xlane.xlu0 %6271
      %v6273 = vsel %vm1337, %v5738, -inf
      %6274 = vmax.xlane.f32.xlu0 %v6273
      %v6275 = vpop.xlane.xlu0 %6274
      %v6276 = vsel %vm1337, %v5743, -inf
      %6277 = vmax.xlane.f32.xlu0 %v6276
      %v6278 = vpop.xlane.xlu0 %6277
      %v6279 = vsel %vm1337, %v5748, -inf
      %6280 = vmax.xlane.f32.xlu0 %v6279
      %v6281 = vpop.xlane.xlu0 %6280
      %v6282 = vsel %vm1337, %v5882, -inf
      %6283 = vmax.xlane.f32.xlu0 %v6282
      %v6284 = vpop.xlane.xlu0 %6283
      %v6285 = vsel %vm1337, %v5887, -inf
      %6286 = vmax.xlane.f32.xlu0 %v6285
      %v6287 = vpop.xlane.xlu0 %6286
      %v6288 = vsel %vm1337, %v5892, -inf
      %6289 = vmax.xlane.f32.xlu0 %v6288
      %v6290 = vpop.xlane.xlu0 %6289
      %v6291 = vsel %vm1337, %v5897, -inf
      %6292 = vmax.xlane.f32.xlu0 %v6291
      %v6293 = vpop.xlane.xlu0 %6292
      %v6294 = vsel %vm1337, %v5902, -inf
      %6295 = vmax.xlane.f32.xlu0 %v6294
      %v6296 = vpop.xlane.xlu0 %6295
      %v6297 = vsel %vm1337, %v5907, -inf
      %6298 = vmax.xlane.f32.xlu0 %v6297
      %v6299 = vpop.xlane.xlu0 %6298
      %v6300 = vsel %vm1337, %v5912, -inf
      %6301 = vmax.xlane.f32.xlu0 %v6300
      %v6302 = vpop.xlane.xlu0 %6301
      %v6303 = vsel %vm1337, %v5917, -inf
      %6304 = vmax.xlane.f32.xlu0 %v6303
      %v6305 = vpop.xlane.xlu0 %6304
      %v6306 = vsel %vm1337, %v6051, -inf
      %6307 = vmax.xlane.f32.xlu0 %v6306
      %v6308 = vpop.xlane.xlu0 %6307
      %v6309 = vsel %vm1337, %v6056, -inf
      %6310 = vmax.xlane.f32.xlu0 %v6309
      %v6311 = vpop.xlane.xlu0 %6310
      %v6312 = vsel %vm1337, %v6061, -inf
      %6313 = vmax.xlane.f32.xlu0 %v6312
      %v6314 = vpop.xlane.xlu0 %6313
      %v6315 = vsel %vm1337, %v6066, -inf
      %6316 = vmax.xlane.f32.xlu0 %v6315
      %v6317 = vpop.xlane.xlu0 %6316
      %v6318 = vsel %vm1337, %v6071, -inf
      %6319 = vmax.xlane.f32.xlu0 %v6318
      %v6320 = vpop.xlane.xlu0 %6319
      %v6321 = vsel %vm1337, %v6076, -inf
      %6322 = vmax.xlane.f32.xlu0 %v6321
      %v6323 = vpop.xlane.xlu0 %6322
      %v6324 = vsel %vm1337, %v6081, -inf
      %6325 = vmax.xlane.f32.xlu0 %v6324
      %v6326 = vpop.xlane.xlu0 %6325
      %v6327 = vsel %vm1337, %v6086, -inf
      %6328 = vmax.xlane.f32.xlu0 %v6327
      %v6329 = vpop.xlane.xlu0 %6328
      %v6330 = vsel %vm1337, %v6220, -inf
      %6331 = vmax.xlane.f32.xlu0 %v6330
      %v6332 = vpop.xlane.xlu0 %6331
      %v6333 = vsel %vm1337, %v6225, -inf
      %6334 = vmax.xlane.f32.xlu0 %v6333
      %v6335 = vpop.xlane.xlu0 %6334
      %v6336 = vsel %vm1337, %v6230, -inf
      %6337 = vmax.xlane.f32.xlu0 %v6336
      %v6338 = vpop.xlane.xlu0 %6337
      %v6339 = vsel %vm1337, %v6235, -inf
      %6340 = vmax.xlane.f32.xlu0 %v6339
      %v6341 = vpop.xlane.xlu0 %6340
      %v6342 = vsel %vm1337, %v6240, -inf
      %6343 = vmax.xlane.f32.xlu0 %v6342
      %v6344 = vpop.xlane.xlu0 %6343
      %v6345 = vsel %vm1337, %v6245, -inf
      %6346 = vmax.xlane.f32.xlu0 %v6345
      %v6347 = vpop.xlane.xlu0 %6346
      %v6348 = vsel %vm1337, %v6250, -inf
      %6349 = vmax.xlane.f32.xlu0 %v6348
      %v6350 = vpop.xlane.xlu0 %6349
      %v6351 = vsel %vm1337, %v6255, -inf
      %6352 = vmax.xlane.f32.xlu0 %v6351
      %v6353 = vpop.xlane.xlu0 %6352
      %v6354 = vsub.f32 %v5713, %v6260
      %v6355 = vsub.f32 %v5718, %v6263
      %v6356 = vsub.f32 %v5723, %v6266
      %v6357 = vsub.f32 %v5728, %v6269
      %v6358 = vsub.f32 %v5733, %v6272
      %v6359 = vsub.f32 %v5738, %v6275
      %v6360 = vsub.f32 %v5743, %v6278
      %v6361 = vsub.f32 %v5748, %v6281
      %v6362 = vsub.f32 %v5882, %v6284
      %v6363 = vsub.f32 %v5887, %v6287
      %v6364 = vsub.f32 %v5892, %v6290
      %v6365 = vsub.f32 %v5897, %v6293
      %v6366 = vsub.f32 %v5902, %v6296
      %v6367 = vsub.f32 %v5907, %v6299
      %v6368 = vsub.f32 %v5912, %v6302
      %v6369 = vsub.f32 %v5917, %v6305
      %v6370 = vsub.f32 %v6051, %v6308
      %v6371 = vsub.f32 %v6056, %v6311
      %v6372 = vsub.f32 %v6061, %v6314
      %v6373 = vsub.f32 %v6066, %v6317
      %v6374 = vsub.f32 %v6071, %v6320
      %v6375 = vsub.f32 %v6076, %v6323
      %v6376 = vsub.f32 %v6081, %v6326
      %v6377 = vsub.f32 %v6086, %v6329
      %v6378 = vsub.f32 %v6220, %v6332
      %v6379 = vsub.f32 %v6225, %v6335
      %v6380 = vsub.f32 %v6230, %v6338
      %v6381 = vsub.f32 %v6235, %v6341
      %v6382 = vsub.f32 %v6240, %v6344
      %v6383 = vsub.f32 %v6245, %v6347
      %v6384 = vsub.f32 %v6250, %v6350
      %v6385 = vsub.f32 %v6255, %v6353
      %v6386 = vmul.f32 %v6354, 1.442695
      %v6387 = vpow.pop %v6386
      %v6388 = vmul.f32 %v6355, 1.442695
      %v6389 = vpow.pop %v6388
      %v6390 = vmul.f32 %v6356, 1.442695
      %v6391 = vpow.pop %v6390
      %v6392 = vmul.f32 %v6357, 1.442695
      %v6393 = vpow.pop %v6392
      %v6394 = vmul.f32 %v6358, 1.442695
      %v6395 = vpow.pop %v6394
      %v6396 = vmul.f32 %v6359, 1.442695
      %v6397 = vpow.pop %v6396
      %v6398 = vmul.f32 %v6360, 1.442695
      %v6399 = vpow.pop %v6398
      %v6400 = vmul.f32 %v6361, 1.442695
      %v6401 = vpow.pop %v6400
      %v6402 = vmul.f32 %v6362, 1.442695
      %v6403 = vpow.pop %v6402
      %v6404 = vmul.f32 %v6363, 1.442695
      %v6405 = vpow.pop %v6404
      %v6406 = vmul.f32 %v6364, 1.442695
      %v6407 = vpow.pop %v6406
      %v6408 = vmul.f32 %v6365, 1.442695
      %v6409 = vpow.pop %v6408
      %v6410 = vmul.f32 %v6366, 1.442695
      %v6411 = vpow.pop %v6410
      %v6412 = vmul.f32 %v6367, 1.442695
      %v6413 = vpow.pop %v6412
      %v6414 = vmul.f32 %v6368, 1.442695
      %v6415 = vpow.pop %v6414
      %v6416 = vmul.f32 %v6369, 1.442695
      %v6417 = vpow.pop %v6416
      %v6418 = vmul.f32 %v6370, 1.442695
      %v6419 = vpow.pop %v6418
      %v6420 = vmul.f32 %v6371, 1.442695
      %v6421 = vpow.pop %v6420
      %v6422 = vmul.f32 %v6372, 1.442695
      %v6423 = vpow.pop %v6422
      %v6424 = vmul.f32 %v6373, 1.442695
      %v6425 = vpow.pop %v6424
      %v6426 = vmul.f32 %v6374, 1.442695
      %v6427 = vpow.pop %v6426
      %v6428 = vmul.f32 %v6375, 1.442695
      %v6429 = vpow.pop %v6428
      %v6430 = vmul.f32 %v6376, 1.442695
      %v6431 = vpow.pop %v6430
      %v6432 = vmul.f32 %v6377, 1.442695
      %v6433 = vpow.pop %v6432
      %v6434 = vmul.f32 %v6378, 1.442695
      %v6435 = vpow.pop %v6434
      %v6436 = vmul.f32 %v6379, 1.442695
      %v6437 = vpow.pop %v6436
      %v6438 = vmul.f32 %v6380, 1.442695
      %v6439 = vpow.pop %v6438
      %v6440 = vmul.f32 %v6381, 1.442695
      %v6441 = vpow.pop %v6440
      %v6442 = vmul.f32 %v6382, 1.442695
      %v6443 = vpow.pop %v6442
      %v6444 = vmul.f32 %v6383, 1.442695
      %v6445 = vpow.pop %v6444
      %v6446 = vmul.f32 %v6384, 1.442695
      %v6447 = vpow.pop %v6446
      %v6448 = vmul.f32 %v6385, 1.442695
      %v6449 = vpow.pop %v6448
      %v6450 = vsel %vm1337, %v6387, 0.0
      %6451 = vadd.xlane.f32.xlu0 %v6450
      %v6452 = vpop.xlane.xlu0 %6451
      %v6453 = vsel %vm1337, %v6389, 0.0
      %6454 = vadd.xlane.f32.xlu0 %v6453
      %v6455 = vpop.xlane.xlu0 %6454
      %v6456 = vsel %vm1337, %v6391, 0.0
      %6457 = vadd.xlane.f32.xlu0 %v6456
      %v6458 = vpop.xlane.xlu0 %6457
      %v6459 = vsel %vm1337, %v6393, 0.0
      %6460 = vadd.xlane.f32.xlu0 %v6459
      %v6461 = vpop.xlane.xlu0 %6460
      %v6462 = vsel %vm1337, %v6395, 0.0
      %6463 = vadd.xlane.f32.xlu0 %v6462
      %v6464 = vpop.xlane.xlu0 %6463
      %v6465 = vsel %vm1337, %v6397, 0.0
      %6466 = vadd.xlane.f32.xlu0 %v6465
      %v6467 = vpop.xlane.xlu0 %6466
      %v6468 = vsel %vm1337, %v6399, 0.0
      %6469 = vadd.xlane.f32.xlu0 %v6468
      %v6470 = vpop.xlane.xlu0 %6469
      %v6471 = vsel %vm1337, %v6401, 0.0
      %6472 = vadd.xlane.f32.xlu0 %v6471
      %v6473 = vpop.xlane.xlu0 %6472
      %v6474 = vsel %vm1337, %v6403, 0.0
      %6475 = vadd.xlane.f32.xlu0 %v6474
      %v6476 = vpop.xlane.xlu0 %6475
      %v6477 = vsel %vm1337, %v6405, 0.0
      %6478 = vadd.xlane.f32.xlu0 %v6477
      %v6479 = vpop.xlane.xlu0 %6478
      %v6480 = vsel %vm1337, %v6407, 0.0
      %6481 = vadd.xlane.f32.xlu0 %v6480
      %v6482 = vpop.xlane.xlu0 %6481
      %v6483 = vsel %vm1337, %v6409, 0.0
      %6484 = vadd.xlane.f32.xlu0 %v6483
      %v6485 = vpop.xlane.xlu0 %6484
      %v6486 = vsel %vm1337, %v6411, 0.0
      %6487 = vadd.xlane.f32.xlu0 %v6486
      %v6488 = vpop.xlane.xlu0 %6487
      %v6489 = vsel %vm1337, %v6413, 0.0
      %6490 = vadd.xlane.f32.xlu0 %v6489
      %v6491 = vpop.xlane.xlu0 %6490
      %v6492 = vsel %vm1337, %v6415, 0.0
      %6493 = vadd.xlane.f32.xlu0 %v6492
      %v6494 = vpop.xlane.xlu0 %6493
      %v6495 = vsel %vm1337, %v6417, 0.0
      %6496 = vadd.xlane.f32.xlu0 %v6495
      %v6497 = vpop.xlane.xlu0 %6496
      %v6498 = vsel %vm1337, %v6419, 0.0
      %6499 = vadd.xlane.f32.xlu0 %v6498
      %v6500 = vpop.xlane.xlu0 %6499
      %v6501 = vsel %vm1337, %v6421, 0.0
      %6502 = vadd.xlane.f32.xlu0 %v6501
      %v6503 = vpop.xlane.xlu0 %6502
      %v6504 = vsel %vm1337, %v6423, 0.0
      %6505 = vadd.xlane.f32.xlu0 %v6504
      %v6506 = vpop.xlane.xlu0 %6505
      %v6507 = vsel %vm1337, %v6425, 0.0
      %6508 = vadd.xlane.f32.xlu0 %v6507
      %v6509 = vpop.xlane.xlu0 %6508
      %v6510 = vsel %vm1337, %v6427, 0.0
      %6511 = vadd.xlane.f32.xlu0 %v6510
      %v6512 = vpop.xlane.xlu0 %6511
      %v6513 = vsel %vm1337, %v6429, 0.0
      %6514 = vadd.xlane.f32.xlu0 %v6513
      %v6515 = vpop.xlane.xlu0 %6514
      %v6516 = vsel %vm1337, %v6431, 0.0
      %6517 = vadd.xlane.f32.xlu0 %v6516
      %v6518 = vpop.xlane.xlu0 %6517
      %v6519 = vsel %vm1337, %v6433, 0.0
      %6520 = vadd.xlane.f32.xlu0 %v6519
      %v6521 = vpop.xlane.xlu0 %6520
      %v6522 = vsel %vm1337, %v6435, 0.0
      %6523 = vadd.xlane.f32.xlu0 %v6522
      %v6524 = vpop.xlane.xlu0 %6523
      %v6525 = vsel %vm1337, %v6437, 0.0
      %6526 = vadd.xlane.f32.xlu0 %v6525
      %v6527 = vpop.xlane.xlu0 %6526
      %v6528 = vsel %vm1337, %v6439, 0.0
      %6529 = vadd.xlane.f32.xlu0 %v6528
      %v6530 = vpop.xlane.xlu0 %6529
      %v6531 = vsel %vm1337, %v6441, 0.0
      %6532 = vadd.xlane.f32.xlu0 %v6531
      %v6533 = vpop.xlane.xlu0 %6532
      %v6534 = vsel %vm1337, %v6443, 0.0
      %6535 = vadd.xlane.f32.xlu0 %v6534
      %v6536 = vpop.xlane.xlu0 %6535
      %v6537 = vsel %vm1337, %v6445, 0.0
      %6538 = vadd.xlane.f32.xlu0 %v6537
      %v6539 = vpop.xlane.xlu0 %6538
      %v6540 = vsel %vm1337, %v6447, 0.0
      %6541 = vadd.xlane.f32.xlu0 %v6540
      %v6542 = vpop.xlane.xlu0 %6541
      %v6543 = vsel %vm1337, %v6449, 0.0
      %6544 = vadd.xlane.f32.xlu0 %v6543
      %v6545 = vpop.xlane.xlu0 %6544
      %6546 = vrot.lane.b32.xlu0 %v462, 40
      %v6547 = vpop.permute.xlu0 %6546
      %6548 = vrot.lane.b32.xlu0 %v467, 40
      %v6549 = vpop.permute.xlu0 %6548
      %6550 = vrot.lane.b32.xlu0 %v472, 40
      %v6551 = vpop.permute.xlu0 %6550
      %6552 = vrot.lane.b32.xlu0 %v477, 40
      %v6553 = vpop.permute.xlu0 %6552
      %6554 = vrot.lane.b32.xlu0 %v482, 40
      %v6555 = vpop.permute.xlu0 %6554
      %6556 = vrot.lane.b32.xlu0 %v487, 40
      %v6557 = vpop.permute.xlu0 %6556
      %6558 = vrot.lane.b32.xlu0 %v492, 40
      %v6559 = vpop.permute.xlu0 %6558
      %6560 = vrot.lane.b32.xlu0 %v497, 40
      %v6561 = vpop.permute.xlu0 %6560
      %v6571 = vsel %vm1337, %v6387, 0
      %v6574 = vsel %vm1337, %v6389, 0
      %v6577 = vsel %vm1337, %v6391, 0
      %v6580 = vsel %vm1337, %v6393, 0
      %v6583 = vsel %vm1337, %v6395, 0
      %v6586 = vsel %vm1337, %v6397, 0
      %v6589 = vsel %vm1337, %v6399, 0
      %v6592 = vsel %vm1337, %v6401, 0
      %6594 = vmatprep.subr.mxu0 0.0
      %6595 = vmatpush1.msra.mxu0 %v6547
      %6596 = vmatprep.subr.mxu0 0.0
      %6597 = vmatpush1.msra.mxu0 %v6549
      %6598 = vmatprep.subr.mxu0 0.0
      %6599 = vmatpush1.msra.mxu0 %v6551
      %6600 = vmatprep.subr.mxu0 0.0
      %6601 = vmatpush1.msra.mxu0 %v6553
      %6602 = vmatprep.subr.mxu0 0.0
      %6603 = vmatpush1.msra.mxu0 %v6555
      %6604 = vmatprep.subr.mxu0 0.0
      %6605 = vmatpush1.msra.mxu0 %v6557
      %6606 = vmatprep.subr.mxu0 0.0
      %6607 = vmatpush1.msra.mxu0 %v6559
      %6608 = vmatprep.subr.mxu0 0.0
      %6609 = vmatpush1.msra.mxu0 %v6561
      %6610 = vmatprep.subr.mxu0 0.0
      %6611 = vmatpush1.msra.mxu0 0.0
      %6612 = vmatprep.subr.mxu0 0.0
      %6613 = vmatpush1.msra.mxu0 0.0
      %6614 = vmatprep.subr.mxu0 0.0
      %6615 = vmatpush1.msra.mxu0 0.0
      %6616 = vmatprep.subr.mxu0 0.0
      %6617 = vmatpush1.msra.mxu0 0.0
      %6618 = vmatprep.subr.mxu0 0.0
      %6619 = vmatpush1.msra.mxu0 0.0
      %6620 = vmatprep.subr.mxu0 0.0
      %6621 = vmatpush1.msra.mxu0 0.0
      %6622 = vmatprep.subr.mxu0 0.0
      %6623 = vmatpush1.msra.mxu0 0.0
      %6624 = vmatprep.subr.mxu0 0.0
      %6625 = vmatpush1.msra.mxu0 0.0
      %6626 = vmatprep.subr.mxu0 0.0
      %6627 = vmatpush1.msra.mxu0 0.0
      %6628 = vmatprep.subr.mxu0 0.0
      %6629 = vmatpush1.msra.mxu0 0.0
      %6630 = vmatprep.subr.mxu0 0.0
      %6631 = vmatpush1.msra.mxu0 0.0
      %6632 = vmatprep.subr.mxu0 0.0
      %6633 = vmatpush1.msra.mxu0 0.0
      %6634 = vmatprep.subr.mxu0 0.0
      %6635 = vmatpush1.msra.mxu0 0.0
      %6636 = vmatprep.subr.mxu0 0.0
      %6637 = vmatpush1.msra.mxu0 0.0
      %6638 = vmatprep.subr.mxu0 0.0
      %6639 = vmatpush1.msra.mxu0 0.0
      %6640 = vmatprep.subr.mxu0 0.0
      %6641 = vmatpush1.msra.mxu0 0.0
      %6642 = vmatprep.subr.mxu0 0.0
      %6643 = vmatpush1.msra.mxu0 0.0
      %6644 = vmatprep.subr.mxu0 0.0
      %6645 = vmatpush1.msra.mxu0 0.0
      %6646 = vmatprep.subr.mxu0 0.0
      %6647 = vmatpush1.msra.mxu0 0.0
      %6648 = vmatprep.subr.mxu0 0.0
      %6649 = vmatpush1.msra.mxu0 0.0
      %6650 = vmatprep.subr.mxu0 0.0
      %6651 = vmatpush1.msra.mxu0 0.0
      %6652 = vmatprep.subr.mxu0 0.0
      %6653 = vmatpush1.msra.mxu0 0.0
      %6654 = vmatprep.subr.mxu0 0.0
      %6655 = vmatpush1.msra.mxu0 0.0
      %6656 = vmatprep.subr.mxu0 0.0
      %6657 = vmatpush1.msra.mxu0 0.0
      %6658 = vmatprep.mubr.f32.mxu0 0.0
      %6659 = vmatmul.mubr.f32.gmra.mrb[0].mxu0 %v6571
      %v6660 = vpop.f32.mrb[0].mxu0
      %v6661 = vadd.f32 0.0, %v6660
      %v6662 = vpop.f32.mrb[0].mxu0
      %6663 = vmatprep.mubr.f32.mxu0 0.0
      %6664 = vmatmul.mubr.f32.gmra.mrb[0].mxu0 %v6574
      %v6665 = vpop.f32.mrb[0].mxu0
      %v6666 = vadd.f32 0.0, %v6665
      %v6667 = vpop.f32.mrb[0].mxu0
      %6668 = vmatprep.mubr.f32.mxu0 0.0
      %6669 = vmatmul.mubr.f32.gmra.mrb[0].mxu0 %v6577
      %v6670 = vpop.f32.mrb[0].mxu0
      %v6671 = vadd.f32 0.0, %v6670
      %v6672 = vpop.f32.mrb[0].mxu0
      %6673 = vmatprep.mubr.f32.mxu0 0.0
      %6674 = vmatmul.mubr.f32.gmra.mrb[0].mxu0 %v6580
      %v6675 = vpop.f32.mrb[0].mxu0
      %v6676 = vadd.f32 0.0, %v6675
      %v6677 = vpop.f32.mrb[0].mxu0
      %6678 = vmatprep.mubr.f32.mxu0 0.0
      %6679 = vmatmul.mubr.f32.gmra.mrb[0].mxu0 %v6583
      %v6680 = vpop.f32.mrb[0].mxu0
      %v6681 = vadd.f32 0.0, %v6680
      %v6682 = vpop.f32.mrb[0].mxu0
      %6683 = vmatprep.mubr.f32.mxu0 0.0
      %6684 = vmatmul.mubr.f32.gmra.mrb[0].mxu0 %v6586
      %v6685 = vpop.f32.mrb[0].mxu0
      %v6686 = vadd.f32 0.0, %v6685
      %v6687 = vpop.f32.mrb[0].mxu0
      %6688 = vmatprep.mubr.f32.mxu0 0.0
      %6689 = vmatmul.mubr.f32.gmra.mrb[0].mxu0 %v6589
      %v6690 = vpop.f32.mrb[0].mxu0
      %v6691 = vadd.f32 0.0, %v6690
      %v6692 = vpop.f32.mrb[0].mxu0
      %6693 = vmatprep.mubr.f32.mxu0 0.0
      %6694 = vmatmul.mubr.f32.gmra.mrb[0].mxu0 %v6592
      %v6695 = vpop.f32.mrb[0].mxu0
      %v6696 = vadd.f32 0.0, %v6695
      %v6697 = vpop.f32.mrb[0].mxu0
      %6698 = vdwg.mxu0
      %6699 = vrot.lane.b32.xlu0 %v502, 40
      %v6700 = vpop.permute.xlu0 %6699
      %6701 = vrot.lane.b32.xlu0 %v507, 40
      %v6702 = vpop.permute.xlu0 %6701
      %6703 = vrot.lane.b32.xlu0 %v512, 40
      %v6704 = vpop.permute.xlu0 %6703
      %6705 = vrot.lane.b32.xlu0 %v517, 40
      %v6706 = vpop.permute.xlu0 %6705
      %6707 = vrot.lane.b32.xlu0 %v522, 40
      %v6708 = vpop.permute.xlu0 %6707
      %6709 = vrot.lane.b32.xlu0 %v527, 40
      %v6710 = vpop.permute.xlu0 %6709
      %6711 = vrot.lane.b32.xlu0 %v532, 40
      %v6712 = vpop.permute.xlu0 %6711
      %6713 = vrot.lane.b32.xlu0 %v537, 40
      %v6714 = vpop.permute.xlu0 %6713
      %v6724 = vsel %vm1337, %v6403, 0
      %v6727 = vsel %vm1337, %v6405, 0
      %v6730 = vsel %vm1337, %v6407, 0
      %v6733 = vsel %vm1337, %v6409, 0
      %v6736 = vsel %vm1337, %v6411, 0
      %v6739 = vsel %vm1337, %v6413, 0
      %v6742 = vsel %vm1337, %v6415, 0
      %v6745 = vsel %vm1337, %v6417, 0
      %6747 = vmatprep.subr.mxu0 0.0
      %6748 = vmatpush1.msra.mxu0 %v6700
      %6749 = vmatprep.subr.mxu0 0.0
      %6750 = vmatpush1.msra.mxu0 %v6702
      %6751 = vmatprep.subr.mxu0 0.0
      %6752 = vmatpush1.msra.mxu0 %v6704
      %6753 = vmatprep.subr.mxu0 0.0
      %6754 = vmatpush1.msra.mxu0 %v6706
      %6755 = vmatprep.subr.mxu0 0.0
      %6756 = vmatpush1.msra.mxu0 %v6708
      %6757 = vmatprep.subr.mxu0 0.0
      %6758 = vmatpush1.msra.mxu0 %v6710
      %6759 = vmatprep.subr.mxu0 0.0
      %6760 = vmatpush1.msra.mxu0 %v6712
      %6761 = vmatprep.subr.mxu0 0.0
      %6762 = vmatpush1.msra.mxu0 %v6714
      %6763 = vmatprep.subr.mxu0 0.0
      %6764 = vmatpush1.msra.mxu0 0.0
      %6765 = vmatprep.subr.mxu0 0.0
      %6766 = vmatpush1.msra.mxu0 0.0
      %6767 = vmatprep.subr.mxu0 0.0
      %6768 = vmatpush1.msra.mxu0 0.0
      %6769 = vmatprep.subr.mxu0 0.0
      %6770 = vmatpush1.msra.mxu0 0.0
      %6771 = vmatprep.subr.mxu0 0.0
      %6772 = vmatpush1.msra.mxu0 0.0
      %6773 = vmatprep.subr.mxu0 0.0
      %6774 = vmatpush1.msra.mxu0 0.0
      %6775 = vmatprep.subr.mxu0 0.0
      %6776 = vmatpush1.msra.mxu0 0.0
      %6777 = vmatprep.subr.mxu0 0.0
      %6778 = vmatpush1.msra.mxu0 0.0
      %6779 = vmatprep.subr.mxu0 0.0
      %6780 = vmatpush1.msra.mxu0 0.0
      %6781 = vmatprep.subr.mxu0 0.0
      %6782 = vmatpush1.msra.mxu0 0.0
      %6783 = vmatprep.subr.mxu0 0.0
      %6784 = vmatpush1.msra.mxu0 0.0
      %6785 = vmatprep.subr.mxu0 0.0
      %6786 = vmatpush1.msra.mxu0 0.0
      %6787 = vmatprep.subr.mxu0 0.0
      %6788 = vmatpush1.msra.mxu0 0.0
      %6789 = vmatprep.subr.mxu0 0.0
      %6790 = vmatpush1.msra.mxu0 0.0
      %6791 = vmatprep.subr.mxu0 0.0
      %6792 = vmatpush1.msra.mxu0 0.0
      %6793 = vmatprep.subr.mxu0 0.0
      %6794 = vmatpush1.msra.mxu0 0.0
      %6795 = vmatprep.subr.mxu0 0.0
      %6796 = vmatpush1.msra.mxu0 0.0
      %6797 = vmatprep.subr.mxu0 0.0
      %6798 = vmatpush1.msra.mxu0 0.0
      %6799 = vmatprep.subr.mxu0 0.0
      %6800 = vmatpush1.msra.mxu0 0.0
      %6801 = vmatprep.subr.mxu0 0.0
      %6802 = vmatpush1.msra.mxu0 0.0
      %6803 = vmatprep.subr.mxu0 0.0
      %6804 = vmatpush1.msra.mxu0 0.0
      %6805 = vmatprep.subr.mxu0 0.0
      %6806 = vmatpush1.msra.mxu0 0.0
      %6807 = vmatprep.subr.mxu0 0.0
      %6808 = vmatpush1.msra.mxu0 0.0
      %6809 = vmatprep.subr.mxu0 0.0
      %6810 = vmatpush1.msra.mxu0 0.0
      %6811 = vmatprep.mubr.f32.mxu0 0.0
      %6812 = vmatmul.mubr.f32.gmra.mrb[0].mxu0 %v6724
      %v6813 = vpop.f32.mrb[0].mxu0
      %v6814 = vadd.f32 0.0, %v6813
      %v6815 = vpop.f32.mrb[0].mxu0
      %6816 = vmatprep.mubr.f32.mxu0 0.0
      %6817 = vmatmul.mubr.f32.gmra.mrb[0].mxu0 %v6727
      %v6818 = vpop.f32.mrb[0].mxu0
      %v6819 = vadd.f32 0.0, %v6818
      %v6820 = vpop.f32.mrb[0].mxu0
      %6821 = vmatprep.mubr.f32.mxu0 0.0
      %6822 = vmatmul.mubr.f32.gmra.mrb[0].mxu0 %v6730
      %v6823 = vpop.f32.mrb[0].mxu0
      %v6824 = vadd.f32 0.0, %v6823
      %v6825 = vpop.f32.mrb[0].mxu0
      %6826 = vmatprep.mubr.f32.mxu0 0.0
      %6827 = vmatmul.mubr.f32.gmra.mrb[0].mxu0 %v6733
      %v6828 = vpop.f32.mrb[0].mxu0
      %v6829 = vadd.f32 0.0, %v6828
      %v6830 = vpop.f32.mrb[0].mxu0
      %6831 = vmatprep.mubr.f32.mxu0 0.0
      %6832 = vmatmul.mubr.f32.gmra.mrb[0].mxu0 %v6736
      %v6833 = vpop.f32.mrb[0].mxu0
      %v6834 = vadd.f32 0.0, %v6833
      %v6835 = vpop.f32.mrb[0].mxu0
      %6836 = vmatprep.mubr.f32.mxu0 0.0
      %6837 = vmatmul.mubr.f32.gmra.mrb[0].mxu0 %v6739
      %v6838 = vpop.f32.mrb[0].mxu0
      %v6839 = vadd.f32 0.0, %v6838
      %v6840 = vpop.f32.mrb[0].mxu0
      %6841 = vmatprep.mubr.f32.mxu0 0.0
      %6842 = vmatmul.mubr.f32.gmra.mrb[0].mxu0 %v6742
      %v6843 = vpop.f32.mrb[0].mxu0
      %v6844 = vadd.f32 0.0, %v6843
      %v6845 = vpop.f32.mrb[0].mxu0
      %6846 = vmatprep.mubr.f32.mxu0 0.0
      %6847 = vmatmul.mubr.f32.gmra.mrb[0].mxu0 %v6745
      %v6848 = vpop.f32.mrb[0].mxu0
      %v6849 = vadd.f32 0.0, %v6848
      %v6850 = vpop.f32.mrb[0].mxu0
      %6851 = vdwg.mxu0
      %6852 = vrot.lane.b32.xlu0 %v542, 40
      %v6853 = vpop.permute.xlu0 %6852
      %6854 = vrot.lane.b32.xlu0 %v547, 40
      %v6855 = vpop.permute.xlu0 %6854
      %6856 = vrot.lane.b32.xlu0 %v552, 40
      %v6857 = vpop.permute.xlu0 %6856
      %6858 = vrot.lane.b32.xlu0 %v557, 40
      %v6859 = vpop.permute.xlu0 %6858
      %6860 = vrot.lane.b32.xlu0 %v562, 40
      %v6861 = vpop.permute.xlu0 %6860
      %6862 = vrot.lane.b32.xlu0 %v567, 40
      %v6863 = vpop.permute.xlu0 %6862
      %6864 = vrot.lane.b32.xlu0 %v572, 40
      %v6865 = vpop.permute.xlu0 %6864
      %6866 = vrot.lane.b32.xlu0 %v577, 40
      %v6867 = vpop.permute.xlu0 %6866
      %v6877 = vsel %vm1337, %v6419, 0
      %v6880 = vsel %vm1337, %v6421, 0
      %v6883 = vsel %vm1337, %v6423, 0
      %v6886 = vsel %vm1337, %v6425, 0
      %v6889 = vsel %vm1337, %v6427, 0
      %v6892 = vsel %vm1337, %v6429, 0
      %v6895 = vsel %vm1337, %v6431, 0
      %v6898 = vsel %vm1337, %v6433, 0
      %6900 = vmatprep.subr.mxu0 0.0
      %6901 = vmatpush1.msra.mxu0 %v6853
      %6902 = vmatprep.subr.mxu0 0.0
      %6903 = vmatpush1.msra.mxu0 %v6855
      %6904 = vmatprep.subr.mxu0 0.0
      %6905 = vmatpush1.msra.mxu0 %v6857
      %6906 = vmatprep.subr.mxu0 0.0
      %6907 = vmatpush1.msra.mxu0 %v6859
      %6908 = vmatprep.subr.mxu0 0.0
      %6909 = vmatpush1.msra.mxu0 %v6861
      %6910 = vmatprep.subr.mxu0 0.0
      %6911 = vmatpush1.msra.mxu0 %v6863
      %6912 = vmatprep.subr.mxu0 0.0
      %6913 = vmatpush1.msra.mxu0 %v6865
      %6914 = vmatprep.subr.mxu0 0.0
      %6915 = vmatpush1.msra.mxu0 %v6867
      %6916 = vmatprep.subr.mxu0 0.0
      %6917 = vmatpush1.msra.mxu0 0.0
      %6918 = vmatprep.subr.mxu0 0.0
      %6919 = vmatpush1.msra.mxu0 0.0
      %6920 = vmatprep.subr.mxu0 0.0
      %6921 = vmatpush1.msra.mxu0 0.0
      %6922 = vmatprep.subr.mxu0 0.0
      %6923 = vmatpush1.msra.mxu0 0.0
      %6924 = vmatprep.subr.mxu0 0.0
      %6925 = vmatpush1.msra.mxu0 0.0
      %6926 = vmatprep.subr.mxu0 0.0
      %6927 = vmatpush1.msra.mxu0 0.0
      %6928 = vmatprep.subr.mxu0 0.0
      %6929 = vmatpush1.msra.mxu0 0.0
      %6930 = vmatprep.subr.mxu0 0.0
      %6931 = vmatpush1.msra.mxu0 0.0
      %6932 = vmatprep.subr.mxu0 0.0
      %6933 = vmatpush1.msra.mxu0 0.0
      %6934 = vmatprep.subr.mxu0 0.0
      %6935 = vmatpush1.msra.mxu0 0.0
      %6936 = vmatprep.subr.mxu0 0.0
      %6937 = vmatpush1.msra.mxu0 0.0
      %6938 = vmatprep.subr.mxu0 0.0
      %6939 = vmatpush1.msra.mxu0 0.0
      %6940 = vmatprep.subr.mxu0 0.0
      %6941 = vmatpush1.msra.mxu0 0.0
      %6942 = vmatprep.subr.mxu0 0.0
      %6943 = vmatpush1.msra.mxu0 0.0
      %6944 = vmatprep.subr.mxu0 0.0
      %6945 = vmatpush1.msra.mxu0 0.0
      %6946 = vmatprep.subr.mxu0 0.0
      %6947 = vmatpush1.msra.mxu0 0.0
      %6948 = vmatprep.subr.mxu0 0.0
      %6949 = vmatpush1.msra.mxu0 0.0
      %6950 = vmatprep.subr.mxu0 0.0
      %6951 = vmatpush1.msra.mxu0 0.0
      %6952 = vmatprep.subr.mxu0 0.0
      %6953 = vmatpush1.msra.mxu0 0.0
      %6954 = vmatprep.subr.mxu0 0.0
      %6955 = vmatpush1.msra.mxu0 0.0
      %6956 = vmatprep.subr.mxu0 0.0
      %6957 = vmatpush1.msra.mxu0 0.0
      %6958 = vmatprep.subr.mxu0 0.0
      %6959 = vmatpush1.msra.mxu0 0.0
      %6960 = vmatprep.subr.mxu0 0.0
      %6961 = vmatpush1.msra.mxu0 0.0
      %6962 = vmatprep.subr.mxu0 0.0
      %6963 = vmatpush1.msra.mxu0 0.0
      %6964 = vmatprep.mubr.f32.mxu0 0.0
      %6965 = vmatmul.mubr.f32.gmra.mrb[0].mxu0 %v6877
      %v6966 = vpop.f32.mrb[0].mxu0
      %v6967 = vadd.f32 0.0, %v6966
      %v6968 = vpop.f32.mrb[0].mxu0
      %6969 = vmatprep.mubr.f32.mxu0 0.0
      %6970 = vmatmul.mubr.f32.gmra.mrb[0].mxu0 %v6880
      %v6971 = vpop.f32.mrb[0].mxu0
      %v6972 = vadd.f32 0.0, %v6971
      %v6973 = vpop.f32.mrb[0].mxu0
      %6974 = vmatprep.mubr.f32.mxu0 0.0
      %6975 = vmatmul.mubr.f32.gmra.mrb[0].mxu0 %v6883
      %v6976 = vpop.f32.mrb[0].mxu0
      %v6977 = vadd.f32 0.0, %v6976
      %v6978 = vpop.f32.mrb[0].mxu0
      %6979 = vmatprep.mubr.f32.mxu0 0.0
      %6980 = vmatmul.mubr.f32.gmra.mrb[0].mxu0 %v6886
      %v6981 = vpop.f32.mrb[0].mxu0
      %v6982 = vadd.f32 0.0, %v6981
      %v6983 = vpop.f32.mrb[0].mxu0
      %6984 = vmatprep.mubr.f32.mxu0 0.0
      %6985 = vmatmul.mubr.f32.gmra.mrb[0].mxu0 %v6889
      %v6986 = vpop.f32.mrb[0].mxu0
      %v6987 = vadd.f32 0.0, %v6986
      %v6988 = vpop.f32.mrb[0].mxu0
      %6989 = vmatprep.mubr.f32.mxu0 0.0
      %6990 = vmatmul.mubr.f32.gmra.mrb[0].mxu0 %v6892
      %v6991 = vpop.f32.mrb[0].mxu0
      %v6992 = vadd.f32 0.0, %v6991
      %v6993 = vpop.f32.mrb[0].mxu0
      %6994 = vmatprep.mubr.f32.mxu0 0.0
      %6995 = vmatmul.mubr.f32.gmra.mrb[0].mxu0 %v6895
      %v6996 = vpop.f32.mrb[0].mxu0
      %v6997 = vadd.f32 0.0, %v6996
      %v6998 = vpop.f32.mrb[0].mxu0
      %6999 = vmatprep.mubr.f32.mxu0 0.0
      %7000 = vmatmul.mubr.f32.gmra.mrb[0].mxu0 %v6898
      %v7001 = vpop.f32.mrb[0].mxu0
      %v7002 = vadd.f32 0.0, %v7001
      %v7003 = vpop.f32.mrb[0].mxu0
      %7004 = vdwg.mxu0
      %7005 = vrot.lane.b32.xlu0 %v582, 40
      %v7006 = vpop.permute.xlu0 %7005
      %7007 = vrot.lane.b32.xlu0 %v587, 40
      %v7008 = vpop.permute.xlu0 %7007
      %7009 = vrot.lane.b32.xlu0 %v592, 40
      %v7010 = vpop.permute.xlu0 %7009
      %7011 = vrot.lane.b32.xlu0 %v597, 40
      %v7012 = vpop.permute.xlu0 %7011
      %7013 = vrot.lane.b32.xlu0 %v602, 40
      %v7014 = vpop.permute.xlu0 %7013
      %7015 = vrot.lane.b32.xlu0 %v607, 40
      %v7016 = vpop.permute.xlu0 %7015
      %7017 = vrot.lane.b32.xlu0 %v612, 40
      %v7018 = vpop.permute.xlu0 %7017
      %7019 = vrot.lane.b32.xlu0 %v617, 40
      %v7020 = vpop.permute.xlu0 %7019
      %v7030 = vsel %vm1337, %v6435, 0
      %v7033 = vsel %vm1337, %v6437, 0
      %v7036 = vsel %vm1337, %v6439, 0
      %v7039 = vsel %vm1337, %v6441, 0
      %v7042 = vsel %vm1337, %v6443, 0
      %v7045 = vsel %vm1337, %v6445, 0
      %v7048 = vsel %vm1337, %v6447, 0
      %v7051 = vsel %vm1337, %v6449, 0
      %7053 = vmatprep.subr.mxu0 0.0
      %7054 = vmatpush1.msra.mxu0 %v7006
      %7055 = vmatprep.subr.mxu0 0.0
      %7056 = vmatpush1.msra.mxu0 %v7008
      %7057 = vmatprep.subr.mxu0 0.0
      %7058 = vmatpush1.msra.mxu0 %v7010
      %7059 = vmatprep.subr.mxu0 0.0
      %7060 = vmatpush1.msra.mxu0 %v7012
      %7061 = vmatprep.subr.mxu0 0.0
      %7062 = vmatpush1.msra.mxu0 %v7014
      %7063 = vmatprep.subr.mxu0 0.0
      %7064 = vmatpush1.msra.mxu0 %v7016
      %7065 = vmatprep.subr.mxu0 0.0
      %7066 = vmatpush1.msra.mxu0 %v7018
      %7067 = vmatprep.subr.mxu0 0.0
      %7068 = vmatpush1.msra.mxu0 %v7020
      %7069 = vmatprep.subr.mxu0 0.0
      %7070 = vmatpush1.msra.mxu0 0.0
      %7071 = vmatprep.subr.mxu0 0.0
      %7072 = vmatpush1.msra.mxu0 0.0
      %7073 = vmatprep.subr.mxu0 0.0
      %7074 = vmatpush1.msra.mxu0 0.0
      %7075 = vmatprep.subr.mxu0 0.0
      %7076 = vmatpush1.msra.mxu0 0.0
      %7077 = vmatprep.subr.mxu0 0.0
      %7078 = vmatpush1.msra.mxu0 0.0
      %7079 = vmatprep.subr.mxu0 0.0
      %7080 = vmatpush1.msra.mxu0 0.0
      %7081 = vmatprep.subr.mxu0 0.0
      %7082 = vmatpush1.msra.mxu0 0.0
      %7083 = vmatprep.subr.mxu0 0.0
      %7084 = vmatpush1.msra.mxu0 0.0
      %7085 = vmatprep.subr.mxu0 0.0
      %7086 = vmatpush1.msra.mxu0 0.0
      %7087 = vmatprep.subr.mxu0 0.0
      %7088 = vmatpush1.msra.mxu0 0.0
      %7089 = vmatprep.subr.mxu0 0.0
      %7090 = vmatpush1.msra.mxu0 0.0
      %7091 = vmatprep.subr.mxu0 0.0
      %7092 = vmatpush1.msra.mxu0 0.0
      %7093 = vmatprep.subr.mxu0 0.0
      %7094 = vmatpush1.msra.mxu0 0.0
      %7095 = vmatprep.subr.mxu0 0.0
      %7096 = vmatpush1.msra.mxu0 0.0
      %7097 = vmatprep.subr.mxu0 0.0
      %7098 = vmatpush1.msra.mxu0 0.0
      %7099 = vmatprep.subr.mxu0 0.0
      %7100 = vmatpush1.msra.mxu0 0.0
      %7101 = vmatprep.subr.mxu0 0.0
      %7102 = vmatpush1.msra.mxu0 0.0
      %7103 = vmatprep.subr.mxu0 0.0
      %7104 = vmatpush1.msra.mxu0 0.0
      %7105 = vmatprep.subr.mxu0 0.0
      %7106 = vmatpush1.msra.mxu0 0.0
      %7107 = vmatprep.subr.mxu0 0.0
      %7108 = vmatpush1.msra.mxu0 0.0
      %7109 = vmatprep.subr.mxu0 0.0
      %7110 = vmatpush1.msra.mxu0 0.0
      %7111 = vmatprep.subr.mxu0 0.0
      %7112 = vmatpush1.msra.mxu0 0.0
      %7113 = vmatprep.subr.mxu0 0.0
      %7114 = vmatpush1.msra.mxu0 0.0
      %7115 = vmatprep.subr.mxu0 0.0
      %7116 = vmatpush1.msra.mxu0 0.0
      %7117 = vmatprep.mubr.f32.mxu0 0.0
      %7118 = vmatmul.mubr.f32.gmra.mrb[0].mxu0 %v7030
      %v7119 = vpop.f32.mrb[0].mxu0
      %v7120 = vadd.f32 0.0, %v7119
      %v7121 = vpop.f32.mrb[0].mxu0
      %7122 = vmatprep.mubr.f32.mxu0 0.0
      %7123 = vmatmul.mubr.f32.gmra.mrb[0].mxu0 %v7033
      %v7124 = vpop.f32.mrb[0].mxu0
      %v7125 = vadd.f32 0.0, %v7124
      %v7126 = vpop.f32.mrb[0].mxu0
      %7127 = vmatprep.mubr.f32.mxu0 0.0
      %7128 = vmatmul.mubr.f32.gmra.mrb[0].mxu0 %v7036
      %v7129 = vpop.f32.mrb[0].mxu0
      %v7130 = vadd.f32 0.0, %v7129
      %v7131 = vpop.f32.mrb[0].mxu0
      %7132 = vmatprep.mubr.f32.mxu0 0.0
      %7133 = vmatmul.mubr.f32.gmra.mrb[0].mxu0 %v7039
      %v7134 = vpop.f32.mrb[0].mxu0
      %v7135 = vadd.f32 0.0, %v7134
      %v7136 = vpop.f32.mrb[0].mxu0
      %7137 = vmatprep.mubr.f32.mxu0 0.0
      %7138 = vmatmul.mubr.f32.gmra.mrb[0].mxu0 %v7042
      %v7139 = vpop.f32.mrb[0].mxu0
      %v7140 = vadd.f32 0.0, %v7139
      %v7141 = vpop.f32.mrb[0].mxu0
      %7142 = vmatprep.mubr.f32.mxu0 0.0
      %7143 = vmatmul.mubr.f32.gmra.mrb[0].mxu0 %v7045
      %v7144 = vpop.f32.mrb[0].mxu0
      %v7145 = vadd.f32 0.0, %v7144
      %v7146 = vpop.f32.mrb[0].mxu0
      %7147 = vmatprep.mubr.f32.mxu0 0.0
      %7148 = vmatmul.mubr.f32.gmra.mrb[0].mxu0 %v7048
      %v7149 = vpop.f32.mrb[0].mxu0
      %v7150 = vadd.f32 0.0, %v7149
      %v7151 = vpop.f32.mrb[0].mxu0
      %7152 = vmatprep.mubr.f32.mxu0 0.0
      %7153 = vmatmul.mubr.f32.gmra.mrb[0].mxu0 %v7051
      %v7154 = vpop.f32.mrb[0].mxu0
      %v7155 = vadd.f32 0.0, %v7154
      %v7156 = vpop.f32.mrb[0].mxu0
      %7157 = vdwg.mxu0
      %v7158 = vrcp.pop %v6452
      %v7159 = vrcp.pop %v6455
      %v7160 = vrcp.pop %v6458
      %v7161 = vrcp.pop %v6461
      %v7162 = vrcp.pop %v6464
      %v7163 = vrcp.pop %v6467
      %v7164 = vrcp.pop %v6470
      %v7165 = vrcp.pop %v6473
      %v7166 = vrcp.pop %v6476
      %v7167 = vrcp.pop %v6479
      %v7168 = vrcp.pop %v6482
      %v7169 = vrcp.pop %v6485
      %v7170 = vrcp.pop %v6488
      %v7171 = vrcp.pop %v6491
      %v7172 = vrcp.pop %v6494
      %v7173 = vrcp.pop %v6497
      %v7174 = vrcp.pop %v6500
      %v7175 = vrcp.pop %v6503
      %v7176 = vrcp.pop %v6506
      %v7177 = vrcp.pop %v6509
      %v7178 = vrcp.pop %v6512
      %v7179 = vrcp.pop %v6515
      %v7180 = vrcp.pop %v6518
      %v7181 = vrcp.pop %v6521
      %v7182 = vrcp.pop %v6524
      %v7183 = vrcp.pop %v6527
      %v7184 = vrcp.pop %v6530
      %v7185 = vrcp.pop %v6533
      %v7186 = vrcp.pop %v6536
      %v7187 = vrcp.pop %v6539
      %v7188 = vrcp.pop %v6542
      %v7189 = vrcp.pop %v6545
      %v7190 = vmul.f32 %v6661, %v7158
      %v7191 = vmul.f32 %v6666, %v7159
      %v7192 = vmul.f32 %v6671, %v7160
      %v7193 = vmul.f32 %v6676, %v7161
      %v7194 = vmul.f32 %v6681, %v7162
      %v7195 = vmul.f32 %v6686, %v7163
      %v7196 = vmul.f32 %v6691, %v7164
      %v7197 = vmul.f32 %v6696, %v7165
      %v7198 = vmul.f32 %v6814, %v7166
      %v7199 = vmul.f32 %v6819, %v7167
      %v7200 = vmul.f32 %v6824, %v7168
      %v7201 = vmul.f32 %v6829, %v7169
      %v7202 = vmul.f32 %v6834, %v7170
      %v7203 = vmul.f32 %v6839, %v7171
      %v7204 = vmul.f32 %v6844, %v7172
      %v7205 = vmul.f32 %v6849, %v7173
      %v7206 = vmul.f32 %v6967, %v7174
      %v7207 = vmul.f32 %v6972, %v7175
      %v7208 = vmul.f32 %v6977, %v7176
      %v7209 = vmul.f32 %v6982, %v7177
      %v7210 = vmul.f32 %v6987, %v7178
      %v7211 = vmul.f32 %v6992, %v7179
      %v7212 = vmul.f32 %v6997, %v7180
      %v7213 = vmul.f32 %v7002, %v7181
      %v7214 = vmul.f32 %v7120, %v7182
      %v7215 = vmul.f32 %v7125, %v7183
      %v7216 = vmul.f32 %v7130, %v7184
      %v7217 = vmul.f32 %v7135, %v7185
      %v7218 = vmul.f32 %v7140, %v7186
      %v7219 = vmul.f32 %v7145, %v7187
      %v7220 = vmul.f32 %v7150, %v7188
      %v7221 = vmul.f32 %v7155, %v7189
      %7254 = vrot.lane.b32.xlu0 %v3910, 8
      %v7255 = vpop.permute.xlu0 %7254
      %7256 = vrot.lane.b32.xlu0 %v3911, 8
      %v7257 = vpop.permute.xlu0 %7256
      %7258 = vrot.lane.b32.xlu0 %v3912, 8
      %v7259 = vpop.permute.xlu0 %7258
      %7260 = vrot.lane.b32.xlu0 %v3913, 8
      %v7261 = vpop.permute.xlu0 %7260
      %7262 = vrot.lane.b32.xlu0 %v3914, 8
      %v7263 = vpop.permute.xlu0 %7262
      %7264 = vrot.lane.b32.xlu0 %v3915, 8
      %v7265 = vpop.permute.xlu0 %7264
      %7266 = vrot.lane.b32.xlu0 %v3916, 8
      %v7267 = vpop.permute.xlu0 %7266
      %7268 = vrot.lane.b32.xlu0 %v3917, 8
      %v7269 = vpop.permute.xlu0 %7268
      %7270 = vrot.lane.b32.xlu0 %v3918, 8
      %v7271 = vpop.permute.xlu0 %7270
      %7272 = vrot.lane.b32.xlu0 %v3919, 8
      %v7273 = vpop.permute.xlu0 %7272
      %7274 = vrot.lane.b32.xlu0 %v3920, 8
      %v7275 = vpop.permute.xlu0 %7274
      %7276 = vrot.lane.b32.xlu0 %v3921, 8
      %v7277 = vpop.permute.xlu0 %7276
      %7278 = vrot.lane.b32.xlu0 %v3922, 8
      %v7279 = vpop.permute.xlu0 %7278
      %7280 = vrot.lane.b32.xlu0 %v3923, 8
      %v7281 = vpop.permute.xlu0 %7280
      %7282 = vrot.lane.b32.xlu0 %v3924, 8
      %v7283 = vpop.permute.xlu0 %7282
      %7284 = vrot.lane.b32.xlu0 %v3925, 8
      %v7285 = vpop.permute.xlu0 %7284
      %7286 = vrot.lane.b32.xlu0 %v3926, 8
      %v7287 = vpop.permute.xlu0 %7286
      %7288 = vrot.lane.b32.xlu0 %v3927, 8
      %v7289 = vpop.permute.xlu0 %7288
      %7290 = vrot.lane.b32.xlu0 %v3928, 8
      %v7291 = vpop.permute.xlu0 %7290
      %7292 = vrot.lane.b32.xlu0 %v3929, 8
      %v7293 = vpop.permute.xlu0 %7292
      %7294 = vrot.lane.b32.xlu0 %v3930, 8
      %v7295 = vpop.permute.xlu0 %7294
      %7296 = vrot.lane.b32.xlu0 %v3931, 8
      %v7297 = vpop.permute.xlu0 %7296
      %7298 = vrot.lane.b32.xlu0 %v3932, 8
      %v7299 = vpop.permute.xlu0 %7298
      %7300 = vrot.lane.b32.xlu0 %v3933, 8
      %v7301 = vpop.permute.xlu0 %7300
      %7302 = vrot.lane.b32.xlu0 %v3934, 8
      %v7303 = vpop.permute.xlu0 %7302
      %7304 = vrot.lane.b32.xlu0 %v3935, 8
      %v7305 = vpop.permute.xlu0 %7304
      %7306 = vrot.lane.b32.xlu0 %v3936, 8
      %v7307 = vpop.permute.xlu0 %7306
      %7308 = vrot.lane.b32.xlu0 %v3937, 8
      %v7309 = vpop.permute.xlu0 %7308
      %7310 = vrot.lane.b32.xlu0 %v3938, 8
      %v7311 = vpop.permute.xlu0 %7310
      %7312 = vrot.lane.b32.xlu0 %v3939, 8
      %v7313 = vpop.permute.xlu0 %7312
      %7314 = vrot.lane.b32.xlu0 %v3940, 8
      %v7315 = vpop.permute.xlu0 %7314
      %7316 = vrot.lane.b32.xlu0 %v3941, 8
      %v7317 = vpop.permute.xlu0 %7316
      %7382 = vrot.lane.b32.xlu0 %v5550, 16
      %v7383 = vpop.permute.xlu0 %7382
      %7384 = vrot.lane.b32.xlu0 %v5551, 16
      %v7385 = vpop.permute.xlu0 %7384
      %7386 = vrot.lane.b32.xlu0 %v5552, 16
      %v7387 = vpop.permute.xlu0 %7386
      %7388 = vrot.lane.b32.xlu0 %v5553, 16
      %v7389 = vpop.permute.xlu0 %7388
      %7390 = vrot.lane.b32.xlu0 %v5554, 16
      %v7391 = vpop.permute.xlu0 %7390
      %7392 = vrot.lane.b32.xlu0 %v5555, 16
      %v7393 = vpop.permute.xlu0 %7392
      %7394 = vrot.lane.b32.xlu0 %v5556, 16
      %v7395 = vpop.permute.xlu0 %7394
      %7396 = vrot.lane.b32.xlu0 %v5557, 16
      %v7397 = vpop.permute.xlu0 %7396
      %7398 = vrot.lane.b32.xlu0 %v5558, 16
      %v7399 = vpop.permute.xlu0 %7398
      %7400 = vrot.lane.b32.xlu0 %v5559, 16
      %v7401 = vpop.permute.xlu0 %7400
      %7402 = vrot.lane.b32.xlu0 %v5560, 16
      %v7403 = vpop.permute.xlu0 %7402
      %7404 = vrot.lane.b32.xlu0 %v5561, 16
      %v7405 = vpop.permute.xlu0 %7404
      %7406 = vrot.lane.b32.xlu0 %v5562, 16
      %v7407 = vpop.permute.xlu0 %7406
      %7408 = vrot.lane.b32.xlu0 %v5563, 16
      %v7409 = vpop.permute.xlu0 %7408
      %7410 = vrot.lane.b32.xlu0 %v5564, 16
      %v7411 = vpop.permute.xlu0 %7410
      %7412 = vrot.lane.b32.xlu0 %v5565, 16
      %v7413 = vpop.permute.xlu0 %7412
      %7414 = vrot.lane.b32.xlu0 %v5566, 16
      %v7415 = vpop.permute.xlu0 %7414
      %7416 = vrot.lane.b32.xlu0 %v5567, 16
      %v7417 = vpop.permute.xlu0 %7416
      %7418 = vrot.lane.b32.xlu0 %v5568, 16
      %v7419 = vpop.permute.xlu0 %7418
      %7420 = vrot.lane.b32.xlu0 %v5569, 16
      %v7421 = vpop.permute.xlu0 %7420
      %7422 = vrot.lane.b32.xlu0 %v5570, 16
      %v7423 = vpop.permute.xlu0 %7422
      %7424 = vrot.lane.b32.xlu0 %v5571, 16
      %v7425 = vpop.permute.xlu0 %7424
      %7426 = vrot.lane.b32.xlu0 %v5572, 16
      %v7427 = vpop.permute.xlu0 %7426
      %7428 = vrot.lane.b32.xlu0 %v5573, 16
      %v7429 = vpop.permute.xlu0 %7428
      %7430 = vrot.lane.b32.xlu0 %v5574, 16
      %v7431 = vpop.permute.xlu0 %7430
      %7432 = vrot.lane.b32.xlu0 %v5575, 16
      %v7433 = vpop.permute.xlu0 %7432
      %7434 = vrot.lane.b32.xlu0 %v5576, 16
      %v7435 = vpop.permute.xlu0 %7434
      %7436 = vrot.lane.b32.xlu0 %v5577, 16
      %v7437 = vpop.permute.xlu0 %7436
      %7438 = vrot.lane.b32.xlu0 %v5578, 16
      %v7439 = vpop.permute.xlu0 %7438
      %7440 = vrot.lane.b32.xlu0 %v5579, 16
      %v7441 = vpop.permute.xlu0 %7440
      %7442 = vrot.lane.b32.xlu0 %v5580, 16
      %v7443 = vpop.permute.xlu0 %7442
      %7444 = vrot.lane.b32.xlu0 %v5581, 16
      %v7445 = vpop.permute.xlu0 %7444
      %7510 = vrot.lane.b32.xlu0 %v7190, 24
      %v7511 = vpop.permute.xlu0 %7510
      %7512 = vrot.lane.b32.xlu0 %v7191, 24
      %v7513 = vpop.permute.xlu0 %7512
      %7514 = vrot.lane.b32.xlu0 %v7192, 24
      %v7515 = vpop.permute.xlu0 %7514
      %7516 = vrot.lane.b32.xlu0 %v7193, 24
      %v7517 = vpop.permute.xlu0 %7516
      %7518 = vrot.lane.b32.xlu0 %v7194, 24
      %v7519 = vpop.permute.xlu0 %7518
      %7520 = vrot.lane.b32.xlu0 %v7195, 24
      %v7521 = vpop.permute.xlu0 %7520
      %7522 = vrot.lane.b32.xlu0 %v7196, 24
      %v7523 = vpop.permute.xlu0 %7522
      %7524 = vrot.lane.b32.xlu0 %v7197, 24
      %v7525 = vpop.permute.xlu0 %7524
      %7526 = vrot.lane.b32.xlu0 %v7198, 24
      %v7527 = vpop.permute.xlu0 %7526
      %7528 = vrot.lane.b32.xlu0 %v7199, 24
      %v7529 = vpop.permute.xlu0 %7528
      %7530 = vrot.lane.b32.xlu0 %v7200, 24
      %v7531 = vpop.permute.xlu0 %7530
      %7532 = vrot.lane.b32.xlu0 %v7201, 24
      %v7533 = vpop.permute.xlu0 %7532
      %7534 = vrot.lane.b32.xlu0 %v7202, 24
      %v7535 = vpop.permute.xlu0 %7534
      %7536 = vrot.lane.b32.xlu0 %v7203, 24
      %v7537 = vpop.permute.xlu0 %7536
      %7538 = vrot.lane.b32.xlu0 %v7204, 24
      %v7539 = vpop.permute.xlu0 %7538
      %7540 = vrot.lane.b32.xlu0 %v7205, 24
      %v7541 = vpop.permute.xlu0 %7540
      %7542 = vrot.lane.b32.xlu0 %v7206, 24
      %v7543 = vpop.permute.xlu0 %7542
      %7544 = vrot.lane.b32.xlu0 %v7207, 24
      %v7545 = vpop.permute.xlu0 %7544
      %7546 = vrot.lane.b32.xlu0 %v7208, 24
      %v7547 = vpop.permute.xlu0 %7546
      %7548 = vrot.lane.b32.xlu0 %v7209, 24
      %v7549 = vpop.permute.xlu0 %7548
      %7550 = vrot.lane.b32.xlu0 %v7210, 24
      %v7551 = vpop.permute.xlu0 %7550
      %7552 = vrot.lane.b32.xlu0 %v7211, 24
      %v7553 = vpop.permute.xlu0 %7552
      %7554 = vrot.lane.b32.xlu0 %v7212, 24
      %v7555 = vpop.permute.xlu0 %7554
      %7556 = vrot.lane.b32.xlu0 %v7213, 24
      %v7557 = vpop.permute.xlu0 %7556
      %7558 = vrot.lane.b32.xlu0 %v7214, 24
      %v7559 = vpop.permute.xlu0 %7558
      %7560 = vrot.lane.b32.xlu0 %v7215, 24
      %v7561 = vpop.permute.xlu0 %7560
      %7562 = vrot.lane.b32.xlu0 %v7216, 24
      %v7563 = vpop.permute.xlu0 %7562
      %7564 = vrot.lane.b32.xlu0 %v7217, 24
      %v7565 = vpop.permute.xlu0 %7564
      %7566 = vrot.lane.b32.xlu0 %v7218, 24
      %v7567 = vpop.permute.xlu0 %7566
      %7568 = vrot.lane.b32.xlu0 %v7219, 24
      %v7569 = vpop.permute.xlu0 %7568
      %7570 = vrot.lane.b32.xlu0 %v7220, 24
      %v7571 = vpop.permute.xlu0 %7570
      %7572 = vrot.lane.b32.xlu0 %v7221, 24
      %v7573 = vpop.permute.xlu0 %7572
      %v7606 = vsel %vm684, %v2270, %v7255
      %v7607 = vsel %vm684, %v2271, %v7257
      %v7608 = vsel %vm684, %v2272, %v7259
      %v7609 = vsel %vm684, %v2273, %v7261
      %v7610 = vsel %vm684, %v2274, %v7263
      %v7611 = vsel %vm684, %v2275, %v7265
      %v7612 = vsel %vm684, %v2276, %v7267
      %v7613 = vsel %vm684, %v2277, %v7269
      %v7614 = vsel %vm684, %v2278, %v7271
      %v7615 = vsel %vm684, %v2279, %v7273
      %v7616 = vsel %vm684, %v2280, %v7275
      %v7617 = vsel %vm684, %v2281, %v7277
      %v7618 = vsel %vm684, %v2282, %v7279
      %v7619 = vsel %vm684, %v2283, %v7281
      %v7620 = vsel %vm684, %v2284, %v7283
      %v7621 = vsel %vm684, %v2285, %v7285
      %v7622 = vsel %vm684, %v2286, %v7287
      %v7623 = vsel %vm684, %v2287, %v7289
      %v7624 = vsel %vm684, %v2288, %v7291
      %v7625 = vsel %vm684, %v2289, %v7293
      %v7626 = vsel %vm684, %v2290, %v7295
      %v7627 = vsel %vm684, %v2291, %v7297
      %v7628 = vsel %vm684, %v2292, %v7299
      %v7629 = vsel %vm684, %v2293, %v7301
      %v7630 = vsel %vm684, %v2294, %v7303
      %v7631 = vsel %vm684, %v2295, %v7305
      %v7632 = vsel %vm684, %v2296, %v7307
      %v7633 = vsel %vm684, %v2297, %v7309
      %v7634 = vsel %vm684, %v2298, %v7311
      %v7635 = vsel %vm684, %v2299, %v7313
      %v7636 = vsel %vm684, %v2300, %v7315
      %v7637 = vsel %vm684, %v2301, %v7317
      %vm7638 = vcmask 130048
      %v7639 = vsel %vm7638, %v7606, %v7383
      %v7640 = vsel %vm7638, %v7607, %v7385
      %v7641 = vsel %vm7638, %v7608, %v7387
      %v7642 = vsel %vm7638, %v7609, %v7389
      %v7643 = vsel %vm7638, %v7610, %v7391
      %v7644 = vsel %vm7638, %v7611, %v7393
      %v7645 = vsel %vm7638, %v7612, %v7395
      %v7646 = vsel %vm7638, %v7613, %v7397
      %v7647 = vsel %vm7638, %v7614, %v7399
      %v7648 = vsel %vm7638, %v7615, %v7401
      %v7649 = vsel %vm7638, %v7616, %v7403
      %v7650 = vsel %vm7638, %v7617, %v7405
      %v7651 = vsel %vm7638, %v7618, %v7407
      %v7652 = vsel %vm7638, %v7619, %v7409
      %v7653 = vsel %vm7638, %v7620, %v7411
      %v7654 = vsel %vm7638, %v7621, %v7413
      %v7655 = vsel %vm7638, %v7622, %v7415
      %v7656 = vsel %vm7638, %v7623, %v7417
      %v7657 = vsel %vm7638, %v7624, %v7419
      %v7658 = vsel %vm7638, %v7625, %v7421
      %v7659 = vsel %vm7638, %v7626, %v7423
      %v7660 = vsel %vm7638, %v7627, %v7425
      %v7661 = vsel %vm7638, %v7628, %v7427
      %v7662 = vsel %vm7638, %v7629, %v7429
      %v7663 = vsel %vm7638, %v7630, %v7431
      %v7664 = vsel %vm7638, %v7631, %v7433
      %v7665 = vsel %vm7638, %v7632, %v7435
      %v7666 = vsel %vm7638, %v7633, %v7437
      %v7667 = vsel %vm7638, %v7634, %v7439
      %v7668 = vsel %vm7638, %v7635, %v7441
      %v7669 = vsel %vm7638, %v7636, %v7443
      %v7670 = vsel %vm7638, %v7637, %v7445
      %vm7671 = vcmask 195584
      %v7672 = vsel %vm7671, %v7639, %v7511
      %v7673 = vsel %vm7671, %v7640, %v7513
      %v7674 = vsel %vm7671, %v7641, %v7515
      %v7675 = vsel %vm7671, %v7642, %v7517
      %v7676 = vsel %vm7671, %v7643, %v7519
      %v7677 = vsel %vm7671, %v7644, %v7521
      %v7678 = vsel %vm7671, %v7645, %v7523
      %v7679 = vsel %vm7671, %v7646, %v7525
      %v7680 = vsel %vm7671, %v7647, %v7527
      %v7681 = vsel %vm7671, %v7648, %v7529
      %v7682 = vsel %vm7671, %v7649, %v7531
      %v7683 = vsel %vm7671, %v7650, %v7533
      %v7684 = vsel %vm7671, %v7651, %v7535
      %v7685 = vsel %vm7671, %v7652, %v7537
      %v7686 = vsel %vm7671, %v7653, %v7539
      %v7687 = vsel %vm7671, %v7654, %v7541
      %v7688 = vsel %vm7671, %v7655, %v7543
      %v7689 = vsel %vm7671, %v7656, %v7545
      %v7690 = vsel %vm7671, %v7657, %v7547
      %v7691 = vsel %vm7671, %v7658, %v7549
      %v7692 = vsel %vm7671, %v7659, %v7551
      %v7693 = vsel %vm7671, %v7660, %v7553
      %v7694 = vsel %vm7671, %v7661, %v7555
      %v7695 = vsel %vm7671, %v7662, %v7557
      %v7696 = vsel %vm7671, %v7663, %v7559
      %v7697 = vsel %vm7671, %v7664, %v7561
      %v7698 = vsel %vm7671, %v7665, %v7563
      %v7699 = vsel %vm7671, %v7666, %v7565
      %v7700 = vsel %vm7671, %v7667, %v7567
      %v7701 = vsel %vm7671, %v7668, %v7569
      %v7702 = vsel %vm7671, %v7669, %v7571
      %v7703 = vsel %vm7671, %v7670, %v7573
      %v7704 = vld [vmem:[%s3] sm:$0xff]
      %v7705 = vld [vmem:[%s3 + $0x8] sm:$0xff]
      %v7706 = vld [vmem:[%s3 + $0x10] sm:$0xff]
      %v7707 = vld [vmem:[%s3 + $0x18] sm:$0xff]
      %v7708 = vld [vmem:[%s4] sm:$0x1]
      %v7710 = vlaneseq
      %v7711 = vshrl.u32 %v7710, 7
      %v7712 = vsub.s32 0, %v7711
      %v7713 = vrot.slane %v7708, %v7712
      %v7716 = vsel %vm298, %v7672, 0
      %v7719 = vsel %vm298, %v7673, 0
      %v7722 = vsel %vm298, %v7674, 0
      %v7725 = vsel %vm298, %v7675, 0
      %v7728 = vsel %vm298, %v7676, 0
      %v7731 = vsel %vm298, %v7677, 0
      %v7734 = vsel %vm298, %v7678, 0
      %v7737 = vsel %vm298, %v7679, 0
      %v7740 = vsel %vm298, %v7680, 0
      %v7743 = vsel %vm298, %v7681, 0
      %v7746 = vsel %vm298, %v7682, 0
      %v7749 = vsel %vm298, %v7683, 0
      %v7752 = vsel %vm298, %v7684, 0
      %v7755 = vsel %vm298, %v7685, 0
      %v7758 = vsel %vm298, %v7686, 0
      %v7761 = vsel %vm298, %v7687, 0
      %v7764 = vsel %vm298, %v7688, 0
      %v7767 = vsel %vm298, %v7689, 0
      %v7770 = vsel %vm298, %v7690, 0
      %v7773 = vsel %vm298, %v7691, 0
      %v7776 = vsel %vm298, %v7692, 0
      %v7779 = vsel %vm298, %v7693, 0
      %v7782 = vsel %vm298, %v7694, 0
      %v7785 = vsel %vm298, %v7695, 0
      %v7788 = vsel %vm298, %v7696, 0
      %v7791 = vsel %vm298, %v7697, 0
      %v7794 = vsel %vm298, %v7698, 0
      %v7797 = vsel %vm298, %v7699, 0
      %v7800 = vsel %vm298, %v7700, 0
      %v7803 = vsel %vm298, %v7701, 0
      %v7806 = vsel %vm298, %v7702, 0
      %v7809 = vsel %vm298, %v7703, 0
      %7811 = vmatprep.subr.mxu0 0.0
      %7812 = vmatpush1.msra.mxu0 %v7704
      %7813 = vmatprep.subr.mxu0 0.0
      %7814 = vmatpush1.msra.mxu0 %v7705
      %7815 = vmatprep.subr.mxu0 0.0
      %7816 = vmatpush1.msra.mxu0 %v7706
      %7817 = vmatprep.subr.mxu0 0.0
      %7818 = vmatpush1.msra.mxu0 %v7707
      %7819 = vmatprep.subr.mxu0 0.0
      %7820 = vmatpush1.msra.mxu0 0.0
      %7821 = vmatprep.subr.mxu0 0.0
      %7822 = vmatpush1.msra.mxu0 0.0
      %7823 = vmatprep.subr.mxu0 0.0
      %7824 = vmatpush1.msra.mxu0 0.0
      %7825 = vmatprep.subr.mxu0 0.0
      %7826 = vmatpush1.msra.mxu0 0.0
      %7827 = vmatprep.subr.mxu0 0.0
      %7828 = vmatpush1.msra.mxu0 0.0
      %7829 = vmatprep.subr.mxu0 0.0
      %7830 = vmatpush1.msra.mxu0 0.0
      %7831 = vmatprep.subr.mxu0 0.0
      %7832 = vmatpush1.msra.mxu0 0.0
      %7833 = vmatprep.subr.mxu0 0.0
      %7834 = vmatpush1.msra.mxu0 0.0
      %7835 = vmatprep.subr.mxu0 0.0
      %7836 = vmatpush1.msra.mxu0 0.0
      %7837 = vmatprep.subr.mxu0 0.0
      %7838 = vmatpush1.msra.mxu0 0.0
      %7839 = vmatprep.subr.mxu0 0.0
      %7840 = vmatpush1.msra.mxu0 0.0
      %7841 = vmatprep.subr.mxu0 0.0
      %7842 = vmatpush1.msra.mxu0 0.0
      %7843 = vmatprep.subr.mxu0 0.0
      %7844 = vmatpush1.msra.mxu0 0.0
      %7845 = vmatprep.subr.mxu0 0.0
      %7846 = vmatpush1.msra.mxu0 0.0
      %7847 = vmatprep.subr.mxu0 0.0
      %7848 = vmatpush1.msra.mxu0 0.0
      %7849 = vmatprep.subr.mxu0 0.0
      %7850 = vmatpush1.msra.mxu0 0.0
      %7851 = vmatprep.subr.mxu0 0.0
      %7852 = vmatpush1.msra.mxu0 0.0
      %7853 = vmatprep.subr.mxu0 0.0
      %7854 = vmatpush1.msra.mxu0 0.0
      %7855 = vmatprep.subr.mxu0 0.0
      %7856 = vmatpush1.msra.mxu0 0.0
      %7857 = vmatprep.subr.mxu0 0.0
      %7858 = vmatpush1.msra.mxu0 0.0
      %7859 = vmatprep.subr.mxu0 0.0
      %7860 = vmatpush1.msra.mxu0 0.0
      %7861 = vmatprep.subr.mxu0 0.0
      %7862 = vmatpush1.msra.mxu0 0.0
      %7863 = vmatprep.subr.mxu0 0.0
      %7864 = vmatpush1.msra.mxu0 0.0
      %7865 = vmatprep.subr.mxu0 0.0
      %7866 = vmatpush1.msra.mxu0 0.0
      %7867 = vmatprep.subr.mxu0 0.0
      %7868 = vmatpush1.msra.mxu0 0.0
      %7869 = vmatprep.subr.mxu0 0.0
      %7870 = vmatpush1.msra.mxu0 0.0
      %7871 = vmatprep.subr.mxu0 0.0
      %7872 = vmatpush1.msra.mxu0 0.0
      %7873 = vmatprep.subr.mxu0 0.0
      %7874 = vmatpush1.msra.mxu0 0.0
      %7875 = vmatprep.mubr.f32.mxu0 0.0
      %7876 = vmatmul.mubr.f32.gmra.mrb[0].mxu0 %v7716
      %v7877 = vpop.f32.mrb[0].mxu0
      %v7878 = vadd.f32 %v7713, %v7877
      %v7879 = vpop.f32.mrb[0].mxu0
      %7880 = vmatprep.mubr.f32.mxu0 0.0
      %7881 = vmatmul.mubr.f32.gmra.mrb[0].mxu0 %v7719
      %v7882 = vpop.f32.mrb[0].mxu0
      %v7883 = vadd.f32 %v7713, %v7882
      %v7884 = vpop.f32.mrb[0].mxu0
      %7885 = vmatprep.mubr.f32.mxu0 0.0
      %7886 = vmatmul.mubr.f32.gmra.mrb[0].mxu0 %v7722
      %v7887 = vpop.f32.mrb[0].mxu0
      %v7888 = vadd.f32 %v7713, %v7887
      %v7889 = vpop.f32.mrb[0].mxu0
      %7890 = vmatprep.mubr.f32.mxu0 0.0
      %7891 = vmatmul.mubr.f32.gmra.mrb[0].mxu0 %v7725
      %v7892 = vpop.f32.mrb[0].mxu0
      %v7893 = vadd.f32 %v7713, %v7892
      %v7894 = vpop.f32.mrb[0].mxu0
      %7895 = vmatprep.mubr.f32.mxu0 0.0
      %7896 = vmatmul.mubr.f32.gmra.mrb[0].mxu0 %v7728
      %v7897 = vpop.f32.mrb[0].mxu0
      %v7898 = vadd.f32 %v7713, %v7897
      %v7899 = vpop.f32.mrb[0].mxu0
      %7900 = vmatprep.mubr.f32.mxu0 0.0
      %7901 = vmatmul.mubr.f32.gmra.mrb[0].mxu0 %v7731
      %v7902 = vpop.f32.mrb[0].mxu0
      %v7903 = vadd.f32 %v7713, %v7902
      %v7904 = vpop.f32.mrb[0].mxu0
      %7905 = vmatprep.mubr.f32.mxu0 0.0
      %7906 = vmatmul.mubr.f32.gmra.mrb[0].mxu0 %v7734
      %v7907 = vpop.f32.mrb[0].mxu0
      %v7908 = vadd.f32 %v7713, %v7907
      %v7909 = vpop.f32.mrb[0].mxu0
      %7910 = vmatprep.mubr.f32.mxu0 0.0
      %7911 = vmatmul.mubr.f32.gmra.mrb[0].mxu0 %v7737
      %v7912 = vpop.f32.mrb[0].mxu0
      %v7913 = vadd.f32 %v7713, %v7912
      %v7914 = vpop.f32.mrb[0].mxu0
      %7915 = vmatprep.mubr.f32.mxu0 0.0
      %7916 = vmatmul.mubr.f32.gmra.mrb[0].mxu0 %v7740
      %v7917 = vpop.f32.mrb[0].mxu0
      %v7918 = vadd.f32 %v7713, %v7917
      %v7919 = vpop.f32.mrb[0].mxu0
      %7920 = vmatprep.mubr.f32.mxu0 0.0
      %7921 = vmatmul.mubr.f32.gmra.mrb[0].mxu0 %v7743
      %v7922 = vpop.f32.mrb[0].mxu0
      %v7923 = vadd.f32 %v7713, %v7922
      %v7924 = vpop.f32.mrb[0].mxu0
      %7925 = vmatprep.mubr.f32.mxu0 0.0
      %7926 = vmatmul.mubr.f32.gmra.mrb[0].mxu0 %v7746
      %v7927 = vpop.f32.mrb[0].mxu0
      %v7928 = vadd.f32 %v7713, %v7927
      %v7929 = vpop.f32.mrb[0].mxu0
      %7930 = vmatprep.mubr.f32.mxu0 0.0
      %7931 = vmatmul.mubr.f32.gmra.mrb[0].mxu0 %v7749
      %v7932 = vpop.f32.mrb[0].mxu0
      %v7933 = vadd.f32 %v7713, %v7932
      %v7934 = vpop.f32.mrb[0].mxu0
      %7935 = vmatprep.mubr.f32.mxu0 0.0
      %7936 = vmatmul.mubr.f32.gmra.mrb[0].mxu0 %v7752
      %v7937 = vpop.f32.mrb[0].mxu0
      %v7938 = vadd.f32 %v7713, %v7937
      %v7939 = vpop.f32.mrb[0].mxu0
      %7940 = vmatprep.mubr.f32.mxu0 0.0
      %7941 = vmatmul.mubr.f32.gmra.mrb[0].mxu0 %v7755
      %v7942 = vpop.f32.mrb[0].mxu0
      %v7943 = vadd.f32 %v7713, %v7942
      %v7944 = vpop.f32.mrb[0].mxu0
      %7945 = vmatprep.mubr.f32.mxu0 0.0
      %7946 = vmatmul.mubr.f32.gmra.mrb[0].mxu0 %v7758
      %v7947 = vpop.f32.mrb[0].mxu0
      %v7948 = vadd.f32 %v7713, %v7947
      %v7949 = vpop.f32.mrb[0].mxu0
      %7950 = vmatprep.mubr.f32.mxu0 0.0
      %7951 = vmatmul.mubr.f32.gmra.mrb[0].mxu0 %v7761
      %v7952 = vpop.f32.mrb[0].mxu0
      %v7953 = vadd.f32 %v7713, %v7952
      %v7954 = vpop.f32.mrb[0].mxu0
      %7955 = vmatprep.mubr.f32.mxu0 0.0
      %7956 = vmatmul.mubr.f32.gmra.mrb[0].mxu0 %v7764
      %v7957 = vpop.f32.mrb[0].mxu0
      %v7958 = vadd.f32 %v7713, %v7957
      %v7959 = vpop.f32.mrb[0].mxu0
      %7960 = vmatprep.mubr.f32.mxu0 0.0
      %7961 = vmatmul.mubr.f32.gmra.mrb[0].mxu0 %v7767
      %v7962 = vpop.f32.mrb[0].mxu0
      %v7963 = vadd.f32 %v7713, %v7962
      %v7964 = vpop.f32.mrb[0].mxu0
      %7965 = vmatprep.mubr.f32.mxu0 0.0
      %7966 = vmatmul.mubr.f32.gmra.mrb[0].mxu0 %v7770
      %v7967 = vpop.f32.mrb[0].mxu0
      %v7968 = vadd.f32 %v7713, %v7967
      %v7969 = vpop.f32.mrb[0].mxu0
      %7970 = vmatprep.mubr.f32.mxu0 0.0
      %7971 = vmatmul.mubr.f32.gmra.mrb[0].mxu0 %v7773
      %v7972 = vpop.f32.mrb[0].mxu0
      %v7973 = vadd.f32 %v7713, %v7972
      %v7974 = vpop.f32.mrb[0].mxu0
      %7975 = vmatprep.mubr.f32.mxu0 0.0
      %7976 = vmatmul.mubr.f32.gmra.mrb[0].mxu0 %v7776
      %v7977 = vpop.f32.mrb[0].mxu0
      %v7978 = vadd.f32 %v7713, %v7977
      %v7979 = vpop.f32.mrb[0].mxu0
      %7980 = vmatprep.mubr.f32.mxu0 0.0
      %7981 = vmatmul.mubr.f32.gmra.mrb[0].mxu0 %v7779
      %v7982 = vpop.f32.mrb[0].mxu0
      %v7983 = vadd.f32 %v7713, %v7982
      %v7984 = vpop.f32.mrb[0].mxu0
      %7985 = vmatprep.mubr.f32.mxu0 0.0
      %7986 = vmatmul.mubr.f32.gmra.mrb[0].mxu0 %v7782
      %v7987 = vpop.f32.mrb[0].mxu0
      %v7988 = vadd.f32 %v7713, %v7987
      %v7989 = vpop.f32.mrb[0].mxu0
      %7990 = vmatprep.mubr.f32.mxu0 0.0
      %7991 = vmatmul.mubr.f32.gmra.mrb[0].mxu0 %v7785
      %v7992 = vpop.f32.mrb[0].mxu0
      %v7993 = vadd.f32 %v7713, %v7992
      %v7994 = vpop.f32.mrb[0].mxu0
      %7995 = vmatprep.mubr.f32.mxu0 0.0
      %7996 = vmatmul.mubr.f32.gmra.mrb[0].mxu0 %v7788
      %v7997 = vpop.f32.mrb[0].mxu0
      %v7998 = vadd.f32 %v7713, %v7997
      %v7999 = vpop.f32.mrb[0].mxu0
      %8000 = vmatprep.mubr.f32.mxu0 0.0
      %8001 = vmatmul.mubr.f32.gmra.mrb[0].mxu0 %v7791
      %v8002 = vpop.f32.mrb[0].mxu0
      %v8003 = vadd.f32 %v7713, %v8002
      %v8004 = vpop.f32.mrb[0].mxu0
      %8005 = vmatprep.mubr.f32.mxu0 0.0
      %8006 = vmatmul.mubr.f32.gmra.mrb[0].mxu0 %v7794
      %v8007 = vpop.f32.mrb[0].mxu0
      %v8008 = vadd.f32 %v7713, %v8007
      %v8009 = vpop.f32.mrb[0].mxu0
      %8010 = vmatprep.mubr.f32.mxu0 0.0
      %8011 = vmatmul.mubr.f32.gmra.mrb[0].mxu0 %v7797
      %v8012 = vpop.f32.mrb[0].mxu0
      %v8013 = vadd.f32 %v7713, %v8012
      %v8014 = vpop.f32.mrb[0].mxu0
      %8015 = vmatprep.mubr.f32.mxu0 0.0
      %8016 = vmatmul.mubr.f32.gmra.mrb[0].mxu0 %v7800
      %v8017 = vpop.f32.mrb[0].mxu0
      %v8018 = vadd.f32 %v7713, %v8017
      %v8019 = vpop.f32.mrb[0].mxu0
      %8020 = vmatprep.mubr.f32.mxu0 0.0
      %8021 = vmatmul.mubr.f32.gmra.mrb[0].mxu0 %v7803
      %v8022 = vpop.f32.mrb[0].mxu0
      %v8023 = vadd.f32 %v7713, %v8022
      %v8024 = vpop.f32.mrb[0].mxu0
      %8025 = vmatprep.mubr.f32.mxu0 0.0
      %8026 = vmatmul.mubr.f32.gmra.mrb[0].mxu0 %v7806
      %v8027 = vpop.f32.mrb[0].mxu0
      %v8028 = vadd.f32 %v7713, %v8027
      %v8029 = vpop.f32.mrb[0].mxu0
      %8030 = vmatprep.mubr.f32.mxu0 0.0
      %8031 = vmatmul.mubr.f32.gmra.mrb[0].mxu0 %v7809
      %v8032 = vpop.f32.mrb[0].mxu0
      %v8033 = vadd.f32 %v7713, %v8032
      %v8034 = vpop.f32.mrb[0].mxu0
      %8035 = vdwg.mxu0
      %8036 = vst.msk [vmem:[%s253] sm:$0xff] %vm298, %v7878
      %8037 = vst.msk [vmem:[%s253 + $0x8] sm:$0xff] %vm298, %v7883
      %8038 = vst.msk [vmem:[%s253 + $0x10] sm:$0xff] %vm298, %v7888
      %8039 = vst.msk [vmem:[%s253 + $0x18] sm:$0xff] %vm298, %v7893
      %8040 = vst.msk [vmem:[%s253 + $0x20] sm:$0xff] %vm298, %v7898
      %8041 = vst.msk [vmem:[%s253 + $0x28] sm:$0xff] %vm298, %v7903
      %8042 = vst.msk [vmem:[%s253 + $0x30] sm:$0xff] %vm298, %v7908
      %8043 = vst.msk [vmem:[%s253 + $0x38] sm:$0xff] %vm298, %v7913
      %8044 = vst.msk [vmem:[%s253 + $0x40] sm:$0xff] %vm298, %v7918
      %8045 = vst.msk [vmem:[%s253 + $0x48] sm:$0xff] %vm298, %v7923
      %8046 = vst.msk [vmem:[%s253 + $0x50] sm:$0xff] %vm298, %v7928
      %8047 = vst.msk [vmem:[%s253 + $0x58] sm:$0xff] %vm298, %v7933
      %8048 = vst.msk [vmem:[%s253 + $0x60] sm:$0xff] %vm298, %v7938
      %8049 = vst.msk [vmem:[%s253 + $0x68] sm:$0xff] %vm298, %v7943
      %8050 = vst.msk [vmem:[%s253 + $0x70] sm:$0xff] %vm298, %v7948
      %8051 = vst.msk [vmem:[%s253 + $0x78] sm:$0xff] %vm298, %v7953
      %8052 = vst.msk [vmem:[%s253 + $0x80] sm:$0xff] %vm298, %v7958
      %8053 = vst.msk [vmem:[%s253 + $0x88] sm:$0xff] %vm298, %v7963
      %8054 = vst.msk [vmem:[%s253 + $0x90] sm:$0xff] %vm298, %v7968
      %8055 = vst.msk [vmem:[%s253 + $0x98] sm:$0xff] %vm298, %v7973
      %8056 = vst.msk [vmem:[%s253 + $0xa0] sm:$0xff] %vm298, %v7978
      %8057 = vst.msk [vmem:[%s253 + $0xa8] sm:$0xff] %vm298, %v7983
      %8058 = vst.msk [vmem:[%s253 + $0xb0] sm:$0xff] %vm298, %v7988
      %8059 = vst.msk [vmem:[%s253 + $0xb8] sm:$0xff] %vm298, %v7993
      %8060 = vst.msk [vmem:[%s253 + $0xc0] sm:$0xff] %vm298, %v7998
      %8061 = vst.msk [vmem:[%s253 + $0xc8] sm:$0xff] %vm298, %v8003
      %8062 = vst.msk [vmem:[%s253 + $0xd0] sm:$0xff] %vm298, %v8008
      %8063 = vst.msk [vmem:[%s253 + $0xd8] sm:$0xff] %vm298, %v8013
      %8064 = vst.msk [vmem:[%s253 + $0xe0] sm:$0xff] %vm298, %v8018
      %8065 = vst.msk [vmem:[%s253 + $0xe8] sm:$0xff] %vm298, %v8023
      %8066 = vst.msk [vmem:[%s253 + $0xf0] sm:$0xff] %vm298, %v8028
      %8067 = vst.msk [vmem:[%s253 + $0xf8] sm:$0xff] %vm298, %v8033
      %s8068 = smul.u32 32, %s17
      %p8069 = scmp.lt.s32.totalorder %s8068, 63
      %s8070 = scalar_select %p8069, %s8068, 63
      %s8071 = smul.addr %s8070, 8
      %s8072 = scalar_lea.vmem %s6, %s8071
      // Predicated region
      $region45: #{tpu_custom_call.1} parent=43 // pred_check
        %p8073 = pneg %p166
      $region46: #{tpu_custom_call.1} parent=43 // pred_check_branch
        %8075 = sbr.rel (%p8073) target = $region48
      $region47: #{tpu_custom_call.1} parent=43 // pred_region
        %s8076 = smul.u32 32, %s17
      $region48: #{tpu_custom_call.1} parent=43 // pred_fallthru
        _
    $region44: #{tpu_custom_call.1} parent=5 // pred_fallthru
      _
    %p8077 = scmp.le.s32.totalorder 2, %s12
    // Predicated region
    $region49: #{tpu_custom_call.1} parent=5 // pred_check
      %p8078 = pneg %p8077
    $region50: #{tpu_custom_call.1} parent=5 // pred_check_branch
      %8080 = sbr.rel (%p8078) target = $region52
    $region51: #{tpu_custom_call.1} parent=5 // pred_region
      %s8081 = ssub.s32 %s12, 2
      // Predicated region
      $region53: #{tpu_custom_call.1} parent=51 // pred_check
        %p8082 = pneg %p172
      $region54: #{tpu_custom_call.1} parent=51 // pred_check_branch
        %8084 = sbr.rel (%p8082) target = $region56
      $region55: #{tpu_custom_call.1} parent=51 // pred_region
        %s8085 = smul.u32 32, %s18
        %p8086 = scmp.lt.s32.totalorder %s8085, 63
        %s8087 = scalar_select %p8086, %s8085, 63
        %s8088 = smul.addr %s8087, 8
        %s8089 = scalar_lea.vmem %s6, %s8088
      $region56: #{tpu_custom_call.1} parent=51 // pred_fallthru
        _
    $region52: #{tpu_custom_call.1} parent=5 // pred_fallthru
      _
  $region6: #{tpu_custom_call.1} parent=0 // loop_footer
    %s16 = sadd.s32 1, %s12
  $region7: #{tpu_custom_call.1} parent=0 // loop_footer_branch
    %11 = sbr.rel target = $region3
  $region8: #{tpu_custom_call.1} parent=0 // loop_exit
    _

</llo_original>
